<compile_context>
chip_gen: v5e
topology: v5e:2x2
jax: 0.10.0
libtpu: 0.0.40
codegen_flags: <defaults>
</compile_context>

<pallas_src>
import jax
import jax.numpy as jnp
import numpy as np
from jax.experimental import pallas as pl
from jax.experimental.pallas import tpu as pltpu


# ---------------------------------------------------------------------------
# pltpu.roll direction probe (one tiny kernel, cached per shape).
# Guarantees correctness regardless of the rotate sign convention and falls
# back to slice+concat if roll cannot be lowered for this shape.
# ---------------------------------------------------------------------------
_ROLL_SIGN_CACHE = {}


def _probe_roll_sign(nrows, ncols):
    """+1 if pltpu.roll(v,s,axis=1)==jnp.roll(v,s,axis=1), -1 if reversed,
    None if pltpu.roll is unusable on this shape (use concat fallback)."""
    key = (int(nrows), int(ncols))
    if key in _ROLL_SIGN_CACHE:
        return _ROLL_SIGN_CACHE[key]
    sign = None
    try:
        def probe_kernel(x_ref, o_ref):
            o_ref[...] = pltpu.roll(x_ref[...], 3, axis=1)

        row = np.arange(ncols, dtype=np.float32)
        x = jnp.asarray(np.tile(row[None, :], (nrows, 1)))
        out = pl.pallas_call(
            probe_kernel,
            out_shape=jax.ShapeDtypeStruct((nrows, ncols), jnp.float32),
        )(x)
        out0 = np.asarray(jax.block_until_ready(out))[0]
        if np.array_equal(out0, np.roll(row, 3)):
            sign = 1
        elif np.array_equal(out0, np.roll(row, -3)):
            sign = -1
    except Exception:
        sign = None
    _ROLL_SIGN_CACHE[key] = sign
    return sign


# ---------------------------------------------------------------------------
# host-side weight preprocessing (pure NumPy; cache per weight in a real loop)
# ---------------------------------------------------------------------------
def _conv_shift_patterns(w, H, W):
    """Fold 3x3x3 'same' conv weights + h/w/channel padding masks into per-lane
    multiply patterns over the lane-dense (rows, H*W*C) activation view.

    w: (3, 3, 3, Cin, Cout) DHWIO NumPy f32 with Cin == Cout == C.

    Returns (pat, s_list) with pat of shape (3*S, HWC) such that

      out[d, l] = sum_{kd, si} dvalid(kd, d) * pat[kd*S + si, l]
                                * x[(d + kd - 1) % D, (l + s_list[si]) % HWC]

    where dvalid(kd, d) = [0 <= d + kd - 1 < D] is applied in-kernel.  Every
    circularly wrapped lane read corresponds to an out-of-range tap and is
    multiplied by a zero pattern entry.
    """
    C = w.shape[-1]
    assert w.shape == (3, 3, 3, C, C)
    HWC = H * W * C

    lid = np.arange(HWC)
    co_l = lid % C                       # output channel of each lane
    w_l = (lid // C) % W                 # output w of each lane
    h_l = lid // (W * C)                 # output h of each lane
    k = np.arange(3)

    h_in = h_l[None, :] + (k - 1)[:, None]           # (3, HWC)
    w_in = w_l[None, :] + (k - 1)[:, None]
    h_ok = (h_in >= 0) & (h_in < H)
    w_ok = (w_in >= 0) & (w_in < W)
    hw_ok = h_ok[:, None, :] & w_ok[None, :, :]      # (kh, kw, HWC)

    deltas = np.arange(-(C - 1), C)                  # channel offset ci - co
    ci = deltas[:, None] + co_l[None, :]             # (2C-1, HWC)
    c_ok = (ci >= 0) & (ci < C)
    ci_safe = np.clip(ci, 0, C - 1)
    co_idx = np.broadcast_to(co_l, ci.shape)

    wg = w[:, :, :, ci_safe, co_idx]                 # (3, 3, 3, 2C-1, HWC)
    mask = hw_ok[:, :, None, :] & c_ok[None, None, :, :]      # (3,3,2C-1,HWC)
    wg = wg * mask[None, ...].astype(np.float32)

    # flat lane offset of each (kh, kw, delta) combination; merge equal offsets
    s_combo = ((k - 1)[:, None, None] * (W * C)
               + (k - 1)[None, :, None] * C
               + deltas[None, None, :])              # (3, 3, 2C-1)
    s_flat = s_combo.reshape(-1)
    s_list = sorted({int(v) for v in s_flat})
    S = len(s_list)
    onehot = (s_flat[:, None] == np.asarray(s_list)[None, :]).astype(np.float32)
    merged = np.einsum('kml,ms->ksl', wg.reshape(3, -1, HWC), onehot)  # (3,S,HWC)
    return merged.reshape(3 * S, HWC).astype(np.float32), s_list


# ---------------------------------------------------------------------------
# kernel factory
# ---------------------------------------------------------------------------
def _make_kernel(s_list, D, roll_sign):
    s_list = tuple(int(s) for s in s_list)
    S = len(s_list)

    def lane_shift(v, off):
        """out[:, l] = v[:, (l + off) % n] (circular; wrapped lanes are zero-masked
        by the pattern so the wrap is harmless)."""
        n = v.shape[1]
        off = off % n
        if off == 0:
            return v
        if roll_sign is None:     # conservative fallback (slice + concat)
            return jnp.concatenate([v[:, off:], v[:, :off]], axis=1)
        amt = (-off * roll_sign) % n
        return pltpu.roll(v, amt, axis=1)

    def sub_shift(v, off):
        """out[i, :] = v[(i + off) % n, :]; only |off| == 1, 2 uses per conv."""
        n = v.shape[0]
        off = off % n
        if off == 0:
            return v
        return jnp.concatenate([v[off:, :], v[:off, :]], axis=0)

    def conv3d(xb, pat_ref, dmask_lo, dmask_hi):
        """3x3x3 'same' conv (incl. Cin->Cout mixing) on the lane-dense view.

        Three per-kd partials accumulated with lane shifts only (register
        accumulation, no scratch); the two non-centre depth taps are applied
        with one sublane shift each + the per-image depth-padding mask.
        """
        HWC = xb.shape[1]
        acc0 = jnp.zeros(xb.shape, jnp.float32)   # kd = 0 (reads d-1)
        acc1 = jnp.zeros(xb.shape, jnp.float32)   # kd = 1 (reads d)
        acc2 = jnp.zeros(xb.shape, jnp.float32)   # kd = 2 (reads d+1)
        for si, s in enumerate(s_list):
            sh = lane_shift(xb, s)
            acc0 = acc0 + pat_ref[pl.ds(0 * S + si, 1), :] * sh
            acc1 = acc1 + pat_ref[pl.ds(1 * S + si, 1), :] * sh
            acc2 = acc2 + pat_ref[pl.ds(2 * S + si, 1), :] * sh
        out = acc1
        out = out + jnp.where(dmask_lo, sub_shift(acc0, -1), 0.0)
        out = out + jnp.where(dmask_hi, sub_shift(acc2, +1), 0.0)
        return out

    def kernel(scal_ref, x_ref, pat1_ref, pat2_ref, o_ref):
        bias1a = scal_ref[0]
        bias1b = scal_ref[1]
        bias2a = scal_ref[2]
        scale = scal_ref[3]
        bias2b = scal_ref[4]

        x = x_ref[...].astype(jnp.float32)            # (rows, HWC) lane-dense
        rows = x.shape[0]

        # per-image depth index -> validity masks for the d-1 / d+1 taps
        d_local = jax.lax.broadcasted_iota(jnp.int32, (rows, 1), 0) % D
        dmask_lo = d_local >= 1
        dmask_hi = d_local <= D - 2

        # conv1(x + bias1a); relu(. + bias1b)
        h1 = conv3d(x + bias1a, pat1_ref, dmask_lo, dmask_hi)
        a1 = jnp.maximum(h1 + bias1b, 0.0)

        # conv2(. + bias2a) * scale + bias2b, identity residual, relu
        h2 = conv3d(a1 + bias2a, pat2_ref, dmask_lo, dmask_hi)
        y = h2 * scale + bias2b + x
        o_ref[...] = jnp.maximum(y, 0.0).astype(o_ref.dtype)   # dense store

    return kernel


# ---------------------------------------------------------------------------
# public wrapper
# ---------------------------------------------------------------------------
def _default_batch_blocks(N, D):
    """Fold the batch on single-TC chips (v5e/v6e); split 2-way on v7x."""
    try:
        kind = jax.devices()[0].device_kind.lower()
    except Exception:
        kind = ""
    ncores = 2 if "v7" in kind else 1
    if ncores > 1 and N % ncores == 0 and ((N // ncores) * D) % 8 == 0:
        return ncores
    return 1


def fixup_basic_block(x, w1, w2, bias1a, bias1b, bias2a, scale, bias2b,
                      *, batch_blocks=None):
    """x: (N, C, D, H, W) f32 (PyTorch NCDHW); w1, w2: (C, C, 3, 3, 3) (OIDHW).
    stride=1, downsample=None (identity residual)."""
    N, C, D, H, W = x.shape
    assert w1.shape == (C, C, 3, 3, 3) and w2.shape == (C, C, 3, 3, 3), \
        "no-downsample block requires Cout == Cin and 3x3x3 kernels"
    HWC = H * W * C
    assert HWC % 128 == 0, "lane-dense layout needs H*W*C to be a multiple of 128"

    if batch_blocks is None:
        batch_blocks = _default_batch_blocks(N, D)
    assert N % batch_blocks == 0
    rows = (N // batch_blocks) * D
    assert rows % 8 == 0 or batch_blocks == 1

    # ---- host-side (NumPy) weight -> pattern preprocessing (cacheable) ----
    w1_dhwio = np.asarray(w1, np.float32).transpose(2, 3, 4, 1, 0)
    w2_dhwio = np.asarray(w2, np.float32).transpose(2, 3, 4, 1, 0)
    pat1_np, s_list = _conv_shift_patterns(w1_dhwio, H, W)
    pat2_np, s_list2 = _conv_shift_patterns(w2_dhwio, H, W)
    assert s_list == s_list2
    pat1 = jnp.asarray(pat1_np)                      # (3*S, HWC), ~135 KiB
    pat2 = jnp.asarray(pat2_np)
    G = pat1.shape[0]

    scalars = jnp.concatenate(
        [bias1a, bias1b, bias2a, scale, bias2b]).astype(jnp.float32)   # (5,)

    # lane-dense activation view: NCDHW -> NDHWC -> (N*D, H*W*C)
    x2d = jnp.transpose(x.astype(jnp.float32), (0, 2, 3, 4, 1)).reshape(N * D, HWC)

    roll_sign = _probe_roll_sign(rows, HWC)
    kernel = _make_kernel(s_list, D, roll_sign)

    grid_spec = pltpu.PrefetchScalarGridSpec(
        num_scalar_prefetch=0,
        grid=(batch_blocks,),
        in_specs=[
            pl.BlockSpec(memory_space=pltpu.MemorySpace.SMEM),     # fixup scalars
            pl.BlockSpec((rows, HWC), lambda b: (b, 0)),           # x (lane-dense)
            pl.BlockSpec((G, HWC), lambda b: (0, 0)),              # conv1 patterns
            pl.BlockSpec((G, HWC), lambda b: (0, 0)),              # conv2 patterns
        ],
        out_specs=pl.BlockSpec((rows, HWC), lambda b: (b, 0)),
        # no scratch: all accumulation happens in registers
    )

    out2d = pl.pallas_call(
        kernel,
        out_shape=jax.ShapeDtypeStruct((N * D, HWC), jnp.float32),
        grid_spec=grid_spec,
        compiler_params=pltpu.CompilerParams(
            dimension_semantics=("parallel",)),       # v7x: 2 TCs split the batch
    )(scalars, x2d, pat1, pat2)

    out = out2d.reshape(N, D, H, W, C).transpose(0, 4, 1, 2, 3)    # back to NCDHW
    return out


# ---------------------------------------------------------------------------
# pure-JAX reference (matches PyTorch FixupBasicBlock.forward, NCDHW)
# ---------------------------------------------------------------------------
def _reference_forward(x, w1, w2, b1a, b1b, b2a, sc, b2b):
    dn = ("NCDHW", "OIDHW", "NCDHW")

    def conv(v, w):
        return jax.lax.conv_general_dilated(
            v, w, window_strides=(1, 1, 1),
            padding=((1, 1), (1, 1), (1, 1)), dimension_numbers=dn,
            precision=jax.lax.Precision.HIGHEST)

    out = conv(x + b1a, w1)
    out = jax.nn.relu(out + b1b)
    out = conv(out + b2a, w2)
    out = out * sc + b2b
    out = out + x                   # downsample is None -> identity = x
    return jax.nn.relu(out)


if __name__ == "__main__":
    # Small shapes consistent with the module: N=2, inplanes=planes=4, D=H=W=8.
    N, C, D, H, W = 2, 4, 8, 8, 8

    key = jax.random.PRNGKey(0)
    kx, kw1, kw2 = jax.random.split(key, 3)

    x = jax.random.normal(kx, (N, C, D, H, W), dtype=jnp.float32)        # NCDHW
    # conv3x3x3 weights (bias=False), OIDHW like PyTorch, deterministic init.
    w1 = 0.1 * jax.random.normal(kw1, (C, C, 3, 3, 3), dtype=jnp.float32)
    w2 = 0.1 * jax.random.normal(kw2, (C, C, 3, 3, 3), dtype=jnp.float32)

    # Fixup scalar parameters (module init: zeros / ones); nonzero values so
    # every term of the forward path is exercised.
    bias1a = jnp.array([0.10], dtype=jnp.float32)
    bias1b = jnp.array([-0.05], dtype=jnp.float32)
    bias2a = jnp.array([0.02], dtype=jnp.float32)
    scale = jnp.array([0.80], dtype=jnp.float32)
    bias2b = jnp.array([0.03], dtype=jnp.float32)

    out = fixup_basic_block(x, w1, w2, bias1a, bias1b, bias2a, scale, bias2b)
    out = jax.block_until_ready(out)

    ref = _reference_forward(x, w1, w2, bias1a, bias1b, bias2a, scale, bias2b)
    np.testing.assert_allclose(np.asarray(out), np.asarray(ref),
                               rtol=2e-3, atol=2e-3)

    print("KERNEL_OK")
</pallas_src>

<mosaic_0001>
module attributes {stable_mosaic.version = 11 : i64} {
  func.func @probe_kernel(%arg0: memref<16x256xf32, #tpu.memory_space<vmem>>, %arg1: memref<16x256xf32, #tpu.memory_space<vmem>>) attributes {dimension_semantics = [], scalar_prefetch = 0 : i64, scratch_operands = 0 : i64, tpu.core_type = #tpu.core_type<tc>} {
    %c0 = arith.constant 0 : index
    %c0_0 = arith.constant 0 : index
    %0 = vector.load %arg0[%c0, %c0_0] : memref<16x256xf32, #tpu.memory_space<vmem>>, vector<16x256xf32>
    %c3_i32 = arith.constant 3 : i32
    %1 = tpu.dynamic_rotate %0 by %c3_i32 dim 1 : vector<16x256xf32>, i32 -> vector<16x256xf32>
    %c0_1 = arith.constant 0 : index
    %c0_2 = arith.constant 0 : index
    %2 = vector.load %arg1[%c0_1, %c0_2] : memref<16x256xf32, #tpu.memory_space<vmem>>, vector<16x256xf32>
    tpu.vector_store %arg1[%c0_1, %c0_2], %1 {strides = array<i32>} : memref<16x256xf32, #tpu.memory_space<vmem>>, vector<16x256xf32>,
    return
  }
}

module attributes {stable_mosaic.version = 11 : i64} {
  func.func @kernel(%arg0: i32, %arg1: memref<5xf32, #tpu.memory_space<smem>>, %arg2: memref<16x256xf32, #tpu.memory_space<vmem>>, %arg3: memref<135x256xf32, #tpu.memory_space<vmem>>, %arg4: memref<135x256xf32, #tpu.memory_space<vmem>>, %arg5: memref<16x256xf32, #tpu.memory_space<vmem>>) attributes {dimension_semantics = [#tpu.dimension_semantics<parallel>], iteration_bounds = array<i64: 1>, scalar_prefetch = 0 : i64, scratch_operands = 0 : i64, tpu.core_type = #tpu.core_type<tc>, window_params = [{transform_indices = @transform_0, window_bounds = array<i64: 5>}, {transform_indices = @transform_1, window_bounds = array<i64: 16, 256>}, {pipeline_mode = #tpu.pipeline_mode<synchronous>, transform_indices = @transform_2, window_bounds = array<i64: 135, 256>}, {pipeline_mode = #tpu.pipeline_mode<synchronous>, transform_indices = @transform_3, window_bounds = array<i64: 135, 256>}, {transform_indices = @transform_4, window_bounds = array<i64: 16, 256>}]} {
    %c0 = arith.constant 0 : index
    %0 = memref.load %arg1[%c0] : memref<5xf32, #tpu.memory_space<smem>>
    %c1 = arith.constant 1 : index
    %1 = memref.load %arg1[%c1] : memref<5xf32, #tpu.memory_space<smem>>
    %c2 = arith.constant 2 : index
    %2 = memref.load %arg1[%c2] : memref<5xf32, #tpu.memory_space<smem>>
    %c3 = arith.constant 3 : index
    %3 = memref.load %arg1[%c3] : memref<5xf32, #tpu.memory_space<smem>>
    %c4 = arith.constant 4 : index
    %4 = memref.load %arg1[%c4] : memref<5xf32, #tpu.memory_space<smem>>
    %c0_0 = arith.constant 0 : index
    %c0_1 = arith.constant 0 : index
    %5 = vector.load %arg2[%c0_0, %c0_1] : memref<16x256xf32, #tpu.memory_space<vmem>>, vector<16x256xf32>
    %6 = tpu.iota {dimensions = array<i32: 0>} : vector<16x1xi32>
    %c8_i32 = arith.constant 8 : i32
    %c0_i32 = arith.constant 0 : i32
    %7 = arith.cmpi eq, %c8_i32, %c0_i32 : i32
    %c1_i32 = arith.constant 1 : i32
    %8 = arith.select %7, %c1_i32, %c8_i32 : i32
    %9 = vector.broadcast %8 : i32 to vector<16x1xi32>
    %10 = arith.remsi %6, %9 : vector<16x1xi32>
    %c0_i32_2 = arith.constant 0 : i32
    %11 = vector.broadcast %c0_i32_2 : i32 to vector<16x1xi32>
    %12 = arith.cmpi ne, %10, %11 : vector<16x1xi32>
    %c0_i32_3 = arith.constant 0 : i32
    %13 = vector.broadcast %c0_i32_3 : i32 to vector<16x1xi32>
    %14 = arith.cmpi slt, %10, %13 : vector<16x1xi32>
    %c0_i32_4 = arith.constant 0 : i32
    %15 = arith.cmpi slt, %8, %c0_i32_4 : i32
    %16 = vector.broadcast %15 : i1 to vector<16x1xi1>
    %17 = vector.broadcast %16 : vector<16x1xi1> to vector<16x1xi1>
    %18 = arith.xori %14, %17 : vector<16x1xi1>
    %19 = arith.andi %18, %12 : vector<16x1xi1>
    %20 = vector.broadcast %8 : i32 to vector<16x1xi32>
    %21 = arith.addi %10, %20 : vector<16x1xi32>
    %22 = arith.select %19, %21, %10 : vector<16x1xi1>, vector<16x1xi32>
    %c1_i32_5 = arith.constant 1 : i32
    %23 = vector.broadcast %c1_i32_5 : i32 to vector<16x1xi32>
    %24 = arith.cmpi sge, %22, %23 : vector<16x1xi32>
    %c6_i32 = arith.constant 6 : i32
    %25 = vector.broadcast %c6_i32 : i32 to vector<16x1xi32>
    %26 = arith.cmpi sle, %22, %25 : vector<16x1xi32>
    %27 = vector.broadcast %0 : f32 to vector<16x256xf32>
    %28 = arith.addf %5, %27 : vector<16x256xf32>
    %cst = arith.constant 0.000000e+00 : f32
    %29 = vector.broadcast %cst : f32 to vector<16x256xf32>
    %cst_6 = arith.constant 0.000000e+00 : f32
    %30 = vector.broadcast %cst_6 : f32 to vector<16x256xf32>
    %cst_7 = arith.constant 0.000000e+00 : f32
    %31 = vector.broadcast %cst_7 : f32 to vector<16x256xf32>
    %32 = vector.extract_strided_slice %28 {offsets = [0, 217], sizes = [16, 39], strides = [1, 1]} : vector<16x256xf32> to vector<16x39xf32>
    %33 = vector.extract_strided_slice %28 {offsets = [0, 0], sizes = [16, 217], strides = [1, 1]} : vector<16x256xf32> to vector<16x217xf32>
    %34 = tpu.concatenate %32, %33 in 1 : vector<16x39xf32>, vector<16x217xf32> -> vector<16x256xf32>
    %c0_8 = arith.constant 0 : index
    %c0_9 = arith.constant 0 : index
    %35 = vector.load %arg3[%c0_8, %c0_9] : memref<135x256xf32, #tpu.memory_space<vmem>>, vector<1x256xf32>
    %36 = vector.broadcast %35 : vector<1x256xf32> to vector<16x256xf32>
    %37 = arith.mulf %36, %34 : vector<16x256xf32>
    %38 = arith.addf %29, %37 : vector<16x256xf32>
    %c45 = arith.constant 45 : index
    %c0_10 = arith.constant 0 : index
    %39 = vector.load %arg3[%c45, %c0_10] : memref<135x256xf32, #tpu.memory_space<vmem>>, vector<1x256xf32>
    %40 = vector.broadcast %39 : vector<1x256xf32> to vector<16x256xf32>
    %41 = arith.mulf %40, %34 : vector<16x256xf32>
    %42 = arith.addf %30, %41 : vector<16x256xf32>
    %c90 = arith.constant 90 : index
    %c0_11 = arith.constant 0 : index
    %43 = vector.load %arg3[%c90, %c0_11] : memref<135x256xf32, #tpu.memory_space<vmem>>, vector<1x256xf32>
    %44 = vector.broadcast %43 : vector<1x256xf32> to vector<16x256xf32>
    %45 = arith.mulf %44, %34 : vector<16x256xf32>
    %46 = arith.addf %31, %45 : vector<16x256xf32>
    %47 = vector.extract_strided_slice %28 {offsets = [0, 218], sizes = [16, 38], strides = [1, 1]} : vector<16x256xf32> to vector<16x38xf32>
    %48 = vector.extract_strided_slice %28 {offsets = [0, 0], sizes = [16, 218], strides = [1, 1]} : vector<16x256xf32> to vector<16x218xf32>
    %49 = tpu.concatenate %47, %48 in 1 : vector<16x38xf32>, vector<16x218xf32> -> vector<16x256xf32>
    %c1_12 = arith.constant 1 : index
    %c0_13 = arith.constant 0 : index
    %50 = vector.load %arg3[%c1_12, %c0_13] : memref<135x256xf32, #tpu.memory_space<vmem>>, vector<1x256xf32>
    %51 = vector.broadcast %50 : vector<1x256xf32> to vector<16x256xf32>
    %52 = arith.mulf %51, %49 : vector<16x256xf32>
    %53 = arith.addf %38, %52 : vector<16x256xf32>
    %c46 = arith.constant 46 : index
    %c0_14 = arith.constant 0 : index
    %54 = vector.load %arg3[%c46, %c0_14] : memref<135x256xf32, #tpu.memory_space<vmem>>, vector<1x256xf32>
    %55 = vector.broadcast %54 : vector<1x256xf32> to vector<16x256xf32>
    %56 = arith.mulf %55, %49 : vector<16x256xf32>
    %57 = arith.addf %42, %56 : vector<16x256xf32>
    %c91 = arith.constant 91 : index
    %c0_15 = arith.constant 0 : index
    %58 = vector.load %arg3[%c91, %c0_15] : memref<135x256xf32, #tpu.memory_space<vmem>>, vector<1x256xf32>
    %59 = vector.broadcast %58 : vector<1x256xf32> to vector<16x256xf32>
    %60 = arith.mulf %59, %49 : vector<16x256xf32>
    %61 = arith.addf %46, %60 : vector<16x256xf32>
    %62 = vector.extract_strided_slice %28 {offsets = [0, 219], sizes = [16, 37], strides = [1, 1]} : vector<16x256xf32> to vector<16x37xf32>
    %63 = vector.extract_strided_slice %28 {offsets = [0, 0], sizes = [16, 219], strides = [1, 1]} : vector<16x256xf32> to vector<16x219xf32>
    %64 = tpu.concatenate %62, %63 in 1 : vector<16x37xf32>, vector<16x219xf32> -> vector<16x256xf32>
    %c2_16 = arith.constant 2 : index
    %c0_17 = arith.constant 0 : index
    %65 = vector.load %arg3[%c2_16, %c0_17] : memref<135x256xf32, #tpu.memory_space<vmem>>, vector<1x256xf32>
    %66 = vector.broadcast %65 : vector<1x256xf32> to vector<16x256xf32>
    %67 = arith.mulf %66, %64 : vector<16x256xf32>
    %68 = arith.addf %53, %67 : vector<16x256xf32>
    %c47 = arith.constant 47 : index
    %c0_18 = arith.constant 0 : index
    %69 = vector.load %arg3[%c47, %c0_18] : memref<135x256xf32, #tpu.memory_space<vmem>>, vector<1x256xf32>
    %70 = vector.broadcast %69 : vector<1x256xf32> to vector<16x256xf32>
    %71 = arith.mulf %70, %64 : vector<16x256xf32>
    %72 = arith.addf %57, %71 : vector<16x256xf32>
    %c92 = arith.constant 92 : index
    %c0_19 = arith.constant 0 : index
    %73 = vector.load %arg3[%c92, %c0_19] : memref<135x256xf32, #tpu.memory_space<vmem>>, vector<1x256xf32>
    %74 = vector.broadcast %73 : vector<1x256xf32> to vector<16x256xf32>
    %75 = arith.mulf %74, %64 : vector<16x256xf32>
    %76 = arith.addf %61, %75 : vector<16x256xf32>
    %77 = vector.extract_strided_slice %28 {offsets = [0, 220], sizes = [16, 36], strides = [1, 1]} : vector<16x256xf32> to vector<16x36xf32>
    %78 = vector.extract_strided_slice %28 {offsets = [0, 0], sizes = [16, 220], strides = [1, 1]} : vector<16x256xf32> to vector<16x220xf32>
    %79 = tpu.concatenate %77, %78 in 1 : vector<16x36xf32>, vector<16x220xf32> -> vector<16x256xf32>
    %c3_20 = arith.constant 3 : index
    %c0_21 = arith.constant 0 : index
    %80 = vector.load %arg3[%c3_20, %c0_21] : memref<135x256xf32, #tpu.memory_space<vmem>>, vector<1x256xf32>
    %81 = vector.broadcast %80 : vector<1x256xf32> to vector<16x256xf32>
    %82 = arith.mulf %81, %79 : vector<16x256xf32>
    %83 = arith.addf %68, %82 : vector<16x256xf32>
    %c48 = arith.constant 48 : index
    %c0_22 = arith.constant 0 : index
    %84 = vector.load %arg3[%c48, %c0_22] : memref<135x256xf32, #tpu.memory_space<vmem>>, vector<1x256xf32>
    %85 = vector.broadcast %84 : vector<1x256xf32> to vector<16x256xf32>
    %86 = arith.mulf %85, %79 : vector<16x256xf32>
    %87 = arith.addf %72, %86 : vector<16x256xf32>
    %c93 = arith.constant 93 : index
    %c0_23 = arith.constant 0 : index
    %88 = vector.load %arg3[%c93, %c0_23] : memref<135x256xf32, #tpu.memory_space<vmem>>, vector<1x256xf32>
    %89 = vector.broadcast %88 : vector<1x256xf32> to vector<16x256xf32>
    %90 = arith.mulf %89, %79 : vector<16x256xf32>
    %91 = arith.addf %76, %90 : vector<16x256xf32>
    %92 = vector.extract_strided_slice %28 {offsets = [0, 221], sizes = [16, 35], strides = [1, 1]} : vector<16x256xf32> to vector<16x35xf32>
    %93 = vector.extract_strided_slice %28 {offsets = [0, 0], sizes = [16, 221], strides = [1, 1]} : vector<16x256xf32> to vector<16x221xf32>
    %94 = tpu.concatenate %92, %93 in 1 : vector<16x35xf32>, vector<16x221xf32> -> vector<16x256xf32>
    %c4_24 = arith.constant 4 : index
    %c0_25 = arith.constant 0 : index
    %95 = vector.load %arg3[%c4_24, %c0_25] : memref<135x256xf32, #tpu.memory_space<vmem>>, vector<1x256xf32>
    %96 = vector.broadcast %95 : vector<1x256xf32> to vector<16x256xf32>
    %97 = arith.mulf %96, %94 : vector<16x256xf32>
    %98 = arith.addf %83, %97 : vector<16x256xf32>
    %c49 = arith.constant 49 : index
    %c0_26 = arith.constant 0 : index
    %99 = vector.load %arg3[%c49, %c0_26] : memref<135x256xf32, #tpu.memory_space<vmem>>, vector<1x256xf32>
    %100 = vector.broadcast %99 : vector<1x256xf32> to vector<16x256xf32>
    %101 = arith.mulf %100, %94 : vector<16x256xf32>
    %102 = arith.addf %87, %101 : vector<16x256xf32>
    %c94 = arith.constant 94 : index
    %c0_27 = arith.constant 0 : index
    %103 = vector.load %arg3[%c94, %c0_27] : memref<135x256xf32, #tpu.memory_space<vmem>>, vector<1x256xf32>
    %104 = vector.broadcast %103 : vector<1x256xf32> to vector<16x256xf32>
    %105 = arith.mulf %104, %94 : vector<16x256xf32>
    %106 = arith.addf %91, %105 : vector<16x256xf32>
    %107 = vector.extract_strided_slice %28 {offsets = [0, 222], sizes = [16, 34], strides = [1, 1]} : vector<16x256xf32> to vector<16x34xf32>
    %108 = vector.extract_strided_slice %28 {offsets = [0, 0], sizes = [16, 222], strides = [1, 1]} : vector<16x256xf32> to vector<16x222xf32>
    %109 = tpu.concatenate %107, %108 in 1 : vector<16x34xf32>, vector<16x222xf32> -> vector<16x256xf32>
    %c5 = arith.constant 5 : index
    %c0_28 = arith.constant 0 : index
    %110 = vector.load %arg3[%c5, %c0_28] : memref<135x256xf32, #tpu.memory_space<vmem>>, vector<1x256xf32>
    %111 = vector.broadcast %110 : vector<1x256xf32> to vector<16x256xf32>
    %112 = arith.mulf %111, %109 : vector<16x256xf32>
    %113 = arith.addf %98, %112 : vector<16x256xf32>
    %c50 = arith.constant 50 : index
    %c0_29 = arith.constant 0 : index
    %114 = vector.load %arg3[%c50, %c0_29] : memref<135x256xf32, #tpu.memory_space<vmem>>, vector<1x256xf32>
    %115 = vector.broadcast %114 : vector<1x256xf32> to vector<16x256xf32>
    %116 = arith.mulf %115, %109 : vector<16x256xf32>
    %117 = arith.addf %102, %116 : vector<16x256xf32>
    %c95 = arith.constant 95 : index
    %c0_30 = arith.constant 0 : index
    %118 = vector.load %arg3[%c95, %c0_30] : memref<135x256xf32, #tpu.memory_space<vmem>>, vector<1x256xf32>
    %119 = vector.broadcast %118 : vector<1x256xf32> to vector<16x256xf32>
    %120 = arith.mulf %119, %109 : vector<16x256xf32>
    %121 = arith.addf %106, %120 : vector<16x256xf32>
    %122 = vector.extract_strided_slice %28 {offsets = [0, 223], sizes = [16, 33], strides = [1, 1]} : vector<16x256xf32> to vector<16x33xf32>
    %123 = vector.extract_strided_slice %28 {offsets = [0, 0], sizes = [16, 223], strides = [1, 1]} : vector<16x256xf32> to vector<16x223xf32>
    %124 = tpu.concatenate %122, %123 in 1 : vector<16x33xf32>, vector<16x223xf32> -> vector<16x256xf32>
    %c6 = arith.constant 6 : index
    %c0_31 = arith.constant 0 : index
    %125 = vector.load %arg3[%c6, %c0_31] : memref<135x256xf32, #tpu.memory_space<vmem>>, vector<1x256xf32>
    %126 = vector.broadcast %125 : vector<1x256xf32> to vector<16x256xf32>
    %127 = arith.mulf %126, %124 : vector<16x256xf32>
    %128 = arith.addf %113, %127 : vector<16x256xf32>
    %c51 = arith.constant 51 : index
    %c0_32 = arith.constant 0 : index
    %129 = vector.load %arg3[%c51, %c0_32] : memref<135x256xf32, #tpu.memory_space<vmem>>, vector<1x256xf32>
    %130 = vector.broadcast %129 : vector<1x256xf32> to vector<16x256xf32>
    %131 = arith.mulf %130, %124 : vector<16x256xf32>
    %132 = arith.addf %117, %131 : vector<16x256xf32>
    %c96 = arith.constant 96 : index
    %c0_33 = arith.constant 0 : index
    %133 = vector.load %arg3[%c96, %c0_33] : memref<135x256xf32, #tpu.memory_space<vmem>>, vector<1x256xf32>
    %134 = vector.broadcast %133 : vector<1x256xf32> to vector<16x256xf32>
    %135 = arith.mulf %134, %124 : vector<16x256xf32>
    %136 = arith.addf %121, %135 : vector<16x256xf32>
    %137 = vector.extract_strided_slice %28 {offsets = [0, 224], sizes = [16, 32], strides = [1, 1]} : vector<16x256xf32> to vector<16x32xf32>
    %138 = vector.extract_strided_slice %28 {offsets = [0, 0], sizes = [16, 224], strides = [1, 1]} : vector<16x256xf32> to vector<16x224xf32>
    %139 = tpu.concatenate %137, %138 in 1 : vector<16x32xf32>, vector<16x224xf32> -> vector<16x256xf32>
    %c7 = arith.constant 7 : index
    %c0_34 = arith.constant 0 : index
    %140 = vector.load %arg3[%c7, %c0_34] : memref<135x256xf32, #tpu.memory_space<vmem>>, vector<1x256xf32>
    %141 = vector.broadcast %140 : vector<1x256xf32> to vector<16x256xf32>
    %142 = arith.mulf %141, %139 : vector<16x256xf32>
    %143 = arith.addf %128, %142 : vector<16x256xf32>
    %c52 = arith.constant 52 : index
    %c0_35 = arith.constant 0 : index
    %144 = vector.load %arg3[%c52, %c0_35] : memref<135x256xf32, #tpu.memory_space<vmem>>, vector<1x256xf32>
    %145 = vector.broadcast %144 : vector<1x256xf32> to vector<16x256xf32>
    %146 = arith.mulf %145, %139 : vector<16x256xf32>
    %147 = arith.addf %132, %146 : vector<16x256xf32>
    %c97 = arith.constant 97 : index
    %c0_36 = arith.constant 0 : index
    %148 = vector.load %arg3[%c97, %c0_36] : memref<135x256xf32, #tpu.memory_space<vmem>>, vector<1x256xf32>
    %149 = vector.broadcast %148 : vector<1x256xf32> to vector<16x256xf32>
    %150 = arith.mulf %149, %139 : vector<16x256xf32>
    %151 = arith.addf %136, %150 : vector<16x256xf32>
    %152 = vector.extract_strided_slice %28 {offsets = [0, 225], sizes = [16, 31], strides = [1, 1]} : vector<16x256xf32> to vector<16x31xf32>
    %153 = vector.extract_strided_slice %28 {offsets = [0, 0], sizes = [16, 225], strides = [1, 1]} : vector<16x256xf32> to vector<16x225xf32>
    %154 = tpu.concatenate %152, %153 in 1 : vector<16x31xf32>, vector<16x225xf32> -> vector<16x256xf32>
    %c8 = arith.constant 8 : index
    %c0_37 = arith.constant 0 : index
    %155 = vector.load %arg3[%c8, %c0_37] : memref<135x256xf32, #tpu.memory_space<vmem>>, vector<1x256xf32>
    %156 = vector.broadcast %155 : vector<1x256xf32> to vector<16x256xf32>
    %157 = arith.mulf %156, %154 : vector<16x256xf32>
    %158 = arith.addf %143, %157 : vector<16x256xf32>
    %c53 = arith.constant 53 : index
    %c0_38 = arith.constant 0 : index
    %159 = vector.load %arg3[%c53, %c0_38] : memref<135x256xf32, #tpu.memory_space<vmem>>, vector<1x256xf32>
    %160 = vector.broadcast %159 : vector<1x256xf32> to vector<16x256xf32>
    %161 = arith.mulf %160, %154 : vector<16x256xf32>
    %162 = arith.addf %147, %161 : vector<16x256xf32>
    %c98 = arith.constant 98 : index
    %c0_39 = arith.constant 0 : index
    %163 = vector.load %arg3[%c98, %c0_39] : memref<135x256xf32, #tpu.memory_space<vmem>>, vector<1x256xf32>
    %164 = vector.broadcast %163 : vector<1x256xf32> to vector<16x256xf32>
    %165 = arith.mulf %164, %154 : vector<16x256xf32>
    %166 = arith.addf %151, %165 : vector<16x256xf32>
    %167 = vector.extract_strided_slice %28 {offsets = [0, 226], sizes = [16, 30], strides = [1, 1]} : vector<16x256xf32> to vector<16x30xf32>
    %168 = vector.extract_strided_slice %28 {offsets = [0, 0], sizes = [16, 226], strides = [1, 1]} : vector<16x256xf32> to vector<16x226xf32>
    %169 = tpu.concatenate %167, %168 in 1 : vector<16x30xf32>, vector<16x226xf32> -> vector<16x256xf32>
    %c9 = arith.constant 9 : index
    %c0_40 = arith.constant 0 : index
    %170 = vector.load %arg3[%c9, %c0_40] : memref<135x256xf32, #tpu.memory_space<vmem>>, vector<1x256xf32>
    %171 = vector.broadcast %170 : vector<1x256xf32> to vector<16x256xf32>
    %172 = arith.mulf %171, %169 : vector<16x256xf32>
    %173 = arith.addf %158, %172 : vector<16x256xf32>
    %c54 = arith.constant 54 : index
    %c0_41 = arith.constant 0 : index
    %174 = vector.load %arg3[%c54, %c0_41] : memref<135x256xf32, #tpu.memory_space<vmem>>, vector<1x256xf32>
    %175 = vector.broadcast %174 : vector<1x256xf32> to vector<16x256xf32>
    %176 = arith.mulf %175, %169 : vector<16x256xf32>
    %177 = arith.addf %162, %176 : vector<16x256xf32>
    %c99 = arith.constant 99 : index
    %c0_42 = arith.constant 0 : index
    %178 = vector.load %arg3[%c99, %c0_42] : memref<135x256xf32, #tpu.memory_space<vmem>>, vector<1x256xf32>
    %179 = vector.broadcast %178 : vector<1x256xf32> to vector<16x256xf32>
    %180 = arith.mulf %179, %169 : vector<16x256xf32>
    %181 = arith.addf %166, %180 : vector<16x256xf32>
    %182 = vector.extract_strided_slice %28 {offsets = [0, 227], sizes = [16, 29], strides = [1, 1]} : vector<16x256xf32> to vector<16x29xf32>
    %183 = vector.extract_strided_slice %28 {offsets = [0, 0], sizes = [16, 227], strides = [1, 1]} : vector<16x256xf32> to vector<16x227xf32>
    %184 = tpu.concatenate %182, %183 in 1 : vector<16x29xf32>, vector<16x227xf32> -> vector<16x256xf32>
    %c10 = arith.constant 10 : index
    %c0_43 = arith.constant 0 : index
    %185 = vector.load %arg3[%c10, %c0_43] : memref<135x256xf32, #tpu.memory_space<vmem>>, vector<1x256xf32>
    %186 = vector.broadcast %185 : vector<1x256xf32> to vector<16x256xf32>
    %187 = arith.mulf %186, %184 : vector<16x256xf32>
    %188 = arith.addf %173, %187 : vector<16x256xf32>
    %c55 = arith.constant 55 : index
    %c0_44 = arith.constant 0 : index
    %189 = vector.load %arg3[%c55, %c0_44] : memref<135x256xf32, #tpu.memory_space<vmem>>, vector<1x256xf32>
    %190 = vector.broadcast %189 : vector<1x256xf32> to vector<16x256xf32>
    %191 = arith.mulf %190, %184 : vector<16x256xf32>
    %192 = arith.addf %177, %191 : vector<16x256xf32>
    %c100 = arith.constant 100 : index
    %c0_45 = arith.constant 0 : index
    %193 = vector.load %arg3[%c100, %c0_45] : memref<135x256xf32, #tpu.memory_space<vmem>>, vector<1x256xf32>
    %194 = vector.broadcast %193 : vector<1x256xf32> to vector<16x256xf32>
    %195 = arith.mulf %194, %184 : vector<16x256xf32>
    %196 = arith.addf %181, %195 : vector<16x256xf32>
    %197 = vector.extract_strided_slice %28 {offsets = [0, 228], sizes = [16, 28], strides = [1, 1]} : vector<16x256xf32> to vector<16x28xf32>
    %198 = vector.extract_strided_slice %28 {offsets = [0, 0], sizes = [16, 228], strides = [1, 1]} : vector<16x256xf32> to vector<16x228xf32>
    %199 = tpu.concatenate %197, %198 in 1 : vector<16x28xf32>, vector<16x228xf32> -> vector<16x256xf32>
    %c11 = arith.constant 11 : index
    %c0_46 = arith.constant 0 : index
    %200 = vector.load %arg3[%c11, %c0_46] : memref<135x256xf32, #tpu.memory_space<vmem>>, vector<1x256xf32>
    %201 = vector.broadcast %200 : vector<1x256xf32> to vector<16x256xf32>
    %202 = arith.mulf %201, %199 : vector<16x256xf32>
    %203 = arith.addf %188, %202 : vector<16x256xf32>
    %c56 = arith.constant 56 : index
    %c0_47 = arith.constant 0 : index
    %204 = vector.load %arg3[%c56, %c0_47] : memref<135x256xf32, #tpu.memory_space<vmem>>, vector<1x256xf32>
    %205 = vector.broadcast %204 : vector<1x256xf32> to vector<16x256xf32>
    %206 = arith.mulf %205, %199 : vector<16x256xf32>
    %207 = arith.addf %192, %206 : vector<16x256xf32>
    %c101 = arith.constant 101 : index
    %c0_48 = arith.constant 0 : index
    %208 = vector.load %arg3[%c101, %c0_48] : memref<135x256xf32, #tpu.memory_space<vmem>>, vector<1x256xf32>
    %209 = vector.broadcast %208 : vector<1x256xf32> to vector<16x256xf32>
    %210 = arith.mulf %209, %199 : vector<16x256xf32>
    %211 = arith.addf %196, %210 : vector<16x256xf32>
    %212 = vector.extract_strided_slice %28 {offsets = [0, 229], sizes = [16, 27], strides = [1, 1]} : vector<16x256xf32> to vector<16x27xf32>
    %213 = vector.extract_strided_slice %28 {offsets = [0, 0], sizes = [16, 229], strides = [1, 1]} : vector<16x256xf32> to vector<16x229xf32>
    %214 = tpu.concatenate %212, %213 in 1 : vector<16x27xf32>, vector<16x229xf32> -> vector<16x256xf32>
    %c12 = arith.constant 12 : index
    %c0_49 = arith.constant 0 : index
    %215 = vector.load %arg3[%c12, %c0_49] : memref<135x256xf32, #tpu.memory_space<vmem>>, vector<1x256xf32>
    %216 = vector.broadcast %215 : vector<1x256xf32> to vector<16x256xf32>
    %217 = arith.mulf %216, %214 : vector<16x256xf32>
    %218 = arith.addf %203, %217 : vector<16x256xf32>
    %c57 = arith.constant 57 : index
    %c0_50 = arith.constant 0 : index
    %219 = vector.load %arg3[%c57, %c0_50] : memref<135x256xf32, #tpu.memory_space<vmem>>, vector<1x256xf32>
    %220 = vector.broadcast %219 : vector<1x256xf32> to vector<16x256xf32>
    %221 = arith.mulf %220, %214 : vector<16x256xf32>
    %222 = arith.addf %207, %221 : vector<16x256xf32>
    %c102 = arith.constant 102 : index
    %c0_51 = arith.constant 0 : index
    %223 = vector.load %arg3[%c102, %c0_51] : memref<135x256xf32, #tpu.memory_space<vmem>>, vector<1x256xf32>
    %224 = vector.broadcast %223 : vector<1x256xf32> to vector<16x256xf32>
    %225 = arith.mulf %224, %214 : vector<16x256xf32>
    %226 = arith.addf %211, %225 : vector<16x256xf32>
    %227 = vector.extract_strided_slice %28 {offsets = [0, 230], sizes = [16, 26], strides = [1, 1]} : vector<16x256xf32> to vector<16x26xf32>
    %228 = vector.extract_strided_slice %28 {offsets = [0, 0], sizes = [16, 230], strides = [1, 1]} : vector<16x256xf32> to vector<16x230xf32>
    %229 = tpu.concatenate %227, %228 in 1 : vector<16x26xf32>, vector<16x230xf32> -> vector<16x256xf32>
    %c13 = arith.constant 13 : index
    %c0_52 = arith.constant 0 : index
    %230 = vector.load %arg3[%c13, %c0_52] : memref<135x256xf32, #tpu.memory_space<vmem>>, vector<1x256xf32>
    %231 = vector.broadcast %230 : vector<1x256xf32> to vector<16x256xf32>
    %232 = arith.mulf %231, %229 : vector<16x256xf32>
    %233 = arith.addf %218, %232 : vector<16x256xf32>
    %c58 = arith.constant 58 : index
    %c0_53 = arith.constant 0 : index
    %234 = vector.load %arg3[%c58, %c0_53] : memref<135x256xf32, #tpu.memory_space<vmem>>, vector<1x256xf32>
    %235 = vector.broadcast %234 : vector<1x256xf32> to vector<16x256xf32>
    %236 = arith.mulf %235, %229 : vector<16x256xf32>
    %237 = arith.addf %222, %236 : vector<16x256xf32>
    %c103 = arith.constant 103 : index
    %c0_54 = arith.constant 0 : index
    %238 = vector.load %arg3[%c103, %c0_54] : memref<135x256xf32, #tpu.memory_space<vmem>>, vector<1x256xf32>
    %239 = vector.broadcast %238 : vector<1x256xf32> to vector<16x256xf32>
    %240 = arith.mulf %239, %229 : vector<16x256xf32>
    %241 = arith.addf %226, %240 : vector<16x256xf32>
    %242 = vector.extract_strided_slice %28 {offsets = [0, 231], sizes = [16, 25], strides = [1, 1]} : vector<16x256xf32> to vector<16x25xf32>
    %243 = vector.extract_strided_slice %28 {offsets = [0, 0], sizes = [16, 231], strides = [1, 1]} : vector<16x256xf32> to vector<16x231xf32>
    %244 = tpu.concatenate %242, %243 in 1 : vector<16x25xf32>, vector<16x231xf32> -> vector<16x256xf32>
    %c14 = arith.constant 14 : index
    %c0_55 = arith.constant 0 : index
    %245 = vector.load %arg3[%c14, %c0_55] : memref<135x256xf32, #tpu.memory_space<vmem>>, vector<1x256xf32>
    %246 = vector.broadcast %245 : vector<1x256xf32> to vector<16x256xf32>
    %247 = arith.mulf %246, %244 : vector<16x256xf32>
    %248 = arith.addf %233, %247 : vector<16x256xf32>
    %c59 = arith.constant 59 : index
    %c0_56 = arith.constant 0 : index
    %249 = vector.load %arg3[%c59, %c0_56] : memref<135x256xf32, #tpu.memory_space<vmem>>, vector<1x256xf32>
    %250 = vector.broadcast %249 : vector<1x256xf32> to vector<16x256xf32>
    %251 = arith.mulf %250, %244 : vector<16x256xf32>
    %252 = arith.addf %237, %251 : vector<16x256xf32>
    %c104 = arith.constant 104 : index
    %c0_57 = arith.constant 0 : index
    %253 = vector.load %arg3[%c104, %c0_57] : memref<135x256xf32, #tpu.memory_space<vmem>>, vector<1x256xf32>
    %254 = vector.broadcast %253 : vector<1x256xf32> to vector<16x256xf32>
    %255 = arith.mulf %254, %244 : vector<16x256xf32>
    %256 = arith.addf %241, %255 : vector<16x256xf32>
    %257 = vector.extract_strided_slice %28 {offsets = [0, 249], sizes = [16, 7], strides = [1, 1]} : vector<16x256xf32> to vector<16x7xf32>
    %258 = vector.extract_strided_slice %28 {offsets = [0, 0], sizes = [16, 249], strides = [1, 1]} : vector<16x256xf32> to vector<16x249xf32>
    %259 = tpu.concatenate %257, %258 in 1 : vector<16x7xf32>, vector<16x249xf32> -> vector<16x256xf32>
    %c15 = arith.constant 15 : index
    %c0_58 = arith.constant 0 : index
    %260 = vector.load %arg3[%c15, %c0_58] : memref<135x256xf32, #tpu.memory_space<vmem>>, vector<1x256xf32>
    %261 = vector.broadcast %260 : vector<1x256xf32> to vector<16x256xf32>
    %262 = arith.mulf %261, %259 : vector<16x256xf32>
    %263 = arith.addf %248, %262 : vector<16x256xf32>
    %c60 = arith.constant 60 : index
    %c0_59 = arith.constant 0 : index
    %264 = vector.load %arg3[%c60, %c0_59] : memref<135x256xf32, #tpu.memory_space<vmem>>, vector<1x256xf32>
    %265 = vector.broadcast %264 : vector<1x256xf32> to vector<16x256xf32>
    %266 = arith.mulf %265, %259 : vector<16x256xf32>
    %267 = arith.addf %252, %266 : vector<16x256xf32>
    %c105 = arith.constant 105 : index
    %c0_60 = arith.constant 0 : index
    %268 = vector.load %arg3[%c105, %c0_60] : memref<135x256xf32, #tpu.memory_space<vmem>>, vector<1x256xf32>
    %269 = vector.broadcast %268 : vector<1x256xf32> to vector<16x256xf32>
    %270 = arith.mulf %269, %259 : vector<16x256xf32>
    %271 = arith.addf %256, %270 : vector<16x256xf32>
    %272 = vector.extract_strided_slice %28 {offsets = [0, 250], sizes = [16, 6], strides = [1, 1]} : vector<16x256xf32> to vector<16x6xf32>
    %273 = vector.extract_strided_slice %28 {offsets = [0, 0], sizes = [16, 250], strides = [1, 1]} : vector<16x256xf32> to vector<16x250xf32>
    %274 = tpu.concatenate %272, %273 in 1 : vector<16x6xf32>, vector<16x250xf32> -> vector<16x256xf32>
    %c16 = arith.constant 16 : index
    %c0_61 = arith.constant 0 : index
    %275 = vector.load %arg3[%c16, %c0_61] : memref<135x256xf32, #tpu.memory_space<vmem>>, vector<1x256xf32>
    %276 = vector.broadcast %275 : vector<1x256xf32> to vector<16x256xf32>
    %277 = arith.mulf %276, %274 : vector<16x256xf32>
    %278 = arith.addf %263, %277 : vector<16x256xf32>
    %c61 = arith.constant 61 : index
    %c0_62 = arith.constant 0 : index
    %279 = vector.load %arg3[%c61, %c0_62] : memref<135x256xf32, #tpu.memory_space<vmem>>, vector<1x256xf32>
    %280 = vector.broadcast %279 : vector<1x256xf32> to vector<16x256xf32>
    %281 = arith.mulf %280, %274 : vector<16x256xf32>
    %282 = arith.addf %267, %281 : vector<16x256xf32>
    %c106 = arith.constant 106 : index
    %c0_63 = arith.constant 0 : index
    %283 = vector.load %arg3[%c106, %c0_63] : memref<135x256xf32, #tpu.memory_space<vmem>>, vector<1x256xf32>
    %284 = vector.broadcast %283 : vector<1x256xf32> to vector<16x256xf32>
    %285 = arith.mulf %284, %274 : vector<16x256xf32>
    %286 = arith.addf %271, %285 : vector<16x256xf32>
    %287 = vector.extract_strided_slice %28 {offsets = [0, 251], sizes = [16, 5], strides = [1, 1]} : vector<16x256xf32> to vector<16x5xf32>
    %288 = vector.extract_strided_slice %28 {offsets = [0, 0], sizes = [16, 251], strides = [1, 1]} : vector<16x256xf32> to vector<16x251xf32>
    %289 = tpu.concatenate %287, %288 in 1 : vector<16x5xf32>, vector<16x251xf32> -> vector<16x256xf32>
    %c17 = arith.constant 17 : index
    %c0_64 = arith.constant 0 : index
    %290 = vector.load %arg3[%c17, %c0_64] : memref<135x256xf32, #tpu.memory_space<vmem>>, vector<1x256xf32>
    %291 = vector.broadcast %290 : vector<1x256xf32> to vector<16x256xf32>
    %292 = arith.mulf %291, %289 : vector<16x256xf32>
    %293 = arith.addf %278, %292 : vector<16x256xf32>
    %c62 = arith.constant 62 : index
    %c0_65 = arith.constant 0 : index
    %294 = vector.load %arg3[%c62, %c0_65] : memref<135x256xf32, #tpu.memory_space<vmem>>, vector<1x256xf32>
    %295 = vector.broadcast %294 : vector<1x256xf32> to vector<16x256xf32>
    %296 = arith.mulf %295, %289 : vector<16x256xf32>
    %297 = arith.addf %282, %296 : vector<16x256xf32>
    %c107 = arith.constant 107 : index
    %c0_66 = arith.constant 0 : index
    %298 = vector.load %arg3[%c107, %c0_66] : memref<135x256xf32, #tpu.memory_space<vmem>>, vector<1x256xf32>
    %299 = vector.broadcast %298 : vector<1x256xf32> to vector<16x256xf32>
    %300 = arith.mulf %299, %289 : vector<16x256xf32>
    %301 = arith.addf %286, %300 : vector<16x256xf32>
    %302 = vector.extract_strided_slice %28 {offsets = [0, 252], sizes = [16, 4], strides = [1, 1]} : vector<16x256xf32> to vector<16x4xf32>
    %303 = vector.extract_strided_slice %28 {offsets = [0, 0], sizes = [16, 252], strides = [1, 1]} : vector<16x256xf32> to vector<16x252xf32>
    %304 = tpu.concatenate %302, %303 in 1 : vector<16x4xf32>, vector<16x252xf32> -> vector<16x256xf32>
    %c18 = arith.constant 18 : index
    %c0_67 = arith.constant 0 : index
    %305 = vector.load %arg3[%c18, %c0_67] : memref<135x256xf32, #tpu.memory_space<vmem>>, vector<1x256xf32>
    %306 = vector.broadcast %305 : vector<1x256xf32> to vector<16x256xf32>
    %307 = arith.mulf %306, %304 : vector<16x256xf32>
    %308 = arith.addf %293, %307 : vector<16x256xf32>
    %c63 = arith.constant 63 : index
    %c0_68 = arith.constant 0 : index
    %309 = vector.load %arg3[%c63, %c0_68] : memref<135x256xf32, #tpu.memory_space<vmem>>, vector<1x256xf32>
    %310 = vector.broadcast %309 : vector<1x256xf32> to vector<16x256xf32>
    %311 = arith.mulf %310, %304 : vector<16x256xf32>
    %312 = arith.addf %297, %311 : vector<16x256xf32>
    %c108 = arith.constant 108 : index
    %c0_69 = arith.constant 0 : index
    %313 = vector.load %arg3[%c108, %c0_69] : memref<135x256xf32, #tpu.memory_space<vmem>>, vector<1x256xf32>
    %314 = vector.broadcast %313 : vector<1x256xf32> to vector<16x256xf32>
    %315 = arith.mulf %314, %304 : vector<16x256xf32>
    %316 = arith.addf %301, %315 : vector<16x256xf32>
    %317 = vector.extract_strided_slice %28 {offsets = [0, 253], sizes = [16, 3], strides = [1, 1]} : vector<16x256xf32> to vector<16x3xf32>
    %318 = vector.extract_strided_slice %28 {offsets = [0, 0], sizes = [16, 253], strides = [1, 1]} : vector<16x256xf32> to vector<16x253xf32>
    %319 = tpu.concatenate %317, %318 in 1 : vector<16x3xf32>, vector<16x253xf32> -> vector<16x256xf32>
    %c19 = arith.constant 19 : index
    %c0_70 = arith.constant 0 : index
    %320 = vector.load %arg3[%c19, %c0_70] : memref<135x256xf32, #tpu.memory_space<vmem>>, vector<1x256xf32>
    %321 = vector.broadcast %320 : vector<1x256xf32> to vector<16x256xf32>
    %322 = arith.mulf %321, %319 : vector<16x256xf32>
    %323 = arith.addf %308, %322 : vector<16x256xf32>
    %c64 = arith.constant 64 : index
    %c0_71 = arith.constant 0 : index
    %324 = vector.load %arg3[%c64, %c0_71] : memref<135x256xf32, #tpu.memory_space<vmem>>, vector<1x256xf32>
    %325 = vector.broadcast %324 : vector<1x256xf32> to vector<16x256xf32>
    %326 = arith.mulf %325, %319 : vector<16x256xf32>
    %327 = arith.addf %312, %326 : vector<16x256xf32>
    %c109 = arith.constant 109 : index
    %c0_72 = arith.constant 0 : index
    %328 = vector.load %arg3[%c109, %c0_72] : memref<135x256xf32, #tpu.memory_space<vmem>>, vector<1x256xf32>
    %329 = vector.broadcast %328 : vector<1x256xf32> to vector<16x256xf32>
    %330 = arith.mulf %329, %319 : vector<16x256xf32>
    %331 = arith.addf %316, %330 : vector<16x256xf32>
    %332 = vector.extract_strided_slice %28 {offsets = [0, 254], sizes = [16, 2], strides = [1, 1]} : vector<16x256xf32> to vector<16x2xf32>
    %333 = vector.extract_strided_slice %28 {offsets = [0, 0], sizes = [16, 254], strides = [1, 1]} : vector<16x256xf32> to vector<16x254xf32>
    %334 = tpu.concatenate %332, %333 in 1 : vector<16x2xf32>, vector<16x254xf32> -> vector<16x256xf32>
    %c20 = arith.constant 20 : index
    %c0_73 = arith.constant 0 : index
    %335 = vector.load %arg3[%c20, %c0_73] : memref<135x256xf32, #tpu.memory_space<vmem>>, vector<1x256xf32>
    %336 = vector.broadcast %335 : vector<1x256xf32> to vector<16x256xf32>
    %337 = arith.mulf %336, %334 : vector<16x256xf32>
    %338 = arith.addf %323, %337 : vector<16x256xf32>
    %c65 = arith.constant 65 : index
    %c0_74 = arith.constant 0 : index
    %339 = vector.load %arg3[%c65, %c0_74] : memref<135x256xf32, #tpu.memory_space<vmem>>, vector<1x256xf32>
    %340 = vector.broadcast %339 : vector<1x256xf32> to vector<16x256xf32>
    %341 = arith.mulf %340, %334 : vector<16x256xf32>
    %342 = arith.addf %327, %341 : vector<16x256xf32>
    %c110 = arith.constant 110 : index
    %c0_75 = arith.constant 0 : index
    %343 = vector.load %arg3[%c110, %c0_75] : memref<135x256xf32, #tpu.memory_space<vmem>>, vector<1x256xf32>
    %344 = vector.broadcast %343 : vector<1x256xf32> to vector<16x256xf32>
    %345 = arith.mulf %344, %334 : vector<16x256xf32>
    %346 = arith.addf %331, %345 : vector<16x256xf32>
    %347 = vector.extract_strided_slice %28 {offsets = [0, 255], sizes = [16, 1], strides = [1, 1]} : vector<16x256xf32> to vector<16x1xf32>
    %348 = vector.extract_strided_slice %28 {offsets = [0, 0], sizes = [16, 255], strides = [1, 1]} : vector<16x256xf32> to vector<16x255xf32>
    %349 = tpu.concatenate %347, %348 in 1 : vector<16x1xf32>, vector<16x255xf32> -> vector<16x256xf32>
    %c21 = arith.constant 21 : index
    %c0_76 = arith.constant 0 : index
    %350 = vector.load %arg3[%c21, %c0_76] : memref<135x256xf32, #tpu.memory_space<vmem>>, vector<1x256xf32>
    %351 = vector.broadcast %350 : vector<1x256xf32> to vector<16x256xf32>
    %352 = arith.mulf %351, %349 : vector<16x256xf32>
    %353 = arith.addf %338, %352 : vector<16x256xf32>
    %c66 = arith.constant 66 : index
    %c0_77 = arith.constant 0 : index
    %354 = vector.load %arg3[%c66, %c0_77] : memref<135x256xf32, #tpu.memory_space<vmem>>, vector<1x256xf32>
    %355 = vector.broadcast %354 : vector<1x256xf32> to vector<16x256xf32>
    %356 = arith.mulf %355, %349 : vector<16x256xf32>
    %357 = arith.addf %342, %356 : vector<16x256xf32>
    %c111 = arith.constant 111 : index
    %c0_78 = arith.constant 0 : index
    %358 = vector.load %arg3[%c111, %c0_78] : memref<135x256xf32, #tpu.memory_space<vmem>>, vector<1x256xf32>
    %359 = vector.broadcast %358 : vector<1x256xf32> to vector<16x256xf32>
    %360 = arith.mulf %359, %349 : vector<16x256xf32>
    %361 = arith.addf %346, %360 : vector<16x256xf32>
    %c22 = arith.constant 22 : index
    %c0_79 = arith.constant 0 : index
    %362 = vector.load %arg3[%c22, %c0_79] : memref<135x256xf32, #tpu.memory_space<vmem>>, vector<1x256xf32>
    %363 = vector.broadcast %362 : vector<1x256xf32> to vector<16x256xf32>
    %364 = arith.mulf %363, %28 : vector<16x256xf32>
    %365 = arith.addf %353, %364 : vector<16x256xf32>
    %c67 = arith.constant 67 : index
    %c0_80 = arith.constant 0 : index
    %366 = vector.load %arg3[%c67, %c0_80] : memref<135x256xf32, #tpu.memory_space<vmem>>, vector<1x256xf32>
    %367 = vector.broadcast %366 : vector<1x256xf32> to vector<16x256xf32>
    %368 = arith.mulf %367, %28 : vector<16x256xf32>
    %369 = arith.addf %357, %368 : vector<16x256xf32>
    %c112 = arith.constant 112 : index
    %c0_81 = arith.constant 0 : index
    %370 = vector.load %arg3[%c112, %c0_81] : memref<135x256xf32, #tpu.memory_space<vmem>>, vector<1x256xf32>
    %371 = vector.broadcast %370 : vector<1x256xf32> to vector<16x256xf32>
    %372 = arith.mulf %371, %28 : vector<16x256xf32>
    %373 = arith.addf %361, %372 : vector<16x256xf32>
    %374 = vector.extract_strided_slice %28 {offsets = [0, 1], sizes = [16, 255], strides = [1, 1]} : vector<16x256xf32> to vector<16x255xf32>
    %375 = vector.extract_strided_slice %28 {offsets = [0, 0], sizes = [16, 1], strides = [1, 1]} : vector<16x256xf32> to vector<16x1xf32>
    %376 = tpu.concatenate %374, %375 in 1 : vector<16x255xf32>, vector<16x1xf32> -> vector<16x256xf32>
    %c23 = arith.constant 23 : index
    %c0_82 = arith.constant 0 : index
    %377 = vector.load %arg3[%c23, %c0_82] : memref<135x256xf32, #tpu.memory_space<vmem>>, vector<1x256xf32>
    %378 = vector.broadcast %377 : vector<1x256xf32> to vector<16x256xf32>
    %379 = arith.mulf %378, %376 : vector<16x256xf32>
    %380 = arith.addf %365, %379 : vector<16x256xf32>
    %c68 = arith.constant 68 : index
    %c0_83 = arith.constant 0 : index
    %381 = vector.load %arg3[%c68, %c0_83] : memref<135x256xf32, #tpu.memory_space<vmem>>, vector<1x256xf32>
    %382 = vector.broadcast %381 : vector<1x256xf32> to vector<16x256xf32>
    %383 = arith.mulf %382, %376 : vector<16x256xf32>
    %384 = arith.addf %369, %383 : vector<16x256xf32>
    %c113 = arith.constant 113 : index
    %c0_84 = arith.constant 0 : index
    %385 = vector.load %arg3[%c113, %c0_84] : memref<135x256xf32, #tpu.memory_space<vmem>>, vector<1x256xf32>
    %386 = vector.broadcast %385 : vector<1x256xf32> to vector<16x256xf32>
    %387 = arith.mulf %386, %376 : vector<16x256xf32>
    %388 = arith.addf %373, %387 : vector<16x256xf32>
    %389 = vector.extract_strided_slice %28 {offsets = [0, 2], sizes = [16, 254], strides = [1, 1]} : vector<16x256xf32> to vector<16x254xf32>
    %390 = vector.extract_strided_slice %28 {offsets = [0, 0], sizes = [16, 2], strides = [1, 1]} : vector<16x256xf32> to vector<16x2xf32>
    %391 = tpu.concatenate %389, %390 in 1 : vector<16x254xf32>, vector<16x2xf32> -> vector<16x256xf32>
    %c24 = arith.constant 24 : index
    %c0_85 = arith.constant 0 : index
    %392 = vector.load %arg3[%c24, %c0_85] : memref<135x256xf32, #tpu.memory_space<vmem>>, vector<1x256xf32>
    %393 = vector.broadcast %392 : vector<1x256xf32> to vector<16x256xf32>
    %394 = arith.mulf %393, %391 : vector<16x256xf32>
    %395 = arith.addf %380, %394 : vector<16x256xf32>
    %c69 = arith.constant 69 : index
    %c0_86 = arith.constant 0 : index
    %396 = vector.load %arg3[%c69, %c0_86] : memref<135x256xf32, #tpu.memory_space<vmem>>, vector<1x256xf32>
    %397 = vector.broadcast %396 : vector<1x256xf32> to vector<16x256xf32>
    %398 = arith.mulf %397, %391 : vector<16x256xf32>
    %399 = arith.addf %384, %398 : vector<16x256xf32>
    %c114 = arith.constant 114 : index
    %c0_87 = arith.constant 0 : index
    %400 = vector.load %arg3[%c114, %c0_87] : memref<135x256xf32, #tpu.memory_space<vmem>>, vector<1x256xf32>
    %401 = vector.broadcast %400 : vector<1x256xf32> to vector<16x256xf32>
    %402 = arith.mulf %401, %391 : vector<16x256xf32>
    %403 = arith.addf %388, %402 : vector<16x256xf32>
    %404 = vector.extract_strided_slice %28 {offsets = [0, 3], sizes = [16, 253], strides = [1, 1]} : vector<16x256xf32> to vector<16x253xf32>
    %405 = vector.extract_strided_slice %28 {offsets = [0, 0], sizes = [16, 3], strides = [1, 1]} : vector<16x256xf32> to vector<16x3xf32>
    %406 = tpu.concatenate %404, %405 in 1 : vector<16x253xf32>, vector<16x3xf32> -> vector<16x256xf32>
    %c25 = arith.constant 25 : index
    %c0_88 = arith.constant 0 : index
    %407 = vector.load %arg3[%c25, %c0_88] : memref<135x256xf32, #tpu.memory_space<vmem>>, vector<1x256xf32>
    %408 = vector.broadcast %407 : vector<1x256xf32> to vector<16x256xf32>
    %409 = arith.mulf %408, %406 : vector<16x256xf32>
    %410 = arith.addf %395, %409 : vector<16x256xf32>
    %c70 = arith.constant 70 : index
    %c0_89 = arith.constant 0 : index
    %411 = vector.load %arg3[%c70, %c0_89] : memref<135x256xf32, #tpu.memory_space<vmem>>, vector<1x256xf32>
    %412 = vector.broadcast %411 : vector<1x256xf32> to vector<16x256xf32>
    %413 = arith.mulf %412, %406 : vector<16x256xf32>
    %414 = arith.addf %399, %413 : vector<16x256xf32>
    %c115 = arith.constant 115 : index
    %c0_90 = arith.constant 0 : index
    %415 = vector.load %arg3[%c115, %c0_90] : memref<135x256xf32, #tpu.memory_space<vmem>>, vector<1x256xf32>
    %416 = vector.broadcast %415 : vector<1x256xf32> to vector<16x256xf32>
    %417 = arith.mulf %416, %406 : vector<16x256xf32>
    %418 = arith.addf %403, %417 : vector<16x256xf32>
    %419 = vector.extract_strided_slice %28 {offsets = [0, 4], sizes = [16, 252], strides = [1, 1]} : vector<16x256xf32> to vector<16x252xf32>
    %420 = vector.extract_strided_slice %28 {offsets = [0, 0], sizes = [16, 4], strides = [1, 1]} : vector<16x256xf32> to vector<16x4xf32>
    %421 = tpu.concatenate %419, %420 in 1 : vector<16x252xf32>, vector<16x4xf32> -> vector<16x256xf32>
    %c26 = arith.constant 26 : index
    %c0_91 = arith.constant 0 : index
    %422 = vector.load %arg3[%c26, %c0_91] : memref<135x256xf32, #tpu.memory_space<vmem>>, vector<1x256xf32>
    %423 = vector.broadcast %422 : vector<1x256xf32> to vector<16x256xf32>
    %424 = arith.mulf %423, %421 : vector<16x256xf32>
    %425 = arith.addf %410, %424 : vector<16x256xf32>
    %c71 = arith.constant 71 : index
    %c0_92 = arith.constant 0 : index
    %426 = vector.load %arg3[%c71, %c0_92] : memref<135x256xf32, #tpu.memory_space<vmem>>, vector<1x256xf32>
    %427 = vector.broadcast %426 : vector<1x256xf32> to vector<16x256xf32>
    %428 = arith.mulf %427, %421 : vector<16x256xf32>
    %429 = arith.addf %414, %428 : vector<16x256xf32>
    %c116 = arith.constant 116 : index
    %c0_93 = arith.constant 0 : index
    %430 = vector.load %arg3[%c116, %c0_93] : memref<135x256xf32, #tpu.memory_space<vmem>>, vector<1x256xf32>
    %431 = vector.broadcast %430 : vector<1x256xf32> to vector<16x256xf32>
    %432 = arith.mulf %431, %421 : vector<16x256xf32>
    %433 = arith.addf %418, %432 : vector<16x256xf32>
    %434 = vector.extract_strided_slice %28 {offsets = [0, 5], sizes = [16, 251], strides = [1, 1]} : vector<16x256xf32> to vector<16x251xf32>
    %435 = vector.extract_strided_slice %28 {offsets = [0, 0], sizes = [16, 5], strides = [1, 1]} : vector<16x256xf32> to vector<16x5xf32>
    %436 = tpu.concatenate %434, %435 in 1 : vector<16x251xf32>, vector<16x5xf32> -> vector<16x256xf32>
    %c27 = arith.constant 27 : index
    %c0_94 = arith.constant 0 : index
    %437 = vector.load %arg3[%c27, %c0_94] : memref<135x256xf32, #tpu.memory_space<vmem>>, vector<1x256xf32>
    %438 = vector.broadcast %437 : vector<1x256xf32> to vector<16x256xf32>
    %439 = arith.mulf %438, %436 : vector<16x256xf32>
    %440 = arith.addf %425, %439 : vector<16x256xf32>
    %c72 = arith.constant 72 : index
    %c0_95 = arith.constant 0 : index
    %441 = vector.load %arg3[%c72, %c0_95] : memref<135x256xf32, #tpu.memory_space<vmem>>, vector<1x256xf32>
    %442 = vector.broadcast %441 : vector<1x256xf32> to vector<16x256xf32>
    %443 = arith.mulf %442, %436 : vector<16x256xf32>
    %444 = arith.addf %429, %443 : vector<16x256xf32>
    %c117 = arith.constant 117 : index
    %c0_96 = arith.constant 0 : index
    %445 = vector.load %arg3[%c117, %c0_96] : memref<135x256xf32, #tpu.memory_space<vmem>>, vector<1x256xf32>
    %446 = vector.broadcast %445 : vector<1x256xf32> to vector<16x256xf32>
    %447 = arith.mulf %446, %436 : vector<16x256xf32>
    %448 = arith.addf %433, %447 : vector<16x256xf32>
    %449 = vector.extract_strided_slice %28 {offsets = [0, 6], sizes = [16, 250], strides = [1, 1]} : vector<16x256xf32> to vector<16x250xf32>
    %450 = vector.extract_strided_slice %28 {offsets = [0, 0], sizes = [16, 6], strides = [1, 1]} : vector<16x256xf32> to vector<16x6xf32>
    %451 = tpu.concatenate %449, %450 in 1 : vector<16x250xf32>, vector<16x6xf32> -> vector<16x256xf32>
    %c28 = arith.constant 28 : index
    %c0_97 = arith.constant 0 : index
    %452 = vector.load %arg3[%c28, %c0_97] : memref<135x256xf32, #tpu.memory_space<vmem>>, vector<1x256xf32>
    %453 = vector.broadcast %452 : vector<1x256xf32> to vector<16x256xf32>
    %454 = arith.mulf %453, %451 : vector<16x256xf32>
    %455 = arith.addf %440, %454 : vector<16x256xf32>
    %c73 = arith.constant 73 : index
    %c0_98 = arith.constant 0 : index
    %456 = vector.load %arg3[%c73, %c0_98] : memref<135x256xf32, #tpu.memory_space<vmem>>, vector<1x256xf32>
    %457 = vector.broadcast %456 : vector<1x256xf32> to vector<16x256xf32>
    %458 = arith.mulf %457, %451 : vector<16x256xf32>
    %459 = arith.addf %444, %458 : vector<16x256xf32>
    %c118 = arith.constant 118 : index
    %c0_99 = arith.constant 0 : index
    %460 = vector.load %arg3[%c118, %c0_99] : memref<135x256xf32, #tpu.memory_space<vmem>>, vector<1x256xf32>
    %461 = vector.broadcast %460 : vector<1x256xf32> to vector<16x256xf32>
    %462 = arith.mulf %461, %451 : vector<16x256xf32>
    %463 = arith.addf %448, %462 : vector<16x256xf32>
    %464 = vector.extract_strided_slice %28 {offsets = [0, 7], sizes = [16, 249], strides = [1, 1]} : vector<16x256xf32> to vector<16x249xf32>
    %465 = vector.extract_strided_slice %28 {offsets = [0, 0], sizes = [16, 7], strides = [1, 1]} : vector<16x256xf32> to vector<16x7xf32>
    %466 = tpu.concatenate %464, %465 in 1 : vector<16x249xf32>, vector<16x7xf32> -> vector<16x256xf32>
    %c29 = arith.constant 29 : index
    %c0_100 = arith.constant 0 : index
    %467 = vector.load %arg3[%c29, %c0_100] : memref<135x256xf32, #tpu.memory_space<vmem>>, vector<1x256xf32>
    %468 = vector.broadcast %467 : vector<1x256xf32> to vector<16x256xf32>
    %469 = arith.mulf %468, %466 : vector<16x256xf32>
    %470 = arith.addf %455, %469 : vector<16x256xf32>
    %c74 = arith.constant 74 : index
    %c0_101 = arith.constant 0 : index
    %471 = vector.load %arg3[%c74, %c0_101] : memref<135x256xf32, #tpu.memory_space<vmem>>, vector<1x256xf32>
    %472 = vector.broadcast %471 : vector<1x256xf32> to vector<16x256xf32>
    %473 = arith.mulf %472, %466 : vector<16x256xf32>
    %474 = arith.addf %459, %473 : vector<16x256xf32>
    %c119 = arith.constant 119 : index
    %c0_102 = arith.constant 0 : index
    %475 = vector.load %arg3[%c119, %c0_102] : memref<135x256xf32, #tpu.memory_space<vmem>>, vector<1x256xf32>
    %476 = vector.broadcast %475 : vector<1x256xf32> to vector<16x256xf32>
    %477 = arith.mulf %476, %466 : vector<16x256xf32>
    %478 = arith.addf %463, %477 : vector<16x256xf32>
    %479 = vector.extract_strided_slice %28 {offsets = [0, 25], sizes = [16, 231], strides = [1, 1]} : vector<16x256xf32> to vector<16x231xf32>
    %480 = vector.extract_strided_slice %28 {offsets = [0, 0], sizes = [16, 25], strides = [1, 1]} : vector<16x256xf32> to vector<16x25xf32>
    %481 = tpu.concatenate %479, %480 in 1 : vector<16x231xf32>, vector<16x25xf32> -> vector<16x256xf32>
    %c30 = arith.constant 30 : index
    %c0_103 = arith.constant 0 : index
    %482 = vector.load %arg3[%c30, %c0_103] : memref<135x256xf32, #tpu.memory_space<vmem>>, vector<1x256xf32>
    %483 = vector.broadcast %482 : vector<1x256xf32> to vector<16x256xf32>
    %484 = arith.mulf %483, %481 : vector<16x256xf32>
    %485 = arith.addf %470, %484 : vector<16x256xf32>
    %c75 = arith.constant 75 : index
    %c0_104 = arith.constant 0 : index
    %486 = vector.load %arg3[%c75, %c0_104] : memref<135x256xf32, #tpu.memory_space<vmem>>, vector<1x256xf32>
    %487 = vector.broadcast %486 : vector<1x256xf32> to vector<16x256xf32>
    %488 = arith.mulf %487, %481 : vector<16x256xf32>
    %489 = arith.addf %474, %488 : vector<16x256xf32>
    %c120 = arith.constant 120 : index
    %c0_105 = arith.constant 0 : index
    %490 = vector.load %arg3[%c120, %c0_105] : memref<135x256xf32, #tpu.memory_space<vmem>>, vector<1x256xf32>
    %491 = vector.broadcast %490 : vector<1x256xf32> to vector<16x256xf32>
    %492 = arith.mulf %491, %481 : vector<16x256xf32>
    %493 = arith.addf %478, %492 : vector<16x256xf32>
    %494 = vector.extract_strided_slice %28 {offsets = [0, 26], sizes = [16, 230], strides = [1, 1]} : vector<16x256xf32> to vector<16x230xf32>
    %495 = vector.extract_strided_slice %28 {offsets = [0, 0], sizes = [16, 26], strides = [1, 1]} : vector<16x256xf32> to vector<16x26xf32>
    %496 = tpu.concatenate %494, %495 in 1 : vector<16x230xf32>, vector<16x26xf32> -> vector<16x256xf32>
    %c31 = arith.constant 31 : index
    %c0_106 = arith.constant 0 : index
    %497 = vector.load %arg3[%c31, %c0_106] : memref<135x256xf32, #tpu.memory_space<vmem>>, vector<1x256xf32>
    %498 = vector.broadcast %497 : vector<1x256xf32> to vector<16x256xf32>
    %499 = arith.mulf %498, %496 : vector<16x256xf32>
    %500 = arith.addf %485, %499 : vector<16x256xf32>
    %c76 = arith.constant 76 : index
    %c0_107 = arith.constant 0 : index
    %501 = vector.load %arg3[%c76, %c0_107] : memref<135x256xf32, #tpu.memory_space<vmem>>, vector<1x256xf32>
    %502 = vector.broadcast %501 : vector<1x256xf32> to vector<16x256xf32>
    %503 = arith.mulf %502, %496 : vector<16x256xf32>
    %504 = arith.addf %489, %503 : vector<16x256xf32>
    %c121 = arith.constant 121 : index
    %c0_108 = arith.constant 0 : index
    %505 = vector.load %arg3[%c121, %c0_108] : memref<135x256xf32, #tpu.memory_space<vmem>>, vector<1x256xf32>
    %506 = vector.broadcast %505 : vector<1x256xf32> to vector<16x256xf32>
    %507 = arith.mulf %506, %496 : vector<16x256xf32>
    %508 = arith.addf %493, %507 : vector<16x256xf32>
    %509 = vector.extract_strided_slice %28 {offsets = [0, 27], sizes = [16, 229], strides = [1, 1]} : vector<16x256xf32> to vector<16x229xf32>
    %510 = vector.extract_strided_slice %28 {offsets = [0, 0], sizes = [16, 27], strides = [1, 1]} : vector<16x256xf32> to vector<16x27xf32>
    %511 = tpu.concatenate %509, %510 in 1 : vector<16x229xf32>, vector<16x27xf32> -> vector<16x256xf32>
    %c32 = arith.constant 32 : index
    %c0_109 = arith.constant 0 : index
    %512 = vector.load %arg3[%c32, %c0_109] : memref<135x256xf32, #tpu.memory_space<vmem>>, vector<1x256xf32>
    %513 = vector.broadcast %512 : vector<1x256xf32> to vector<16x256xf32>
    %514 = arith.mulf %513, %511 : vector<16x256xf32>
    %515 = arith.addf %500, %514 : vector<16x256xf32>
    %c77 = arith.constant 77 : index
    %c0_110 = arith.constant 0 : index
    %516 = vector.load %arg3[%c77, %c0_110] : memref<135x256xf32, #tpu.memory_space<vmem>>, vector<1x256xf32>
    %517 = vector.broadcast %516 : vector<1x256xf32> to vector<16x256xf32>
    %518 = arith.mulf %517, %511 : vector<16x256xf32>
    %519 = arith.addf %504, %518 : vector<16x256xf32>
    %c122 = arith.constant 122 : index
    %c0_111 = arith.constant 0 : index
    %520 = vector.load %arg3[%c122, %c0_111] : memref<135x256xf32, #tpu.memory_space<vmem>>, vector<1x256xf32>
    %521 = vector.broadcast %520 : vector<1x256xf32> to vector<16x256xf32>
    %522 = arith.mulf %521, %511 : vector<16x256xf32>
    %523 = arith.addf %508, %522 : vector<16x256xf32>
    %524 = vector.extract_strided_slice %28 {offsets = [0, 28], sizes = [16, 228], strides = [1, 1]} : vector<16x256xf32> to vector<16x228xf32>
    %525 = vector.extract_strided_slice %28 {offsets = [0, 0], sizes = [16, 28], strides = [1, 1]} : vector<16x256xf32> to vector<16x28xf32>
    %526 = tpu.concatenate %524, %525 in 1 : vector<16x228xf32>, vector<16x28xf32> -> vector<16x256xf32>
    %c33 = arith.constant 33 : index
    %c0_112 = arith.constant 0 : index
    %527 = vector.load %arg3[%c33, %c0_112] : memref<135x256xf32, #tpu.memory_space<vmem>>, vector<1x256xf32>
    %528 = vector.broadcast %527 : vector<1x256xf32> to vector<16x256xf32>
    %529 = arith.mulf %528, %526 : vector<16x256xf32>
    %530 = arith.addf %515, %529 : vector<16x256xf32>
    %c78 = arith.constant 78 : index
    %c0_113 = arith.constant 0 : index
    %531 = vector.load %arg3[%c78, %c0_113] : memref<135x256xf32, #tpu.memory_space<vmem>>, vector<1x256xf32>
    %532 = vector.broadcast %531 : vector<1x256xf32> to vector<16x256xf32>
    %533 = arith.mulf %532, %526 : vector<16x256xf32>
    %534 = arith.addf %519, %533 : vector<16x256xf32>
    %c123 = arith.constant 123 : index
    %c0_114 = arith.constant 0 : index
    %535 = vector.load %arg3[%c123, %c0_114] : memref<135x256xf32, #tpu.memory_space<vmem>>, vector<1x256xf32>
    %536 = vector.broadcast %535 : vector<1x256xf32> to vector<16x256xf32>
    %537 = arith.mulf %536, %526 : vector<16x256xf32>
    %538 = arith.addf %523, %537 : vector<16x256xf32>
    %539 = vector.extract_strided_slice %28 {offsets = [0, 29], sizes = [16, 227], strides = [1, 1]} : vector<16x256xf32> to vector<16x227xf32>
    %540 = vector.extract_strided_slice %28 {offsets = [0, 0], sizes = [16, 29], strides = [1, 1]} : vector<16x256xf32> to vector<16x29xf32>
    %541 = tpu.concatenate %539, %540 in 1 : vector<16x227xf32>, vector<16x29xf32> -> vector<16x256xf32>
    %c34 = arith.constant 34 : index
    %c0_115 = arith.constant 0 : index
    %542 = vector.load %arg3[%c34, %c0_115] : memref<135x256xf32, #tpu.memory_space<vmem>>, vector<1x256xf32>
    %543 = vector.broadcast %542 : vector<1x256xf32> to vector<16x256xf32>
    %544 = arith.mulf %543, %541 : vector<16x256xf32>
    %545 = arith.addf %530, %544 : vector<16x256xf32>
    %c79 = arith.constant 79 : index
    %c0_116 = arith.constant 0 : index
    %546 = vector.load %arg3[%c79, %c0_116] : memref<135x256xf32, #tpu.memory_space<vmem>>, vector<1x256xf32>
    %547 = vector.broadcast %546 : vector<1x256xf32> to vector<16x256xf32>
    %548 = arith.mulf %547, %541 : vector<16x256xf32>
    %549 = arith.addf %534, %548 : vector<16x256xf32>
    %c124 = arith.constant 124 : index
    %c0_117 = arith.constant 0 : index
    %550 = vector.load %arg3[%c124, %c0_117] : memref<135x256xf32, #tpu.memory_space<vmem>>, vector<1x256xf32>
    %551 = vector.broadcast %550 : vector<1x256xf32> to vector<16x256xf32>
    %552 = arith.mulf %551, %541 : vector<16x256xf32>
    %553 = arith.addf %538, %552 : vector<16x256xf32>
    %554 = vector.extract_strided_slice %28 {offsets = [0, 30], sizes = [16, 226], strides = [1, 1]} : vector<16x256xf32> to vector<16x226xf32>
    %555 = vector.extract_strided_slice %28 {offsets = [0, 0], sizes = [16, 30], strides = [1, 1]} : vector<16x256xf32> to vector<16x30xf32>
    %556 = tpu.concatenate %554, %555 in 1 : vector<16x226xf32>, vector<16x30xf32> -> vector<16x256xf32>
    %c35 = arith.constant 35 : index
    %c0_118 = arith.constant 0 : index
    %557 = vector.load %arg3[%c35, %c0_118] : memref<135x256xf32, #tpu.memory_space<vmem>>, vector<1x256xf32>
    %558 = vector.broadcast %557 : vector<1x256xf32> to vector<16x256xf32>
    %559 = arith.mulf %558, %556 : vector<16x256xf32>
    %560 = arith.addf %545, %559 : vector<16x256xf32>
    %c80 = arith.constant 80 : index
    %c0_119 = arith.constant 0 : index
    %561 = vector.load %arg3[%c80, %c0_119] : memref<135x256xf32, #tpu.memory_space<vmem>>, vector<1x256xf32>
    %562 = vector.broadcast %561 : vector<1x256xf32> to vector<16x256xf32>
    %563 = arith.mulf %562, %556 : vector<16x256xf32>
    %564 = arith.addf %549, %563 : vector<16x256xf32>
    %c125 = arith.constant 125 : index
    %c0_120 = arith.constant 0 : index
    %565 = vector.load %arg3[%c125, %c0_120] : memref<135x256xf32, #tpu.memory_space<vmem>>, vector<1x256xf32>
    %566 = vector.broadcast %565 : vector<1x256xf32> to vector<16x256xf32>
    %567 = arith.mulf %566, %556 : vector<16x256xf32>
    %568 = arith.addf %553, %567 : vector<16x256xf32>
    %569 = vector.extract_strided_slice %28 {offsets = [0, 31], sizes = [16, 225], strides = [1, 1]} : vector<16x256xf32> to vector<16x225xf32>
    %570 = vector.extract_strided_slice %28 {offsets = [0, 0], sizes = [16, 31], strides = [1, 1]} : vector<16x256xf32> to vector<16x31xf32>
    %571 = tpu.concatenate %569, %570 in 1 : vector<16x225xf32>, vector<16x31xf32> -> vector<16x256xf32>
    %c36 = arith.constant 36 : index
    %c0_121 = arith.constant 0 : index
    %572 = vector.load %arg3[%c36, %c0_121] : memref<135x256xf32, #tpu.memory_space<vmem>>, vector<1x256xf32>
    %573 = vector.broadcast %572 : vector<1x256xf32> to vector<16x256xf32>
    %574 = arith.mulf %573, %571 : vector<16x256xf32>
    %575 = arith.addf %560, %574 : vector<16x256xf32>
    %c81 = arith.constant 81 : index
    %c0_122 = arith.constant 0 : index
    %576 = vector.load %arg3[%c81, %c0_122] : memref<135x256xf32, #tpu.memory_space<vmem>>, vector<1x256xf32>
    %577 = vector.broadcast %576 : vector<1x256xf32> to vector<16x256xf32>
    %578 = arith.mulf %577, %571 : vector<16x256xf32>
    %579 = arith.addf %564, %578 : vector<16x256xf32>
    %c126 = arith.constant 126 : index
    %c0_123 = arith.constant 0 : index
    %580 = vector.load %arg3[%c126, %c0_123] : memref<135x256xf32, #tpu.memory_space<vmem>>, vector<1x256xf32>
    %581 = vector.broadcast %580 : vector<1x256xf32> to vector<16x256xf32>
    %582 = arith.mulf %581, %571 : vector<16x256xf32>
    %583 = arith.addf %568, %582 : vector<16x256xf32>
    %584 = vector.extract_strided_slice %28 {offsets = [0, 32], sizes = [16, 224], strides = [1, 1]} : vector<16x256xf32> to vector<16x224xf32>
    %585 = vector.extract_strided_slice %28 {offsets = [0, 0], sizes = [16, 32], strides = [1, 1]} : vector<16x256xf32> to vector<16x32xf32>
    %586 = tpu.concatenate %584, %585 in 1 : vector<16x224xf32>, vector<16x32xf32> -> vector<16x256xf32>
    %c37 = arith.constant 37 : index
    %c0_124 = arith.constant 0 : index
    %587 = vector.load %arg3[%c37, %c0_124] : memref<135x256xf32, #tpu.memory_space<vmem>>, vector<1x256xf32>
    %588 = vector.broadcast %587 : vector<1x256xf32> to vector<16x256xf32>
    %589 = arith.mulf %588, %586 : vector<16x256xf32>
    %590 = arith.addf %575, %589 : vector<16x256xf32>
    %c82 = arith.constant 82 : index
    %c0_125 = arith.constant 0 : index
    %591 = vector.load %arg3[%c82, %c0_125] : memref<135x256xf32, #tpu.memory_space<vmem>>, vector<1x256xf32>
    %592 = vector.broadcast %591 : vector<1x256xf32> to vector<16x256xf32>
    %593 = arith.mulf %592, %586 : vector<16x256xf32>
    %594 = arith.addf %579, %593 : vector<16x256xf32>
    %c127 = arith.constant 127 : index
    %c0_126 = arith.constant 0 : index
    %595 = vector.load %arg3[%c127, %c0_126] : memref<135x256xf32, #tpu.memory_space<vmem>>, vector<1x256xf32>
    %596 = vector.broadcast %595 : vector<1x256xf32> to vector<16x256xf32>
    %597 = arith.mulf %596, %586 : vector<16x256xf32>
    %598 = arith.addf %583, %597 : vector<16x256xf32>
    %599 = vector.extract_strided_slice %28 {offsets = [0, 33], sizes = [16, 223], strides = [1, 1]} : vector<16x256xf32> to vector<16x223xf32>
    %600 = vector.extract_strided_slice %28 {offsets = [0, 0], sizes = [16, 33], strides = [1, 1]} : vector<16x256xf32> to vector<16x33xf32>
    %601 = tpu.concatenate %599, %600 in 1 : vector<16x223xf32>, vector<16x33xf32> -> vector<16x256xf32>
    %c38 = arith.constant 38 : index
    %c0_127 = arith.constant 0 : index
    %602 = vector.load %arg3[%c38, %c0_127] : memref<135x256xf32, #tpu.memory_space<vmem>>, vector<1x256xf32>
    %603 = vector.broadcast %602 : vector<1x256xf32> to vector<16x256xf32>
    %604 = arith.mulf %603, %601 : vector<16x256xf32>
    %605 = arith.addf %590, %604 : vector<16x256xf32>
    %c83 = arith.constant 83 : index
    %c0_128 = arith.constant 0 : index
    %606 = vector.load %arg3[%c83, %c0_128] : memref<135x256xf32, #tpu.memory_space<vmem>>, vector<1x256xf32>
    %607 = vector.broadcast %606 : vector<1x256xf32> to vector<16x256xf32>
    %608 = arith.mulf %607, %601 : vector<16x256xf32>
    %609 = arith.addf %594, %608 : vector<16x256xf32>
    %c128 = arith.constant 128 : index
    %c0_129 = arith.constant 0 : index
    %610 = vector.load %arg3[%c128, %c0_129] : memref<135x256xf32, #tpu.memory_space<vmem>>, vector<1x256xf32>
    %611 = vector.broadcast %610 : vector<1x256xf32> to vector<16x256xf32>
    %612 = arith.mulf %611, %601 : vector<16x256xf32>
    %613 = arith.addf %598, %612 : vector<16x256xf32>
    %614 = vector.extract_strided_slice %28 {offsets = [0, 34], sizes = [16, 222], strides = [1, 1]} : vector<16x256xf32> to vector<16x222xf32>
    %615 = vector.extract_strided_slice %28 {offsets = [0, 0], sizes = [16, 34], strides = [1, 1]} : vector<16x256xf32> to vector<16x34xf32>
    %616 = tpu.concatenate %614, %615 in 1 : vector<16x222xf32>, vector<16x34xf32> -> vector<16x256xf32>
    %c39 = arith.constant 39 : index
    %c0_130 = arith.constant 0 : index
    %617 = vector.load %arg3[%c39, %c0_130] : memref<135x256xf32, #tpu.memory_space<vmem>>, vector<1x256xf32>
    %618 = vector.broadcast %617 : vector<1x256xf32> to vector<16x256xf32>
    %619 = arith.mulf %618, %616 : vector<16x256xf32>
    %620 = arith.addf %605, %619 : vector<16x256xf32>
    %c84 = arith.constant 84 : index
    %c0_131 = arith.constant 0 : index
    %621 = vector.load %arg3[%c84, %c0_131] : memref<135x256xf32, #tpu.memory_space<vmem>>, vector<1x256xf32>
    %622 = vector.broadcast %621 : vector<1x256xf32> to vector<16x256xf32>
    %623 = arith.mulf %622, %616 : vector<16x256xf32>
    %624 = arith.addf %609, %623 : vector<16x256xf32>
    %c129 = arith.constant 129 : index
    %c0_132 = arith.constant 0 : index
    %625 = vector.load %arg3[%c129, %c0_132] : memref<135x256xf32, #tpu.memory_space<vmem>>, vector<1x256xf32>
    %626 = vector.broadcast %625 : vector<1x256xf32> to vector<16x256xf32>
    %627 = arith.mulf %626, %616 : vector<16x256xf32>
    %628 = arith.addf %613, %627 : vector<16x256xf32>
    %629 = vector.extract_strided_slice %28 {offsets = [0, 35], sizes = [16, 221], strides = [1, 1]} : vector<16x256xf32> to vector<16x221xf32>
    %630 = vector.extract_strided_slice %28 {offsets = [0, 0], sizes = [16, 35], strides = [1, 1]} : vector<16x256xf32> to vector<16x35xf32>
    %631 = tpu.concatenate %629, %630 in 1 : vector<16x221xf32>, vector<16x35xf32> -> vector<16x256xf32>
    %c40 = arith.constant 40 : index
    %c0_133 = arith.constant 0 : index
    %632 = vector.load %arg3[%c40, %c0_133] : memref<135x256xf32, #tpu.memory_space<vmem>>, vector<1x256xf32>
    %633 = vector.broadcast %632 : vector<1x256xf32> to vector<16x256xf32>
    %634 = arith.mulf %633, %631 : vector<16x256xf32>
    %635 = arith.addf %620, %634 : vector<16x256xf32>
    %c85 = arith.constant 85 : index
    %c0_134 = arith.constant 0 : index
    %636 = vector.load %arg3[%c85, %c0_134] : memref<135x256xf32, #tpu.memory_space<vmem>>, vector<1x256xf32>
    %637 = vector.broadcast %636 : vector<1x256xf32> to vector<16x256xf32>
    %638 = arith.mulf %637, %631 : vector<16x256xf32>
    %639 = arith.addf %624, %638 : vector<16x256xf32>
    %c130 = arith.constant 130 : index
    %c0_135 = arith.constant 0 : index
    %640 = vector.load %arg3[%c130, %c0_135] : memref<135x256xf32, #tpu.memory_space<vmem>>, vector<1x256xf32>
    %641 = vector.broadcast %640 : vector<1x256xf32> to vector<16x256xf32>
    %642 = arith.mulf %641, %631 : vector<16x256xf32>
    %643 = arith.addf %628, %642 : vector<16x256xf32>
    %644 = vector.extract_strided_slice %28 {offsets = [0, 36], sizes = [16, 220], strides = [1, 1]} : vector<16x256xf32> to vector<16x220xf32>
    %645 = vector.extract_strided_slice %28 {offsets = [0, 0], sizes = [16, 36], strides = [1, 1]} : vector<16x256xf32> to vector<16x36xf32>
    %646 = tpu.concatenate %644, %645 in 1 : vector<16x220xf32>, vector<16x36xf32> -> vector<16x256xf32>
    %c41 = arith.constant 41 : index
    %c0_136 = arith.constant 0 : index
    %647 = vector.load %arg3[%c41, %c0_136] : memref<135x256xf32, #tpu.memory_space<vmem>>, vector<1x256xf32>
    %648 = vector.broadcast %647 : vector<1x256xf32> to vector<16x256xf32>
    %649 = arith.mulf %648, %646 : vector<16x256xf32>
    %650 = arith.addf %635, %649 : vector<16x256xf32>
    %c86 = arith.constant 86 : index
    %c0_137 = arith.constant 0 : index
    %651 = vector.load %arg3[%c86, %c0_137] : memref<135x256xf32, #tpu.memory_space<vmem>>, vector<1x256xf32>
    %652 = vector.broadcast %651 : vector<1x256xf32> to vector<16x256xf32>
    %653 = arith.mulf %652, %646 : vector<16x256xf32>
    %654 = arith.addf %639, %653 : vector<16x256xf32>
    %c131 = arith.constant 131 : index
    %c0_138 = arith.constant 0 : index
    %655 = vector.load %arg3[%c131, %c0_138] : memref<135x256xf32, #tpu.memory_space<vmem>>, vector<1x256xf32>
    %656 = vector.broadcast %655 : vector<1x256xf32> to vector<16x256xf32>
    %657 = arith.mulf %656, %646 : vector<16x256xf32>
    %658 = arith.addf %643, %657 : vector<16x256xf32>
    %659 = vector.extract_strided_slice %28 {offsets = [0, 37], sizes = [16, 219], strides = [1, 1]} : vector<16x256xf32> to vector<16x219xf32>
    %660 = vector.extract_strided_slice %28 {offsets = [0, 0], sizes = [16, 37], strides = [1, 1]} : vector<16x256xf32> to vector<16x37xf32>
    %661 = tpu.concatenate %659, %660 in 1 : vector<16x219xf32>, vector<16x37xf32> -> vector<16x256xf32>
    %c42 = arith.constant 42 : index
    %c0_139 = arith.constant 0 : index
    %662 = vector.load %arg3[%c42, %c0_139] : memref<135x256xf32, #tpu.memory_space<vmem>>, vector<1x256xf32>
    %663 = vector.broadcast %662 : vector<1x256xf32> to vector<16x256xf32>
    %664 = arith.mulf %663, %661 : vector<16x256xf32>
    %665 = arith.addf %650, %664 : vector<16x256xf32>
    %c87 = arith.constant 87 : index
    %c0_140 = arith.constant 0 : index
    %666 = vector.load %arg3[%c87, %c0_140] : memref<135x256xf32, #tpu.memory_space<vmem>>, vector<1x256xf32>
    %667 = vector.broadcast %666 : vector<1x256xf32> to vector<16x256xf32>
    %668 = arith.mulf %667, %661 : vector<16x256xf32>
    %669 = arith.addf %654, %668 : vector<16x256xf32>
    %c132 = arith.constant 132 : index
    %c0_141 = arith.constant 0 : index
    %670 = vector.load %arg3[%c132, %c0_141] : memref<135x256xf32, #tpu.memory_space<vmem>>, vector<1x256xf32>
    %671 = vector.broadcast %670 : vector<1x256xf32> to vector<16x256xf32>
    %672 = arith.mulf %671, %661 : vector<16x256xf32>
    %673 = arith.addf %658, %672 : vector<16x256xf32>
    %674 = vector.extract_strided_slice %28 {offsets = [0, 38], sizes = [16, 218], strides = [1, 1]} : vector<16x256xf32> to vector<16x218xf32>
    %675 = vector.extract_strided_slice %28 {offsets = [0, 0], sizes = [16, 38], strides = [1, 1]} : vector<16x256xf32> to vector<16x38xf32>
    %676 = tpu.concatenate %674, %675 in 1 : vector<16x218xf32>, vector<16x38xf32> -> vector<16x256xf32>
    %c43 = arith.constant 43 : index
    %c0_142 = arith.constant 0 : index
    %677 = vector.load %arg3[%c43, %c0_142] : memref<135x256xf32, #tpu.memory_space<vmem>>, vector<1x256xf32>
    %678 = vector.broadcast %677 : vector<1x256xf32> to vector<16x256xf32>
    %679 = arith.mulf %678, %676 : vector<16x256xf32>
    %680 = arith.addf %665, %679 : vector<16x256xf32>
    %c88 = arith.constant 88 : index
    %c0_143 = arith.constant 0 : index
    %681 = vector.load %arg3[%c88, %c0_143] : memref<135x256xf32, #tpu.memory_space<vmem>>, vector<1x256xf32>
    %682 = vector.broadcast %681 : vector<1x256xf32> to vector<16x256xf32>
    %683 = arith.mulf %682, %676 : vector<16x256xf32>
    %684 = arith.addf %669, %683 : vector<16x256xf32>
    %c133 = arith.constant 133 : index
    %c0_144 = arith.constant 0 : index
    %685 = vector.load %arg3[%c133, %c0_144] : memref<135x256xf32, #tpu.memory_space<vmem>>, vector<1x256xf32>
    %686 = vector.broadcast %685 : vector<1x256xf32> to vector<16x256xf32>
    %687 = arith.mulf %686, %676 : vector<16x256xf32>
    %688 = arith.addf %673, %687 : vector<16x256xf32>
    %689 = vector.extract_strided_slice %28 {offsets = [0, 39], sizes = [16, 217], strides = [1, 1]} : vector<16x256xf32> to vector<16x217xf32>
    %690 = vector.extract_strided_slice %28 {offsets = [0, 0], sizes = [16, 39], strides = [1, 1]} : vector<16x256xf32> to vector<16x39xf32>
    %691 = tpu.concatenate %689, %690 in 1 : vector<16x217xf32>, vector<16x39xf32> -> vector<16x256xf32>
    %c44 = arith.constant 44 : index
    %c0_145 = arith.constant 0 : index
    %692 = vector.load %arg3[%c44, %c0_145] : memref<135x256xf32, #tpu.memory_space<vmem>>, vector<1x256xf32>
    %693 = vector.broadcast %692 : vector<1x256xf32> to vector<16x256xf32>
    %694 = arith.mulf %693, %691 : vector<16x256xf32>
    %695 = arith.addf %680, %694 : vector<16x256xf32>
    %c89 = arith.constant 89 : index
    %c0_146 = arith.constant 0 : index
    %696 = vector.load %arg3[%c89, %c0_146] : memref<135x256xf32, #tpu.memory_space<vmem>>, vector<1x256xf32>
    %697 = vector.broadcast %696 : vector<1x256xf32> to vector<16x256xf32>
    %698 = arith.mulf %697, %691 : vector<16x256xf32>
    %699 = arith.addf %684, %698 : vector<16x256xf32>
    %c134 = arith.constant 134 : index
    %c0_147 = arith.constant 0 : index
    %700 = vector.load %arg3[%c134, %c0_147] : memref<135x256xf32, #tpu.memory_space<vmem>>, vector<1x256xf32>
    %701 = vector.broadcast %700 : vector<1x256xf32> to vector<16x256xf32>
    %702 = arith.mulf %701, %691 : vector<16x256xf32>
    %703 = arith.addf %688, %702 : vector<16x256xf32>
    %704 = vector.extract_strided_slice %695 {offsets = [15, 0], sizes = [1, 256], strides = [1, 1]} : vector<16x256xf32> to vector<1x256xf32>
    %705 = vector.extract_strided_slice %695 {offsets = [0, 0], sizes = [15, 256], strides = [1, 1]} : vector<16x256xf32> to vector<15x256xf32>
    %706 = tpu.concatenate %704, %705 in 0 : vector<1x256xf32>, vector<15x256xf32> -> vector<16x256xf32>
    %cst_148 = arith.constant 0.000000e+00 : f32
    %707 = vector.shape_cast %24 : vector<16x1xi1> to vector<16x1xi1>
    %708 = vector.broadcast %707 : vector<16x1xi1> to vector<16x256xi1>
    %709 = vector.broadcast %cst_148 : f32 to vector<16x256xf32>
    %710 = arith.select %708, %706, %709 : vector<16x256xi1>, vector<16x256xf32>
    %711 = arith.addf %699, %710 : vector<16x256xf32>
    %712 = vector.extract_strided_slice %703 {offsets = [1, 0], sizes = [15, 256], strides = [1, 1]} : vector<16x256xf32> to vector<15x256xf32>
    %713 = vector.extract_strided_slice %703 {offsets = [0, 0], sizes = [1, 256], strides = [1, 1]} : vector<16x256xf32> to vector<1x256xf32>
    %714 = tpu.concatenate %712, %713 in 0 : vector<15x256xf32>, vector<1x256xf32> -> vector<16x256xf32>
    %cst_149 = arith.constant 0.000000e+00 : f32
    %715 = vector.shape_cast %26 : vector<16x1xi1> to vector<16x1xi1>
    %716 = vector.broadcast %715 : vector<16x1xi1> to vector<16x256xi1>
    %717 = vector.broadcast %cst_149 : f32 to vector<16x256xf32>
    %718 = arith.select %716, %714, %717 : vector<16x256xi1>, vector<16x256xf32>
    %719 = arith.addf %711, %718 : vector<16x256xf32>
    %720 = vector.broadcast %1 : f32 to vector<16x256xf32>
    %721 = arith.addf %719, %720 : vector<16x256xf32>
    %cst_150 = arith.constant 0.000000e+00 : f32
    %722 = vector.broadcast %cst_150 : f32 to vector<16x256xf32>
    %723 = arith.maximumf %721, %722 : vector<16x256xf32>
    %724 = vector.broadcast %2 : f32 to vector<16x256xf32>
    %725 = arith.addf %723, %724 : vector<16x256xf32>
    %cst_151 = arith.constant 0.000000e+00 : f32
    %726 = vector.broadcast %cst_151 : f32 to vector<16x256xf32>
    %cst_152 = arith.constant 0.000000e+00 : f32
    %727 = vector.broadcast %cst_152 : f32 to vector<16x256xf32>
    %cst_153 = arith.constant 0.000000e+00 : f32
    %728 = vector.broadcast %cst_153 : f32 to vector<16x256xf32>
    %729 = vector.extract_strided_slice %725 {offsets = [0, 217], sizes = [16, 39], strides = [1, 1]} : vector<16x256xf32> to vector<16x39xf32>
    %730 = vector.extract_strided_slice %725 {offsets = [0, 0], sizes = [16, 217], strides = [1, 1]} : vector<16x256xf32> to vector<16x217xf32>
    %731 = tpu.concatenate %729, %730 in 1 : vector<16x39xf32>, vector<16x217xf32> -> vector<16x256xf32>
    %c0_154 = arith.constant 0 : index
    %c0_155 = arith.constant 0 : index
    %732 = vector.load %arg4[%c0_154, %c0_155] : memref<135x256xf32, #tpu.memory_space<vmem>>, vector<1x256xf32>
    %733 = vector.broadcast %732 : vector<1x256xf32> to vector<16x256xf32>
    %734 = arith.mulf %733, %731 : vector<16x256xf32>
    %735 = arith.addf %726, %734 : vector<16x256xf32>
    %c45_156 = arith.constant 45 : index
    %c0_157 = arith.constant 0 : index
    %736 = vector.load %arg4[%c45_156, %c0_157] : memref<135x256xf32, #tpu.memory_space<vmem>>, vector<1x256xf32>
    %737 = vector.broadcast %736 : vector<1x256xf32> to vector<16x256xf32>
    %738 = arith.mulf %737, %731 : vector<16x256xf32>
    %739 = arith.addf %727, %738 : vector<16x256xf32>
    %c90_158 = arith.constant 90 : index
    %c0_159 = arith.constant 0 : index
    %740 = vector.load %arg4[%c90_158, %c0_159] : memref<135x256xf32, #tpu.memory_space<vmem>>, vector<1x256xf32>
    %741 = vector.broadcast %740 : vector<1x256xf32> to vector<16x256xf32>
    %742 = arith.mulf %741, %731 : vector<16x256xf32>
    %743 = arith.addf %728, %742 : vector<16x256xf32>
    %744 = vector.extract_strided_slice %725 {offsets = [0, 218], sizes = [16, 38], strides = [1, 1]} : vector<16x256xf32> to vector<16x38xf32>
    %745 = vector.extract_strided_slice %725 {offsets = [0, 0], sizes = [16, 218], strides = [1, 1]} : vector<16x256xf32> to vector<16x218xf32>
    %746 = tpu.concatenate %744, %745 in 1 : vector<16x38xf32>, vector<16x218xf32> -> vector<16x256xf32>
    %c1_160 = arith.constant 1 : index
    %c0_161 = arith.constant 0 : index
    %747 = vector.load %arg4[%c1_160, %c0_161] : memref<135x256xf32, #tpu.memory_space<vmem>>, vector<1x256xf32>
    %748 = vector.broadcast %747 : vector<1x256xf32> to vector<16x256xf32>
    %749 = arith.mulf %748, %746 : vector<16x256xf32>
    %750 = arith.addf %735, %749 : vector<16x256xf32>
    %c46_162 = arith.constant 46 : index
    %c0_163 = arith.constant 0 : index
    %751 = vector.load %arg4[%c46_162, %c0_163] : memref<135x256xf32, #tpu.memory_space<vmem>>, vector<1x256xf32>
    %752 = vector.broadcast %751 : vector<1x256xf32> to vector<16x256xf32>
    %753 = arith.mulf %752, %746 : vector<16x256xf32>
    %754 = arith.addf %739, %753 : vector<16x256xf32>
    %c91_164 = arith.constant 91 : index
    %c0_165 = arith.constant 0 : index
    %755 = vector.load %arg4[%c91_164, %c0_165] : memref<135x256xf32, #tpu.memory_space<vmem>>, vector<1x256xf32>
    %756 = vector.broadcast %755 : vector<1x256xf32> to vector<16x256xf32>
    %757 = arith.mulf %756, %746 : vector<16x256xf32>
    %758 = arith.addf %743, %757 : vector<16x256xf32>
    %759 = vector.extract_strided_slice %725 {offsets = [0, 219], sizes = [16, 37], strides = [1, 1]} : vector<16x256xf32> to vector<16x37xf32>
    %760 = vector.extract_strided_slice %725 {offsets = [0, 0], sizes = [16, 219], strides = [1, 1]} : vector<16x256xf32> to vector<16x219xf32>
    %761 = tpu.concatenate %759, %760 in 1 : vector<16x37xf32>, vector<16x219xf32> -> vector<16x256xf32>
    %c2_166 = arith.constant 2 : index
    %c0_167 = arith.constant 0 : index
    %762 = vector.load %arg4[%c2_166, %c0_167] : memref<135x256xf32, #tpu.memory_space<vmem>>, vector<1x256xf32>
    %763 = vector.broadcast %762 : vector<1x256xf32> to vector<16x256xf32>
    %764 = arith.mulf %763, %761 : vector<16x256xf32>
    %765 = arith.addf %750, %764 : vector<16x256xf32>
    %c47_168 = arith.constant 47 : index
    %c0_169 = arith.constant 0 : index
    %766 = vector.load %arg4[%c47_168, %c0_169] : memref<135x256xf32, #tpu.memory_space<vmem>>, vector<1x256xf32>
    %767 = vector.broadcast %766 : vector<1x256xf32> to vector<16x256xf32>
    %768 = arith.mulf %767, %761 : vector<16x256xf32>
    %769 = arith.addf %754, %768 : vector<16x256xf32>
    %c92_170 = arith.constant 92 : index
    %c0_171 = arith.constant 0 : index
    %770 = vector.load %arg4[%c92_170, %c0_171] : memref<135x256xf32, #tpu.memory_space<vmem>>, vector<1x256xf32>
    %771 = vector.broadcast %770 : vector<1x256xf32> to vector<16x256xf32>
    %772 = arith.mulf %771, %761 : vector<16x256xf32>
    %773 = arith.addf %758, %772 : vector<16x256xf32>
    %774 = vector.extract_strided_slice %725 {offsets = [0, 220], sizes = [16, 36], strides = [1, 1]} : vector<16x256xf32> to vector<16x36xf32>
    %775 = vector.extract_strided_slice %725 {offsets = [0, 0], sizes = [16, 220], strides = [1, 1]} : vector<16x256xf32> to vector<16x220xf32>
    %776 = tpu.concatenate %774, %775 in 1 : vector<16x36xf32>, vector<16x220xf32> -> vector<16x256xf32>
    %c3_172 = arith.constant 3 : index
    %c0_173 = arith.constant 0 : index
    %777 = vector.load %arg4[%c3_172, %c0_173] : memref<135x256xf32, #tpu.memory_space<vmem>>, vector<1x256xf32>
    %778 = vector.broadcast %777 : vector<1x256xf32> to vector<16x256xf32>
    %779 = arith.mulf %778, %776 : vector<16x256xf32>
    %780 = arith.addf %765, %779 : vector<16x256xf32>
    %c48_174 = arith.constant 48 : index
    %c0_175 = arith.constant 0 : index
    %781 = vector.load %arg4[%c48_174, %c0_175] : memref<135x256xf32, #tpu.memory_space<vmem>>, vector<1x256xf32>
    %782 = vector.broadcast %781 : vector<1x256xf32> to vector<16x256xf32>
    %783 = arith.mulf %782, %776 : vector<16x256xf32>
    %784 = arith.addf %769, %783 : vector<16x256xf32>
    %c93_176 = arith.constant 93 : index
    %c0_177 = arith.constant 0 : index
    %785 = vector.load %arg4[%c93_176, %c0_177] : memref<135x256xf32, #tpu.memory_space<vmem>>, vector<1x256xf32>
    %786 = vector.broadcast %785 : vector<1x256xf32> to vector<16x256xf32>
    %787 = arith.mulf %786, %776 : vector<16x256xf32>
    %788 = arith.addf %773, %787 : vector<16x256xf32>
    %789 = vector.extract_strided_slice %725 {offsets = [0, 221], sizes = [16, 35], strides = [1, 1]} : vector<16x256xf32> to vector<16x35xf32>
    %790 = vector.extract_strided_slice %725 {offsets = [0, 0], sizes = [16, 221], strides = [1, 1]} : vector<16x256xf32> to vector<16x221xf32>
    %791 = tpu.concatenate %789, %790 in 1 : vector<16x35xf32>, vector<16x221xf32> -> vector<16x256xf32>
    %c4_178 = arith.constant 4 : index
    %c0_179 = arith.constant 0 : index
    %792 = vector.load %arg4[%c4_178, %c0_179] : memref<135x256xf32, #tpu.memory_space<vmem>>, vector<1x256xf32>
    %793 = vector.broadcast %792 : vector<1x256xf32> to vector<16x256xf32>
    %794 = arith.mulf %793, %791 : vector<16x256xf32>
    %795 = arith.addf %780, %794 : vector<16x256xf32>
    %c49_180 = arith.constant 49 : index
    %c0_181 = arith.constant 0 : index
    %796 = vector.load %arg4[%c49_180, %c0_181] : memref<135x256xf32, #tpu.memory_space<vmem>>, vector<1x256xf32>
    %797 = vector.broadcast %796 : vector<1x256xf32> to vector<16x256xf32>
    %798 = arith.mulf %797, %791 : vector<16x256xf32>
    %799 = arith.addf %784, %798 : vector<16x256xf32>
    %c94_182 = arith.constant 94 : index
    %c0_183 = arith.constant 0 : index
    %800 = vector.load %arg4[%c94_182, %c0_183] : memref<135x256xf32, #tpu.memory_space<vmem>>, vector<1x256xf32>
    %801 = vector.broadcast %800 : vector<1x256xf32> to vector<16x256xf32>
    %802 = arith.mulf %801, %791 : vector<16x256xf32>
    %803 = arith.addf %788, %802 : vector<16x256xf32>
    %804 = vector.extract_strided_slice %725 {offsets = [0, 222], sizes = [16, 34], strides = [1, 1]} : vector<16x256xf32> to vector<16x34xf32>
    %805 = vector.extract_strided_slice %725 {offsets = [0, 0], sizes = [16, 222], strides = [1, 1]} : vector<16x256xf32> to vector<16x222xf32>
    %806 = tpu.concatenate %804, %805 in 1 : vector<16x34xf32>, vector<16x222xf32> -> vector<16x256xf32>
    %c5_184 = arith.constant 5 : index
    %c0_185 = arith.constant 0 : index
    %807 = vector.load %arg4[%c5_184, %c0_185] : memref<135x256xf32, #tpu.memory_space<vmem>>, vector<1x256xf32>
    %808 = vector.broadcast %807 : vector<1x256xf32> to vector<16x256xf32>
    %809 = arith.mulf %808, %806 : vector<16x256xf32>
    %810 = arith.addf %795, %809 : vector<16x256xf32>
    %c50_186 = arith.constant 50 : index
    %c0_187 = arith.constant 0 : index
    %811 = vector.load %arg4[%c50_186, %c0_187] : memref<135x256xf32, #tpu.memory_space<vmem>>, vector<1x256xf32>
    %812 = vector.broadcast %811 : vector<1x256xf32> to vector<16x256xf32>
    %813 = arith.mulf %812, %806 : vector<16x256xf32>
    %814 = arith.addf %799, %813 : vector<16x256xf32>
    %c95_188 = arith.constant 95 : index
    %c0_189 = arith.constant 0 : index
    %815 = vector.load %arg4[%c95_188, %c0_189] : memref<135x256xf32, #tpu.memory_space<vmem>>, vector<1x256xf32>
    %816 = vector.broadcast %815 : vector<1x256xf32> to vector<16x256xf32>
    %817 = arith.mulf %816, %806 : vector<16x256xf32>
    %818 = arith.addf %803, %817 : vector<16x256xf32>
    %819 = vector.extract_strided_slice %725 {offsets = [0, 223], sizes = [16, 33], strides = [1, 1]} : vector<16x256xf32> to vector<16x33xf32>
    %820 = vector.extract_strided_slice %725 {offsets = [0, 0], sizes = [16, 223], strides = [1, 1]} : vector<16x256xf32> to vector<16x223xf32>
    %821 = tpu.concatenate %819, %820 in 1 : vector<16x33xf32>, vector<16x223xf32> -> vector<16x256xf32>
    %c6_190 = arith.constant 6 : index
    %c0_191 = arith.constant 0 : index
    %822 = vector.load %arg4[%c6_190, %c0_191] : memref<135x256xf32, #tpu.memory_space<vmem>>, vector<1x256xf32>
    %823 = vector.broadcast %822 : vector<1x256xf32> to vector<16x256xf32>
    %824 = arith.mulf %823, %821 : vector<16x256xf32>
    %825 = arith.addf %810, %824 : vector<16x256xf32>
    %c51_192 = arith.constant 51 : index
    %c0_193 = arith.constant 0 : index
    %826 = vector.load %arg4[%c51_192, %c0_193] : memref<135x256xf32, #tpu.memory_space<vmem>>, vector<1x256xf32>
    %827 = vector.broadcast %826 : vector<1x256xf32> to vector<16x256xf32>
    %828 = arith.mulf %827, %821 : vector<16x256xf32>
    %829 = arith.addf %814, %828 : vector<16x256xf32>
    %c96_194 = arith.constant 96 : index
    %c0_195 = arith.constant 0 : index
    %830 = vector.load %arg4[%c96_194, %c0_195] : memref<135x256xf32, #tpu.memory_space<vmem>>, vector<1x256xf32>
    %831 = vector.broadcast %830 : vector<1x256xf32> to vector<16x256xf32>
    %832 = arith.mulf %831, %821 : vector<16x256xf32>
    %833 = arith.addf %818, %832 : vector<16x256xf32>
    %834 = vector.extract_strided_slice %725 {offsets = [0, 224], sizes = [16, 32], strides = [1, 1]} : vector<16x256xf32> to vector<16x32xf32>
    %835 = vector.extract_strided_slice %725 {offsets = [0, 0], sizes = [16, 224], strides = [1, 1]} : vector<16x256xf32> to vector<16x224xf32>
    %836 = tpu.concatenate %834, %835 in 1 : vector<16x32xf32>, vector<16x224xf32> -> vector<16x256xf32>
    %c7_196 = arith.constant 7 : index
    %c0_197 = arith.constant 0 : index
    %837 = vector.load %arg4[%c7_196, %c0_197] : memref<135x256xf32, #tpu.memory_space<vmem>>, vector<1x256xf32>
    %838 = vector.broadcast %837 : vector<1x256xf32> to vector<16x256xf32>
    %839 = arith.mulf %838, %836 : vector<16x256xf32>
    %840 = arith.addf %825, %839 : vector<16x256xf32>
    %c52_198 = arith.constant 52 : index
    %c0_199 = arith.constant 0 : index
    %841 = vector.load %arg4[%c52_198, %c0_199] : memref<135x256xf32, #tpu.memory_space<vmem>>, vector<1x256xf32>
    %842 = vector.broadcast %841 : vector<1x256xf32> to vector<16x256xf32>
    %843 = arith.mulf %842, %836 : vector<16x256xf32>
    %844 = arith.addf %829, %843 : vector<16x256xf32>
    %c97_200 = arith.constant 97 : index
    %c0_201 = arith.constant 0 : index
    %845 = vector.load %arg4[%c97_200, %c0_201] : memref<135x256xf32, #tpu.memory_space<vmem>>, vector<1x256xf32>
    %846 = vector.broadcast %845 : vector<1x256xf32> to vector<16x256xf32>
    %847 = arith.mulf %846, %836 : vector<16x256xf32>
    %848 = arith.addf %833, %847 : vector<16x256xf32>
    %849 = vector.extract_strided_slice %725 {offsets = [0, 225], sizes = [16, 31], strides = [1, 1]} : vector<16x256xf32> to vector<16x31xf32>
    %850 = vector.extract_strided_slice %725 {offsets = [0, 0], sizes = [16, 225], strides = [1, 1]} : vector<16x256xf32> to vector<16x225xf32>
    %851 = tpu.concatenate %849, %850 in 1 : vector<16x31xf32>, vector<16x225xf32> -> vector<16x256xf32>
    %c8_202 = arith.constant 8 : index
    %c0_203 = arith.constant 0 : index
    %852 = vector.load %arg4[%c8_202, %c0_203] : memref<135x256xf32, #tpu.memory_space<vmem>>, vector<1x256xf32>
    %853 = vector.broadcast %852 : vector<1x256xf32> to vector<16x256xf32>
    %854 = arith.mulf %853, %851 : vector<16x256xf32>
    %855 = arith.addf %840, %854 : vector<16x256xf32>
    %c53_204 = arith.constant 53 : index
    %c0_205 = arith.constant 0 : index
    %856 = vector.load %arg4[%c53_204, %c0_205] : memref<135x256xf32, #tpu.memory_space<vmem>>, vector<1x256xf32>
    %857 = vector.broadcast %856 : vector<1x256xf32> to vector<16x256xf32>
    %858 = arith.mulf %857, %851 : vector<16x256xf32>
    %859 = arith.addf %844, %858 : vector<16x256xf32>
    %c98_206 = arith.constant 98 : index
    %c0_207 = arith.constant 0 : index
    %860 = vector.load %arg4[%c98_206, %c0_207] : memref<135x256xf32, #tpu.memory_space<vmem>>, vector<1x256xf32>
    %861 = vector.broadcast %860 : vector<1x256xf32> to vector<16x256xf32>
    %862 = arith.mulf %861, %851 : vector<16x256xf32>
    %863 = arith.addf %848, %862 : vector<16x256xf32>
    %864 = vector.extract_strided_slice %725 {offsets = [0, 226], sizes = [16, 30], strides = [1, 1]} : vector<16x256xf32> to vector<16x30xf32>
    %865 = vector.extract_strided_slice %725 {offsets = [0, 0], sizes = [16, 226], strides = [1, 1]} : vector<16x256xf32> to vector<16x226xf32>
    %866 = tpu.concatenate %864, %865 in 1 : vector<16x30xf32>, vector<16x226xf32> -> vector<16x256xf32>
    %c9_208 = arith.constant 9 : index
    %c0_209 = arith.constant 0 : index
    %867 = vector.load %arg4[%c9_208, %c0_209] : memref<135x256xf32, #tpu.memory_space<vmem>>, vector<1x256xf32>
    %868 = vector.broadcast %867 : vector<1x256xf32> to vector<16x256xf32>
    %869 = arith.mulf %868, %866 : vector<16x256xf32>
    %870 = arith.addf %855, %869 : vector<16x256xf32>
    %c54_210 = arith.constant 54 : index
    %c0_211 = arith.constant 0 : index
    %871 = vector.load %arg4[%c54_210, %c0_211] : memref<135x256xf32, #tpu.memory_space<vmem>>, vector<1x256xf32>
    %872 = vector.broadcast %871 : vector<1x256xf32> to vector<16x256xf32>
    %873 = arith.mulf %872, %866 : vector<16x256xf32>
    %874 = arith.addf %859, %873 : vector<16x256xf32>
    %c99_212 = arith.constant 99 : index
    %c0_213 = arith.constant 0 : index
    %875 = vector.load %arg4[%c99_212, %c0_213] : memref<135x256xf32, #tpu.memory_space<vmem>>, vector<1x256xf32>
    %876 = vector.broadcast %875 : vector<1x256xf32> to vector<16x256xf32>
    %877 = arith.mulf %876, %866 : vector<16x256xf32>
    %878 = arith.addf %863, %877 : vector<16x256xf32>
    %879 = vector.extract_strided_slice %725 {offsets = [0, 227], sizes = [16, 29], strides = [1, 1]} : vector<16x256xf32> to vector<16x29xf32>
    %880 = vector.extract_strided_slice %725 {offsets = [0, 0], sizes = [16, 227], strides = [1, 1]} : vector<16x256xf32> to vector<16x227xf32>
    %881 = tpu.concatenate %879, %880 in 1 : vector<16x29xf32>, vector<16x227xf32> -> vector<16x256xf32>
    %c10_214 = arith.constant 10 : index
    %c0_215 = arith.constant 0 : index
    %882 = vector.load %arg4[%c10_214, %c0_215] : memref<135x256xf32, #tpu.memory_space<vmem>>, vector<1x256xf32>
    %883 = vector.broadcast %882 : vector<1x256xf32> to vector<16x256xf32>
    %884 = arith.mulf %883, %881 : vector<16x256xf32>
    %885 = arith.addf %870, %884 : vector<16x256xf32>
    %c55_216 = arith.constant 55 : index
    %c0_217 = arith.constant 0 : index
    %886 = vector.load %arg4[%c55_216, %c0_217] : memref<135x256xf32, #tpu.memory_space<vmem>>, vector<1x256xf32>
    %887 = vector.broadcast %886 : vector<1x256xf32> to vector<16x256xf32>
    %888 = arith.mulf %887, %881 : vector<16x256xf32>
    %889 = arith.addf %874, %888 : vector<16x256xf32>
    %c100_218 = arith.constant 100 : index
    %c0_219 = arith.constant 0 : index
    %890 = vector.load %arg4[%c100_218, %c0_219] : memref<135x256xf32, #tpu.memory_space<vmem>>, vector<1x256xf32>
    %891 = vector.broadcast %890 : vector<1x256xf32> to vector<16x256xf32>
    %892 = arith.mulf %891, %881 : vector<16x256xf32>
    %893 = arith.addf %878, %892 : vector<16x256xf32>
    %894 = vector.extract_strided_slice %725 {offsets = [0, 228], sizes = [16, 28], strides = [1, 1]} : vector<16x256xf32> to vector<16x28xf32>
    %895 = vector.extract_strided_slice %725 {offsets = [0, 0], sizes = [16, 228], strides = [1, 1]} : vector<16x256xf32> to vector<16x228xf32>
    %896 = tpu.concatenate %894, %895 in 1 : vector<16x28xf32>, vector<16x228xf32> -> vector<16x256xf32>
    %c11_220 = arith.constant 11 : index
    %c0_221 = arith.constant 0 : index
    %897 = vector.load %arg4[%c11_220, %c0_221] : memref<135x256xf32, #tpu.memory_space<vmem>>, vector<1x256xf32>
    %898 = vector.broadcast %897 : vector<1x256xf32> to vector<16x256xf32>
    %899 = arith.mulf %898, %896 : vector<16x256xf32>
    %900 = arith.addf %885, %899 : vector<16x256xf32>
    %c56_222 = arith.constant 56 : index
    %c0_223 = arith.constant 0 : index
    %901 = vector.load %arg4[%c56_222, %c0_223] : memref<135x256xf32, #tpu.memory_space<vmem>>, vector<1x256xf32>
    %902 = vector.broadcast %901 : vector<1x256xf32> to vector<16x256xf32>
    %903 = arith.mulf %902, %896 : vector<16x256xf32>
    %904 = arith.addf %889, %903 : vector<16x256xf32>
    %c101_224 = arith.constant 101 : index
    %c0_225 = arith.constant 0 : index
    %905 = vector.load %arg4[%c101_224, %c0_225] : memref<135x256xf32, #tpu.memory_space<vmem>>, vector<1x256xf32>
    %906 = vector.broadcast %905 : vector<1x256xf32> to vector<16x256xf32>
    %907 = arith.mulf %906, %896 : vector<16x256xf32>
    %908 = arith.addf %893, %907 : vector<16x256xf32>
    %909 = vector.extract_strided_slice %725 {offsets = [0, 229], sizes = [16, 27], strides = [1, 1]} : vector<16x256xf32> to vector<16x27xf32>
    %910 = vector.extract_strided_slice %725 {offsets = [0, 0], sizes = [16, 229], strides = [1, 1]} : vector<16x256xf32> to vector<16x229xf32>
    %911 = tpu.concatenate %909, %910 in 1 : vector<16x27xf32>, vector<16x229xf32> -> vector<16x256xf32>
    %c12_226 = arith.constant 12 : index
    %c0_227 = arith.constant 0 : index
    %912 = vector.load %arg4[%c12_226, %c0_227] : memref<135x256xf32, #tpu.memory_space<vmem>>, vector<1x256xf32>
    %913 = vector.broadcast %912 : vector<1x256xf32> to vector<16x256xf32>
    %914 = arith.mulf %913, %911 : vector<16x256xf32>
    %915 = arith.addf %900, %914 : vector<16x256xf32>
    %c57_228 = arith.constant 57 : index
    %c0_229 = arith.constant 0 : index
    %916 = vector.load %arg4[%c57_228, %c0_229] : memref<135x256xf32, #tpu.memory_space<vmem>>, vector<1x256xf32>
    %917 = vector.broadcast %916 : vector<1x256xf32> to vector<16x256xf32>
    %918 = arith.mulf %917, %911 : vector<16x256xf32>
    %919 = arith.addf %904, %918 : vector<16x256xf32>
    %c102_230 = arith.constant 102 : index
    %c0_231 = arith.constant 0 : index
    %920 = vector.load %arg4[%c102_230, %c0_231] : memref<135x256xf32, #tpu.memory_space<vmem>>, vector<1x256xf32>
    %921 = vector.broadcast %920 : vector<1x256xf32> to vector<16x256xf32>
    %922 = arith.mulf %921, %911 : vector<16x256xf32>
    %923 = arith.addf %908, %922 : vector<16x256xf32>
    %924 = vector.extract_strided_slice %725 {offsets = [0, 230], sizes = [16, 26], strides = [1, 1]} : vector<16x256xf32> to vector<16x26xf32>
    %925 = vector.extract_strided_slice %725 {offsets = [0, 0], sizes = [16, 230], strides = [1, 1]} : vector<16x256xf32> to vector<16x230xf32>
    %926 = tpu.concatenate %924, %925 in 1 : vector<16x26xf32>, vector<16x230xf32> -> vector<16x256xf32>
    %c13_232 = arith.constant 13 : index
    %c0_233 = arith.constant 0 : index
    %927 = vector.load %arg4[%c13_232, %c0_233] : memref<135x256xf32, #tpu.memory_space<vmem>>, vector<1x256xf32>
    %928 = vector.broadcast %927 : vector<1x256xf32> to vector<16x256xf32>
    %929 = arith.mulf %928, %926 : vector<16x256xf32>
    %930 = arith.addf %915, %929 : vector<16x256xf32>
    %c58_234 = arith.constant 58 : index
    %c0_235 = arith.constant 0 : index
    %931 = vector.load %arg4[%c58_234, %c0_235] : memref<135x256xf32, #tpu.memory_space<vmem>>, vector<1x256xf32>
    %932 = vector.broadcast %931 : vector<1x256xf32> to vector<16x256xf32>
    %933 = arith.mulf %932, %926 : vector<16x256xf32>
    %934 = arith.addf %919, %933 : vector<16x256xf32>
    %c103_236 = arith.constant 103 : index
    %c0_237 = arith.constant 0 : index
    %935 = vector.load %arg4[%c103_236, %c0_237] : memref<135x256xf32, #tpu.memory_space<vmem>>, vector<1x256xf32>
    %936 = vector.broadcast %935 : vector<1x256xf32> to vector<16x256xf32>
    %937 = arith.mulf %936, %926 : vector<16x256xf32>
    %938 = arith.addf %923, %937 : vector<16x256xf32>
    %939 = vector.extract_strided_slice %725 {offsets = [0, 231], sizes = [16, 25], strides = [1, 1]} : vector<16x256xf32> to vector<16x25xf32>
    %940 = vector.extract_strided_slice %725 {offsets = [0, 0], sizes = [16, 231], strides = [1, 1]} : vector<16x256xf32> to vector<16x231xf32>
    %941 = tpu.concatenate %939, %940 in 1 : vector<16x25xf32>, vector<16x231xf32> -> vector<16x256xf32>
    %c14_238 = arith.constant 14 : index
    %c0_239 = arith.constant 0 : index
    %942 = vector.load %arg4[%c14_238, %c0_239] : memref<135x256xf32, #tpu.memory_space<vmem>>, vector<1x256xf32>
    %943 = vector.broadcast %942 : vector<1x256xf32> to vector<16x256xf32>
    %944 = arith.mulf %943, %941 : vector<16x256xf32>
    %945 = arith.addf %930, %944 : vector<16x256xf32>
    %c59_240 = arith.constant 59 : index
    %c0_241 = arith.constant 0 : index
    %946 = vector.load %arg4[%c59_240, %c0_241] : memref<135x256xf32, #tpu.memory_space<vmem>>, vector<1x256xf32>
    %947 = vector.broadcast %946 : vector<1x256xf32> to vector<16x256xf32>
    %948 = arith.mulf %947, %941 : vector<16x256xf32>
    %949 = arith.addf %934, %948 : vector<16x256xf32>
    %c104_242 = arith.constant 104 : index
    %c0_243 = arith.constant 0 : index
    %950 = vector.load %arg4[%c104_242, %c0_243] : memref<135x256xf32, #tpu.memory_space<vmem>>, vector<1x256xf32>
    %951 = vector.broadcast %950 : vector<1x256xf32> to vector<16x256xf32>
    %952 = arith.mulf %951, %941 : vector<16x256xf32>
    %953 = arith.addf %938, %952 : vector<16x256xf32>
    %954 = vector.extract_strided_slice %725 {offsets = [0, 249], sizes = [16, 7], strides = [1, 1]} : vector<16x256xf32> to vector<16x7xf32>
    %955 = vector.extract_strided_slice %725 {offsets = [0, 0], sizes = [16, 249], strides = [1, 1]} : vector<16x256xf32> to vector<16x249xf32>
    %956 = tpu.concatenate %954, %955 in 1 : vector<16x7xf32>, vector<16x249xf32> -> vector<16x256xf32>
    %c15_244 = arith.constant 15 : index
    %c0_245 = arith.constant 0 : index
    %957 = vector.load %arg4[%c15_244, %c0_245] : memref<135x256xf32, #tpu.memory_space<vmem>>, vector<1x256xf32>
    %958 = vector.broadcast %957 : vector<1x256xf32> to vector<16x256xf32>
    %959 = arith.mulf %958, %956 : vector<16x256xf32>
    %960 = arith.addf %945, %959 : vector<16x256xf32>
    %c60_246 = arith.constant 60 : index
    %c0_247 = arith.constant 0 : index
    %961 = vector.load %arg4[%c60_246, %c0_247] : memref<135x256xf32, #tpu.memory_space<vmem>>, vector<1x256xf32>
    %962 = vector.broadcast %961 : vector<1x256xf32> to vector<16x256xf32>
    %963 = arith.mulf %962, %956 : vector<16x256xf32>
    %964 = arith.addf %949, %963 : vector<16x256xf32>
    %c105_248 = arith.constant 105 : index
    %c0_249 = arith.constant 0 : index
    %965 = vector.load %arg4[%c105_248, %c0_249] : memref<135x256xf32, #tpu.memory_space<vmem>>, vector<1x256xf32>
    %966 = vector.broadcast %965 : vector<1x256xf32> to vector<16x256xf32>
    %967 = arith.mulf %966, %956 : vector<16x256xf32>
    %968 = arith.addf %953, %967 : vector<16x256xf32>
    %969 = vector.extract_strided_slice %725 {offsets = [0, 250], sizes = [16, 6], strides = [1, 1]} : vector<16x256xf32> to vector<16x6xf32>
    %970 = vector.extract_strided_slice %725 {offsets = [0, 0], sizes = [16, 250], strides = [1, 1]} : vector<16x256xf32> to vector<16x250xf32>
    %971 = tpu.concatenate %969, %970 in 1 : vector<16x6xf32>, vector<16x250xf32> -> vector<16x256xf32>
    %c16_250 = arith.constant 16 : index
    %c0_251 = arith.constant 0 : index
    %972 = vector.load %arg4[%c16_250, %c0_251] : memref<135x256xf32, #tpu.memory_space<vmem>>, vector<1x256xf32>
    %973 = vector.broadcast %972 : vector<1x256xf32> to vector<16x256xf32>
    %974 = arith.mulf %973, %971 : vector<16x256xf32>
    %975 = arith.addf %960, %974 : vector<16x256xf32>
    %c61_252 = arith.constant 61 : index
    %c0_253 = arith.constant 0 : index
    %976 = vector.load %arg4[%c61_252, %c0_253] : memref<135x256xf32, #tpu.memory_space<vmem>>, vector<1x256xf32>
    %977 = vector.broadcast %976 : vector<1x256xf32> to vector<16x256xf32>
    %978 = arith.mulf %977, %971 : vector<16x256xf32>
    %979 = arith.addf %964, %978 : vector<16x256xf32>
    %c106_254 = arith.constant 106 : index
    %c0_255 = arith.constant 0 : index
    %980 = vector.load %arg4[%c106_254, %c0_255] : memref<135x256xf32, #tpu.memory_space<vmem>>, vector<1x256xf32>
    %981 = vector.broadcast %980 : vector<1x256xf32> to vector<16x256xf32>
    %982 = arith.mulf %981, %971 : vector<16x256xf32>
    %983 = arith.addf %968, %982 : vector<16x256xf32>
    %984 = vector.extract_strided_slice %725 {offsets = [0, 251], sizes = [16, 5], strides = [1, 1]} : vector<16x256xf32> to vector<16x5xf32>
    %985 = vector.extract_strided_slice %725 {offsets = [0, 0], sizes = [16, 251], strides = [1, 1]} : vector<16x256xf32> to vector<16x251xf32>
    %986 = tpu.concatenate %984, %985 in 1 : vector<16x5xf32>, vector<16x251xf32> -> vector<16x256xf32>
    %c17_256 = arith.constant 17 : index
    %c0_257 = arith.constant 0 : index
    %987 = vector.load %arg4[%c17_256, %c0_257] : memref<135x256xf32, #tpu.memory_space<vmem>>, vector<1x256xf32>
    %988 = vector.broadcast %987 : vector<1x256xf32> to vector<16x256xf32>
    %989 = arith.mulf %988, %986 : vector<16x256xf32>
    %990 = arith.addf %975, %989 : vector<16x256xf32>
    %c62_258 = arith.constant 62 : index
    %c0_259 = arith.constant 0 : index
    %991 = vector.load %arg4[%c62_258, %c0_259] : memref<135x256xf32, #tpu.memory_space<vmem>>, vector<1x256xf32>
    %992 = vector.broadcast %991 : vector<1x256xf32> to vector<16x256xf32>
    %993 = arith.mulf %992, %986 : vector<16x256xf32>
    %994 = arith.addf %979, %993 : vector<16x256xf32>
    %c107_260 = arith.constant 107 : index
    %c0_261 = arith.constant 0 : index
    %995 = vector.load %arg4[%c107_260, %c0_261] : memref<135x256xf32, #tpu.memory_space<vmem>>, vector<1x256xf32>
    %996 = vector.broadcast %995 : vector<1x256xf32> to vector<16x256xf32>
    %997 = arith.mulf %996, %986 : vector<16x256xf32>
    %998 = arith.addf %983, %997 : vector<16x256xf32>
    %999 = vector.extract_strided_slice %725 {offsets = [0, 252], sizes = [16, 4], strides = [1, 1]} : vector<16x256xf32> to vector<16x4xf32>
    %1000 = vector.extract_strided_slice %725 {offsets = [0, 0], sizes = [16, 252], strides = [1, 1]} : vector<16x256xf32> to vector<16x252xf32>
    %1001 = tpu.concatenate %999, %1000 in 1 : vector<16x4xf32>, vector<16x252xf32> -> vector<16x256xf32>
    %c18_262 = arith.constant 18 : index
    %c0_263 = arith.constant 0 : index
    %1002 = vector.load %arg4[%c18_262, %c0_263] : memref<135x256xf32, #tpu.memory_space<vmem>>, vector<1x256xf32>
    %1003 = vector.broadcast %1002 : vector<1x256xf32> to vector<16x256xf32>
    %1004 = arith.mulf %1003, %1001 : vector<16x256xf32>
    %1005 = arith.addf %990, %1004 : vector<16x256xf32>
    %c63_264 = arith.constant 63 : index
    %c0_265 = arith.constant 0 : index
    %1006 = vector.load %arg4[%c63_264, %c0_265] : memref<135x256xf32, #tpu.memory_space<vmem>>, vector<1x256xf32>
    %1007 = vector.broadcast %1006 : vector<1x256xf32> to vector<16x256xf32>
    %1008 = arith.mulf %1007, %1001 : vector<16x256xf32>
    %1009 = arith.addf %994, %1008 : vector<16x256xf32>
    %c108_266 = arith.constant 108 : index
    %c0_267 = arith.constant 0 : index
    %1010 = vector.load %arg4[%c108_266, %c0_267] : memref<135x256xf32, #tpu.memory_space<vmem>>, vector<1x256xf32>
    %1011 = vector.broadcast %1010 : vector<1x256xf32> to vector<16x256xf32>
    %1012 = arith.mulf %1011, %1001 : vector<16x256xf32>
    %1013 = arith.addf %998, %1012 : vector<16x256xf32>
    %1014 = vector.extract_strided_slice %725 {offsets = [0, 253], sizes = [16, 3], strides = [1, 1]} : vector<16x256xf32> to vector<16x3xf32>
    %1015 = vector.extract_strided_slice %725 {offsets = [0, 0], sizes = [16, 253], strides = [1, 1]} : vector<16x256xf32> to vector<16x253xf32>
    %1016 = tpu.concatenate %1014, %1015 in 1 : vector<16x3xf32>, vector<16x253xf32> -> vector<16x256xf32>
    %c19_268 = arith.constant 19 : index
    %c0_269 = arith.constant 0 : index
    %1017 = vector.load %arg4[%c19_268, %c0_269] : memref<135x256xf32, #tpu.memory_space<vmem>>, vector<1x256xf32>
    %1018 = vector.broadcast %1017 : vector<1x256xf32> to vector<16x256xf32>
    %1019 = arith.mulf %1018, %1016 : vector<16x256xf32>
    %1020 = arith.addf %1005, %1019 : vector<16x256xf32>
    %c64_270 = arith.constant 64 : index
    %c0_271 = arith.constant 0 : index
    %1021 = vector.load %arg4[%c64_270, %c0_271] : memref<135x256xf32, #tpu.memory_space<vmem>>, vector<1x256xf32>
    %1022 = vector.broadcast %1021 : vector<1x256xf32> to vector<16x256xf32>
    %1023 = arith.mulf %1022, %1016 : vector<16x256xf32>
    %1024 = arith.addf %1009, %1023 : vector<16x256xf32>
    %c109_272 = arith.constant 109 : index
    %c0_273 = arith.constant 0 : index
    %1025 = vector.load %arg4[%c109_272, %c0_273] : memref<135x256xf32, #tpu.memory_space<vmem>>, vector<1x256xf32>
    %1026 = vector.broadcast %1025 : vector<1x256xf32> to vector<16x256xf32>
    %1027 = arith.mulf %1026, %1016 : vector<16x256xf32>
    %1028 = arith.addf %1013, %1027 : vector<16x256xf32>
    %1029 = vector.extract_strided_slice %725 {offsets = [0, 254], sizes = [16, 2], strides = [1, 1]} : vector<16x256xf32> to vector<16x2xf32>
    %1030 = vector.extract_strided_slice %725 {offsets = [0, 0], sizes = [16, 254], strides = [1, 1]} : vector<16x256xf32> to vector<16x254xf32>
    %1031 = tpu.concatenate %1029, %1030 in 1 : vector<16x2xf32>, vector<16x254xf32> -> vector<16x256xf32>
    %c20_274 = arith.constant 20 : index
    %c0_275 = arith.constant 0 : index
    %1032 = vector.load %arg4[%c20_274, %c0_275] : memref<135x256xf32, #tpu.memory_space<vmem>>, vector<1x256xf32>
    %1033 = vector.broadcast %1032 : vector<1x256xf32> to vector<16x256xf32>
    %1034 = arith.mulf %1033, %1031 : vector<16x256xf32>
    %1035 = arith.addf %1020, %1034 : vector<16x256xf32>
    %c65_276 = arith.constant 65 : index
    %c0_277 = arith.constant 0 : index
    %1036 = vector.load %arg4[%c65_276, %c0_277] : memref<135x256xf32, #tpu.memory_space<vmem>>, vector<1x256xf32>
    %1037 = vector.broadcast %1036 : vector<1x256xf32> to vector<16x256xf32>
    %1038 = arith.mulf %1037, %1031 : vector<16x256xf32>
    %1039 = arith.addf %1024, %1038 : vector<16x256xf32>
    %c110_278 = arith.constant 110 : index
    %c0_279 = arith.constant 0 : index
    %1040 = vector.load %arg4[%c110_278, %c0_279] : memref<135x256xf32, #tpu.memory_space<vmem>>, vector<1x256xf32>
    %1041 = vector.broadcast %1040 : vector<1x256xf32> to vector<16x256xf32>
    %1042 = arith.mulf %1041, %1031 : vector<16x256xf32>
    %1043 = arith.addf %1028, %1042 : vector<16x256xf32>
    %1044 = vector.extract_strided_slice %725 {offsets = [0, 255], sizes = [16, 1], strides = [1, 1]} : vector<16x256xf32> to vector<16x1xf32>
    %1045 = vector.extract_strided_slice %725 {offsets = [0, 0], sizes = [16, 255], strides = [1, 1]} : vector<16x256xf32> to vector<16x255xf32>
    %1046 = tpu.concatenate %1044, %1045 in 1 : vector<16x1xf32>, vector<16x255xf32> -> vector<16x256xf32>
    %c21_280 = arith.constant 21 : index
    %c0_281 = arith.constant 0 : index
    %1047 = vector.load %arg4[%c21_280, %c0_281] : memref<135x256xf32, #tpu.memory_space<vmem>>, vector<1x256xf32>
    %1048 = vector.broadcast %1047 : vector<1x256xf32> to vector<16x256xf32>
    %1049 = arith.mulf %1048, %1046 : vector<16x256xf32>
    %1050 = arith.addf %1035, %1049 : vector<16x256xf32>
    %c66_282 = arith.constant 66 : index
    %c0_283 = arith.constant 0 : index
    %1051 = vector.load %arg4[%c66_282, %c0_283] : memref<135x256xf32, #tpu.memory_space<vmem>>, vector<1x256xf32>
    %1052 = vector.broadcast %1051 : vector<1x256xf32> to vector<16x256xf32>
    %1053 = arith.mulf %1052, %1046 : vector<16x256xf32>
    %1054 = arith.addf %1039, %1053 : vector<16x256xf32>
    %c111_284 = arith.constant 111 : index
    %c0_285 = arith.constant 0 : index
    %1055 = vector.load %arg4[%c111_284, %c0_285] : memref<135x256xf32, #tpu.memory_space<vmem>>, vector<1x256xf32>
    %1056 = vector.broadcast %1055 : vector<1x256xf32> to vector<16x256xf32>
    %1057 = arith.mulf %1056, %1046 : vector<16x256xf32>
    %1058 = arith.addf %1043, %1057 : vector<16x256xf32>
    %c22_286 = arith.constant 22 : index
    %c0_287 = arith.constant 0 : index
    %1059 = vector.load %arg4[%c22_286, %c0_287] : memref<135x256xf32, #tpu.memory_space<vmem>>, vector<1x256xf32>
    %1060 = vector.broadcast %1059 : vector<1x256xf32> to vector<16x256xf32>
    %1061 = arith.mulf %1060, %725 : vector<16x256xf32>
    %1062 = arith.addf %1050, %1061 : vector<16x256xf32>
    %c67_288 = arith.constant 67 : index
    %c0_289 = arith.constant 0 : index
    %1063 = vector.load %arg4[%c67_288, %c0_289] : memref<135x256xf32, #tpu.memory_space<vmem>>, vector<1x256xf32>
    %1064 = vector.broadcast %1063 : vector<1x256xf32> to vector<16x256xf32>
    %1065 = arith.mulf %1064, %725 : vector<16x256xf32>
    %1066 = arith.addf %1054, %1065 : vector<16x256xf32>
    %c112_290 = arith.constant 112 : index
    %c0_291 = arith.constant 0 : index
    %1067 = vector.load %arg4[%c112_290, %c0_291] : memref<135x256xf32, #tpu.memory_space<vmem>>, vector<1x256xf32>
    %1068 = vector.broadcast %1067 : vector<1x256xf32> to vector<16x256xf32>
    %1069 = arith.mulf %1068, %725 : vector<16x256xf32>
    %1070 = arith.addf %1058, %1069 : vector<16x256xf32>
    %1071 = vector.extract_strided_slice %725 {offsets = [0, 1], sizes = [16, 255], strides = [1, 1]} : vector<16x256xf32> to vector<16x255xf32>
    %1072 = vector.extract_strided_slice %725 {offsets = [0, 0], sizes = [16, 1], strides = [1, 1]} : vector<16x256xf32> to vector<16x1xf32>
    %1073 = tpu.concatenate %1071, %1072 in 1 : vector<16x255xf32>, vector<16x1xf32> -> vector<16x256xf32>
    %c23_292 = arith.constant 23 : index
    %c0_293 = arith.constant 0 : index
    %1074 = vector.load %arg4[%c23_292, %c0_293] : memref<135x256xf32, #tpu.memory_space<vmem>>, vector<1x256xf32>
    %1075 = vector.broadcast %1074 : vector<1x256xf32> to vector<16x256xf32>
    %1076 = arith.mulf %1075, %1073 : vector<16x256xf32>
    %1077 = arith.addf %1062, %1076 : vector<16x256xf32>
    %c68_294 = arith.constant 68 : index
    %c0_295 = arith.constant 0 : index
    %1078 = vector.load %arg4[%c68_294, %c0_295] : memref<135x256xf32, #tpu.memory_space<vmem>>, vector<1x256xf32>
    %1079 = vector.broadcast %1078 : vector<1x256xf32> to vector<16x256xf32>
    %1080 = arith.mulf %1079, %1073 : vector<16x256xf32>
    %1081 = arith.addf %1066, %1080 : vector<16x256xf32>
    %c113_296 = arith.constant 113 : index
    %c0_297 = arith.constant 0 : index
    %1082 = vector.load %arg4[%c113_296, %c0_297] : memref<135x256xf32, #tpu.memory_space<vmem>>, vector<1x256xf32>
    %1083 = vector.broadcast %1082 : vector<1x256xf32> to vector<16x256xf32>
    %1084 = arith.mulf %1083, %1073 : vector<16x256xf32>
    %1085 = arith.addf %1070, %1084 : vector<16x256xf32>
    %1086 = vector.extract_strided_slice %725 {offsets = [0, 2], sizes = [16, 254], strides = [1, 1]} : vector<16x256xf32> to vector<16x254xf32>
    %1087 = vector.extract_strided_slice %725 {offsets = [0, 0], sizes = [16, 2], strides = [1, 1]} : vector<16x256xf32> to vector<16x2xf32>
    %1088 = tpu.concatenate %1086, %1087 in 1 : vector<16x254xf32>, vector<16x2xf32> -> vector<16x256xf32>
    %c24_298 = arith.constant 24 : index
    %c0_299 = arith.constant 0 : index
    %1089 = vector.load %arg4[%c24_298, %c0_299] : memref<135x256xf32, #tpu.memory_space<vmem>>, vector<1x256xf32>
    %1090 = vector.broadcast %1089 : vector<1x256xf32> to vector<16x256xf32>
    %1091 = arith.mulf %1090, %1088 : vector<16x256xf32>
    %1092 = arith.addf %1077, %1091 : vector<16x256xf32>
    %c69_300 = arith.constant 69 : index
    %c0_301 = arith.constant 0 : index
    %1093 = vector.load %arg4[%c69_300, %c0_301] : memref<135x256xf32, #tpu.memory_space<vmem>>, vector<1x256xf32>
    %1094 = vector.broadcast %1093 : vector<1x256xf32> to vector<16x256xf32>
    %1095 = arith.mulf %1094, %1088 : vector<16x256xf32>
    %1096 = arith.addf %1081, %1095 : vector<16x256xf32>
    %c114_302 = arith.constant 114 : index
    %c0_303 = arith.constant 0 : index
    %1097 = vector.load %arg4[%c114_302, %c0_303] : memref<135x256xf32, #tpu.memory_space<vmem>>, vector<1x256xf32>
    %1098 = vector.broadcast %1097 : vector<1x256xf32> to vector<16x256xf32>
    %1099 = arith.mulf %1098, %1088 : vector<16x256xf32>
    %1100 = arith.addf %1085, %1099 : vector<16x256xf32>
    %1101 = vector.extract_strided_slice %725 {offsets = [0, 3], sizes = [16, 253], strides = [1, 1]} : vector<16x256xf32> to vector<16x253xf32>
    %1102 = vector.extract_strided_slice %725 {offsets = [0, 0], sizes = [16, 3], strides = [1, 1]} : vector<16x256xf32> to vector<16x3xf32>
    %1103 = tpu.concatenate %1101, %1102 in 1 : vector<16x253xf32>, vector<16x3xf32> -> vector<16x256xf32>
    %c25_304 = arith.constant 25 : index
    %c0_305 = arith.constant 0 : index
    %1104 = vector.load %arg4[%c25_304, %c0_305] : memref<135x256xf32, #tpu.memory_space<vmem>>, vector<1x256xf32>
    %1105 = vector.broadcast %1104 : vector<1x256xf32> to vector<16x256xf32>
    %1106 = arith.mulf %1105, %1103 : vector<16x256xf32>
    %1107 = arith.addf %1092, %1106 : vector<16x256xf32>
    %c70_306 = arith.constant 70 : index
    %c0_307 = arith.constant 0 : index
    %1108 = vector.load %arg4[%c70_306, %c0_307] : memref<135x256xf32, #tpu.memory_space<vmem>>, vector<1x256xf32>
    %1109 = vector.broadcast %1108 : vector<1x256xf32> to vector<16x256xf32>
    %1110 = arith.mulf %1109, %1103 : vector<16x256xf32>
    %1111 = arith.addf %1096, %1110 : vector<16x256xf32>
    %c115_308 = arith.constant 115 : index
    %c0_309 = arith.constant 0 : index
    %1112 = vector.load %arg4[%c115_308, %c0_309] : memref<135x256xf32, #tpu.memory_space<vmem>>, vector<1x256xf32>
    %1113 = vector.broadcast %1112 : vector<1x256xf32> to vector<16x256xf32>
    %1114 = arith.mulf %1113, %1103 : vector<16x256xf32>
    %1115 = arith.addf %1100, %1114 : vector<16x256xf32>
    %1116 = vector.extract_strided_slice %725 {offsets = [0, 4], sizes = [16, 252], strides = [1, 1]} : vector<16x256xf32> to vector<16x252xf32>
    %1117 = vector.extract_strided_slice %725 {offsets = [0, 0], sizes = [16, 4], strides = [1, 1]} : vector<16x256xf32> to vector<16x4xf32>
    %1118 = tpu.concatenate %1116, %1117 in 1 : vector<16x252xf32>, vector<16x4xf32> -> vector<16x256xf32>
    %c26_310 = arith.constant 26 : index
    %c0_311 = arith.constant 0 : index
    %1119 = vector.load %arg4[%c26_310, %c0_311] : memref<135x256xf32, #tpu.memory_space<vmem>>, vector<1x256xf32>
    %1120 = vector.broadcast %1119 : vector<1x256xf32> to vector<16x256xf32>
    %1121 = arith.mulf %1120, %1118 : vector<16x256xf32>
    %1122 = arith.addf %1107, %1121 : vector<16x256xf32>
    %c71_312 = arith.constant 71 : index
    %c0_313 = arith.constant 0 : index
    %1123 = vector.load %arg4[%c71_312, %c0_313] : memref<135x256xf32, #tpu.memory_space<vmem>>, vector<1x256xf32>
    %1124 = vector.broadcast %1123 : vector<1x256xf32> to vector<16x256xf32>
    %1125 = arith.mulf %1124, %1118 : vector<16x256xf32>
    %1126 = arith.addf %1111, %1125 : vector<16x256xf32>
    %c116_314 = arith.constant 116 : index
    %c0_315 = arith.constant 0 : index
    %1127 = vector.load %arg4[%c116_314, %c0_315] : memref<135x256xf32, #tpu.memory_space<vmem>>, vector<1x256xf32>
    %1128 = vector.broadcast %1127 : vector<1x256xf32> to vector<16x256xf32>
    %1129 = arith.mulf %1128, %1118 : vector<16x256xf32>
    %1130 = arith.addf %1115, %1129 : vector<16x256xf32>
    %1131 = vector.extract_strided_slice %725 {offsets = [0, 5], sizes = [16, 251], strides = [1, 1]} : vector<16x256xf32> to vector<16x251xf32>
    %1132 = vector.extract_strided_slice %725 {offsets = [0, 0], sizes = [16, 5], strides = [1, 1]} : vector<16x256xf32> to vector<16x5xf32>
    %1133 = tpu.concatenate %1131, %1132 in 1 : vector<16x251xf32>, vector<16x5xf32> -> vector<16x256xf32>
    %c27_316 = arith.constant 27 : index
    %c0_317 = arith.constant 0 : index
    %1134 = vector.load %arg4[%c27_316, %c0_317] : memref<135x256xf32, #tpu.memory_space<vmem>>, vector<1x256xf32>
    %1135 = vector.broadcast %1134 : vector<1x256xf32> to vector<16x256xf32>
    %1136 = arith.mulf %1135, %1133 : vector<16x256xf32>
    %1137 = arith.addf %1122, %1136 : vector<16x256xf32>
    %c72_318 = arith.constant 72 : index
    %c0_319 = arith.constant 0 : index
    %1138 = vector.load %arg4[%c72_318, %c0_319] : memref<135x256xf32, #tpu.memory_space<vmem>>, vector<1x256xf32>
    %1139 = vector.broadcast %1138 : vector<1x256xf32> to vector<16x256xf32>
    %1140 = arith.mulf %1139, %1133 : vector<16x256xf32>
    %1141 = arith.addf %1126, %1140 : vector<16x256xf32>
    %c117_320 = arith.constant 117 : index
    %c0_321 = arith.constant 0 : index
    %1142 = vector.load %arg4[%c117_320, %c0_321] : memref<135x256xf32, #tpu.memory_space<vmem>>, vector<1x256xf32>
    %1143 = vector.broadcast %1142 : vector<1x256xf32> to vector<16x256xf32>
    %1144 = arith.mulf %1143, %1133 : vector<16x256xf32>
    %1145 = arith.addf %1130, %1144 : vector<16x256xf32>
    %1146 = vector.extract_strided_slice %725 {offsets = [0, 6], sizes = [16, 250], strides = [1, 1]} : vector<16x256xf32> to vector<16x250xf32>
    %1147 = vector.extract_strided_slice %725 {offsets = [0, 0], sizes = [16, 6], strides = [1, 1]} : vector<16x256xf32> to vector<16x6xf32>
    %1148 = tpu.concatenate %1146, %1147 in 1 : vector<16x250xf32>, vector<16x6xf32> -> vector<16x256xf32>
    %c28_322 = arith.constant 28 : index
    %c0_323 = arith.constant 0 : index
    %1149 = vector.load %arg4[%c28_322, %c0_323] : memref<135x256xf32, #tpu.memory_space<vmem>>, vector<1x256xf32>
    %1150 = vector.broadcast %1149 : vector<1x256xf32> to vector<16x256xf32>
    %1151 = arith.mulf %1150, %1148 : vector<16x256xf32>
    %1152 = arith.addf %1137, %1151 : vector<16x256xf32>
    %c73_324 = arith.constant 73 : index
    %c0_325 = arith.constant 0 : index
    %1153 = vector.load %arg4[%c73_324, %c0_325] : memref<135x256xf32, #tpu.memory_space<vmem>>, vector<1x256xf32>
    %1154 = vector.broadcast %1153 : vector<1x256xf32> to vector<16x256xf32>
    %1155 = arith.mulf %1154, %1148 : vector<16x256xf32>
    %1156 = arith.addf %1141, %1155 : vector<16x256xf32>
    %c118_326 = arith.constant 118 : index
    %c0_327 = arith.constant 0 : index
    %1157 = vector.load %arg4[%c118_326, %c0_327] : memref<135x256xf32, #tpu.memory_space<vmem>>, vector<1x256xf32>
    %1158 = vector.broadcast %1157 : vector<1x256xf32> to vector<16x256xf32>
    %1159 = arith.mulf %1158, %1148 : vector<16x256xf32>
    %1160 = arith.addf %1145, %1159 : vector<16x256xf32>
    %1161 = vector.extract_strided_slice %725 {offsets = [0, 7], sizes = [16, 249], strides = [1, 1]} : vector<16x256xf32> to vector<16x249xf32>
    %1162 = vector.extract_strided_slice %725 {offsets = [0, 0], sizes = [16, 7], strides = [1, 1]} : vector<16x256xf32> to vector<16x7xf32>
    %1163 = tpu.concatenate %1161, %1162 in 1 : vector<16x249xf32>, vector<16x7xf32> -> vector<16x256xf32>
    %c29_328 = arith.constant 29 : index
    %c0_329 = arith.constant 0 : index
    %1164 = vector.load %arg4[%c29_328, %c0_329] : memref<135x256xf32, #tpu.memory_space<vmem>>, vector<1x256xf32>
    %1165 = vector.broadcast %1164 : vector<1x256xf32> to vector<16x256xf32>
    %1166 = arith.mulf %1165, %1163 : vector<16x256xf32>
    %1167 = arith.addf %1152, %1166 : vector<16x256xf32>
    %c74_330 = arith.constant 74 : index
    %c0_331 = arith.constant 0 : index
    %1168 = vector.load %arg4[%c74_330, %c0_331] : memref<135x256xf32, #tpu.memory_space<vmem>>, vector<1x256xf32>
    %1169 = vector.broadcast %1168 : vector<1x256xf32> to vector<16x256xf32>
    %1170 = arith.mulf %1169, %1163 : vector<16x256xf32>
    %1171 = arith.addf %1156, %1170 : vector<16x256xf32>
    %c119_332 = arith.constant 119 : index
    %c0_333 = arith.constant 0 : index
    %1172 = vector.load %arg4[%c119_332, %c0_333] : memref<135x256xf32, #tpu.memory_space<vmem>>, vector<1x256xf32>
    %1173 = vector.broadcast %1172 : vector<1x256xf32> to vector<16x256xf32>
    %1174 = arith.mulf %1173, %1163 : vector<16x256xf32>
    %1175 = arith.addf %1160, %1174 : vector<16x256xf32>
    %1176 = vector.extract_strided_slice %725 {offsets = [0, 25], sizes = [16, 231], strides = [1, 1]} : vector<16x256xf32> to vector<16x231xf32>
    %1177 = vector.extract_strided_slice %725 {offsets = [0, 0], sizes = [16, 25], strides = [1, 1]} : vector<16x256xf32> to vector<16x25xf32>
    %1178 = tpu.concatenate %1176, %1177 in 1 : vector<16x231xf32>, vector<16x25xf32> -> vector<16x256xf32>
    %c30_334 = arith.constant 30 : index
    %c0_335 = arith.constant 0 : index
    %1179 = vector.load %arg4[%c30_334, %c0_335] : memref<135x256xf32, #tpu.memory_space<vmem>>, vector<1x256xf32>
    %1180 = vector.broadcast %1179 : vector<1x256xf32> to vector<16x256xf32>
    %1181 = arith.mulf %1180, %1178 : vector<16x256xf32>
    %1182 = arith.addf %1167, %1181 : vector<16x256xf32>
    %c75_336 = arith.constant 75 : index
    %c0_337 = arith.constant 0 : index
    %1183 = vector.load %arg4[%c75_336, %c0_337] : memref<135x256xf32, #tpu.memory_space<vmem>>, vector<1x256xf32>
    %1184 = vector.broadcast %1183 : vector<1x256xf32> to vector<16x256xf32>
    %1185 = arith.mulf %1184, %1178 : vector<16x256xf32>
    %1186 = arith.addf %1171, %1185 : vector<16x256xf32>
    %c120_338 = arith.constant 120 : index
    %c0_339 = arith.constant 0 : index
    %1187 = vector.load %arg4[%c120_338, %c0_339] : memref<135x256xf32, #tpu.memory_space<vmem>>, vector<1x256xf32>
    %1188 = vector.broadcast %1187 : vector<1x256xf32> to vector<16x256xf32>
    %1189 = arith.mulf %1188, %1178 : vector<16x256xf32>
    %1190 = arith.addf %1175, %1189 : vector<16x256xf32>
    %1191 = vector.extract_strided_slice %725 {offsets = [0, 26], sizes = [16, 230], strides = [1, 1]} : vector<16x256xf32> to vector<16x230xf32>
    %1192 = vector.extract_strided_slice %725 {offsets = [0, 0], sizes = [16, 26], strides = [1, 1]} : vector<16x256xf32> to vector<16x26xf32>
    %1193 = tpu.concatenate %1191, %1192 in 1 : vector<16x230xf32>, vector<16x26xf32> -> vector<16x256xf32>
    %c31_340 = arith.constant 31 : index
    %c0_341 = arith.constant 0 : index
    %1194 = vector.load %arg4[%c31_340, %c0_341] : memref<135x256xf32, #tpu.memory_space<vmem>>, vector<1x256xf32>
    %1195 = vector.broadcast %1194 : vector<1x256xf32> to vector<16x256xf32>
    %1196 = arith.mulf %1195, %1193 : vector<16x256xf32>
    %1197 = arith.addf %1182, %1196 : vector<16x256xf32>
    %c76_342 = arith.constant 76 : index
    %c0_343 = arith.constant 0 : index
    %1198 = vector.load %arg4[%c76_342, %c0_343] : memref<135x256xf32, #tpu.memory_space<vmem>>, vector<1x256xf32>
    %1199 = vector.broadcast %1198 : vector<1x256xf32> to vector<16x256xf32>
    %1200 = arith.mulf %1199, %1193 : vector<16x256xf32>
    %1201 = arith.addf %1186, %1200 : vector<16x256xf32>
    %c121_344 = arith.constant 121 : index
    %c0_345 = arith.constant 0 : index
    %1202 = vector.load %arg4[%c121_344, %c0_345] : memref<135x256xf32, #tpu.memory_space<vmem>>, vector<1x256xf32>
    %1203 = vector.broadcast %1202 : vector<1x256xf32> to vector<16x256xf32>
    %1204 = arith.mulf %1203, %1193 : vector<16x256xf32>
    %1205 = arith.addf %1190, %1204 : vector<16x256xf32>
    %1206 = vector.extract_strided_slice %725 {offsets = [0, 27], sizes = [16, 229], strides = [1, 1]} : vector<16x256xf32> to vector<16x229xf32>
    %1207 = vector.extract_strided_slice %725 {offsets = [0, 0], sizes = [16, 27], strides = [1, 1]} : vector<16x256xf32> to vector<16x27xf32>
    %1208 = tpu.concatenate %1206, %1207 in 1 : vector<16x229xf32>, vector<16x27xf32> -> vector<16x256xf32>
    %c32_346 = arith.constant 32 : index
    %c0_347 = arith.constant 0 : index
    %1209 = vector.load %arg4[%c32_346, %c0_347] : memref<135x256xf32, #tpu.memory_space<vmem>>, vector<1x256xf32>
    %1210 = vector.broadcast %1209 : vector<1x256xf32> to vector<16x256xf32>
    %1211 = arith.mulf %1210, %1208 : vector<16x256xf32>
    %1212 = arith.addf %1197, %1211 : vector<16x256xf32>
    %c77_348 = arith.constant 77 : index
    %c0_349 = arith.constant 0 : index
    %1213 = vector.load %arg4[%c77_348, %c0_349] : memref<135x256xf32, #tpu.memory_space<vmem>>, vector<1x256xf32>
    %1214 = vector.broadcast %1213 : vector<1x256xf32> to vector<16x256xf32>
    %1215 = arith.mulf %1214, %1208 : vector<16x256xf32>
    %1216 = arith.addf %1201, %1215 : vector<16x256xf32>
    %c122_350 = arith.constant 122 : index
    %c0_351 = arith.constant 0 : index
    %1217 = vector.load %arg4[%c122_350, %c0_351] : memref<135x256xf32, #tpu.memory_space<vmem>>, vector<1x256xf32>
    %1218 = vector.broadcast %1217 : vector<1x256xf32> to vector<16x256xf32>
    %1219 = arith.mulf %1218, %1208 : vector<16x256xf32>
    %1220 = arith.addf %1205, %1219 : vector<16x256xf32>
    %1221 = vector.extract_strided_slice %725 {offsets = [0, 28], sizes = [16, 228], strides = [1, 1]} : vector<16x256xf32> to vector<16x228xf32>
    %1222 = vector.extract_strided_slice %725 {offsets = [0, 0], sizes = [16, 28], strides = [1, 1]} : vector<16x256xf32> to vector<16x28xf32>
    %1223 = tpu.concatenate %1221, %1222 in 1 : vector<16x228xf32>, vector<16x28xf32> -> vector<16x256xf32>
    %c33_352 = arith.constant 33 : index
    %c0_353 = arith.constant 0 : index
    %1224 = vector.load %arg4[%c33_352, %c0_353] : memref<135x256xf32, #tpu.memory_space<vmem>>, vector<1x256xf32>
    %1225 = vector.broadcast %1224 : vector<1x256xf32> to vector<16x256xf32>
    %1226 = arith.mulf %1225, %1223 : vector<16x256xf32>
    %1227 = arith.addf %1212, %1226 : vector<16x256xf32>
    %c78_354 = arith.constant 78 : index
    %c0_355 = arith.constant 0 : index
    %1228 = vector.load %arg4[%c78_354, %c0_355] : memref<135x256xf32, #tpu.memory_space<vmem>>, vector<1x256xf32>
    %1229 = vector.broadcast %1228 : vector<1x256xf32> to vector<16x256xf32>
    %1230 = arith.mulf %1229, %1223 : vector<16x256xf32>
    %1231 = arith.addf %1216, %1230 : vector<16x256xf32>
    %c123_356 = arith.constant 123 : index
    %c0_357 = arith.constant 0 : index
    %1232 = vector.load %arg4[%c123_356, %c0_357] : memref<135x256xf32, #tpu.memory_space<vmem>>, vector<1x256xf32>
    %1233 = vector.broadcast %1232 : vector<1x256xf32> to vector<16x256xf32>
    %1234 = arith.mulf %1233, %1223 : vector<16x256xf32>
    %1235 = arith.addf %1220, %1234 : vector<16x256xf32>
    %1236 = vector.extract_strided_slice %725 {offsets = [0, 29], sizes = [16, 227], strides = [1, 1]} : vector<16x256xf32> to vector<16x227xf32>
    %1237 = vector.extract_strided_slice %725 {offsets = [0, 0], sizes = [16, 29], strides = [1, 1]} : vector<16x256xf32> to vector<16x29xf32>
    %1238 = tpu.concatenate %1236, %1237 in 1 : vector<16x227xf32>, vector<16x29xf32> -> vector<16x256xf32>
    %c34_358 = arith.constant 34 : index
    %c0_359 = arith.constant 0 : index
    %1239 = vector.load %arg4[%c34_358, %c0_359] : memref<135x256xf32, #tpu.memory_space<vmem>>, vector<1x256xf32>
    %1240 = vector.broadcast %1239 : vector<1x256xf32> to vector<16x256xf32>
    %1241 = arith.mulf %1240, %1238 : vector<16x256xf32>
    %1242 = arith.addf %1227, %1241 : vector<16x256xf32>
    %c79_360 = arith.constant 79 : index
    %c0_361 = arith.constant 0 : index
    %1243 = vector.load %arg4[%c79_360, %c0_361] : memref<135x256xf32, #tpu.memory_space<vmem>>, vector<1x256xf32>
    %1244 = vector.broadcast %1243 : vector<1x256xf32> to vector<16x256xf32>
    %1245 = arith.mulf %1244, %1238 : vector<16x256xf32>
    %1246 = arith.addf %1231, %1245 : vector<16x256xf32>
    %c124_362 = arith.constant 124 : index
    %c0_363 = arith.constant 0 : index
    %1247 = vector.load %arg4[%c124_362, %c0_363] : memref<135x256xf32, #tpu.memory_space<vmem>>, vector<1x256xf32>
    %1248 = vector.broadcast %1247 : vector<1x256xf32> to vector<16x256xf32>
    %1249 = arith.mulf %1248, %1238 : vector<16x256xf32>
    %1250 = arith.addf %1235, %1249 : vector<16x256xf32>
    %1251 = vector.extract_strided_slice %725 {offsets = [0, 30], sizes = [16, 226], strides = [1, 1]} : vector<16x256xf32> to vector<16x226xf32>
    %1252 = vector.extract_strided_slice %725 {offsets = [0, 0], sizes = [16, 30], strides = [1, 1]} : vector<16x256xf32> to vector<16x30xf32>
    %1253 = tpu.concatenate %1251, %1252 in 1 : vector<16x226xf32>, vector<16x30xf32> -> vector<16x256xf32>
    %c35_364 = arith.constant 35 : index
    %c0_365 = arith.constant 0 : index
    %1254 = vector.load %arg4[%c35_364, %c0_365] : memref<135x256xf32, #tpu.memory_space<vmem>>, vector<1x256xf32>
    %1255 = vector.broadcast %1254 : vector<1x256xf32> to vector<16x256xf32>
    %1256 = arith.mulf %1255, %1253 : vector<16x256xf32>
    %1257 = arith.addf %1242, %1256 : vector<16x256xf32>
    %c80_366 = arith.constant 80 : index
    %c0_367 = arith.constant 0 : index
    %1258 = vector.load %arg4[%c80_366, %c0_367] : memref<135x256xf32, #tpu.memory_space<vmem>>, vector<1x256xf32>
    %1259 = vector.broadcast %1258 : vector<1x256xf32> to vector<16x256xf32>
    %1260 = arith.mulf %1259, %1253 : vector<16x256xf32>
    %1261 = arith.addf %1246, %1260 : vector<16x256xf32>
    %c125_368 = arith.constant 125 : index
    %c0_369 = arith.constant 0 : index
    %1262 = vector.load %arg4[%c125_368, %c0_369] : memref<135x256xf32, #tpu.memory_space<vmem>>, vector<1x256xf32>
    %1263 = vector.broadcast %1262 : vector<1x256xf32> to vector<16x256xf32>
    %1264 = arith.mulf %1263, %1253 : vector<16x256xf32>
    %1265 = arith.addf %1250, %1264 : vector<16x256xf32>
    %1266 = vector.extract_strided_slice %725 {offsets = [0, 31], sizes = [16, 225], strides = [1, 1]} : vector<16x256xf32> to vector<16x225xf32>
    %1267 = vector.extract_strided_slice %725 {offsets = [0, 0], sizes = [16, 31], strides = [1, 1]} : vector<16x256xf32> to vector<16x31xf32>
    %1268 = tpu.concatenate %1266, %1267 in 1 : vector<16x225xf32>, vector<16x31xf32> -> vector<16x256xf32>
    %c36_370 = arith.constant 36 : index
    %c0_371 = arith.constant 0 : index
    %1269 = vector.load %arg4[%c36_370, %c0_371] : memref<135x256xf32, #tpu.memory_space<vmem>>, vector<1x256xf32>
    %1270 = vector.broadcast %1269 : vector<1x256xf32> to vector<16x256xf32>
    %1271 = arith.mulf %1270, %1268 : vector<16x256xf32>
    %1272 = arith.addf %1257, %1271 : vector<16x256xf32>
    %c81_372 = arith.constant 81 : index
    %c0_373 = arith.constant 0 : index
    %1273 = vector.load %arg4[%c81_372, %c0_373] : memref<135x256xf32, #tpu.memory_space<vmem>>, vector<1x256xf32>
    %1274 = vector.broadcast %1273 : vector<1x256xf32> to vector<16x256xf32>
    %1275 = arith.mulf %1274, %1268 : vector<16x256xf32>
    %1276 = arith.addf %1261, %1275 : vector<16x256xf32>
    %c126_374 = arith.constant 126 : index
    %c0_375 = arith.constant 0 : index
    %1277 = vector.load %arg4[%c126_374, %c0_375] : memref<135x256xf32, #tpu.memory_space<vmem>>, vector<1x256xf32>
    %1278 = vector.broadcast %1277 : vector<1x256xf32> to vector<16x256xf32>
    %1279 = arith.mulf %1278, %1268 : vector<16x256xf32>
    %1280 = arith.addf %1265, %1279 : vector<16x256xf32>
    %1281 = vector.extract_strided_slice %725 {offsets = [0, 32], sizes = [16, 224], strides = [1, 1]} : vector<16x256xf32> to vector<16x224xf32>
    %1282 = vector.extract_strided_slice %725 {offsets = [0, 0], sizes = [16, 32], strides = [1, 1]} : vector<16x256xf32> to vector<16x32xf32>
    %1283 = tpu.concatenate %1281, %1282 in 1 : vector<16x224xf32>, vector<16x32xf32> -> vector<16x256xf32>
    %c37_376 = arith.constant 37 : index
    %c0_377 = arith.constant 0 : index
    %1284 = vector.load %arg4[%c37_376, %c0_377] : memref<135x256xf32, #tpu.memory_space<vmem>>, vector<1x256xf32>
    %1285 = vector.broadcast %1284 : vector<1x256xf32> to vector<16x256xf32>
    %1286 = arith.mulf %1285, %1283 : vector<16x256xf32>
    %1287 = arith.addf %1272, %1286 : vector<16x256xf32>
    %c82_378 = arith.constant 82 : index
    %c0_379 = arith.constant 0 : index
    %1288 = vector.load %arg4[%c82_378, %c0_379] : memref<135x256xf32, #tpu.memory_space<vmem>>, vector<1x256xf32>
    %1289 = vector.broadcast %1288 : vector<1x256xf32> to vector<16x256xf32>
    %1290 = arith.mulf %1289, %1283 : vector<16x256xf32>
    %1291 = arith.addf %1276, %1290 : vector<16x256xf32>
    %c127_380 = arith.constant 127 : index
    %c0_381 = arith.constant 0 : index
    %1292 = vector.load %arg4[%c127_380, %c0_381] : memref<135x256xf32, #tpu.memory_space<vmem>>, vector<1x256xf32>
    %1293 = vector.broadcast %1292 : vector<1x256xf32> to vector<16x256xf32>
    %1294 = arith.mulf %1293, %1283 : vector<16x256xf32>
    %1295 = arith.addf %1280, %1294 : vector<16x256xf32>
    %1296 = vector.extract_strided_slice %725 {offsets = [0, 33], sizes = [16, 223], strides = [1, 1]} : vector<16x256xf32> to vector<16x223xf32>
    %1297 = vector.extract_strided_slice %725 {offsets = [0, 0], sizes = [16, 33], strides = [1, 1]} : vector<16x256xf32> to vector<16x33xf32>
    %1298 = tpu.concatenate %1296, %1297 in 1 : vector<16x223xf32>, vector<16x33xf32> -> vector<16x256xf32>
    %c38_382 = arith.constant 38 : index
    %c0_383 = arith.constant 0 : index
    %1299 = vector.load %arg4[%c38_382, %c0_383] : memref<135x256xf32, #tpu.memory_space<vmem>>, vector<1x256xf32>
    %1300 = vector.broadcast %1299 : vector<1x256xf32> to vector<16x256xf32>
    %1301 = arith.mulf %1300, %1298 : vector<16x256xf32>
    %1302 = arith.addf %1287, %1301 : vector<16x256xf32>
    %c83_384 = arith.constant 83 : index
    %c0_385 = arith.constant 0 : index
    %1303 = vector.load %arg4[%c83_384, %c0_385] : memref<135x256xf32, #tpu.memory_space<vmem>>, vector<1x256xf32>
    %1304 = vector.broadcast %1303 : vector<1x256xf32> to vector<16x256xf32>
    %1305 = arith.mulf %1304, %1298 : vector<16x256xf32>
    %1306 = arith.addf %1291, %1305 : vector<16x256xf32>
    %c128_386 = arith.constant 128 : index
    %c0_387 = arith.constant 0 : index
    %1307 = vector.load %arg4[%c128_386, %c0_387] : memref<135x256xf32, #tpu.memory_space<vmem>>, vector<1x256xf32>
    %1308 = vector.broadcast %1307 : vector<1x256xf32> to vector<16x256xf32>
    %1309 = arith.mulf %1308, %1298 : vector<16x256xf32>
    %1310 = arith.addf %1295, %1309 : vector<16x256xf32>
    %1311 = vector.extract_strided_slice %725 {offsets = [0, 34], sizes = [16, 222], strides = [1, 1]} : vector<16x256xf32> to vector<16x222xf32>
    %1312 = vector.extract_strided_slice %725 {offsets = [0, 0], sizes = [16, 34], strides = [1, 1]} : vector<16x256xf32> to vector<16x34xf32>
    %1313 = tpu.concatenate %1311, %1312 in 1 : vector<16x222xf32>, vector<16x34xf32> -> vector<16x256xf32>
    %c39_388 = arith.constant 39 : index
    %c0_389 = arith.constant 0 : index
    %1314 = vector.load %arg4[%c39_388, %c0_389] : memref<135x256xf32, #tpu.memory_space<vmem>>, vector<1x256xf32>
    %1315 = vector.broadcast %1314 : vector<1x256xf32> to vector<16x256xf32>
    %1316 = arith.mulf %1315, %1313 : vector<16x256xf32>
    %1317 = arith.addf %1302, %1316 : vector<16x256xf32>
    %c84_390 = arith.constant 84 : index
    %c0_391 = arith.constant 0 : index
    %1318 = vector.load %arg4[%c84_390, %c0_391] : memref<135x256xf32, #tpu.memory_space<vmem>>, vector<1x256xf32>
    %1319 = vector.broadcast %1318 : vector<1x256xf32> to vector<16x256xf32>
    %1320 = arith.mulf %1319, %1313 : vector<16x256xf32>
    %1321 = arith.addf %1306, %1320 : vector<16x256xf32>
    %c129_392 = arith.constant 129 : index
    %c0_393 = arith.constant 0 : index
    %1322 = vector.load %arg4[%c129_392, %c0_393] : memref<135x256xf32, #tpu.memory_space<vmem>>, vector<1x256xf32>
    %1323 = vector.broadcast %1322 : vector<1x256xf32> to vector<16x256xf32>
    %1324 = arith.mulf %1323, %1313 : vector<16x256xf32>
    %1325 = arith.addf %1310, %1324 : vector<16x256xf32>
    %1326 = vector.extract_strided_slice %725 {offsets = [0, 35], sizes = [16, 221], strides = [1, 1]} : vector<16x256xf32> to vector<16x221xf32>
    %1327 = vector.extract_strided_slice %725 {offsets = [0, 0], sizes = [16, 35], strides = [1, 1]} : vector<16x256xf32> to vector<16x35xf32>
    %1328 = tpu.concatenate %1326, %1327 in 1 : vector<16x221xf32>, vector<16x35xf32> -> vector<16x256xf32>
    %c40_394 = arith.constant 40 : index
    %c0_395 = arith.constant 0 : index
    %1329 = vector.load %arg4[%c40_394, %c0_395] : memref<135x256xf32, #tpu.memory_space<vmem>>, vector<1x256xf32>
    %1330 = vector.broadcast %1329 : vector<1x256xf32> to vector<16x256xf32>
    %1331 = arith.mulf %1330, %1328 : vector<16x256xf32>
    %1332 = arith.addf %1317, %1331 : vector<16x256xf32>
    %c85_396 = arith.constant 85 : index
    %c0_397 = arith.constant 0 : index
    %1333 = vector.load %arg4[%c85_396, %c0_397] : memref<135x256xf32, #tpu.memory_space<vmem>>, vector<1x256xf32>
    %1334 = vector.broadcast %1333 : vector<1x256xf32> to vector<16x256xf32>
    %1335 = arith.mulf %1334, %1328 : vector<16x256xf32>
    %1336 = arith.addf %1321, %1335 : vector<16x256xf32>
    %c130_398 = arith.constant 130 : index
    %c0_399 = arith.constant 0 : index
    %1337 = vector.load %arg4[%c130_398, %c0_399] : memref<135x256xf32, #tpu.memory_space<vmem>>, vector<1x256xf32>
    %1338 = vector.broadcast %1337 : vector<1x256xf32> to vector<16x256xf32>
    %1339 = arith.mulf %1338, %1328 : vector<16x256xf32>
    %1340 = arith.addf %1325, %1339 : vector<16x256xf32>
    %1341 = vector.extract_strided_slice %725 {offsets = [0, 36], sizes = [16, 220], strides = [1, 1]} : vector<16x256xf32> to vector<16x220xf32>
    %1342 = vector.extract_strided_slice %725 {offsets = [0, 0], sizes = [16, 36], strides = [1, 1]} : vector<16x256xf32> to vector<16x36xf32>
    %1343 = tpu.concatenate %1341, %1342 in 1 : vector<16x220xf32>, vector<16x36xf32> -> vector<16x256xf32>
    %c41_400 = arith.constant 41 : index
    %c0_401 = arith.constant 0 : index
    %1344 = vector.load %arg4[%c41_400, %c0_401] : memref<135x256xf32, #tpu.memory_space<vmem>>, vector<1x256xf32>
    %1345 = vector.broadcast %1344 : vector<1x256xf32> to vector<16x256xf32>
    %1346 = arith.mulf %1345, %1343 : vector<16x256xf32>
    %1347 = arith.addf %1332, %1346 : vector<16x256xf32>
    %c86_402 = arith.constant 86 : index
    %c0_403 = arith.constant 0 : index
    %1348 = vector.load %arg4[%c86_402, %c0_403] : memref<135x256xf32, #tpu.memory_space<vmem>>, vector<1x256xf32>
    %1349 = vector.broadcast %1348 : vector<1x256xf32> to vector<16x256xf32>
    %1350 = arith.mulf %1349, %1343 : vector<16x256xf32>
    %1351 = arith.addf %1336, %1350 : vector<16x256xf32>
    %c131_404 = arith.constant 131 : index
    %c0_405 = arith.constant 0 : index
    %1352 = vector.load %arg4[%c131_404, %c0_405] : memref<135x256xf32, #tpu.memory_space<vmem>>, vector<1x256xf32>
    %1353 = vector.broadcast %1352 : vector<1x256xf32> to vector<16x256xf32>
    %1354 = arith.mulf %1353, %1343 : vector<16x256xf32>
    %1355 = arith.addf %1340, %1354 : vector<16x256xf32>
    %1356 = vector.extract_strided_slice %725 {offsets = [0, 37], sizes = [16, 219], strides = [1, 1]} : vector<16x256xf32> to vector<16x219xf32>
    %1357 = vector.extract_strided_slice %725 {offsets = [0, 0], sizes = [16, 37], strides = [1, 1]} : vector<16x256xf32> to vector<16x37xf32>
    %1358 = tpu.concatenate %1356, %1357 in 1 : vector<16x219xf32>, vector<16x37xf32> -> vector<16x256xf32>
    %c42_406 = arith.constant 42 : index
    %c0_407 = arith.constant 0 : index
    %1359 = vector.load %arg4[%c42_406, %c0_407] : memref<135x256xf32, #tpu.memory_space<vmem>>, vector<1x256xf32>
    %1360 = vector.broadcast %1359 : vector<1x256xf32> to vector<16x256xf32>
    %1361 = arith.mulf %1360, %1358 : vector<16x256xf32>
    %1362 = arith.addf %1347, %1361 : vector<16x256xf32>
    %c87_408 = arith.constant 87 : index
    %c0_409 = arith.constant 0 : index
    %1363 = vector.load %arg4[%c87_408, %c0_409] : memref<135x256xf32, #tpu.memory_space<vmem>>, vector<1x256xf32>
    %1364 = vector.broadcast %1363 : vector<1x256xf32> to vector<16x256xf32>
    %1365 = arith.mulf %1364, %1358 : vector<16x256xf32>
    %1366 = arith.addf %1351, %1365 : vector<16x256xf32>
    %c132_410 = arith.constant 132 : index
    %c0_411 = arith.constant 0 : index
    %1367 = vector.load %arg4[%c132_410, %c0_411] : memref<135x256xf32, #tpu.memory_space<vmem>>, vector<1x256xf32>
    %1368 = vector.broadcast %1367 : vector<1x256xf32> to vector<16x256xf32>
    %1369 = arith.mulf %1368, %1358 : vector<16x256xf32>
    %1370 = arith.addf %1355, %1369 : vector<16x256xf32>
    %1371 = vector.extract_strided_slice %725 {offsets = [0, 38], sizes = [16, 218], strides = [1, 1]} : vector<16x256xf32> to vector<16x218xf32>
    %1372 = vector.extract_strided_slice %725 {offsets = [0, 0], sizes = [16, 38], strides = [1, 1]} : vector<16x256xf32> to vector<16x38xf32>
    %1373 = tpu.concatenate %1371, %1372 in 1 : vector<16x218xf32>, vector<16x38xf32> -> vector<16x256xf32>
    %c43_412 = arith.constant 43 : index
    %c0_413 = arith.constant 0 : index
    %1374 = vector.load %arg4[%c43_412, %c0_413] : memref<135x256xf32, #tpu.memory_space<vmem>>, vector<1x256xf32>
    %1375 = vector.broadcast %1374 : vector<1x256xf32> to vector<16x256xf32>
    %1376 = arith.mulf %1375, %1373 : vector<16x256xf32>
    %1377 = arith.addf %1362, %1376 : vector<16x256xf32>
    %c88_414 = arith.constant 88 : index
    %c0_415 = arith.constant 0 : index
    %1378 = vector.load %arg4[%c88_414, %c0_415] : memref<135x256xf32, #tpu.memory_space<vmem>>, vector<1x256xf32>
    %1379 = vector.broadcast %1378 : vector<1x256xf32> to vector<16x256xf32>
    %1380 = arith.mulf %1379, %1373 : vector<16x256xf32>
    %1381 = arith.addf %1366, %1380 : vector<16x256xf32>
    %c133_416 = arith.constant 133 : index
    %c0_417 = arith.constant 0 : index
    %1382 = vector.load %arg4[%c133_416, %c0_417] : memref<135x256xf32, #tpu.memory_space<vmem>>, vector<1x256xf32>
    %1383 = vector.broadcast %1382 : vector<1x256xf32> to vector<16x256xf32>
    %1384 = arith.mulf %1383, %1373 : vector<16x256xf32>
    %1385 = arith.addf %1370, %1384 : vector<16x256xf32>
    %1386 = vector.extract_strided_slice %725 {offsets = [0, 39], sizes = [16, 217], strides = [1, 1]} : vector<16x256xf32> to vector<16x217xf32>
    %1387 = vector.extract_strided_slice %725 {offsets = [0, 0], sizes = [16, 39], strides = [1, 1]} : vector<16x256xf32> to vector<16x39xf32>
    %1388 = tpu.concatenate %1386, %1387 in 1 : vector<16x217xf32>, vector<16x39xf32> -> vector<16x256xf32>
    %c44_418 = arith.constant 44 : index
    %c0_419 = arith.constant 0 : index
    %1389 = vector.load %arg4[%c44_418, %c0_419] : memref<135x256xf32, #tpu.memory_space<vmem>>, vector<1x256xf32>
    %1390 = vector.broadcast %1389 : vector<1x256xf32> to vector<16x256xf32>
    %1391 = arith.mulf %1390, %1388 : vector<16x256xf32>
    %1392 = arith.addf %1377, %1391 : vector<16x256xf32>
    %c89_420 = arith.constant 89 : index
    %c0_421 = arith.constant 0 : index
    %1393 = vector.load %arg4[%c89_420, %c0_421] : memref<135x256xf32, #tpu.memory_space<vmem>>, vector<1x256xf32>
    %1394 = vector.broadcast %1393 : vector<1x256xf32> to vector<16x256xf32>
    %1395 = arith.mulf %1394, %1388 : vector<16x256xf32>
    %1396 = arith.addf %1381, %1395 : vector<16x256xf32>
    %c134_422 = arith.constant 134 : index
    %c0_423 = arith.constant 0 : index
    %1397 = vector.load %arg4[%c134_422, %c0_423] : memref<135x256xf32, #tpu.memory_space<vmem>>, vector<1x256xf32>
    %1398 = vector.broadcast %1397 : vector<1x256xf32> to vector<16x256xf32>
    %1399 = arith.mulf %1398, %1388 : vector<16x256xf32>
    %1400 = arith.addf %1385, %1399 : vector<16x256xf32>
    %1401 = vector.extract_strided_slice %1392 {offsets = [15, 0], sizes = [1, 256], strides = [1, 1]} : vector<16x256xf32> to vector<1x256xf32>
    %1402 = vector.extract_strided_slice %1392 {offsets = [0, 0], sizes = [15, 256], strides = [1, 1]} : vector<16x256xf32> to vector<15x256xf32>
    %1403 = tpu.concatenate %1401, %1402 in 0 : vector<1x256xf32>, vector<15x256xf32> -> vector<16x256xf32>
    %cst_424 = arith.constant 0.000000e+00 : f32
    %1404 = vector.shape_cast %24 : vector<16x1xi1> to vector<16x1xi1>
    %1405 = vector.broadcast %1404 : vector<16x1xi1> to vector<16x256xi1>
    %1406 = vector.broadcast %cst_424 : f32 to vector<16x256xf32>
    %1407 = arith.select %1405, %1403, %1406 : vector<16x256xi1>, vector<16x256xf32>
    %1408 = arith.addf %1396, %1407 : vector<16x256xf32>
    %1409 = vector.extract_strided_slice %1400 {offsets = [1, 0], sizes = [15, 256], strides = [1, 1]} : vector<16x256xf32> to vector<15x256xf32>
    %1410 = vector.extract_strided_slice %1400 {offsets = [0, 0], sizes = [1, 256], strides = [1, 1]} : vector<16x256xf32> to vector<1x256xf32>
    %1411 = tpu.concatenate %1409, %1410 in 0 : vector<15x256xf32>, vector<1x256xf32> -> vector<16x256xf32>
    %cst_425 = arith.constant 0.000000e+00 : f32
    %1412 = vector.shape_cast %26 : vector<16x1xi1> to vector<16x1xi1>
    %1413 = vector.broadcast %1412 : vector<16x1xi1> to vector<16x256xi1>
    %1414 = vector.broadcast %cst_425 : f32 to vector<16x256xf32>
    %1415 = arith.select %1413, %1411, %1414 : vector<16x256xi1>, vector<16x256xf32>
    %1416 = arith.addf %1408, %1415 : vector<16x256xf32>
    %1417 = vector.broadcast %3 : f32 to vector<16x256xf32>
    %1418 = arith.mulf %1416, %1417 : vector<16x256xf32>
    %1419 = vector.broadcast %4 : f32 to vector<16x256xf32>
    %1420 = arith.addf %1418, %1419 : vector<16x256xf32>
    %1421 = arith.addf %1420, %5 : vector<16x256xf32>
    %cst_426 = arith.constant 0.000000e+00 : f32
    %1422 = vector.broadcast %cst_426 : f32 to vector<16x256xf32>
    %1423 = arith.maximumf %1421, %1422 : vector<16x256xf32>
    %c0_427 = arith.constant 0 : index
    %c0_428 = arith.constant 0 : index
    %1424 = vector.load %arg5[%c0_427, %c0_428] : memref<16x256xf32, #tpu.memory_space<vmem>>, vector<16x256xf32>
    tpu.vector_store %arg5[%c0_427, %c0_428], %1423 {strides = array<i32>} : memref<16x256xf32, #tpu.memory_space<vmem>>, vector<16x256xf32>,
    return
  }
  func.func @transform_0(%arg0: i32) -> i32 {
    %c0_i32 = arith.constant 0 : i32
    %c0_i32_0 = arith.constant 0 : i32
    return %c0_i32 : i32
  }
  func.func @transform_1(%arg0: i32) -> (i32, i32) {
    %c0_i32 = arith.constant 0 : i32
    %c0_i32_0 = arith.constant 0 : i32
    return %arg0, %c0_i32 : i32, i32
  }
  func.func @transform_2(%arg0: i32) -> (i32, i32) {
    %c0_i32 = arith.constant 0 : i32
    %c0_i32_0 = arith.constant 0 : i32
    %c0_i32_1 = arith.constant 0 : i32
    return %c0_i32, %c0_i32_0 : i32, i32
  }
  func.func @transform_3(%arg0: i32) -> (i32, i32) {
    %c0_i32 = arith.constant 0 : i32
    %c0_i32_0 = arith.constant 0 : i32
    %c0_i32_1 = arith.constant 0 : i32
    return %c0_i32, %c0_i32_0 : i32, i32
  }
  func.func @transform_4(%arg0: i32) -> (i32, i32) {
    %c0_i32 = arith.constant 0 : i32
    %c0_i32_0 = arith.constant 0 : i32
    return %arg0, %c0_i32 : i32, i32
  }
}

</mosaic_0001>

<llo_original>
// kernel: tpu_custom_call.1
$region0: #{tpu_custom_call.1}
  #allocation0 [shape = 'u32[]', space=smem, size = 0x4, offset = 0x4, fixed_abs, tag = 'smem constant byte address 0x4 - core index']
  #allocation1 [shape = 'u32[72,128]{1,0:T(1,128)}', space=vmem, size = 0x9000, scoped, tag = 'internal scratch']
  %s0 = inlined_call_operand.hbm [shape: f32[16,256], index: 0, kind: input, shape index: {}]
  %s1 = inlined_call_operand.hbm [shape: f32[16,256], index: 1, kind: output, shape index: {}]
  %s2 = sld [smem:[#allocation0]]
  $region18: #{tpu_custom_call.1} parent=0
    _
  %s4 = ssub.s32 1, %s2
  %s5 = scalar_select 0, %s4, %s2
  $region1: #{tpu_custom_call.1} parent=0
    #allocation2 [shape = 'u8[16384]{0}', space=vmem, size = 0x4000, scoped, tag = 'input window, operand 0, single buffered']
    #allocation3 [shape = 's32[1]{0}', space=sflag, size = 0x4, scoped, tag = 'scoped memory for tpu_custom_call.1']
    #allocation4 [shape = 's32[1]{0}', space=sflag, size = 0x4, scoped, tag = 'scoped memory for tpu_custom_call.1']
    #allocation5 [shape = 'u8[16384]{0}', space=vmem, size = 0x4000, scoped, tag = 'output window, operand 0, single buffered']
    %6 = vsyncpa [#allocation3], 0
    %7 = vsyncpa [#allocation4], 0
    // Predicated region
    $region2: #{tpu_custom_call.1} parent=1 // pred_check
      _
    $region3: #{tpu_custom_call.1} parent=1 // pred_check_branch
      %9 = sbr.rel (0) target = $region5
    $region4: #{tpu_custom_call.1} parent=1 // pred_region
      %11 = vsyncadd [#allocation3], 0
      %s12 = sshll.u32 %s0, 4
      %s13 = int_to_ptr.hbm [resolvable:$true] %s12
      %s14 = sshll.u32 [#allocation2], 4
      %s15 = int_to_ptr.vmem [resolvable:$true] %s14
      %20 = dma.hbm_to_vmem [thread:$0]  %s13, 512, %s15, [#allocation3], 256, 256, 16
    $region5: #{tpu_custom_call.1} parent=1 // pred_fallthru
      _
    // Predicated region
    $region6: #{tpu_custom_call.1} parent=1 // pred_check
      _
    $region7: #{tpu_custom_call.1} parent=1 // pred_check_branch
      %22 = sbr.rel (0) target = $region9
    $region8: #{tpu_custom_call.1} parent=1 // pred_region
      %24 = dma.done [#allocation3], 512
    $region9: #{tpu_custom_call.1} parent=1 // pred_fallthru
      _
    %v25 = vld [vmem:[#allocation2] sm:$0xff]
    %v26 = vld [vmem:[#allocation2 + $0x8] sm:$0xff]
    %v27 = vld [vmem:[#allocation2 + $0x10] sm:$0xff]
    %v28 = vld [vmem:[#allocation2 + $0x18] sm:$0xff]
    %29 = vrot.lane.b32.xlu0 %v25, 3
    %v30 = vpop.permute.xlu0 %29
    %31 = vrot.lane.b32.xlu0 %v27, 3
    %v32 = vpop.permute.xlu0 %31
    %33 = vrot.lane.b32.xlu0 %v26, 3
    %v34 = vpop.permute.xlu0 %33
    %35 = vrot.lane.b32.xlu0 %v28, 3
    %v36 = vpop.permute.xlu0 %35
    %v37 = vlaneseq
    %v38 = vand.u32 %v37, 127
    %vm39 = vcmp.lt.s32.totalorder %v38, 3
    %v40 = vsel %vm39, %v30, %v34
    %v41 = vsel %vm39, %v32, %v36
    %v42 = vsel %vm39, %v34, %v30
    %v43 = vsel %vm39, %v36, %v32
    %44 = vst [vmem:[#allocation5] sm:$0xff] %v42
    %45 = vst [vmem:[#allocation5 + $0x8] sm:$0xff] %v40
    %46 = vst [vmem:[#allocation5 + $0x10] sm:$0xff] %v43
    %47 = vst [vmem:[#allocation5 + $0x18] sm:$0xff] %v41
    // Predicated region
    $region10: #{tpu_custom_call.1} parent=1 // pred_check
      _
    $region11: #{tpu_custom_call.1} parent=1 // pred_check_branch
      %49 = sbr.rel (0) target = $region13
    $region12: #{tpu_custom_call.1} parent=1 // pred_region
      %51 = vsyncadd [#allocation4], 0
      %s52 = sshll.u32 [#allocation5], 4
      %s53 = int_to_ptr.vmem [resolvable:$true] %s52
      %s54 = sshll.u32 %s1, 4
      %s55 = int_to_ptr.hbm [resolvable:$true] %s54
      %60 = dma.vmem_to_hbm [thread:$0]  %s53, 512, %s55, [#allocation4], 256, 256, 16
    $region13: #{tpu_custom_call.1} parent=1 // pred_fallthru
      _
    // Predicated region
    $region14: #{tpu_custom_call.1} parent=1 // pred_check
      _
    $region15: #{tpu_custom_call.1} parent=1 // pred_check_branch
      %62 = sbr.rel (0) target = $region17
    $region16: #{tpu_custom_call.1} parent=1 // pred_region
      %64 = dma.done [#allocation4], 512
    $region17: #{tpu_custom_call.1} parent=1 // pred_fallthru
      _
    %65 = vsyncpa [#allocation3], 1
    %66 = vsyncpa [#allocation4], 1

// kernel: tpu_custom_call.1
$region0: #{tpu_custom_call.1}
  #allocation0 [shape = 'u32[]', space=smem, size = 0x4, offset = 0x4, fixed_abs, tag = 'smem constant byte address 0x4 - core index']
  #allocation1 [shape = 'u32[72,128]{1,0:T(1,128)}', space=vmem, size = 0x9000, scoped, tag = 'internal scratch']
  %s0 = inlined_call_operand.hbm [shape: f32[5], index: 0, kind: input, shape index: {}]
  %s1 = inlined_call_operand.hbm [shape: f32[16,256], index: 1, kind: input, shape index: {}]
  %s2 = inlined_call_operand.hbm [shape: f32[135,256], index: 2, kind: input, shape index: {}]
  %s3 = inlined_call_operand.hbm [shape: f32[135,256], index: 3, kind: input, shape index: {}]
  %s4 = inlined_call_operand.hbm [shape: f32[16,256], index: 4, kind: output, shape index: {}]
  %s5 = sld [smem:[#allocation0]]
  $region42: #{tpu_custom_call.1} parent=0
    _
  %s7 = ssub.s32 1, %s5
  %s8 = scalar_select 0, %s7, %s5
  $region1: #{tpu_custom_call.1} parent=0
    #allocation2 [shape = 'u8[512]{0}', space=smem, size = 0x200, scoped, tag = 'input window, operand 0, single buffered']
    #allocation3 [shape = 's32[1]{0}', space=sflag, size = 0x4, scoped, tag = 'scoped memory for tpu_custom_call.1']
    #allocation4 [shape = 's32[1]{0}', space=sflag, size = 0x4, scoped, tag = 'scoped memory for tpu_custom_call.1']
    #allocation5 [shape = 's32[1]{0}', space=sflag, size = 0x4, scoped, tag = 'scoped memory for tpu_custom_call.1']
    #allocation6 [shape = 'u8[16384]{0}', space=vmem, size = 0x4000, scoped, tag = 'input window, operand 1, single buffered']
    #allocation7 [shape = 'u8[139264]{0}', space=vmem, size = 0x22000, scoped, tag = 'input window, operand 2, single buffered']
    #allocation8 [shape = 's32[1]{0}', space=sflag, size = 0x4, scoped, tag = 'scoped memory for tpu_custom_call.1']
    #allocation9 [shape = 'u8[139264]{0}', space=vmem, size = 0x22000, scoped, tag = 'input window, operand 3, single buffered']
    #allocation10 [shape = 'u8[16384]{0}', space=vmem, size = 0x4000, scoped, tag = 'output window, operand 0, single buffered']
    %9 = vsyncpa [#allocation5], 0
    %10 = vsyncpa [#allocation3], 0
    %11 = vsyncpa [#allocation8], 0
    %12 = vsyncpa [#allocation4], 0
    // Predicated region
    $region2: #{tpu_custom_call.1} parent=1 // pred_check
      _
    $region3: #{tpu_custom_call.1} parent=1 // pred_check_branch
      %14 = sbr.rel (0) target = $region5
    $region4: #{tpu_custom_call.1} parent=1 // pred_region
      %16 = vsyncadd [#allocation5], 0
      %s18 = sshll.u32 %s0, 4
      %s19 = int_to_ptr.hbm [resolvable:$true] %s18
      %21 = dma.hbm_to_smem %s19, 16, [#allocation2], [#allocation5]
    $region5: #{tpu_custom_call.1} parent=1 // pred_fallthru
      _
    // Predicated region
    $region6: #{tpu_custom_call.1} parent=1 // pred_check
      _
    $region7: #{tpu_custom_call.1} parent=1 // pred_check_branch
      %23 = sbr.rel (0) target = $region9
    $region8: #{tpu_custom_call.1} parent=1 // pred_region
      %25 = vsyncadd [#allocation3], 0
      %s26 = sshll.u32 %s1, 4
      %s27 = int_to_ptr.hbm [resolvable:$true] %s26
      %s28 = sshll.u32 [#allocation6], 4
      %s29 = int_to_ptr.vmem [resolvable:$true] %s28
      %34 = dma.hbm_to_vmem [thread:$0]  %s27, 512, %s29, [#allocation3], 256, 256, 16
    $region9: #{tpu_custom_call.1} parent=1 // pred_fallthru
      _
    // Predicated region
    $region10: #{tpu_custom_call.1} parent=1 // pred_check
      _
    $region11: #{tpu_custom_call.1} parent=1 // pred_check_branch
      %36 = sbr.rel (0) target = $region13
    $region12: #{tpu_custom_call.1} parent=1 // pred_region
      %38 = vsyncadd [#allocation8], 0
      %s39 = sshll.u32 %s2, 4
      %s40 = int_to_ptr.hbm [resolvable:$true] %s39
      %s41 = sshll.u32 [#allocation7], 4
      %s42 = int_to_ptr.vmem [resolvable:$true] %s41
      %47 = dma.hbm_to_vmem [thread:$0]  %s40, 4352, %s42, [#allocation8], 256, 256, 16
    $region13: #{tpu_custom_call.1} parent=1 // pred_fallthru
      _
    // Predicated region
    $region14: #{tpu_custom_call.1} parent=1 // pred_check
      _
    $region15: #{tpu_custom_call.1} parent=1 // pred_check_branch
      %49 = sbr.rel (0) target = $region17
    $region16: #{tpu_custom_call.1} parent=1 // pred_region
      %51 = vsyncadd [#allocation8], 0
      %s52 = sshll.u32 %s3, 4
      %s53 = int_to_ptr.hbm [resolvable:$true] %s52
      %s54 = sshll.u32 [#allocation9], 4
      %s55 = int_to_ptr.vmem [resolvable:$true] %s54
      %60 = dma.hbm_to_vmem [thread:$0]  %s53, 4352, %s55, [#allocation8], 256, 256, 16
    $region17: #{tpu_custom_call.1} parent=1 // pred_fallthru
      _
    // Predicated region
    $region18: #{tpu_custom_call.1} parent=1 // pred_check
      _
    $region19: #{tpu_custom_call.1} parent=1 // pred_check_branch
      %62 = sbr.rel (0) target = $region21
    $region20: #{tpu_custom_call.1} parent=1 // pred_region
      %64 = dma.done [#allocation5], 16
    $region21: #{tpu_custom_call.1} parent=1 // pred_fallthru
      _
    // Predicated region
    $region22: #{tpu_custom_call.1} parent=1 // pred_check
      _
    $region23: #{tpu_custom_call.1} parent=1 // pred_check_branch
      %66 = sbr.rel (0) target = $region25
    $region24: #{tpu_custom_call.1} parent=1 // pred_region
      %68 = dma.done [#allocation3], 512
    $region25: #{tpu_custom_call.1} parent=1 // pred_fallthru
      _
    // Predicated region
    $region26: #{tpu_custom_call.1} parent=1 // pred_check
      _
    $region27: #{tpu_custom_call.1} parent=1 // pred_check_branch
      %70 = sbr.rel (0) target = $region29
    $region28: #{tpu_custom_call.1} parent=1 // pred_region
      %72 = dma.done [#allocation8], 4352
    $region29: #{tpu_custom_call.1} parent=1 // pred_fallthru
      _
    // Predicated region
    $region30: #{tpu_custom_call.1} parent=1 // pred_check
      _
    $region31: #{tpu_custom_call.1} parent=1 // pred_check_branch
      %74 = sbr.rel (0) target = $region33
    $region32: #{tpu_custom_call.1} parent=1 // pred_region
      %76 = dma.done [#allocation8], 4352
    $region33: #{tpu_custom_call.1} parent=1 // pred_fallthru
      _
    %77 = sfence
    %s78 = sld [smem:[#allocation2]]
    %s79 = sld [smem:[#allocation2 + $0x1]]
    %s80 = sld [smem:[#allocation2 + $0x2]]
    %s81 = sld [smem:[#allocation2 + $0x3]]
    %s82 = sld [smem:[#allocation2 + $0x4]]
    %v83 = vld [vmem:[#allocation6] sm:$0xff]
    %v84 = vld [vmem:[#allocation6 + $0x8] sm:$0xff]
    %v85 = vld [vmem:[#allocation6 + $0x10] sm:$0xff]
    %v86 = vld [vmem:[#allocation6 + $0x18] sm:$0xff]
    %v87 = vlaneseq
    %v88 = vshrl.u32 %v87, 7
    %v89 = vadd.s32 %v88, 8
    %vm90 = vcmp.lt.s32.totalorder %v88, 0
    %v91 = vsub.s32 0, %v88
    %v92 = vsel %vm90, %v91, %v88
    %v93 = vshrl.u32 %v92, 3
    %v94 = vand.u32 %v92, 7
    %v95 = vsub.s32 0, %v94
    %v96 = vsel %vm90, %v95, %v94
    %vm97 = vcmp.lt.s32.totalorder %v89, 0
    %v98 = vsub.s32 0, %v89
    %v99 = vsel %vm97, %v98, %v89
    %v100 = vshrl.u32 %v99, 3
    %v101 = vand.u32 %v99, 7
    %v102 = vsub.s32 0, %v101
    %v103 = vsel %vm97, %v102, %v101
    %vm104 = vcmp.ne.s32.totalorder %v96, 0
    %vm105 = vcmp.ne.s32.totalorder %v103, 0
    %vm106 = vcmp.lt.s32.totalorder %v96, 0
    %vm107 = vcmp.lt.s32.totalorder %v103, 0
    %vm108 = vmand %vm106, %vm104
    %vm109 = vmand %vm107, %vm105
    %v110 = vadd.s32 %v96, 8
    %v111 = vadd.s32 %v103, 8
    %v112 = vsel %vm108, %v110, %v96
    %v113 = vsel %vm109, %v111, %v103
    %vm114 = vcmp.ge.s32.totalorder %v112, 1
    %vm115 = vcmp.ge.s32.totalorder %v113, 1
    %vm116 = vcmp.le.s32.totalorder %v112, 6
    %vm117 = vcmp.le.s32.totalorder %v113, 6
    %v118 = vstv %s78
    %v119 = vadd.f32 %v83, %v118
    %v120 = vadd.f32 %v84, %v118
    %v121 = vadd.f32 %v85, %v118
    %v122 = vadd.f32 %v86, %v118
    %125 = vrot.lane.b32.xlu0 %v120, 39
    %v126 = vpop.permute.xlu0 %125
    %127 = vrot.lane.b32.xlu0 %v122, 39
    %v128 = vpop.permute.xlu0 %127
    %133 = vrot.lane.b32.xlu0 %v119, 39
    %v134 = vpop.permute.xlu0 %133
    %135 = vrot.lane.b32.xlu0 %v121, 39
    %v136 = vpop.permute.xlu0 %135
    %vm137 = vcmask 318464
    %v138 = vsel %vm137, %v134, %v126
    %v139 = vsel %vm137, %v136, %v128
    %v144 = vsel %vm137, %v126, %v134
    %v145 = vsel %vm137, %v128, %v136
    %v146 = vld [vmem:[#allocation7] ss:$8 sm:$0x3]
    %v148 = vperm.slane %v146, 0
    %v149 = vperm.slane %v146, 1
    %v152 = vmul.f32 %v148, %v144
    %v153 = vmul.f32 %v149, %v138
    %v154 = vmul.f32 %v148, %v145
    %v155 = vmul.f32 %v149, %v139
    %v156 = vadd.f32 %v152, 0.0
    %v157 = vadd.f32 %v153, 0.0
    %v158 = vadd.f32 %v154, 0.0
    %v159 = vadd.f32 %v155, 0.0
    %s160 = scalar_lea.vmem [#allocation7], 85
    %v161 = vld [vmem:[%s160] ss:$8 sm:$0x3]
    %v163 = vperm.slane %v161, 0
    %v164 = vperm.slane %v161, 1
    %v167 = vmul.f32 %v163, %v144
    %v168 = vmul.f32 %v164, %v138
    %v169 = vmul.f32 %v163, %v145
    %v170 = vmul.f32 %v164, %v139
    %v171 = vadd.f32 %v167, 0.0
    %v172 = vadd.f32 %v168, 0.0
    %v173 = vadd.f32 %v169, 0.0
    %v174 = vadd.f32 %v170, 0.0
    %s175 = scalar_lea.vmem [#allocation7], 178
    %v176 = vld [vmem:[%s175] ss:$8 sm:$0x3]
    %v178 = vperm.slane %v176, 0
    %v179 = vperm.slane %v176, 1
    %v182 = vmul.f32 %v178, %v144
    %v183 = vmul.f32 %v179, %v138
    %v184 = vmul.f32 %v178, %v145
    %v185 = vmul.f32 %v179, %v139
    %v186 = vadd.f32 %v182, 0.0
    %v187 = vadd.f32 %v183, 0.0
    %v188 = vadd.f32 %v184, 0.0
    %v189 = vadd.f32 %v185, 0.0
    %190 = vrot.lane.b32.xlu0 %v120, 38
    %v191 = vpop.permute.xlu0 %190
    %192 = vrot.lane.b32.xlu0 %v122, 38
    %v193 = vpop.permute.xlu0 %192
    %196 = vrot.lane.b32.xlu0 %v119, 38
    %v197 = vpop.permute.xlu0 %196
    %198 = vrot.lane.b32.xlu0 %v121, 38
    %v199 = vpop.permute.xlu0 %198
    %vm200 = vcmask 310272
    %v201 = vsel %vm200, %v197, %v191
    %v202 = vsel %vm200, %v199, %v193
    %v207 = vsel %vm200, %v191, %v197
    %v208 = vsel %vm200, %v193, %v199
    %s209 = scalar_lea.vmem [#allocation7], 1
    %v210 = vld [vmem:[%s209] ss:$8 sm:$0x3]
    %v212 = vperm.slane %v210, 0
    %v213 = vperm.slane %v210, 1
    %v216 = vmul.f32 %v212, %v207
    %v217 = vmul.f32 %v213, %v201
    %v218 = vmul.f32 %v212, %v208
    %v219 = vmul.f32 %v213, %v202
    %v220 = vadd.f32 %v156, %v216
    %v221 = vadd.f32 %v157, %v217
    %v222 = vadd.f32 %v158, %v218
    %v223 = vadd.f32 %v159, %v219
    %s224 = scalar_lea.vmem [#allocation7], 86
    %v225 = vld [vmem:[%s224] ss:$8 sm:$0x3]
    %v227 = vperm.slane %v225, 0
    %v228 = vperm.slane %v225, 1
    %v231 = vmul.f32 %v227, %v207
    %v232 = vmul.f32 %v228, %v201
    %v233 = vmul.f32 %v227, %v208
    %v234 = vmul.f32 %v228, %v202
    %v235 = vadd.f32 %v171, %v231
    %v236 = vadd.f32 %v172, %v232
    %v237 = vadd.f32 %v173, %v233
    %v238 = vadd.f32 %v174, %v234
    %s239 = scalar_lea.vmem [#allocation7], 179
    %v240 = vld [vmem:[%s239] ss:$8 sm:$0x3]
    %v242 = vperm.slane %v240, 0
    %v243 = vperm.slane %v240, 1
    %v246 = vmul.f32 %v242, %v207
    %v247 = vmul.f32 %v243, %v201
    %v248 = vmul.f32 %v242, %v208
    %v249 = vmul.f32 %v243, %v202
    %v250 = vadd.f32 %v186, %v246
    %v251 = vadd.f32 %v187, %v247
    %v252 = vadd.f32 %v188, %v248
    %v253 = vadd.f32 %v189, %v249
    %254 = vrot.lane.b32.xlu0 %v120, 37
    %v255 = vpop.permute.xlu0 %254
    %256 = vrot.lane.b32.xlu0 %v122, 37
    %v257 = vpop.permute.xlu0 %256
    %260 = vrot.lane.b32.xlu0 %v119, 37
    %v261 = vpop.permute.xlu0 %260
    %262 = vrot.lane.b32.xlu0 %v121, 37
    %v263 = vpop.permute.xlu0 %262
    %vm264 = vcmask 302080
    %v265 = vsel %vm264, %v261, %v255
    %v266 = vsel %vm264, %v263, %v257
    %v271 = vsel %vm264, %v255, %v261
    %v272 = vsel %vm264, %v257, %v263
    %s273 = scalar_lea.vmem [#allocation7], 2
    %v274 = vld [vmem:[%s273] ss:$8 sm:$0x3]
    %v276 = vperm.slane %v274, 0
    %v277 = vperm.slane %v274, 1
    %v280 = vmul.f32 %v276, %v271
    %v281 = vmul.f32 %v277, %v265
    %v282 = vmul.f32 %v276, %v272
    %v283 = vmul.f32 %v277, %v266
    %v284 = vadd.f32 %v220, %v280
    %v285 = vadd.f32 %v221, %v281
    %v286 = vadd.f32 %v222, %v282
    %v287 = vadd.f32 %v223, %v283
    %s288 = scalar_lea.vmem [#allocation7], 87
    %v289 = vld [vmem:[%s288] ss:$8 sm:$0x3]
    %v291 = vperm.slane %v289, 0
    %v292 = vperm.slane %v289, 1
    %v295 = vmul.f32 %v291, %v271
    %v296 = vmul.f32 %v292, %v265
    %v297 = vmul.f32 %v291, %v272
    %v298 = vmul.f32 %v292, %v266
    %v299 = vadd.f32 %v235, %v295
    %v300 = vadd.f32 %v236, %v296
    %v301 = vadd.f32 %v237, %v297
    %v302 = vadd.f32 %v238, %v298
    %s303 = scalar_lea.vmem [#allocation7], 180
    %v304 = vld [vmem:[%s303] ss:$8 sm:$0x3]
    %v306 = vperm.slane %v304, 0
    %v307 = vperm.slane %v304, 1
    %v310 = vmul.f32 %v306, %v271
    %v311 = vmul.f32 %v307, %v265
    %v312 = vmul.f32 %v306, %v272
    %v313 = vmul.f32 %v307, %v266
    %v314 = vadd.f32 %v250, %v310
    %v315 = vadd.f32 %v251, %v311
    %v316 = vadd.f32 %v252, %v312
    %v317 = vadd.f32 %v253, %v313
    %318 = vrot.lane.b32.xlu0 %v120, 36
    %v319 = vpop.permute.xlu0 %318
    %320 = vrot.lane.b32.xlu0 %v122, 36
    %v321 = vpop.permute.xlu0 %320
    %324 = vrot.lane.b32.xlu0 %v119, 36
    %v325 = vpop.permute.xlu0 %324
    %326 = vrot.lane.b32.xlu0 %v121, 36
    %v327 = vpop.permute.xlu0 %326
    %vm328 = vcmask 293888
    %v329 = vsel %vm328, %v325, %v319
    %v330 = vsel %vm328, %v327, %v321
    %v335 = vsel %vm328, %v319, %v325
    %v336 = vsel %vm328, %v321, %v327
    %s337 = scalar_lea.vmem [#allocation7], 3
    %v338 = vld [vmem:[%s337] ss:$8 sm:$0x3]
    %v340 = vperm.slane %v338, 0
    %v341 = vperm.slane %v338, 1
    %v344 = vmul.f32 %v340, %v335
    %v345 = vmul.f32 %v341, %v329
    %v346 = vmul.f32 %v340, %v336
    %v347 = vmul.f32 %v341, %v330
    %v348 = vadd.f32 %v284, %v344
    %v349 = vadd.f32 %v285, %v345
    %v350 = vadd.f32 %v286, %v346
    %v351 = vadd.f32 %v287, %v347
    %s352 = scalar_lea.vmem [#allocation7], 96
    %v353 = vld [vmem:[%s352] ss:$8 sm:$0x3]
    %v355 = vperm.slane %v353, 0
    %v356 = vperm.slane %v353, 1
    %v359 = vmul.f32 %v355, %v335
    %v360 = vmul.f32 %v356, %v329
    %v361 = vmul.f32 %v355, %v336
    %v362 = vmul.f32 %v356, %v330
    %v363 = vadd.f32 %v299, %v359
    %v364 = vadd.f32 %v300, %v360
    %v365 = vadd.f32 %v301, %v361
    %v366 = vadd.f32 %v302, %v362
    %s367 = scalar_lea.vmem [#allocation7], 181
    %v368 = vld [vmem:[%s367] ss:$8 sm:$0x3]
    %v370 = vperm.slane %v368, 0
    %v371 = vperm.slane %v368, 1
    %v374 = vmul.f32 %v370, %v335
    %v375 = vmul.f32 %v371, %v329
    %v376 = vmul.f32 %v370, %v336
    %v377 = vmul.f32 %v371, %v330
    %v378 = vadd.f32 %v314, %v374
    %v379 = vadd.f32 %v315, %v375
    %v380 = vadd.f32 %v316, %v376
    %v381 = vadd.f32 %v317, %v377
    %382 = vrot.lane.b32.xlu0 %v120, 35
    %v383 = vpop.permute.xlu0 %382
    %384 = vrot.lane.b32.xlu0 %v122, 35
    %v385 = vpop.permute.xlu0 %384
    %388 = vrot.lane.b32.xlu0 %v119, 35
    %v389 = vpop.permute.xlu0 %388
    %390 = vrot.lane.b32.xlu0 %v121, 35
    %v391 = vpop.permute.xlu0 %390
    %vm392 = vcmask 285696
    %v393 = vsel %vm392, %v389, %v383
    %v394 = vsel %vm392, %v391, %v385
    %v399 = vsel %vm392, %v383, %v389
    %v400 = vsel %vm392, %v385, %v391
    %s401 = scalar_lea.vmem [#allocation7], 4
    %v402 = vld [vmem:[%s401] ss:$8 sm:$0x3]
    %v404 = vperm.slane %v402, 0
    %v405 = vperm.slane %v402, 1
    %v408 = vmul.f32 %v404, %v399
    %v409 = vmul.f32 %v405, %v393
    %v410 = vmul.f32 %v404, %v400
    %v411 = vmul.f32 %v405, %v394
    %v412 = vadd.f32 %v348, %v408
    %v413 = vadd.f32 %v349, %v409
    %v414 = vadd.f32 %v350, %v410
    %v415 = vadd.f32 %v351, %v411
    %s416 = scalar_lea.vmem [#allocation7], 97
    %v417 = vld [vmem:[%s416] ss:$8 sm:$0x3]
    %v419 = vperm.slane %v417, 0
    %v420 = vperm.slane %v417, 1
    %v423 = vmul.f32 %v419, %v399
    %v424 = vmul.f32 %v420, %v393
    %v425 = vmul.f32 %v419, %v400
    %v426 = vmul.f32 %v420, %v394
    %v427 = vadd.f32 %v363, %v423
    %v428 = vadd.f32 %v364, %v424
    %v429 = vadd.f32 %v365, %v425
    %v430 = vadd.f32 %v366, %v426
    %s431 = scalar_lea.vmem [#allocation7], 182
    %v432 = vld [vmem:[%s431] ss:$8 sm:$0x3]
    %v434 = vperm.slane %v432, 0
    %v435 = vperm.slane %v432, 1
    %v438 = vmul.f32 %v434, %v399
    %v439 = vmul.f32 %v435, %v393
    %v440 = vmul.f32 %v434, %v400
    %v441 = vmul.f32 %v435, %v394
    %v442 = vadd.f32 %v378, %v438
    %v443 = vadd.f32 %v379, %v439
    %v444 = vadd.f32 %v380, %v440
    %v445 = vadd.f32 %v381, %v441
    %446 = vrot.lane.b32.xlu0 %v120, 34
    %v447 = vpop.permute.xlu0 %446
    %448 = vrot.lane.b32.xlu0 %v122, 34
    %v449 = vpop.permute.xlu0 %448
    %452 = vrot.lane.b32.xlu0 %v119, 34
    %v453 = vpop.permute.xlu0 %452
    %454 = vrot.lane.b32.xlu0 %v121, 34
    %v455 = vpop.permute.xlu0 %454
    %vm456 = vcmask 277504
    %v457 = vsel %vm456, %v453, %v447
    %v458 = vsel %vm456, %v455, %v449
    %v463 = vsel %vm456, %v447, %v453
    %v464 = vsel %vm456, %v449, %v455
    %s465 = scalar_lea.vmem [#allocation7], 5
    %v466 = vld [vmem:[%s465] ss:$8 sm:$0x3]
    %v468 = vperm.slane %v466, 0
    %v469 = vperm.slane %v466, 1
    %v472 = vmul.f32 %v468, %v463
    %v473 = vmul.f32 %v469, %v457
    %v474 = vmul.f32 %v468, %v464
    %v475 = vmul.f32 %v469, %v458
    %v476 = vadd.f32 %v412, %v472
    %v477 = vadd.f32 %v413, %v473
    %v478 = vadd.f32 %v414, %v474
    %v479 = vadd.f32 %v415, %v475
    %s480 = scalar_lea.vmem [#allocation7], 98
    %v481 = vld [vmem:[%s480] ss:$8 sm:$0x3]
    %v483 = vperm.slane %v481, 0
    %v484 = vperm.slane %v481, 1
    %v487 = vmul.f32 %v483, %v463
    %v488 = vmul.f32 %v484, %v457
    %v489 = vmul.f32 %v483, %v464
    %v490 = vmul.f32 %v484, %v458
    %v491 = vadd.f32 %v427, %v487
    %v492 = vadd.f32 %v428, %v488
    %v493 = vadd.f32 %v429, %v489
    %v494 = vadd.f32 %v430, %v490
    %s495 = scalar_lea.vmem [#allocation7], 183
    %v496 = vld [vmem:[%s495] ss:$8 sm:$0x3]
    %v498 = vperm.slane %v496, 0
    %v499 = vperm.slane %v496, 1
    %v502 = vmul.f32 %v498, %v463
    %v503 = vmul.f32 %v499, %v457
    %v504 = vmul.f32 %v498, %v464
    %v505 = vmul.f32 %v499, %v458
    %v506 = vadd.f32 %v442, %v502
    %v507 = vadd.f32 %v443, %v503
    %v508 = vadd.f32 %v444, %v504
    %v509 = vadd.f32 %v445, %v505
    %510 = vrot.lane.b32.xlu0 %v120, 33
    %v511 = vpop.permute.xlu0 %510
    %512 = vrot.lane.b32.xlu0 %v122, 33
    %v513 = vpop.permute.xlu0 %512
    %516 = vrot.lane.b32.xlu0 %v119, 33
    %v517 = vpop.permute.xlu0 %516
    %518 = vrot.lane.b32.xlu0 %v121, 33
    %v519 = vpop.permute.xlu0 %518
    %vm520 = vcmask 269312
    %v521 = vsel %vm520, %v517, %v511
    %v522 = vsel %vm520, %v519, %v513
    %v527 = vsel %vm520, %v511, %v517
    %v528 = vsel %vm520, %v513, %v519
    %s529 = scalar_lea.vmem [#allocation7], 6
    %v530 = vld [vmem:[%s529] ss:$8 sm:$0x3]
    %v532 = vperm.slane %v530, 0
    %v533 = vperm.slane %v530, 1
    %v536 = vmul.f32 %v532, %v527
    %v537 = vmul.f32 %v533, %v521
    %v538 = vmul.f32 %v532, %v528
    %v539 = vmul.f32 %v533, %v522
    %v540 = vadd.f32 %v476, %v536
    %v541 = vadd.f32 %v477, %v537
    %v542 = vadd.f32 %v478, %v538
    %v543 = vadd.f32 %v479, %v539
    %s544 = scalar_lea.vmem [#allocation7], 99
    %v545 = vld [vmem:[%s544] ss:$8 sm:$0x3]
    %v547 = vperm.slane %v545, 0
    %v548 = vperm.slane %v545, 1
    %v551 = vmul.f32 %v547, %v527
    %v552 = vmul.f32 %v548, %v521
    %v553 = vmul.f32 %v547, %v528
    %v554 = vmul.f32 %v548, %v522
    %v555 = vadd.f32 %v491, %v551
    %v556 = vadd.f32 %v492, %v552
    %v557 = vadd.f32 %v493, %v553
    %v558 = vadd.f32 %v494, %v554
    %s559 = scalar_lea.vmem [#allocation7], 192
    %v560 = vld [vmem:[%s559] ss:$8 sm:$0x3]
    %v562 = vperm.slane %v560, 0
    %v563 = vperm.slane %v560, 1
    %v566 = vmul.f32 %v562, %v527
    %v567 = vmul.f32 %v563, %v521
    %v568 = vmul.f32 %v562, %v528
    %v569 = vmul.f32 %v563, %v522
    %v570 = vadd.f32 %v506, %v566
    %v571 = vadd.f32 %v507, %v567
    %v572 = vadd.f32 %v508, %v568
    %v573 = vadd.f32 %v509, %v569
    %574 = vrot.lane.b32.xlu0 %v120, 32
    %v575 = vpop.permute.xlu0 %574
    %576 = vrot.lane.b32.xlu0 %v122, 32
    %v577 = vpop.permute.xlu0 %576
    %580 = vrot.lane.b32.xlu0 %v119, 32
    %v581 = vpop.permute.xlu0 %580
    %582 = vrot.lane.b32.xlu0 %v121, 32
    %v583 = vpop.permute.xlu0 %582
    %vm584 = vcmask 261120
    %v585 = vsel %vm584, %v581, %v575
    %v586 = vsel %vm584, %v583, %v577
    %v591 = vsel %vm584, %v575, %v581
    %v592 = vsel %vm584, %v577, %v583
    %s593 = scalar_lea.vmem [#allocation7], 7
    %v594 = vld [vmem:[%s593] ss:$8 sm:$0x3]
    %v596 = vperm.slane %v594, 0
    %v597 = vperm.slane %v594, 1
    %v600 = vmul.f32 %v596, %v591
    %v601 = vmul.f32 %v597, %v585
    %v602 = vmul.f32 %v596, %v592
    %v603 = vmul.f32 %v597, %v586
    %v604 = vadd.f32 %v540, %v600
    %v605 = vadd.f32 %v541, %v601
    %v606 = vadd.f32 %v542, %v602
    %v607 = vadd.f32 %v543, %v603
    %s608 = scalar_lea.vmem [#allocation7], 100
    %v609 = vld [vmem:[%s608] ss:$8 sm:$0x3]
    %v611 = vperm.slane %v609, 0
    %v612 = vperm.slane %v609, 1
    %v615 = vmul.f32 %v611, %v591
    %v616 = vmul.f32 %v612, %v585
    %v617 = vmul.f32 %v611, %v592
    %v618 = vmul.f32 %v612, %v586
    %v619 = vadd.f32 %v555, %v615
    %v620 = vadd.f32 %v556, %v616
    %v621 = vadd.f32 %v557, %v617
    %v622 = vadd.f32 %v558, %v618
    %s623 = scalar_lea.vmem [#allocation7], 193
    %v624 = vld [vmem:[%s623] ss:$8 sm:$0x3]
    %v626 = vperm.slane %v624, 0
    %v627 = vperm.slane %v624, 1
    %v630 = vmul.f32 %v626, %v591
    %v631 = vmul.f32 %v627, %v585
    %v632 = vmul.f32 %v626, %v592
    %v633 = vmul.f32 %v627, %v586
    %v634 = vadd.f32 %v570, %v630
    %v635 = vadd.f32 %v571, %v631
    %v636 = vadd.f32 %v572, %v632
    %v637 = vadd.f32 %v573, %v633
    %638 = vrot.lane.b32.xlu0 %v120, 31
    %v639 = vpop.permute.xlu0 %638
    %640 = vrot.lane.b32.xlu0 %v122, 31
    %v641 = vpop.permute.xlu0 %640
    %644 = vrot.lane.b32.xlu0 %v119, 31
    %v645 = vpop.permute.xlu0 %644
    %646 = vrot.lane.b32.xlu0 %v121, 31
    %v647 = vpop.permute.xlu0 %646
    %vm648 = vcmask 252928
    %v649 = vsel %vm648, %v645, %v639
    %v650 = vsel %vm648, %v647, %v641
    %v655 = vsel %vm648, %v639, %v645
    %v656 = vsel %vm648, %v641, %v647
    %s657 = scalar_lea.vmem [#allocation7], 16
    %v658 = vld [vmem:[%s657] ss:$8 sm:$0x3]
    %v660 = vperm.slane %v658, 0
    %v661 = vperm.slane %v658, 1
    %v664 = vmul.f32 %v660, %v655
    %v665 = vmul.f32 %v661, %v649
    %v666 = vmul.f32 %v660, %v656
    %v667 = vmul.f32 %v661, %v650
    %v668 = vadd.f32 %v604, %v664
    %v669 = vadd.f32 %v605, %v665
    %v670 = vadd.f32 %v606, %v666
    %v671 = vadd.f32 %v607, %v667
    %s672 = scalar_lea.vmem [#allocation7], 101
    %v673 = vld [vmem:[%s672] ss:$8 sm:$0x3]
    %v675 = vperm.slane %v673, 0
    %v676 = vperm.slane %v673, 1
    %v679 = vmul.f32 %v675, %v655
    %v680 = vmul.f32 %v676, %v649
    %v681 = vmul.f32 %v675, %v656
    %v682 = vmul.f32 %v676, %v650
    %v683 = vadd.f32 %v619, %v679
    %v684 = vadd.f32 %v620, %v680
    %v685 = vadd.f32 %v621, %v681
    %v686 = vadd.f32 %v622, %v682
    %s687 = scalar_lea.vmem [#allocation7], 194
    %v688 = vld [vmem:[%s687] ss:$8 sm:$0x3]
    %v690 = vperm.slane %v688, 0
    %v691 = vperm.slane %v688, 1
    %v694 = vmul.f32 %v690, %v655
    %v695 = vmul.f32 %v691, %v649
    %v696 = vmul.f32 %v690, %v656
    %v697 = vmul.f32 %v691, %v650
    %v698 = vadd.f32 %v634, %v694
    %v699 = vadd.f32 %v635, %v695
    %v700 = vadd.f32 %v636, %v696
    %v701 = vadd.f32 %v637, %v697
    %702 = vrot.lane.b32.xlu0 %v120, 30
    %v703 = vpop.permute.xlu0 %702
    %704 = vrot.lane.b32.xlu0 %v122, 30
    %v705 = vpop.permute.xlu0 %704
    %708 = vrot.lane.b32.xlu0 %v119, 30
    %v709 = vpop.permute.xlu0 %708
    %710 = vrot.lane.b32.xlu0 %v121, 30
    %v711 = vpop.permute.xlu0 %710
    %vm712 = vcmask 244736
    %v713 = vsel %vm712, %v709, %v703
    %v714 = vsel %vm712, %v711, %v705
    %v719 = vsel %vm712, %v703, %v709
    %v720 = vsel %vm712, %v705, %v711
    %s721 = scalar_lea.vmem [#allocation7], 17
    %v722 = vld [vmem:[%s721] ss:$8 sm:$0x3]
    %v724 = vperm.slane %v722, 0
    %v725 = vperm.slane %v722, 1
    %v728 = vmul.f32 %v724, %v719
    %v729 = vmul.f32 %v725, %v713
    %v730 = vmul.f32 %v724, %v720
    %v731 = vmul.f32 %v725, %v714
    %v732 = vadd.f32 %v668, %v728
    %v733 = vadd.f32 %v669, %v729
    %v734 = vadd.f32 %v670, %v730
    %v735 = vadd.f32 %v671, %v731
    %s736 = scalar_lea.vmem [#allocation7], 102
    %v737 = vld [vmem:[%s736] ss:$8 sm:$0x3]
    %v739 = vperm.slane %v737, 0
    %v740 = vperm.slane %v737, 1
    %v743 = vmul.f32 %v739, %v719
    %v744 = vmul.f32 %v740, %v713
    %v745 = vmul.f32 %v739, %v720
    %v746 = vmul.f32 %v740, %v714
    %v747 = vadd.f32 %v683, %v743
    %v748 = vadd.f32 %v684, %v744
    %v749 = vadd.f32 %v685, %v745
    %v750 = vadd.f32 %v686, %v746
    %s751 = scalar_lea.vmem [#allocation7], 195
    %v752 = vld [vmem:[%s751] ss:$8 sm:$0x3]
    %v754 = vperm.slane %v752, 0
    %v755 = vperm.slane %v752, 1
    %v758 = vmul.f32 %v754, %v719
    %v759 = vmul.f32 %v755, %v713
    %v760 = vmul.f32 %v754, %v720
    %v761 = vmul.f32 %v755, %v714
    %v762 = vadd.f32 %v698, %v758
    %v763 = vadd.f32 %v699, %v759
    %v764 = vadd.f32 %v700, %v760
    %v765 = vadd.f32 %v701, %v761
    %766 = vrot.lane.b32.xlu0 %v120, 29
    %v767 = vpop.permute.xlu0 %766
    %768 = vrot.lane.b32.xlu0 %v122, 29
    %v769 = vpop.permute.xlu0 %768
    %772 = vrot.lane.b32.xlu0 %v119, 29
    %v773 = vpop.permute.xlu0 %772
    %774 = vrot.lane.b32.xlu0 %v121, 29
    %v775 = vpop.permute.xlu0 %774
    %vm776 = vcmask 236544
    %v777 = vsel %vm776, %v773, %v767
    %v778 = vsel %vm776, %v775, %v769
    %v783 = vsel %vm776, %v767, %v773
    %v784 = vsel %vm776, %v769, %v775
    %s785 = scalar_lea.vmem [#allocation7], 18
    %v786 = vld [vmem:[%s785] ss:$8 sm:$0x3]
    %v788 = vperm.slane %v786, 0
    %v789 = vperm.slane %v786, 1
    %v792 = vmul.f32 %v788, %v783
    %v793 = vmul.f32 %v789, %v777
    %v794 = vmul.f32 %v788, %v784
    %v795 = vmul.f32 %v789, %v778
    %v796 = vadd.f32 %v732, %v792
    %v797 = vadd.f32 %v733, %v793
    %v798 = vadd.f32 %v734, %v794
    %v799 = vadd.f32 %v735, %v795
    %s800 = scalar_lea.vmem [#allocation7], 103
    %v801 = vld [vmem:[%s800] ss:$8 sm:$0x3]
    %v803 = vperm.slane %v801, 0
    %v804 = vperm.slane %v801, 1
    %v807 = vmul.f32 %v803, %v783
    %v808 = vmul.f32 %v804, %v777
    %v809 = vmul.f32 %v803, %v784
    %v810 = vmul.f32 %v804, %v778
    %v811 = vadd.f32 %v747, %v807
    %v812 = vadd.f32 %v748, %v808
    %v813 = vadd.f32 %v749, %v809
    %v814 = vadd.f32 %v750, %v810
    %s815 = scalar_lea.vmem [#allocation7], 196
    %v816 = vld [vmem:[%s815] ss:$8 sm:$0x3]
    %v818 = vperm.slane %v816, 0
    %v819 = vperm.slane %v816, 1
    %v822 = vmul.f32 %v818, %v783
    %v823 = vmul.f32 %v819, %v777
    %v824 = vmul.f32 %v818, %v784
    %v825 = vmul.f32 %v819, %v778
    %v826 = vadd.f32 %v762, %v822
    %v827 = vadd.f32 %v763, %v823
    %v828 = vadd.f32 %v764, %v824
    %v829 = vadd.f32 %v765, %v825
    %830 = vrot.lane.b32.xlu0 %v120, 28
    %v831 = vpop.permute.xlu0 %830
    %832 = vrot.lane.b32.xlu0 %v122, 28
    %v833 = vpop.permute.xlu0 %832
    %836 = vrot.lane.b32.xlu0 %v119, 28
    %v837 = vpop.permute.xlu0 %836
    %838 = vrot.lane.b32.xlu0 %v121, 28
    %v839 = vpop.permute.xlu0 %838
    %vm840 = vcmask 228352
    %v841 = vsel %vm840, %v837, %v831
    %v842 = vsel %vm840, %v839, %v833
    %v847 = vsel %vm840, %v831, %v837
    %v848 = vsel %vm840, %v833, %v839
    %s849 = scalar_lea.vmem [#allocation7], 19
    %v850 = vld [vmem:[%s849] ss:$8 sm:$0x3]
    %v852 = vperm.slane %v850, 0
    %v853 = vperm.slane %v850, 1
    %v856 = vmul.f32 %v852, %v847
    %v857 = vmul.f32 %v853, %v841
    %v858 = vmul.f32 %v852, %v848
    %v859 = vmul.f32 %v853, %v842
    %v860 = vadd.f32 %v796, %v856
    %v861 = vadd.f32 %v797, %v857
    %v862 = vadd.f32 %v798, %v858
    %v863 = vadd.f32 %v799, %v859
    %s864 = scalar_lea.vmem [#allocation7], 112
    %v865 = vld [vmem:[%s864] ss:$8 sm:$0x3]
    %v867 = vperm.slane %v865, 0
    %v868 = vperm.slane %v865, 1
    %v871 = vmul.f32 %v867, %v847
    %v872 = vmul.f32 %v868, %v841
    %v873 = vmul.f32 %v867, %v848
    %v874 = vmul.f32 %v868, %v842
    %v875 = vadd.f32 %v811, %v871
    %v876 = vadd.f32 %v812, %v872
    %v877 = vadd.f32 %v813, %v873
    %v878 = vadd.f32 %v814, %v874
    %s879 = scalar_lea.vmem [#allocation7], 197
    %v880 = vld [vmem:[%s879] ss:$8 sm:$0x3]
    %v882 = vperm.slane %v880, 0
    %v883 = vperm.slane %v880, 1
    %v886 = vmul.f32 %v882, %v847
    %v887 = vmul.f32 %v883, %v841
    %v888 = vmul.f32 %v882, %v848
    %v889 = vmul.f32 %v883, %v842
    %v890 = vadd.f32 %v826, %v886
    %v891 = vadd.f32 %v827, %v887
    %v892 = vadd.f32 %v828, %v888
    %v893 = vadd.f32 %v829, %v889
    %894 = vrot.lane.b32.xlu0 %v120, 27
    %v895 = vpop.permute.xlu0 %894
    %896 = vrot.lane.b32.xlu0 %v122, 27
    %v897 = vpop.permute.xlu0 %896
    %900 = vrot.lane.b32.xlu0 %v119, 27
    %v901 = vpop.permute.xlu0 %900
    %902 = vrot.lane.b32.xlu0 %v121, 27
    %v903 = vpop.permute.xlu0 %902
    %vm904 = vcmask 220160
    %v905 = vsel %vm904, %v901, %v895
    %v906 = vsel %vm904, %v903, %v897
    %v911 = vsel %vm904, %v895, %v901
    %v912 = vsel %vm904, %v897, %v903
    %s913 = scalar_lea.vmem [#allocation7], 20
    %v914 = vld [vmem:[%s913] ss:$8 sm:$0x3]
    %v916 = vperm.slane %v914, 0
    %v917 = vperm.slane %v914, 1
    %v920 = vmul.f32 %v916, %v911
    %v921 = vmul.f32 %v917, %v905
    %v922 = vmul.f32 %v916, %v912
    %v923 = vmul.f32 %v917, %v906
    %v924 = vadd.f32 %v860, %v920
    %v925 = vadd.f32 %v861, %v921
    %v926 = vadd.f32 %v862, %v922
    %v927 = vadd.f32 %v863, %v923
    %s928 = scalar_lea.vmem [#allocation7], 113
    %v929 = vld [vmem:[%s928] ss:$8 sm:$0x3]
    %v931 = vperm.slane %v929, 0
    %v932 = vperm.slane %v929, 1
    %v935 = vmul.f32 %v931, %v911
    %v936 = vmul.f32 %v932, %v905
    %v937 = vmul.f32 %v931, %v912
    %v938 = vmul.f32 %v932, %v906
    %v939 = vadd.f32 %v875, %v935
    %v940 = vadd.f32 %v876, %v936
    %v941 = vadd.f32 %v877, %v937
    %v942 = vadd.f32 %v878, %v938
    %s943 = scalar_lea.vmem [#allocation7], 198
    %v944 = vld [vmem:[%s943] ss:$8 sm:$0x3]
    %v946 = vperm.slane %v944, 0
    %v947 = vperm.slane %v944, 1
    %v950 = vmul.f32 %v946, %v911
    %v951 = vmul.f32 %v947, %v905
    %v952 = vmul.f32 %v946, %v912
    %v953 = vmul.f32 %v947, %v906
    %v954 = vadd.f32 %v890, %v950
    %v955 = vadd.f32 %v891, %v951
    %v956 = vadd.f32 %v892, %v952
    %v957 = vadd.f32 %v893, %v953
    %958 = vrot.lane.b32.xlu0 %v120, 26
    %v959 = vpop.permute.xlu0 %958
    %960 = vrot.lane.b32.xlu0 %v122, 26
    %v961 = vpop.permute.xlu0 %960
    %964 = vrot.lane.b32.xlu0 %v119, 26
    %v965 = vpop.permute.xlu0 %964
    %966 = vrot.lane.b32.xlu0 %v121, 26
    %v967 = vpop.permute.xlu0 %966
    %vm968 = vcmask 211968
    %v969 = vsel %vm968, %v965, %v959
    %v970 = vsel %vm968, %v967, %v961
    %v975 = vsel %vm968, %v959, %v965
    %v976 = vsel %vm968, %v961, %v967
    %s977 = scalar_lea.vmem [#allocation7], 21
    %v978 = vld [vmem:[%s977] ss:$8 sm:$0x3]
    %v980 = vperm.slane %v978, 0
    %v981 = vperm.slane %v978, 1
    %v984 = vmul.f32 %v980, %v975
    %v985 = vmul.f32 %v981, %v969
    %v986 = vmul.f32 %v980, %v976
    %v987 = vmul.f32 %v981, %v970
    %v988 = vadd.f32 %v924, %v984
    %v989 = vadd.f32 %v925, %v985
    %v990 = vadd.f32 %v926, %v986
    %v991 = vadd.f32 %v927, %v987
    %s992 = scalar_lea.vmem [#allocation7], 114
    %v993 = vld [vmem:[%s992] ss:$8 sm:$0x3]
    %v995 = vperm.slane %v993, 0
    %v996 = vperm.slane %v993, 1
    %v999 = vmul.f32 %v995, %v975
    %v1000 = vmul.f32 %v996, %v969
    %v1001 = vmul.f32 %v995, %v976
    %v1002 = vmul.f32 %v996, %v970
    %v1003 = vadd.f32 %v939, %v999
    %v1004 = vadd.f32 %v940, %v1000
    %v1005 = vadd.f32 %v941, %v1001
    %v1006 = vadd.f32 %v942, %v1002
    %s1007 = scalar_lea.vmem [#allocation7], 199
    %v1008 = vld [vmem:[%s1007] ss:$8 sm:$0x3]
    %v1010 = vperm.slane %v1008, 0
    %v1011 = vperm.slane %v1008, 1
    %v1014 = vmul.f32 %v1010, %v975
    %v1015 = vmul.f32 %v1011, %v969
    %v1016 = vmul.f32 %v1010, %v976
    %v1017 = vmul.f32 %v1011, %v970
    %v1018 = vadd.f32 %v954, %v1014
    %v1019 = vadd.f32 %v955, %v1015
    %v1020 = vadd.f32 %v956, %v1016
    %v1021 = vadd.f32 %v957, %v1017
    %1022 = vrot.lane.b32.xlu0 %v120, 25
    %v1023 = vpop.permute.xlu0 %1022
    %1024 = vrot.lane.b32.xlu0 %v122, 25
    %v1025 = vpop.permute.xlu0 %1024
    %1028 = vrot.lane.b32.xlu0 %v119, 25
    %v1029 = vpop.permute.xlu0 %1028
    %1030 = vrot.lane.b32.xlu0 %v121, 25
    %v1031 = vpop.permute.xlu0 %1030
    %vm1032 = vcmask 203776
    %v1033 = vsel %vm1032, %v1029, %v1023
    %v1034 = vsel %vm1032, %v1031, %v1025
    %v1039 = vsel %vm1032, %v1023, %v1029
    %v1040 = vsel %vm1032, %v1025, %v1031
    %s1041 = scalar_lea.vmem [#allocation7], 22
    %v1042 = vld [vmem:[%s1041] ss:$8 sm:$0x3]
    %v1044 = vperm.slane %v1042, 0
    %v1045 = vperm.slane %v1042, 1
    %v1048 = vmul.f32 %v1044, %v1039
    %v1049 = vmul.f32 %v1045, %v1033
    %v1050 = vmul.f32 %v1044, %v1040
    %v1051 = vmul.f32 %v1045, %v1034
    %v1052 = vadd.f32 %v988, %v1048
    %v1053 = vadd.f32 %v989, %v1049
    %v1054 = vadd.f32 %v990, %v1050
    %v1055 = vadd.f32 %v991, %v1051
    %s1056 = scalar_lea.vmem [#allocation7], 115
    %v1057 = vld [vmem:[%s1056] ss:$8 sm:$0x3]
    %v1059 = vperm.slane %v1057, 0
    %v1060 = vperm.slane %v1057, 1
    %v1063 = vmul.f32 %v1059, %v1039
    %v1064 = vmul.f32 %v1060, %v1033
    %v1065 = vmul.f32 %v1059, %v1040
    %v1066 = vmul.f32 %v1060, %v1034
    %v1067 = vadd.f32 %v1003, %v1063
    %v1068 = vadd.f32 %v1004, %v1064
    %v1069 = vadd.f32 %v1005, %v1065
    %v1070 = vadd.f32 %v1006, %v1066
    %s1071 = scalar_lea.vmem [#allocation7], 208
    %v1072 = vld [vmem:[%s1071] ss:$8 sm:$0x3]
    %v1074 = vperm.slane %v1072, 0
    %v1075 = vperm.slane %v1072, 1
    %v1078 = vmul.f32 %v1074, %v1039
    %v1079 = vmul.f32 %v1075, %v1033
    %v1080 = vmul.f32 %v1074, %v1040
    %v1081 = vmul.f32 %v1075, %v1034
    %v1082 = vadd.f32 %v1018, %v1078
    %v1083 = vadd.f32 %v1019, %v1079
    %v1084 = vadd.f32 %v1020, %v1080
    %v1085 = vadd.f32 %v1021, %v1081
    %1086 = vrot.lane.b32.xlu0 %v120, 7
    %v1087 = vpop.permute.xlu0 %1086
    %1088 = vrot.lane.b32.xlu0 %v122, 7
    %v1089 = vpop.permute.xlu0 %1088
    %1092 = vrot.lane.b32.xlu0 %v119, 7
    %v1093 = vpop.permute.xlu0 %1092
    %1094 = vrot.lane.b32.xlu0 %v121, 7
    %v1095 = vpop.permute.xlu0 %1094
    %vm1096 = vcmask 56320
    %v1097 = vsel %vm1096, %v1093, %v1087
    %v1098 = vsel %vm1096, %v1095, %v1089
    %v1103 = vsel %vm1096, %v1087, %v1093
    %v1104 = vsel %vm1096, %v1089, %v1095
    %s1105 = scalar_lea.vmem [#allocation7], 23
    %v1106 = vld [vmem:[%s1105] ss:$8 sm:$0x3]
    %v1108 = vperm.slane %v1106, 0
    %v1109 = vperm.slane %v1106, 1
    %v1112 = vmul.f32 %v1108, %v1103
    %v1113 = vmul.f32 %v1109, %v1097
    %v1114 = vmul.f32 %v1108, %v1104
    %v1115 = vmul.f32 %v1109, %v1098
    %v1116 = vadd.f32 %v1052, %v1112
    %v1117 = vadd.f32 %v1053, %v1113
    %v1118 = vadd.f32 %v1054, %v1114
    %v1119 = vadd.f32 %v1055, %v1115
    %s1120 = scalar_lea.vmem [#allocation7], 116
    %v1121 = vld [vmem:[%s1120] ss:$8 sm:$0x3]
    %v1123 = vperm.slane %v1121, 0
    %v1124 = vperm.slane %v1121, 1
    %v1127 = vmul.f32 %v1123, %v1103
    %v1128 = vmul.f32 %v1124, %v1097
    %v1129 = vmul.f32 %v1123, %v1104
    %v1130 = vmul.f32 %v1124, %v1098
    %v1131 = vadd.f32 %v1067, %v1127
    %v1132 = vadd.f32 %v1068, %v1128
    %v1133 = vadd.f32 %v1069, %v1129
    %v1134 = vadd.f32 %v1070, %v1130
    %s1135 = scalar_lea.vmem [#allocation7], 209
    %v1136 = vld [vmem:[%s1135] ss:$8 sm:$0x3]
    %v1138 = vperm.slane %v1136, 0
    %v1139 = vperm.slane %v1136, 1
    %v1142 = vmul.f32 %v1138, %v1103
    %v1143 = vmul.f32 %v1139, %v1097
    %v1144 = vmul.f32 %v1138, %v1104
    %v1145 = vmul.f32 %v1139, %v1098
    %v1146 = vadd.f32 %v1082, %v1142
    %v1147 = vadd.f32 %v1083, %v1143
    %v1148 = vadd.f32 %v1084, %v1144
    %v1149 = vadd.f32 %v1085, %v1145
    %1150 = vrot.lane.b32.xlu0 %v120, 6
    %v1151 = vpop.permute.xlu0 %1150
    %1152 = vrot.lane.b32.xlu0 %v122, 6
    %v1153 = vpop.permute.xlu0 %1152
    %1156 = vrot.lane.b32.xlu0 %v119, 6
    %v1157 = vpop.permute.xlu0 %1156
    %1158 = vrot.lane.b32.xlu0 %v121, 6
    %v1159 = vpop.permute.xlu0 %1158
    %vm1160 = vcmask 48128
    %v1161 = vsel %vm1160, %v1157, %v1151
    %v1162 = vsel %vm1160, %v1159, %v1153
    %v1167 = vsel %vm1160, %v1151, %v1157
    %v1168 = vsel %vm1160, %v1153, %v1159
    %s1169 = scalar_lea.vmem [#allocation7], 32
    %v1170 = vld [vmem:[%s1169] ss:$8 sm:$0x3]
    %v1172 = vperm.slane %v1170, 0
    %v1173 = vperm.slane %v1170, 1
    %v1176 = vmul.f32 %v1172, %v1167
    %v1177 = vmul.f32 %v1173, %v1161
    %v1178 = vmul.f32 %v1172, %v1168
    %v1179 = vmul.f32 %v1173, %v1162
    %v1180 = vadd.f32 %v1116, %v1176
    %v1181 = vadd.f32 %v1117, %v1177
    %v1182 = vadd.f32 %v1118, %v1178
    %v1183 = vadd.f32 %v1119, %v1179
    %s1184 = scalar_lea.vmem [#allocation7], 117
    %v1185 = vld [vmem:[%s1184] ss:$8 sm:$0x3]
    %v1187 = vperm.slane %v1185, 0
    %v1188 = vperm.slane %v1185, 1
    %v1191 = vmul.f32 %v1187, %v1167
    %v1192 = vmul.f32 %v1188, %v1161
    %v1193 = vmul.f32 %v1187, %v1168
    %v1194 = vmul.f32 %v1188, %v1162
    %v1195 = vadd.f32 %v1131, %v1191
    %v1196 = vadd.f32 %v1132, %v1192
    %v1197 = vadd.f32 %v1133, %v1193
    %v1198 = vadd.f32 %v1134, %v1194
    %s1199 = scalar_lea.vmem [#allocation7], 210
    %v1200 = vld [vmem:[%s1199] ss:$8 sm:$0x3]
    %v1202 = vperm.slane %v1200, 0
    %v1203 = vperm.slane %v1200, 1
    %v1206 = vmul.f32 %v1202, %v1167
    %v1207 = vmul.f32 %v1203, %v1161
    %v1208 = vmul.f32 %v1202, %v1168
    %v1209 = vmul.f32 %v1203, %v1162
    %v1210 = vadd.f32 %v1146, %v1206
    %v1211 = vadd.f32 %v1147, %v1207
    %v1212 = vadd.f32 %v1148, %v1208
    %v1213 = vadd.f32 %v1149, %v1209
    %1214 = vrot.lane.b32.xlu0 %v120, 5
    %v1215 = vpop.permute.xlu0 %1214
    %1216 = vrot.lane.b32.xlu0 %v122, 5
    %v1217 = vpop.permute.xlu0 %1216
    %1220 = vrot.lane.b32.xlu0 %v119, 5
    %v1221 = vpop.permute.xlu0 %1220
    %1222 = vrot.lane.b32.xlu0 %v121, 5
    %v1223 = vpop.permute.xlu0 %1222
    %vm1224 = vcmask 39936
    %v1225 = vsel %vm1224, %v1221, %v1215
    %v1226 = vsel %vm1224, %v1223, %v1217
    %v1231 = vsel %vm1224, %v1215, %v1221
    %v1232 = vsel %vm1224, %v1217, %v1223
    %s1233 = scalar_lea.vmem [#allocation7], 33
    %v1234 = vld [vmem:[%s1233] ss:$8 sm:$0x3]
    %v1236 = vperm.slane %v1234, 0
    %v1237 = vperm.slane %v1234, 1
    %v1240 = vmul.f32 %v1236, %v1231
    %v1241 = vmul.f32 %v1237, %v1225
    %v1242 = vmul.f32 %v1236, %v1232
    %v1243 = vmul.f32 %v1237, %v1226
    %v1244 = vadd.f32 %v1180, %v1240
    %v1245 = vadd.f32 %v1181, %v1241
    %v1246 = vadd.f32 %v1182, %v1242
    %v1247 = vadd.f32 %v1183, %v1243
    %s1248 = scalar_lea.vmem [#allocation7], 118
    %v1249 = vld [vmem:[%s1248] ss:$8 sm:$0x3]
    %v1251 = vperm.slane %v1249, 0
    %v1252 = vperm.slane %v1249, 1
    %v1255 = vmul.f32 %v1251, %v1231
    %v1256 = vmul.f32 %v1252, %v1225
    %v1257 = vmul.f32 %v1251, %v1232
    %v1258 = vmul.f32 %v1252, %v1226
    %v1259 = vadd.f32 %v1195, %v1255
    %v1260 = vadd.f32 %v1196, %v1256
    %v1261 = vadd.f32 %v1197, %v1257
    %v1262 = vadd.f32 %v1198, %v1258
    %s1263 = scalar_lea.vmem [#allocation7], 211
    %v1264 = vld [vmem:[%s1263] ss:$8 sm:$0x3]
    %v1266 = vperm.slane %v1264, 0
    %v1267 = vperm.slane %v1264, 1
    %v1270 = vmul.f32 %v1266, %v1231
    %v1271 = vmul.f32 %v1267, %v1225
    %v1272 = vmul.f32 %v1266, %v1232
    %v1273 = vmul.f32 %v1267, %v1226
    %v1274 = vadd.f32 %v1210, %v1270
    %v1275 = vadd.f32 %v1211, %v1271
    %v1276 = vadd.f32 %v1212, %v1272
    %v1277 = vadd.f32 %v1213, %v1273
    %1278 = vrot.lane.b32.xlu0 %v120, 4
    %v1279 = vpop.permute.xlu0 %1278
    %1280 = vrot.lane.b32.xlu0 %v122, 4
    %v1281 = vpop.permute.xlu0 %1280
    %1284 = vrot.lane.b32.xlu0 %v119, 4
    %v1285 = vpop.permute.xlu0 %1284
    %1286 = vrot.lane.b32.xlu0 %v121, 4
    %v1287 = vpop.permute.xlu0 %1286
    %vm1288 = vcmask 31744
    %v1289 = vsel %vm1288, %v1285, %v1279
    %v1290 = vsel %vm1288, %v1287, %v1281
    %v1295 = vsel %vm1288, %v1279, %v1285
    %v1296 = vsel %vm1288, %v1281, %v1287
    %s1297 = scalar_lea.vmem [#allocation7], 34
    %v1298 = vld [vmem:[%s1297] ss:$8 sm:$0x3]
    %v1300 = vperm.slane %v1298, 0
    %v1301 = vperm.slane %v1298, 1
    %v1304 = vmul.f32 %v1300, %v1295
    %v1305 = vmul.f32 %v1301, %v1289
    %v1306 = vmul.f32 %v1300, %v1296
    %v1307 = vmul.f32 %v1301, %v1290
    %v1308 = vadd.f32 %v1244, %v1304
    %v1309 = vadd.f32 %v1245, %v1305
    %v1310 = vadd.f32 %v1246, %v1306
    %v1311 = vadd.f32 %v1247, %v1307
    %s1312 = scalar_lea.vmem [#allocation7], 119
    %v1313 = vld [vmem:[%s1312] ss:$8 sm:$0x3]
    %v1315 = vperm.slane %v1313, 0
    %v1316 = vperm.slane %v1313, 1
    %v1319 = vmul.f32 %v1315, %v1295
    %v1320 = vmul.f32 %v1316, %v1289
    %v1321 = vmul.f32 %v1315, %v1296
    %v1322 = vmul.f32 %v1316, %v1290
    %v1323 = vadd.f32 %v1259, %v1319
    %v1324 = vadd.f32 %v1260, %v1320
    %v1325 = vadd.f32 %v1261, %v1321
    %v1326 = vadd.f32 %v1262, %v1322
    %s1327 = scalar_lea.vmem [#allocation7], 212
    %v1328 = vld [vmem:[%s1327] ss:$8 sm:$0x3]
    %v1330 = vperm.slane %v1328, 0
    %v1331 = vperm.slane %v1328, 1
    %v1334 = vmul.f32 %v1330, %v1295
    %v1335 = vmul.f32 %v1331, %v1289
    %v1336 = vmul.f32 %v1330, %v1296
    %v1337 = vmul.f32 %v1331, %v1290
    %v1338 = vadd.f32 %v1274, %v1334
    %v1339 = vadd.f32 %v1275, %v1335
    %v1340 = vadd.f32 %v1276, %v1336
    %v1341 = vadd.f32 %v1277, %v1337
    %1342 = vrot.lane.b32.xlu0 %v120, 3
    %v1343 = vpop.permute.xlu0 %1342
    %1344 = vrot.lane.b32.xlu0 %v122, 3
    %v1345 = vpop.permute.xlu0 %1344
    %1348 = vrot.lane.b32.xlu0 %v119, 3
    %v1349 = vpop.permute.xlu0 %1348
    %1350 = vrot.lane.b32.xlu0 %v121, 3
    %v1351 = vpop.permute.xlu0 %1350
    %vm1352 = vcmask 23552
    %v1353 = vsel %vm1352, %v1349, %v1343
    %v1354 = vsel %vm1352, %v1351, %v1345
    %v1359 = vsel %vm1352, %v1343, %v1349
    %v1360 = vsel %vm1352, %v1345, %v1351
    %s1361 = scalar_lea.vmem [#allocation7], 35
    %v1362 = vld [vmem:[%s1361] ss:$8 sm:$0x3]
    %v1364 = vperm.slane %v1362, 0
    %v1365 = vperm.slane %v1362, 1
    %v1368 = vmul.f32 %v1364, %v1359
    %v1369 = vmul.f32 %v1365, %v1353
    %v1370 = vmul.f32 %v1364, %v1360
    %v1371 = vmul.f32 %v1365, %v1354
    %v1372 = vadd.f32 %v1308, %v1368
    %v1373 = vadd.f32 %v1309, %v1369
    %v1374 = vadd.f32 %v1310, %v1370
    %v1375 = vadd.f32 %v1311, %v1371
    %s1376 = scalar_lea.vmem [#allocation7], 128
    %v1377 = vld [vmem:[%s1376] ss:$8 sm:$0x3]
    %v1379 = vperm.slane %v1377, 0
    %v1380 = vperm.slane %v1377, 1
    %v1383 = vmul.f32 %v1379, %v1359
    %v1384 = vmul.f32 %v1380, %v1353
    %v1385 = vmul.f32 %v1379, %v1360
    %v1386 = vmul.f32 %v1380, %v1354
    %v1387 = vadd.f32 %v1323, %v1383
    %v1388 = vadd.f32 %v1324, %v1384
    %v1389 = vadd.f32 %v1325, %v1385
    %v1390 = vadd.f32 %v1326, %v1386
    %s1391 = scalar_lea.vmem [#allocation7], 213
    %v1392 = vld [vmem:[%s1391] ss:$8 sm:$0x3]
    %v1394 = vperm.slane %v1392, 0
    %v1395 = vperm.slane %v1392, 1
    %v1398 = vmul.f32 %v1394, %v1359
    %v1399 = vmul.f32 %v1395, %v1353
    %v1400 = vmul.f32 %v1394, %v1360
    %v1401 = vmul.f32 %v1395, %v1354
    %v1402 = vadd.f32 %v1338, %v1398
    %v1403 = vadd.f32 %v1339, %v1399
    %v1404 = vadd.f32 %v1340, %v1400
    %v1405 = vadd.f32 %v1341, %v1401
    %1406 = vrot.lane.b32.xlu0 %v120, 2
    %v1407 = vpop.permute.xlu0 %1406
    %1408 = vrot.lane.b32.xlu0 %v122, 2
    %v1409 = vpop.permute.xlu0 %1408
    %1412 = vrot.lane.b32.xlu0 %v119, 2
    %v1413 = vpop.permute.xlu0 %1412
    %1414 = vrot.lane.b32.xlu0 %v121, 2
    %v1415 = vpop.permute.xlu0 %1414
    %vm1416 = vcmask 15360
    %v1417 = vsel %vm1416, %v1413, %v1407
    %v1418 = vsel %vm1416, %v1415, %v1409
    %v1423 = vsel %vm1416, %v1407, %v1413
    %v1424 = vsel %vm1416, %v1409, %v1415
    %s1425 = scalar_lea.vmem [#allocation7], 36
    %v1426 = vld [vmem:[%s1425] ss:$8 sm:$0x3]
    %v1428 = vperm.slane %v1426, 0
    %v1429 = vperm.slane %v1426, 1
    %v1432 = vmul.f32 %v1428, %v1423
    %v1433 = vmul.f32 %v1429, %v1417
    %v1434 = vmul.f32 %v1428, %v1424
    %v1435 = vmul.f32 %v1429, %v1418
    %v1436 = vadd.f32 %v1372, %v1432
    %v1437 = vadd.f32 %v1373, %v1433
    %v1438 = vadd.f32 %v1374, %v1434
    %v1439 = vadd.f32 %v1375, %v1435
    %s1440 = scalar_lea.vmem [#allocation7], 129
    %v1441 = vld [vmem:[%s1440] ss:$8 sm:$0x3]
    %v1443 = vperm.slane %v1441, 0
    %v1444 = vperm.slane %v1441, 1
    %v1447 = vmul.f32 %v1443, %v1423
    %v1448 = vmul.f32 %v1444, %v1417
    %v1449 = vmul.f32 %v1443, %v1424
    %v1450 = vmul.f32 %v1444, %v1418
    %v1451 = vadd.f32 %v1387, %v1447
    %v1452 = vadd.f32 %v1388, %v1448
    %v1453 = vadd.f32 %v1389, %v1449
    %v1454 = vadd.f32 %v1390, %v1450
    %s1455 = scalar_lea.vmem [#allocation7], 214
    %v1456 = vld [vmem:[%s1455] ss:$8 sm:$0x3]
    %v1458 = vperm.slane %v1456, 0
    %v1459 = vperm.slane %v1456, 1
    %v1462 = vmul.f32 %v1458, %v1423
    %v1463 = vmul.f32 %v1459, %v1417
    %v1464 = vmul.f32 %v1458, %v1424
    %v1465 = vmul.f32 %v1459, %v1418
    %v1466 = vadd.f32 %v1402, %v1462
    %v1467 = vadd.f32 %v1403, %v1463
    %v1468 = vadd.f32 %v1404, %v1464
    %v1469 = vadd.f32 %v1405, %v1465
    %1470 = vrot.lane.b32.xlu0 %v120, 1
    %v1471 = vpop.permute.xlu0 %1470
    %1472 = vrot.lane.b32.xlu0 %v122, 1
    %v1473 = vpop.permute.xlu0 %1472
    %1476 = vrot.lane.b32.xlu0 %v119, 1
    %v1477 = vpop.permute.xlu0 %1476
    %1478 = vrot.lane.b32.xlu0 %v121, 1
    %v1479 = vpop.permute.xlu0 %1478
    %vm1480 = vcmask 7168
    %v1481 = vsel %vm1480, %v1477, %v1471
    %v1482 = vsel %vm1480, %v1479, %v1473
    %v1487 = vsel %vm1480, %v1471, %v1477
    %v1488 = vsel %vm1480, %v1473, %v1479
    %s1489 = scalar_lea.vmem [#allocation7], 37
    %v1490 = vld [vmem:[%s1489] ss:$8 sm:$0x3]
    %v1492 = vperm.slane %v1490, 0
    %v1493 = vperm.slane %v1490, 1
    %v1496 = vmul.f32 %v1492, %v1487
    %v1497 = vmul.f32 %v1493, %v1481
    %v1498 = vmul.f32 %v1492, %v1488
    %v1499 = vmul.f32 %v1493, %v1482
    %v1500 = vadd.f32 %v1436, %v1496
    %v1501 = vadd.f32 %v1437, %v1497
    %v1502 = vadd.f32 %v1438, %v1498
    %v1503 = vadd.f32 %v1439, %v1499
    %s1504 = scalar_lea.vmem [#allocation7], 130
    %v1505 = vld [vmem:[%s1504] ss:$8 sm:$0x3]
    %v1507 = vperm.slane %v1505, 0
    %v1508 = vperm.slane %v1505, 1
    %v1511 = vmul.f32 %v1507, %v1487
    %v1512 = vmul.f32 %v1508, %v1481
    %v1513 = vmul.f32 %v1507, %v1488
    %v1514 = vmul.f32 %v1508, %v1482
    %v1515 = vadd.f32 %v1451, %v1511
    %v1516 = vadd.f32 %v1452, %v1512
    %v1517 = vadd.f32 %v1453, %v1513
    %v1518 = vadd.f32 %v1454, %v1514
    %s1519 = scalar_lea.vmem [#allocation7], 215
    %v1520 = vld [vmem:[%s1519] ss:$8 sm:$0x3]
    %v1522 = vperm.slane %v1520, 0
    %v1523 = vperm.slane %v1520, 1
    %v1526 = vmul.f32 %v1522, %v1487
    %v1527 = vmul.f32 %v1523, %v1481
    %v1528 = vmul.f32 %v1522, %v1488
    %v1529 = vmul.f32 %v1523, %v1482
    %v1530 = vadd.f32 %v1466, %v1526
    %v1531 = vadd.f32 %v1467, %v1527
    %v1532 = vadd.f32 %v1468, %v1528
    %v1533 = vadd.f32 %v1469, %v1529
    %s1534 = scalar_lea.vmem [#allocation7], 38
    %v1535 = vld [vmem:[%s1534] ss:$8 sm:$0x3]
    %v1537 = vperm.slane %v1535, 0
    %v1538 = vperm.slane %v1535, 1
    %v1541 = vmul.f32 %v1537, %v119
    %v1542 = vmul.f32 %v1538, %v120
    %v1543 = vmul.f32 %v1537, %v121
    %v1544 = vmul.f32 %v1538, %v122
    %v1545 = vadd.f32 %v1500, %v1541
    %v1546 = vadd.f32 %v1501, %v1542
    %v1547 = vadd.f32 %v1502, %v1543
    %v1548 = vadd.f32 %v1503, %v1544
    %s1549 = scalar_lea.vmem [#allocation7], 131
    %v1550 = vld [vmem:[%s1549] ss:$8 sm:$0x3]
    %v1552 = vperm.slane %v1550, 0
    %v1553 = vperm.slane %v1550, 1
    %v1556 = vmul.f32 %v1552, %v119
    %v1557 = vmul.f32 %v1553, %v120
    %v1558 = vmul.f32 %v1552, %v121
    %v1559 = vmul.f32 %v1553, %v122
    %v1560 = vadd.f32 %v1515, %v1556
    %v1561 = vadd.f32 %v1516, %v1557
    %v1562 = vadd.f32 %v1517, %v1558
    %v1563 = vadd.f32 %v1518, %v1559
    %s1564 = scalar_lea.vmem [#allocation7], 224
    %v1565 = vld [vmem:[%s1564] ss:$8 sm:$0x3]
    %v1567 = vperm.slane %v1565, 0
    %v1568 = vperm.slane %v1565, 1
    %v1571 = vmul.f32 %v1567, %v119
    %v1572 = vmul.f32 %v1568, %v120
    %v1573 = vmul.f32 %v1567, %v121
    %v1574 = vmul.f32 %v1568, %v122
    %v1575 = vadd.f32 %v1530, %v1571
    %v1576 = vadd.f32 %v1531, %v1572
    %v1577 = vadd.f32 %v1532, %v1573
    %v1578 = vadd.f32 %v1533, %v1574
    %1579 = vrot.lane.b32.xlu0 %v119, 127
    %v1580 = vpop.permute.xlu0 %1579
    %1581 = vrot.lane.b32.xlu0 %v120, 127
    %v1582 = vpop.permute.xlu0 %1581
    %1583 = vrot.lane.b32.xlu0 %v121, 127
    %v1584 = vpop.permute.xlu0 %1583
    %1585 = vrot.lane.b32.xlu0 %v122, 127
    %v1586 = vpop.permute.xlu0 %1585
    %vm1587 = vcmask 1039360
    %v1588 = vsel %vm1587, %v1580, %v1582
    %v1589 = vsel %vm1587, %v1584, %v1586
    %v1596 = vsel %vm1587, %v1582, %v1580
    %v1597 = vsel %vm1587, %v1586, %v1584
    %s1598 = scalar_lea.vmem [#allocation7], 39
    %v1599 = vld [vmem:[%s1598] ss:$8 sm:$0x3]
    %v1601 = vperm.slane %v1599, 0
    %v1602 = vperm.slane %v1599, 1
    %v1605 = vmul.f32 %v1601, %v1588
    %v1606 = vmul.f32 %v1602, %v1596
    %v1607 = vmul.f32 %v1601, %v1589
    %v1608 = vmul.f32 %v1602, %v1597
    %v1609 = vadd.f32 %v1545, %v1605
    %v1610 = vadd.f32 %v1546, %v1606
    %v1611 = vadd.f32 %v1547, %v1607
    %v1612 = vadd.f32 %v1548, %v1608
    %s1613 = scalar_lea.vmem [#allocation7], 132
    %v1614 = vld [vmem:[%s1613] ss:$8 sm:$0x3]
    %v1616 = vperm.slane %v1614, 0
    %v1617 = vperm.slane %v1614, 1
    %v1620 = vmul.f32 %v1616, %v1588
    %v1621 = vmul.f32 %v1617, %v1596
    %v1622 = vmul.f32 %v1616, %v1589
    %v1623 = vmul.f32 %v1617, %v1597
    %v1624 = vadd.f32 %v1560, %v1620
    %v1625 = vadd.f32 %v1561, %v1621
    %v1626 = vadd.f32 %v1562, %v1622
    %v1627 = vadd.f32 %v1563, %v1623
    %s1628 = scalar_lea.vmem [#allocation7], 225
    %v1629 = vld [vmem:[%s1628] ss:$8 sm:$0x3]
    %v1631 = vperm.slane %v1629, 0
    %v1632 = vperm.slane %v1629, 1
    %v1635 = vmul.f32 %v1631, %v1588
    %v1636 = vmul.f32 %v1632, %v1596
    %v1637 = vmul.f32 %v1631, %v1589
    %v1638 = vmul.f32 %v1632, %v1597
    %v1639 = vadd.f32 %v1575, %v1635
    %v1640 = vadd.f32 %v1576, %v1636
    %v1641 = vadd.f32 %v1577, %v1637
    %v1642 = vadd.f32 %v1578, %v1638
    %1643 = vrot.lane.b32.xlu0 %v119, 126
    %v1644 = vpop.permute.xlu0 %1643
    %1645 = vrot.lane.b32.xlu0 %v120, 126
    %v1646 = vpop.permute.xlu0 %1645
    %1647 = vrot.lane.b32.xlu0 %v121, 126
    %v1648 = vpop.permute.xlu0 %1647
    %1649 = vrot.lane.b32.xlu0 %v122, 126
    %v1650 = vpop.permute.xlu0 %1649
    %vm1651 = vcmask 1031168
    %v1652 = vsel %vm1651, %v1644, %v1646
    %v1653 = vsel %vm1651, %v1648, %v1650
    %v1660 = vsel %vm1651, %v1646, %v1644
    %v1661 = vsel %vm1651, %v1650, %v1648
    %s1662 = scalar_lea.vmem [#allocation7], 48
    %v1663 = vld [vmem:[%s1662] ss:$8 sm:$0x3]
    %v1665 = vperm.slane %v1663, 0
    %v1666 = vperm.slane %v1663, 1
    %v1669 = vmul.f32 %v1665, %v1652
    %v1670 = vmul.f32 %v1666, %v1660
    %v1671 = vmul.f32 %v1665, %v1653
    %v1672 = vmul.f32 %v1666, %v1661
    %v1673 = vadd.f32 %v1609, %v1669
    %v1674 = vadd.f32 %v1610, %v1670
    %v1675 = vadd.f32 %v1611, %v1671
    %v1676 = vadd.f32 %v1612, %v1672
    %s1677 = scalar_lea.vmem [#allocation7], 133
    %v1678 = vld [vmem:[%s1677] ss:$8 sm:$0x3]
    %v1680 = vperm.slane %v1678, 0
    %v1681 = vperm.slane %v1678, 1
    %v1684 = vmul.f32 %v1680, %v1652
    %v1685 = vmul.f32 %v1681, %v1660
    %v1686 = vmul.f32 %v1680, %v1653
    %v1687 = vmul.f32 %v1681, %v1661
    %v1688 = vadd.f32 %v1624, %v1684
    %v1689 = vadd.f32 %v1625, %v1685
    %v1690 = vadd.f32 %v1626, %v1686
    %v1691 = vadd.f32 %v1627, %v1687
    %s1692 = scalar_lea.vmem [#allocation7], 226
    %v1693 = vld [vmem:[%s1692] ss:$8 sm:$0x3]
    %v1695 = vperm.slane %v1693, 0
    %v1696 = vperm.slane %v1693, 1
    %v1699 = vmul.f32 %v1695, %v1652
    %v1700 = vmul.f32 %v1696, %v1660
    %v1701 = vmul.f32 %v1695, %v1653
    %v1702 = vmul.f32 %v1696, %v1661
    %v1703 = vadd.f32 %v1639, %v1699
    %v1704 = vadd.f32 %v1640, %v1700
    %v1705 = vadd.f32 %v1641, %v1701
    %v1706 = vadd.f32 %v1642, %v1702
    %1707 = vrot.lane.b32.xlu0 %v119, 125
    %v1708 = vpop.permute.xlu0 %1707
    %1709 = vrot.lane.b32.xlu0 %v120, 125
    %v1710 = vpop.permute.xlu0 %1709
    %1711 = vrot.lane.b32.xlu0 %v121, 125
    %v1712 = vpop.permute.xlu0 %1711
    %1713 = vrot.lane.b32.xlu0 %v122, 125
    %v1714 = vpop.permute.xlu0 %1713
    %vm1715 = vcmask 1022976
    %v1716 = vsel %vm1715, %v1708, %v1710
    %v1717 = vsel %vm1715, %v1712, %v1714
    %v1724 = vsel %vm1715, %v1710, %v1708
    %v1725 = vsel %vm1715, %v1714, %v1712
    %s1726 = scalar_lea.vmem [#allocation7], 49
    %v1727 = vld [vmem:[%s1726] ss:$8 sm:$0x3]
    %v1729 = vperm.slane %v1727, 0
    %v1730 = vperm.slane %v1727, 1
    %v1733 = vmul.f32 %v1729, %v1716
    %v1734 = vmul.f32 %v1730, %v1724
    %v1735 = vmul.f32 %v1729, %v1717
    %v1736 = vmul.f32 %v1730, %v1725
    %v1737 = vadd.f32 %v1673, %v1733
    %v1738 = vadd.f32 %v1674, %v1734
    %v1739 = vadd.f32 %v1675, %v1735
    %v1740 = vadd.f32 %v1676, %v1736
    %s1741 = scalar_lea.vmem [#allocation7], 134
    %v1742 = vld [vmem:[%s1741] ss:$8 sm:$0x3]
    %v1744 = vperm.slane %v1742, 0
    %v1745 = vperm.slane %v1742, 1
    %v1748 = vmul.f32 %v1744, %v1716
    %v1749 = vmul.f32 %v1745, %v1724
    %v1750 = vmul.f32 %v1744, %v1717
    %v1751 = vmul.f32 %v1745, %v1725
    %v1752 = vadd.f32 %v1688, %v1748
    %v1753 = vadd.f32 %v1689, %v1749
    %v1754 = vadd.f32 %v1690, %v1750
    %v1755 = vadd.f32 %v1691, %v1751
    %s1756 = scalar_lea.vmem [#allocation7], 227
    %v1757 = vld [vmem:[%s1756] ss:$8 sm:$0x3]
    %v1759 = vperm.slane %v1757, 0
    %v1760 = vperm.slane %v1757, 1
    %v1763 = vmul.f32 %v1759, %v1716
    %v1764 = vmul.f32 %v1760, %v1724
    %v1765 = vmul.f32 %v1759, %v1717
    %v1766 = vmul.f32 %v1760, %v1725
    %v1767 = vadd.f32 %v1703, %v1763
    %v1768 = vadd.f32 %v1704, %v1764
    %v1769 = vadd.f32 %v1705, %v1765
    %v1770 = vadd.f32 %v1706, %v1766
    %1771 = vrot.lane.b32.xlu0 %v119, 124
    %v1772 = vpop.permute.xlu0 %1771
    %1773 = vrot.lane.b32.xlu0 %v120, 124
    %v1774 = vpop.permute.xlu0 %1773
    %1775 = vrot.lane.b32.xlu0 %v121, 124
    %v1776 = vpop.permute.xlu0 %1775
    %1777 = vrot.lane.b32.xlu0 %v122, 124
    %v1778 = vpop.permute.xlu0 %1777
    %vm1779 = vcmask 1014784
    %v1780 = vsel %vm1779, %v1772, %v1774
    %v1781 = vsel %vm1779, %v1776, %v1778
    %v1788 = vsel %vm1779, %v1774, %v1772
    %v1789 = vsel %vm1779, %v1778, %v1776
    %s1790 = scalar_lea.vmem [#allocation7], 50
    %v1791 = vld [vmem:[%s1790] ss:$8 sm:$0x3]
    %v1793 = vperm.slane %v1791, 0
    %v1794 = vperm.slane %v1791, 1
    %v1797 = vmul.f32 %v1793, %v1780
    %v1798 = vmul.f32 %v1794, %v1788
    %v1799 = vmul.f32 %v1793, %v1781
    %v1800 = vmul.f32 %v1794, %v1789
    %v1801 = vadd.f32 %v1737, %v1797
    %v1802 = vadd.f32 %v1738, %v1798
    %v1803 = vadd.f32 %v1739, %v1799
    %v1804 = vadd.f32 %v1740, %v1800
    %s1805 = scalar_lea.vmem [#allocation7], 135
    %v1806 = vld [vmem:[%s1805] ss:$8 sm:$0x3]
    %v1808 = vperm.slane %v1806, 0
    %v1809 = vperm.slane %v1806, 1
    %v1812 = vmul.f32 %v1808, %v1780
    %v1813 = vmul.f32 %v1809, %v1788
    %v1814 = vmul.f32 %v1808, %v1781
    %v1815 = vmul.f32 %v1809, %v1789
    %v1816 = vadd.f32 %v1752, %v1812
    %v1817 = vadd.f32 %v1753, %v1813
    %v1818 = vadd.f32 %v1754, %v1814
    %v1819 = vadd.f32 %v1755, %v1815
    %s1820 = scalar_lea.vmem [#allocation7], 228
    %v1821 = vld [vmem:[%s1820] ss:$8 sm:$0x3]
    %v1823 = vperm.slane %v1821, 0
    %v1824 = vperm.slane %v1821, 1
    %v1827 = vmul.f32 %v1823, %v1780
    %v1828 = vmul.f32 %v1824, %v1788
    %v1829 = vmul.f32 %v1823, %v1781
    %v1830 = vmul.f32 %v1824, %v1789
    %v1831 = vadd.f32 %v1767, %v1827
    %v1832 = vadd.f32 %v1768, %v1828
    %v1833 = vadd.f32 %v1769, %v1829
    %v1834 = vadd.f32 %v1770, %v1830
    %1835 = vrot.lane.b32.xlu0 %v119, 123
    %v1836 = vpop.permute.xlu0 %1835
    %1837 = vrot.lane.b32.xlu0 %v120, 123
    %v1838 = vpop.permute.xlu0 %1837
    %1839 = vrot.lane.b32.xlu0 %v121, 123
    %v1840 = vpop.permute.xlu0 %1839
    %1841 = vrot.lane.b32.xlu0 %v122, 123
    %v1842 = vpop.permute.xlu0 %1841
    %vm1843 = vcmask 1006592
    %v1844 = vsel %vm1843, %v1836, %v1838
    %v1845 = vsel %vm1843, %v1840, %v1842
    %v1852 = vsel %vm1843, %v1838, %v1836
    %v1853 = vsel %vm1843, %v1842, %v1840
    %s1854 = scalar_lea.vmem [#allocation7], 51
    %v1855 = vld [vmem:[%s1854] ss:$8 sm:$0x3]
    %v1857 = vperm.slane %v1855, 0
    %v1858 = vperm.slane %v1855, 1
    %v1861 = vmul.f32 %v1857, %v1844
    %v1862 = vmul.f32 %v1858, %v1852
    %v1863 = vmul.f32 %v1857, %v1845
    %v1864 = vmul.f32 %v1858, %v1853
    %v1865 = vadd.f32 %v1801, %v1861
    %v1866 = vadd.f32 %v1802, %v1862
    %v1867 = vadd.f32 %v1803, %v1863
    %v1868 = vadd.f32 %v1804, %v1864
    %s1869 = scalar_lea.vmem [#allocation7], 144
    %v1870 = vld [vmem:[%s1869] ss:$8 sm:$0x3]
    %v1872 = vperm.slane %v1870, 0
    %v1873 = vperm.slane %v1870, 1
    %v1876 = vmul.f32 %v1872, %v1844
    %v1877 = vmul.f32 %v1873, %v1852
    %v1878 = vmul.f32 %v1872, %v1845
    %v1879 = vmul.f32 %v1873, %v1853
    %v1880 = vadd.f32 %v1816, %v1876
    %v1881 = vadd.f32 %v1817, %v1877
    %v1882 = vadd.f32 %v1818, %v1878
    %v1883 = vadd.f32 %v1819, %v1879
    %s1884 = scalar_lea.vmem [#allocation7], 229
    %v1885 = vld [vmem:[%s1884] ss:$8 sm:$0x3]
    %v1887 = vperm.slane %v1885, 0
    %v1888 = vperm.slane %v1885, 1
    %v1891 = vmul.f32 %v1887, %v1844
    %v1892 = vmul.f32 %v1888, %v1852
    %v1893 = vmul.f32 %v1887, %v1845
    %v1894 = vmul.f32 %v1888, %v1853
    %v1895 = vadd.f32 %v1831, %v1891
    %v1896 = vadd.f32 %v1832, %v1892
    %v1897 = vadd.f32 %v1833, %v1893
    %v1898 = vadd.f32 %v1834, %v1894
    %1899 = vrot.lane.b32.xlu0 %v119, 122
    %v1900 = vpop.permute.xlu0 %1899
    %1901 = vrot.lane.b32.xlu0 %v120, 122
    %v1902 = vpop.permute.xlu0 %1901
    %1903 = vrot.lane.b32.xlu0 %v121, 122
    %v1904 = vpop.permute.xlu0 %1903
    %1905 = vrot.lane.b32.xlu0 %v122, 122
    %v1906 = vpop.permute.xlu0 %1905
    %vm1907 = vcmask 998400
    %v1908 = vsel %vm1907, %v1900, %v1902
    %v1909 = vsel %vm1907, %v1904, %v1906
    %v1916 = vsel %vm1907, %v1902, %v1900
    %v1917 = vsel %vm1907, %v1906, %v1904
    %s1918 = scalar_lea.vmem [#allocation7], 52
    %v1919 = vld [vmem:[%s1918] ss:$8 sm:$0x3]
    %v1921 = vperm.slane %v1919, 0
    %v1922 = vperm.slane %v1919, 1
    %v1925 = vmul.f32 %v1921, %v1908
    %v1926 = vmul.f32 %v1922, %v1916
    %v1927 = vmul.f32 %v1921, %v1909
    %v1928 = vmul.f32 %v1922, %v1917
    %v1929 = vadd.f32 %v1865, %v1925
    %v1930 = vadd.f32 %v1866, %v1926
    %v1931 = vadd.f32 %v1867, %v1927
    %v1932 = vadd.f32 %v1868, %v1928
    %s1933 = scalar_lea.vmem [#allocation7], 145
    %v1934 = vld [vmem:[%s1933] ss:$8 sm:$0x3]
    %v1936 = vperm.slane %v1934, 0
    %v1937 = vperm.slane %v1934, 1
    %v1940 = vmul.f32 %v1936, %v1908
    %v1941 = vmul.f32 %v1937, %v1916
    %v1942 = vmul.f32 %v1936, %v1909
    %v1943 = vmul.f32 %v1937, %v1917
    %v1944 = vadd.f32 %v1880, %v1940
    %v1945 = vadd.f32 %v1881, %v1941
    %v1946 = vadd.f32 %v1882, %v1942
    %v1947 = vadd.f32 %v1883, %v1943
    %s1948 = scalar_lea.vmem [#allocation7], 230
    %v1949 = vld [vmem:[%s1948] ss:$8 sm:$0x3]
    %v1951 = vperm.slane %v1949, 0
    %v1952 = vperm.slane %v1949, 1
    %v1955 = vmul.f32 %v1951, %v1908
    %v1956 = vmul.f32 %v1952, %v1916
    %v1957 = vmul.f32 %v1951, %v1909
    %v1958 = vmul.f32 %v1952, %v1917
    %v1959 = vadd.f32 %v1895, %v1955
    %v1960 = vadd.f32 %v1896, %v1956
    %v1961 = vadd.f32 %v1897, %v1957
    %v1962 = vadd.f32 %v1898, %v1958
    %1963 = vrot.lane.b32.xlu0 %v119, 121
    %v1964 = vpop.permute.xlu0 %1963
    %1965 = vrot.lane.b32.xlu0 %v120, 121
    %v1966 = vpop.permute.xlu0 %1965
    %1967 = vrot.lane.b32.xlu0 %v121, 121
    %v1968 = vpop.permute.xlu0 %1967
    %1969 = vrot.lane.b32.xlu0 %v122, 121
    %v1970 = vpop.permute.xlu0 %1969
    %vm1971 = vcmask 990208
    %v1972 = vsel %vm1971, %v1964, %v1966
    %v1973 = vsel %vm1971, %v1968, %v1970
    %v1980 = vsel %vm1971, %v1966, %v1964
    %v1981 = vsel %vm1971, %v1970, %v1968
    %s1982 = scalar_lea.vmem [#allocation7], 53
    %v1983 = vld [vmem:[%s1982] ss:$8 sm:$0x3]
    %v1985 = vperm.slane %v1983, 0
    %v1986 = vperm.slane %v1983, 1
    %v1989 = vmul.f32 %v1985, %v1972
    %v1990 = vmul.f32 %v1986, %v1980
    %v1991 = vmul.f32 %v1985, %v1973
    %v1992 = vmul.f32 %v1986, %v1981
    %v1993 = vadd.f32 %v1929, %v1989
    %v1994 = vadd.f32 %v1930, %v1990
    %v1995 = vadd.f32 %v1931, %v1991
    %v1996 = vadd.f32 %v1932, %v1992
    %s1997 = scalar_lea.vmem [#allocation7], 146
    %v1998 = vld [vmem:[%s1997] ss:$8 sm:$0x3]
    %v2000 = vperm.slane %v1998, 0
    %v2001 = vperm.slane %v1998, 1
    %v2004 = vmul.f32 %v2000, %v1972
    %v2005 = vmul.f32 %v2001, %v1980
    %v2006 = vmul.f32 %v2000, %v1973
    %v2007 = vmul.f32 %v2001, %v1981
    %v2008 = vadd.f32 %v1944, %v2004
    %v2009 = vadd.f32 %v1945, %v2005
    %v2010 = vadd.f32 %v1946, %v2006
    %v2011 = vadd.f32 %v1947, %v2007
    %s2012 = scalar_lea.vmem [#allocation7], 231
    %v2013 = vld [vmem:[%s2012] ss:$8 sm:$0x3]
    %v2015 = vperm.slane %v2013, 0
    %v2016 = vperm.slane %v2013, 1
    %v2019 = vmul.f32 %v2015, %v1972
    %v2020 = vmul.f32 %v2016, %v1980
    %v2021 = vmul.f32 %v2015, %v1973
    %v2022 = vmul.f32 %v2016, %v1981
    %v2023 = vadd.f32 %v1959, %v2019
    %v2024 = vadd.f32 %v1960, %v2020
    %v2025 = vadd.f32 %v1961, %v2021
    %v2026 = vadd.f32 %v1962, %v2022
    %2027 = vrot.lane.b32.xlu0 %v119, 103
    %v2028 = vpop.permute.xlu0 %2027
    %2029 = vrot.lane.b32.xlu0 %v120, 103
    %v2030 = vpop.permute.xlu0 %2029
    %2031 = vrot.lane.b32.xlu0 %v121, 103
    %v2032 = vpop.permute.xlu0 %2031
    %2033 = vrot.lane.b32.xlu0 %v122, 103
    %v2034 = vpop.permute.xlu0 %2033
    %vm2035 = vcmask 842752
    %v2036 = vsel %vm2035, %v2028, %v2030
    %v2037 = vsel %vm2035, %v2032, %v2034
    %v2044 = vsel %vm2035, %v2030, %v2028
    %v2045 = vsel %vm2035, %v2034, %v2032
    %s2046 = scalar_lea.vmem [#allocation7], 54
    %v2047 = vld [vmem:[%s2046] ss:$8 sm:$0x3]
    %v2049 = vperm.slane %v2047, 0
    %v2050 = vperm.slane %v2047, 1
    %v2053 = vmul.f32 %v2049, %v2036
    %v2054 = vmul.f32 %v2050, %v2044
    %v2055 = vmul.f32 %v2049, %v2037
    %v2056 = vmul.f32 %v2050, %v2045
    %v2057 = vadd.f32 %v1993, %v2053
    %v2058 = vadd.f32 %v1994, %v2054
    %v2059 = vadd.f32 %v1995, %v2055
    %v2060 = vadd.f32 %v1996, %v2056
    %s2061 = scalar_lea.vmem [#allocation7], 147
    %v2062 = vld [vmem:[%s2061] ss:$8 sm:$0x3]
    %v2064 = vperm.slane %v2062, 0
    %v2065 = vperm.slane %v2062, 1
    %v2068 = vmul.f32 %v2064, %v2036
    %v2069 = vmul.f32 %v2065, %v2044
    %v2070 = vmul.f32 %v2064, %v2037
    %v2071 = vmul.f32 %v2065, %v2045
    %v2072 = vadd.f32 %v2008, %v2068
    %v2073 = vadd.f32 %v2009, %v2069
    %v2074 = vadd.f32 %v2010, %v2070
    %v2075 = vadd.f32 %v2011, %v2071
    %s2076 = scalar_lea.vmem [#allocation7], 240
    %v2077 = vld [vmem:[%s2076] ss:$8 sm:$0x3]
    %v2079 = vperm.slane %v2077, 0
    %v2080 = vperm.slane %v2077, 1
    %v2083 = vmul.f32 %v2079, %v2036
    %v2084 = vmul.f32 %v2080, %v2044
    %v2085 = vmul.f32 %v2079, %v2037
    %v2086 = vmul.f32 %v2080, %v2045
    %v2087 = vadd.f32 %v2023, %v2083
    %v2088 = vadd.f32 %v2024, %v2084
    %v2089 = vadd.f32 %v2025, %v2085
    %v2090 = vadd.f32 %v2026, %v2086
    %2091 = vrot.lane.b32.xlu0 %v119, 102
    %v2092 = vpop.permute.xlu0 %2091
    %2093 = vrot.lane.b32.xlu0 %v120, 102
    %v2094 = vpop.permute.xlu0 %2093
    %2095 = vrot.lane.b32.xlu0 %v121, 102
    %v2096 = vpop.permute.xlu0 %2095
    %2097 = vrot.lane.b32.xlu0 %v122, 102
    %v2098 = vpop.permute.xlu0 %2097
    %vm2099 = vcmask 834560
    %v2100 = vsel %vm2099, %v2092, %v2094
    %v2101 = vsel %vm2099, %v2096, %v2098
    %v2108 = vsel %vm2099, %v2094, %v2092
    %v2109 = vsel %vm2099, %v2098, %v2096
    %s2110 = scalar_lea.vmem [#allocation7], 55
    %v2111 = vld [vmem:[%s2110] ss:$8 sm:$0x3]
    %v2113 = vperm.slane %v2111, 0
    %v2114 = vperm.slane %v2111, 1
    %v2117 = vmul.f32 %v2113, %v2100
    %v2118 = vmul.f32 %v2114, %v2108
    %v2119 = vmul.f32 %v2113, %v2101
    %v2120 = vmul.f32 %v2114, %v2109
    %v2121 = vadd.f32 %v2057, %v2117
    %v2122 = vadd.f32 %v2058, %v2118
    %v2123 = vadd.f32 %v2059, %v2119
    %v2124 = vadd.f32 %v2060, %v2120
    %s2125 = scalar_lea.vmem [#allocation7], 148
    %v2126 = vld [vmem:[%s2125] ss:$8 sm:$0x3]
    %v2128 = vperm.slane %v2126, 0
    %v2129 = vperm.slane %v2126, 1
    %v2132 = vmul.f32 %v2128, %v2100
    %v2133 = vmul.f32 %v2129, %v2108
    %v2134 = vmul.f32 %v2128, %v2101
    %v2135 = vmul.f32 %v2129, %v2109
    %v2136 = vadd.f32 %v2072, %v2132
    %v2137 = vadd.f32 %v2073, %v2133
    %v2138 = vadd.f32 %v2074, %v2134
    %v2139 = vadd.f32 %v2075, %v2135
    %s2140 = scalar_lea.vmem [#allocation7], 241
    %v2141 = vld [vmem:[%s2140] ss:$8 sm:$0x3]
    %v2143 = vperm.slane %v2141, 0
    %v2144 = vperm.slane %v2141, 1
    %v2147 = vmul.f32 %v2143, %v2100
    %v2148 = vmul.f32 %v2144, %v2108
    %v2149 = vmul.f32 %v2143, %v2101
    %v2150 = vmul.f32 %v2144, %v2109
    %v2151 = vadd.f32 %v2087, %v2147
    %v2152 = vadd.f32 %v2088, %v2148
    %v2153 = vadd.f32 %v2089, %v2149
    %v2154 = vadd.f32 %v2090, %v2150
    %2155 = vrot.lane.b32.xlu0 %v119, 101
    %v2156 = vpop.permute.xlu0 %2155
    %2157 = vrot.lane.b32.xlu0 %v120, 101
    %v2158 = vpop.permute.xlu0 %2157
    %2159 = vrot.lane.b32.xlu0 %v121, 101
    %v2160 = vpop.permute.xlu0 %2159
    %2161 = vrot.lane.b32.xlu0 %v122, 101
    %v2162 = vpop.permute.xlu0 %2161
    %vm2163 = vcmask 826368
    %v2164 = vsel %vm2163, %v2156, %v2158
    %v2165 = vsel %vm2163, %v2160, %v2162
    %v2172 = vsel %vm2163, %v2158, %v2156
    %v2173 = vsel %vm2163, %v2162, %v2160
    %s2174 = scalar_lea.vmem [#allocation7], 64
    %v2175 = vld [vmem:[%s2174] ss:$8 sm:$0x3]
    %v2177 = vperm.slane %v2175, 0
    %v2178 = vperm.slane %v2175, 1
    %v2181 = vmul.f32 %v2177, %v2164
    %v2182 = vmul.f32 %v2178, %v2172
    %v2183 = vmul.f32 %v2177, %v2165
    %v2184 = vmul.f32 %v2178, %v2173
    %v2185 = vadd.f32 %v2121, %v2181
    %v2186 = vadd.f32 %v2122, %v2182
    %v2187 = vadd.f32 %v2123, %v2183
    %v2188 = vadd.f32 %v2124, %v2184
    %s2189 = scalar_lea.vmem [#allocation7], 149
    %v2190 = vld [vmem:[%s2189] ss:$8 sm:$0x3]
    %v2192 = vperm.slane %v2190, 0
    %v2193 = vperm.slane %v2190, 1
    %v2196 = vmul.f32 %v2192, %v2164
    %v2197 = vmul.f32 %v2193, %v2172
    %v2198 = vmul.f32 %v2192, %v2165
    %v2199 = vmul.f32 %v2193, %v2173
    %v2200 = vadd.f32 %v2136, %v2196
    %v2201 = vadd.f32 %v2137, %v2197
    %v2202 = vadd.f32 %v2138, %v2198
    %v2203 = vadd.f32 %v2139, %v2199
    %s2204 = scalar_lea.vmem [#allocation7], 242
    %v2205 = vld [vmem:[%s2204] ss:$8 sm:$0x3]
    %v2207 = vperm.slane %v2205, 0
    %v2208 = vperm.slane %v2205, 1
    %v2211 = vmul.f32 %v2207, %v2164
    %v2212 = vmul.f32 %v2208, %v2172
    %v2213 = vmul.f32 %v2207, %v2165
    %v2214 = vmul.f32 %v2208, %v2173
    %v2215 = vadd.f32 %v2151, %v2211
    %v2216 = vadd.f32 %v2152, %v2212
    %v2217 = vadd.f32 %v2153, %v2213
    %v2218 = vadd.f32 %v2154, %v2214
    %2219 = vrot.lane.b32.xlu0 %v119, 100
    %v2220 = vpop.permute.xlu0 %2219
    %2221 = vrot.lane.b32.xlu0 %v120, 100
    %v2222 = vpop.permute.xlu0 %2221
    %2223 = vrot.lane.b32.xlu0 %v121, 100
    %v2224 = vpop.permute.xlu0 %2223
    %2225 = vrot.lane.b32.xlu0 %v122, 100
    %v2226 = vpop.permute.xlu0 %2225
    %vm2227 = vcmask 818176
    %v2228 = vsel %vm2227, %v2220, %v2222
    %v2229 = vsel %vm2227, %v2224, %v2226
    %v2236 = vsel %vm2227, %v2222, %v2220
    %v2237 = vsel %vm2227, %v2226, %v2224
    %s2238 = scalar_lea.vmem [#allocation7], 65
    %v2239 = vld [vmem:[%s2238] ss:$8 sm:$0x3]
    %v2241 = vperm.slane %v2239, 0
    %v2242 = vperm.slane %v2239, 1
    %v2245 = vmul.f32 %v2241, %v2228
    %v2246 = vmul.f32 %v2242, %v2236
    %v2247 = vmul.f32 %v2241, %v2229
    %v2248 = vmul.f32 %v2242, %v2237
    %v2249 = vadd.f32 %v2185, %v2245
    %v2250 = vadd.f32 %v2186, %v2246
    %v2251 = vadd.f32 %v2187, %v2247
    %v2252 = vadd.f32 %v2188, %v2248
    %s2253 = scalar_lea.vmem [#allocation7], 150
    %v2254 = vld [vmem:[%s2253] ss:$8 sm:$0x3]
    %v2256 = vperm.slane %v2254, 0
    %v2257 = vperm.slane %v2254, 1
    %v2260 = vmul.f32 %v2256, %v2228
    %v2261 = vmul.f32 %v2257, %v2236
    %v2262 = vmul.f32 %v2256, %v2229
    %v2263 = vmul.f32 %v2257, %v2237
    %v2264 = vadd.f32 %v2200, %v2260
    %v2265 = vadd.f32 %v2201, %v2261
    %v2266 = vadd.f32 %v2202, %v2262
    %v2267 = vadd.f32 %v2203, %v2263
    %s2268 = scalar_lea.vmem [#allocation7], 243
    %v2269 = vld [vmem:[%s2268] ss:$8 sm:$0x3]
    %v2271 = vperm.slane %v2269, 0
    %v2272 = vperm.slane %v2269, 1
    %v2275 = vmul.f32 %v2271, %v2228
    %v2276 = vmul.f32 %v2272, %v2236
    %v2277 = vmul.f32 %v2271, %v2229
    %v2278 = vmul.f32 %v2272, %v2237
    %v2279 = vadd.f32 %v2215, %v2275
    %v2280 = vadd.f32 %v2216, %v2276
    %v2281 = vadd.f32 %v2217, %v2277
    %v2282 = vadd.f32 %v2218, %v2278
    %2283 = vrot.lane.b32.xlu0 %v119, 99
    %v2284 = vpop.permute.xlu0 %2283
    %2285 = vrot.lane.b32.xlu0 %v120, 99
    %v2286 = vpop.permute.xlu0 %2285
    %2287 = vrot.lane.b32.xlu0 %v121, 99
    %v2288 = vpop.permute.xlu0 %2287
    %2289 = vrot.lane.b32.xlu0 %v122, 99
    %v2290 = vpop.permute.xlu0 %2289
    %vm2291 = vcmask 809984
    %v2292 = vsel %vm2291, %v2284, %v2286
    %v2293 = vsel %vm2291, %v2288, %v2290
    %v2300 = vsel %vm2291, %v2286, %v2284
    %v2301 = vsel %vm2291, %v2290, %v2288
    %s2302 = scalar_lea.vmem [#allocation7], 66
    %v2303 = vld [vmem:[%s2302] ss:$8 sm:$0x3]
    %v2305 = vperm.slane %v2303, 0
    %v2306 = vperm.slane %v2303, 1
    %v2309 = vmul.f32 %v2305, %v2292
    %v2310 = vmul.f32 %v2306, %v2300
    %v2311 = vmul.f32 %v2305, %v2293
    %v2312 = vmul.f32 %v2306, %v2301
    %v2313 = vadd.f32 %v2249, %v2309
    %v2314 = vadd.f32 %v2250, %v2310
    %v2315 = vadd.f32 %v2251, %v2311
    %v2316 = vadd.f32 %v2252, %v2312
    %s2317 = scalar_lea.vmem [#allocation7], 151
    %v2318 = vld [vmem:[%s2317] ss:$8 sm:$0x3]
    %v2320 = vperm.slane %v2318, 0
    %v2321 = vperm.slane %v2318, 1
    %v2324 = vmul.f32 %v2320, %v2292
    %v2325 = vmul.f32 %v2321, %v2300
    %v2326 = vmul.f32 %v2320, %v2293
    %v2327 = vmul.f32 %v2321, %v2301
    %v2328 = vadd.f32 %v2264, %v2324
    %v2329 = vadd.f32 %v2265, %v2325
    %v2330 = vadd.f32 %v2266, %v2326
    %v2331 = vadd.f32 %v2267, %v2327
    %s2332 = scalar_lea.vmem [#allocation7], 244
    %v2333 = vld [vmem:[%s2332] ss:$8 sm:$0x3]
    %v2335 = vperm.slane %v2333, 0
    %v2336 = vperm.slane %v2333, 1
    %v2339 = vmul.f32 %v2335, %v2292
    %v2340 = vmul.f32 %v2336, %v2300
    %v2341 = vmul.f32 %v2335, %v2293
    %v2342 = vmul.f32 %v2336, %v2301
    %v2343 = vadd.f32 %v2279, %v2339
    %v2344 = vadd.f32 %v2280, %v2340
    %v2345 = vadd.f32 %v2281, %v2341
    %v2346 = vadd.f32 %v2282, %v2342
    %2347 = vrot.lane.b32.xlu0 %v119, 98
    %v2348 = vpop.permute.xlu0 %2347
    %2349 = vrot.lane.b32.xlu0 %v120, 98
    %v2350 = vpop.permute.xlu0 %2349
    %2351 = vrot.lane.b32.xlu0 %v121, 98
    %v2352 = vpop.permute.xlu0 %2351
    %2353 = vrot.lane.b32.xlu0 %v122, 98
    %v2354 = vpop.permute.xlu0 %2353
    %vm2355 = vcmask 801792
    %v2356 = vsel %vm2355, %v2348, %v2350
    %v2357 = vsel %vm2355, %v2352, %v2354
    %v2364 = vsel %vm2355, %v2350, %v2348
    %v2365 = vsel %vm2355, %v2354, %v2352
    %s2366 = scalar_lea.vmem [#allocation7], 67
    %v2367 = vld [vmem:[%s2366] ss:$8 sm:$0x3]
    %v2369 = vperm.slane %v2367, 0
    %v2370 = vperm.slane %v2367, 1
    %v2373 = vmul.f32 %v2369, %v2356
    %v2374 = vmul.f32 %v2370, %v2364
    %v2375 = vmul.f32 %v2369, %v2357
    %v2376 = vmul.f32 %v2370, %v2365
    %v2377 = vadd.f32 %v2313, %v2373
    %v2378 = vadd.f32 %v2314, %v2374
    %v2379 = vadd.f32 %v2315, %v2375
    %v2380 = vadd.f32 %v2316, %v2376
    %s2381 = scalar_lea.vmem [#allocation7], 160
    %v2382 = vld [vmem:[%s2381] ss:$8 sm:$0x3]
    %v2384 = vperm.slane %v2382, 0
    %v2385 = vperm.slane %v2382, 1
    %v2388 = vmul.f32 %v2384, %v2356
    %v2389 = vmul.f32 %v2385, %v2364
    %v2390 = vmul.f32 %v2384, %v2357
    %v2391 = vmul.f32 %v2385, %v2365
    %v2392 = vadd.f32 %v2328, %v2388
    %v2393 = vadd.f32 %v2329, %v2389
    %v2394 = vadd.f32 %v2330, %v2390
    %v2395 = vadd.f32 %v2331, %v2391
    %s2396 = scalar_lea.vmem [#allocation7], 245
    %v2397 = vld [vmem:[%s2396] ss:$8 sm:$0x3]
    %v2399 = vperm.slane %v2397, 0
    %v2400 = vperm.slane %v2397, 1
    %v2403 = vmul.f32 %v2399, %v2356
    %v2404 = vmul.f32 %v2400, %v2364
    %v2405 = vmul.f32 %v2399, %v2357
    %v2406 = vmul.f32 %v2400, %v2365
    %v2407 = vadd.f32 %v2343, %v2403
    %v2408 = vadd.f32 %v2344, %v2404
    %v2409 = vadd.f32 %v2345, %v2405
    %v2410 = vadd.f32 %v2346, %v2406
    %2411 = vrot.lane.b32.xlu0 %v119, 97
    %v2412 = vpop.permute.xlu0 %2411
    %2413 = vrot.lane.b32.xlu0 %v120, 97
    %v2414 = vpop.permute.xlu0 %2413
    %2415 = vrot.lane.b32.xlu0 %v121, 97
    %v2416 = vpop.permute.xlu0 %2415
    %2417 = vrot.lane.b32.xlu0 %v122, 97
    %v2418 = vpop.permute.xlu0 %2417
    %vm2419 = vcmask 793600
    %v2420 = vsel %vm2419, %v2412, %v2414
    %v2421 = vsel %vm2419, %v2416, %v2418
    %v2428 = vsel %vm2419, %v2414, %v2412
    %v2429 = vsel %vm2419, %v2418, %v2416
    %s2430 = scalar_lea.vmem [#allocation7], 68
    %v2431 = vld [vmem:[%s2430] ss:$8 sm:$0x3]
    %v2433 = vperm.slane %v2431, 0
    %v2434 = vperm.slane %v2431, 1
    %v2437 = vmul.f32 %v2433, %v2420
    %v2438 = vmul.f32 %v2434, %v2428
    %v2439 = vmul.f32 %v2433, %v2421
    %v2440 = vmul.f32 %v2434, %v2429
    %v2441 = vadd.f32 %v2377, %v2437
    %v2442 = vadd.f32 %v2378, %v2438
    %v2443 = vadd.f32 %v2379, %v2439
    %v2444 = vadd.f32 %v2380, %v2440
    %s2445 = scalar_lea.vmem [#allocation7], 161
    %v2446 = vld [vmem:[%s2445] ss:$8 sm:$0x3]
    %v2448 = vperm.slane %v2446, 0
    %v2449 = vperm.slane %v2446, 1
    %v2452 = vmul.f32 %v2448, %v2420
    %v2453 = vmul.f32 %v2449, %v2428
    %v2454 = vmul.f32 %v2448, %v2421
    %v2455 = vmul.f32 %v2449, %v2429
    %v2456 = vadd.f32 %v2392, %v2452
    %v2457 = vadd.f32 %v2393, %v2453
    %v2458 = vadd.f32 %v2394, %v2454
    %v2459 = vadd.f32 %v2395, %v2455
    %s2460 = scalar_lea.vmem [#allocation7], 246
    %v2461 = vld [vmem:[%s2460] ss:$8 sm:$0x3]
    %v2463 = vperm.slane %v2461, 0
    %v2464 = vperm.slane %v2461, 1
    %v2467 = vmul.f32 %v2463, %v2420
    %v2468 = vmul.f32 %v2464, %v2428
    %v2469 = vmul.f32 %v2463, %v2421
    %v2470 = vmul.f32 %v2464, %v2429
    %v2471 = vadd.f32 %v2407, %v2467
    %v2472 = vadd.f32 %v2408, %v2468
    %v2473 = vadd.f32 %v2409, %v2469
    %v2474 = vadd.f32 %v2410, %v2470
    %2475 = vrot.lane.b32.xlu0 %v119, 96
    %v2476 = vpop.permute.xlu0 %2475
    %2477 = vrot.lane.b32.xlu0 %v120, 96
    %v2478 = vpop.permute.xlu0 %2477
    %2479 = vrot.lane.b32.xlu0 %v121, 96
    %v2480 = vpop.permute.xlu0 %2479
    %2481 = vrot.lane.b32.xlu0 %v122, 96
    %v2482 = vpop.permute.xlu0 %2481
    %vm2483 = vcmask 785408
    %v2484 = vsel %vm2483, %v2476, %v2478
    %v2485 = vsel %vm2483, %v2480, %v2482
    %v2492 = vsel %vm2483, %v2478, %v2476
    %v2493 = vsel %vm2483, %v2482, %v2480
    %s2494 = scalar_lea.vmem [#allocation7], 69
    %v2495 = vld [vmem:[%s2494] ss:$8 sm:$0x3]
    %v2497 = vperm.slane %v2495, 0
    %v2498 = vperm.slane %v2495, 1
    %v2501 = vmul.f32 %v2497, %v2484
    %v2502 = vmul.f32 %v2498, %v2492
    %v2503 = vmul.f32 %v2497, %v2485
    %v2504 = vmul.f32 %v2498, %v2493
    %v2505 = vadd.f32 %v2441, %v2501
    %v2506 = vadd.f32 %v2442, %v2502
    %v2507 = vadd.f32 %v2443, %v2503
    %v2508 = vadd.f32 %v2444, %v2504
    %s2509 = scalar_lea.vmem [#allocation7], 162
    %v2510 = vld [vmem:[%s2509] ss:$8 sm:$0x3]
    %v2512 = vperm.slane %v2510, 0
    %v2513 = vperm.slane %v2510, 1
    %v2516 = vmul.f32 %v2512, %v2484
    %v2517 = vmul.f32 %v2513, %v2492
    %v2518 = vmul.f32 %v2512, %v2485
    %v2519 = vmul.f32 %v2513, %v2493
    %v2520 = vadd.f32 %v2456, %v2516
    %v2521 = vadd.f32 %v2457, %v2517
    %v2522 = vadd.f32 %v2458, %v2518
    %v2523 = vadd.f32 %v2459, %v2519
    %s2524 = scalar_lea.vmem [#allocation7], 247
    %v2525 = vld [vmem:[%s2524] ss:$8 sm:$0x3]
    %v2527 = vperm.slane %v2525, 0
    %v2528 = vperm.slane %v2525, 1
    %v2531 = vmul.f32 %v2527, %v2484
    %v2532 = vmul.f32 %v2528, %v2492
    %v2533 = vmul.f32 %v2527, %v2485
    %v2534 = vmul.f32 %v2528, %v2493
    %v2535 = vadd.f32 %v2471, %v2531
    %v2536 = vadd.f32 %v2472, %v2532
    %v2537 = vadd.f32 %v2473, %v2533
    %v2538 = vadd.f32 %v2474, %v2534
    %2539 = vrot.lane.b32.xlu0 %v119, 95
    %v2540 = vpop.permute.xlu0 %2539
    %2541 = vrot.lane.b32.xlu0 %v120, 95
    %v2542 = vpop.permute.xlu0 %2541
    %2543 = vrot.lane.b32.xlu0 %v121, 95
    %v2544 = vpop.permute.xlu0 %2543
    %2545 = vrot.lane.b32.xlu0 %v122, 95
    %v2546 = vpop.permute.xlu0 %2545
    %vm2547 = vcmask 777216
    %v2548 = vsel %vm2547, %v2540, %v2542
    %v2549 = vsel %vm2547, %v2544, %v2546
    %v2556 = vsel %vm2547, %v2542, %v2540
    %v2557 = vsel %vm2547, %v2546, %v2544
    %s2558 = scalar_lea.vmem [#allocation7], 70
    %v2559 = vld [vmem:[%s2558] ss:$8 sm:$0x3]
    %v2561 = vperm.slane %v2559, 0
    %v2562 = vperm.slane %v2559, 1
    %v2565 = vmul.f32 %v2561, %v2548
    %v2566 = vmul.f32 %v2562, %v2556
    %v2567 = vmul.f32 %v2561, %v2549
    %v2568 = vmul.f32 %v2562, %v2557
    %v2569 = vadd.f32 %v2505, %v2565
    %v2570 = vadd.f32 %v2506, %v2566
    %v2571 = vadd.f32 %v2507, %v2567
    %v2572 = vadd.f32 %v2508, %v2568
    %s2573 = scalar_lea.vmem [#allocation7], 163
    %v2574 = vld [vmem:[%s2573] ss:$8 sm:$0x3]
    %v2576 = vperm.slane %v2574, 0
    %v2577 = vperm.slane %v2574, 1
    %v2580 = vmul.f32 %v2576, %v2548
    %v2581 = vmul.f32 %v2577, %v2556
    %v2582 = vmul.f32 %v2576, %v2549
    %v2583 = vmul.f32 %v2577, %v2557
    %v2584 = vadd.f32 %v2520, %v2580
    %v2585 = vadd.f32 %v2521, %v2581
    %v2586 = vadd.f32 %v2522, %v2582
    %v2587 = vadd.f32 %v2523, %v2583
    %s2588 = scalar_lea.vmem [#allocation7], 256
    %v2589 = vld [vmem:[%s2588] ss:$8 sm:$0x3]
    %v2591 = vperm.slane %v2589, 0
    %v2592 = vperm.slane %v2589, 1
    %v2595 = vmul.f32 %v2591, %v2548
    %v2596 = vmul.f32 %v2592, %v2556
    %v2597 = vmul.f32 %v2591, %v2549
    %v2598 = vmul.f32 %v2592, %v2557
    %v2599 = vadd.f32 %v2535, %v2595
    %v2600 = vadd.f32 %v2536, %v2596
    %v2601 = vadd.f32 %v2537, %v2597
    %v2602 = vadd.f32 %v2538, %v2598
    %2603 = vrot.lane.b32.xlu0 %v119, 94
    %v2604 = vpop.permute.xlu0 %2603
    %2605 = vrot.lane.b32.xlu0 %v120, 94
    %v2606 = vpop.permute.xlu0 %2605
    %2607 = vrot.lane.b32.xlu0 %v121, 94
    %v2608 = vpop.permute.xlu0 %2607
    %2609 = vrot.lane.b32.xlu0 %v122, 94
    %v2610 = vpop.permute.xlu0 %2609
    %vm2611 = vcmask 769024
    %v2612 = vsel %vm2611, %v2604, %v2606
    %v2613 = vsel %vm2611, %v2608, %v2610
    %v2620 = vsel %vm2611, %v2606, %v2604
    %v2621 = vsel %vm2611, %v2610, %v2608
    %s2622 = scalar_lea.vmem [#allocation7], 71
    %v2623 = vld [vmem:[%s2622] ss:$8 sm:$0x3]
    %v2625 = vperm.slane %v2623, 0
    %v2626 = vperm.slane %v2623, 1
    %v2629 = vmul.f32 %v2625, %v2612
    %v2630 = vmul.f32 %v2626, %v2620
    %v2631 = vmul.f32 %v2625, %v2613
    %v2632 = vmul.f32 %v2626, %v2621
    %v2633 = vadd.f32 %v2569, %v2629
    %v2634 = vadd.f32 %v2570, %v2630
    %v2635 = vadd.f32 %v2571, %v2631
    %v2636 = vadd.f32 %v2572, %v2632
    %s2637 = scalar_lea.vmem [#allocation7], 164
    %v2638 = vld [vmem:[%s2637] ss:$8 sm:$0x3]
    %v2640 = vperm.slane %v2638, 0
    %v2641 = vperm.slane %v2638, 1
    %v2644 = vmul.f32 %v2640, %v2612
    %v2645 = vmul.f32 %v2641, %v2620
    %v2646 = vmul.f32 %v2640, %v2613
    %v2647 = vmul.f32 %v2641, %v2621
    %v2648 = vadd.f32 %v2584, %v2644
    %v2649 = vadd.f32 %v2585, %v2645
    %v2650 = vadd.f32 %v2586, %v2646
    %v2651 = vadd.f32 %v2587, %v2647
    %s2652 = scalar_lea.vmem [#allocation7], 257
    %v2653 = vld [vmem:[%s2652] ss:$8 sm:$0x3]
    %v2655 = vperm.slane %v2653, 0
    %v2656 = vperm.slane %v2653, 1
    %v2659 = vmul.f32 %v2655, %v2612
    %v2660 = vmul.f32 %v2656, %v2620
    %v2661 = vmul.f32 %v2655, %v2613
    %v2662 = vmul.f32 %v2656, %v2621
    %v2663 = vadd.f32 %v2599, %v2659
    %v2664 = vadd.f32 %v2600, %v2660
    %v2665 = vadd.f32 %v2601, %v2661
    %v2666 = vadd.f32 %v2602, %v2662
    %2667 = vrot.lane.b32.xlu0 %v119, 93
    %v2668 = vpop.permute.xlu0 %2667
    %2669 = vrot.lane.b32.xlu0 %v120, 93
    %v2670 = vpop.permute.xlu0 %2669
    %2671 = vrot.lane.b32.xlu0 %v121, 93
    %v2672 = vpop.permute.xlu0 %2671
    %2673 = vrot.lane.b32.xlu0 %v122, 93
    %v2674 = vpop.permute.xlu0 %2673
    %vm2675 = vcmask 760832
    %v2676 = vsel %vm2675, %v2668, %v2670
    %v2677 = vsel %vm2675, %v2672, %v2674
    %v2684 = vsel %vm2675, %v2670, %v2668
    %v2685 = vsel %vm2675, %v2674, %v2672
    %s2686 = scalar_lea.vmem [#allocation7], 80
    %v2687 = vld [vmem:[%s2686] ss:$8 sm:$0x3]
    %v2689 = vperm.slane %v2687, 0
    %v2690 = vperm.slane %v2687, 1
    %v2693 = vmul.f32 %v2689, %v2676
    %v2694 = vmul.f32 %v2690, %v2684
    %v2695 = vmul.f32 %v2689, %v2677
    %v2696 = vmul.f32 %v2690, %v2685
    %v2697 = vadd.f32 %v2633, %v2693
    %v2698 = vadd.f32 %v2634, %v2694
    %v2699 = vadd.f32 %v2635, %v2695
    %v2700 = vadd.f32 %v2636, %v2696
    %s2701 = scalar_lea.vmem [#allocation7], 165
    %v2702 = vld [vmem:[%s2701] ss:$8 sm:$0x3]
    %v2704 = vperm.slane %v2702, 0
    %v2705 = vperm.slane %v2702, 1
    %v2708 = vmul.f32 %v2704, %v2676
    %v2709 = vmul.f32 %v2705, %v2684
    %v2710 = vmul.f32 %v2704, %v2677
    %v2711 = vmul.f32 %v2705, %v2685
    %v2712 = vadd.f32 %v2648, %v2708
    %v2713 = vadd.f32 %v2649, %v2709
    %v2714 = vadd.f32 %v2650, %v2710
    %v2715 = vadd.f32 %v2651, %v2711
    %s2716 = scalar_lea.vmem [#allocation7], 258
    %v2717 = vld [vmem:[%s2716] ss:$8 sm:$0x3]
    %v2719 = vperm.slane %v2717, 0
    %v2720 = vperm.slane %v2717, 1
    %v2723 = vmul.f32 %v2719, %v2676
    %v2724 = vmul.f32 %v2720, %v2684
    %v2725 = vmul.f32 %v2719, %v2677
    %v2726 = vmul.f32 %v2720, %v2685
    %v2727 = vadd.f32 %v2663, %v2723
    %v2728 = vadd.f32 %v2664, %v2724
    %v2729 = vadd.f32 %v2665, %v2725
    %v2730 = vadd.f32 %v2666, %v2726
    %2731 = vrot.lane.b32.xlu0 %v119, 92
    %v2732 = vpop.permute.xlu0 %2731
    %2733 = vrot.lane.b32.xlu0 %v120, 92
    %v2734 = vpop.permute.xlu0 %2733
    %2735 = vrot.lane.b32.xlu0 %v121, 92
    %v2736 = vpop.permute.xlu0 %2735
    %2737 = vrot.lane.b32.xlu0 %v122, 92
    %v2738 = vpop.permute.xlu0 %2737
    %vm2739 = vcmask 752640
    %v2740 = vsel %vm2739, %v2732, %v2734
    %v2741 = vsel %vm2739, %v2736, %v2738
    %v2748 = vsel %vm2739, %v2734, %v2732
    %v2749 = vsel %vm2739, %v2738, %v2736
    %s2750 = scalar_lea.vmem [#allocation7], 81
    %v2751 = vld [vmem:[%s2750] ss:$8 sm:$0x3]
    %v2753 = vperm.slane %v2751, 0
    %v2754 = vperm.slane %v2751, 1
    %v2757 = vmul.f32 %v2753, %v2740
    %v2758 = vmul.f32 %v2754, %v2748
    %v2759 = vmul.f32 %v2753, %v2741
    %v2760 = vmul.f32 %v2754, %v2749
    %v2761 = vadd.f32 %v2697, %v2757
    %v2762 = vadd.f32 %v2698, %v2758
    %v2763 = vadd.f32 %v2699, %v2759
    %v2764 = vadd.f32 %v2700, %v2760
    %s2765 = scalar_lea.vmem [#allocation7], 166
    %v2766 = vld [vmem:[%s2765] ss:$8 sm:$0x3]
    %v2768 = vperm.slane %v2766, 0
    %v2769 = vperm.slane %v2766, 1
    %v2772 = vmul.f32 %v2768, %v2740
    %v2773 = vmul.f32 %v2769, %v2748
    %v2774 = vmul.f32 %v2768, %v2741
    %v2775 = vmul.f32 %v2769, %v2749
    %v2776 = vadd.f32 %v2712, %v2772
    %v2777 = vadd.f32 %v2713, %v2773
    %v2778 = vadd.f32 %v2714, %v2774
    %v2779 = vadd.f32 %v2715, %v2775
    %s2780 = scalar_lea.vmem [#allocation7], 259
    %v2781 = vld [vmem:[%s2780] ss:$8 sm:$0x3]
    %v2783 = vperm.slane %v2781, 0
    %v2784 = vperm.slane %v2781, 1
    %v2787 = vmul.f32 %v2783, %v2740
    %v2788 = vmul.f32 %v2784, %v2748
    %v2789 = vmul.f32 %v2783, %v2741
    %v2790 = vmul.f32 %v2784, %v2749
    %v2791 = vadd.f32 %v2727, %v2787
    %v2792 = vadd.f32 %v2728, %v2788
    %v2793 = vadd.f32 %v2729, %v2789
    %v2794 = vadd.f32 %v2730, %v2790
    %2795 = vrot.lane.b32.xlu0 %v119, 91
    %v2796 = vpop.permute.xlu0 %2795
    %2797 = vrot.lane.b32.xlu0 %v120, 91
    %v2798 = vpop.permute.xlu0 %2797
    %2799 = vrot.lane.b32.xlu0 %v121, 91
    %v2800 = vpop.permute.xlu0 %2799
    %2801 = vrot.lane.b32.xlu0 %v122, 91
    %v2802 = vpop.permute.xlu0 %2801
    %vm2803 = vcmask 744448
    %v2804 = vsel %vm2803, %v2796, %v2798
    %v2805 = vsel %vm2803, %v2800, %v2802
    %v2812 = vsel %vm2803, %v2798, %v2796
    %v2813 = vsel %vm2803, %v2802, %v2800
    %s2814 = scalar_lea.vmem [#allocation7], 82
    %v2815 = vld [vmem:[%s2814] ss:$8 sm:$0x3]
    %v2817 = vperm.slane %v2815, 0
    %v2818 = vperm.slane %v2815, 1
    %v2821 = vmul.f32 %v2817, %v2804
    %v2822 = vmul.f32 %v2818, %v2812
    %v2823 = vmul.f32 %v2817, %v2805
    %v2824 = vmul.f32 %v2818, %v2813
    %v2825 = vadd.f32 %v2761, %v2821
    %v2826 = vadd.f32 %v2762, %v2822
    %v2827 = vadd.f32 %v2763, %v2823
    %v2828 = vadd.f32 %v2764, %v2824
    %s2829 = scalar_lea.vmem [#allocation7], 167
    %v2830 = vld [vmem:[%s2829] ss:$8 sm:$0x3]
    %v2832 = vperm.slane %v2830, 0
    %v2833 = vperm.slane %v2830, 1
    %v2836 = vmul.f32 %v2832, %v2804
    %v2837 = vmul.f32 %v2833, %v2812
    %v2838 = vmul.f32 %v2832, %v2805
    %v2839 = vmul.f32 %v2833, %v2813
    %v2840 = vadd.f32 %v2776, %v2836
    %v2841 = vadd.f32 %v2777, %v2837
    %v2842 = vadd.f32 %v2778, %v2838
    %v2843 = vadd.f32 %v2779, %v2839
    %s2844 = scalar_lea.vmem [#allocation7], 260
    %v2845 = vld [vmem:[%s2844] ss:$8 sm:$0x3]
    %v2847 = vperm.slane %v2845, 0
    %v2848 = vperm.slane %v2845, 1
    %v2851 = vmul.f32 %v2847, %v2804
    %v2852 = vmul.f32 %v2848, %v2812
    %v2853 = vmul.f32 %v2847, %v2805
    %v2854 = vmul.f32 %v2848, %v2813
    %v2855 = vadd.f32 %v2791, %v2851
    %v2856 = vadd.f32 %v2792, %v2852
    %v2857 = vadd.f32 %v2793, %v2853
    %v2858 = vadd.f32 %v2794, %v2854
    %2859 = vrot.lane.b32.xlu0 %v119, 90
    %v2860 = vpop.permute.xlu0 %2859
    %2861 = vrot.lane.b32.xlu0 %v120, 90
    %v2862 = vpop.permute.xlu0 %2861
    %2863 = vrot.lane.b32.xlu0 %v121, 90
    %v2864 = vpop.permute.xlu0 %2863
    %2865 = vrot.lane.b32.xlu0 %v122, 90
    %v2866 = vpop.permute.xlu0 %2865
    %vm2867 = vcmask 736256
    %v2868 = vsel %vm2867, %v2860, %v2862
    %v2869 = vsel %vm2867, %v2864, %v2866
    %v2876 = vsel %vm2867, %v2862, %v2860
    %v2877 = vsel %vm2867, %v2866, %v2864
    %s2878 = scalar_lea.vmem [#allocation7], 83
    %v2879 = vld [vmem:[%s2878] ss:$8 sm:$0x3]
    %v2881 = vperm.slane %v2879, 0
    %v2882 = vperm.slane %v2879, 1
    %v2885 = vmul.f32 %v2881, %v2868
    %v2886 = vmul.f32 %v2882, %v2876
    %v2887 = vmul.f32 %v2881, %v2869
    %v2888 = vmul.f32 %v2882, %v2877
    %v2889 = vadd.f32 %v2825, %v2885
    %v2890 = vadd.f32 %v2826, %v2886
    %v2891 = vadd.f32 %v2827, %v2887
    %v2892 = vadd.f32 %v2828, %v2888
    %s2893 = scalar_lea.vmem [#allocation7], 176
    %v2894 = vld [vmem:[%s2893] ss:$8 sm:$0x3]
    %v2896 = vperm.slane %v2894, 0
    %v2897 = vperm.slane %v2894, 1
    %v2900 = vmul.f32 %v2896, %v2868
    %v2901 = vmul.f32 %v2897, %v2876
    %v2902 = vmul.f32 %v2896, %v2869
    %v2903 = vmul.f32 %v2897, %v2877
    %v2904 = vadd.f32 %v2840, %v2900
    %v2905 = vadd.f32 %v2841, %v2901
    %v2906 = vadd.f32 %v2842, %v2902
    %v2907 = vadd.f32 %v2843, %v2903
    %s2908 = scalar_lea.vmem [#allocation7], 261
    %v2909 = vld [vmem:[%s2908] ss:$8 sm:$0x3]
    %v2911 = vperm.slane %v2909, 0
    %v2912 = vperm.slane %v2909, 1
    %v2915 = vmul.f32 %v2911, %v2868
    %v2916 = vmul.f32 %v2912, %v2876
    %v2917 = vmul.f32 %v2911, %v2869
    %v2918 = vmul.f32 %v2912, %v2877
    %v2919 = vadd.f32 %v2855, %v2915
    %v2920 = vadd.f32 %v2856, %v2916
    %v2921 = vadd.f32 %v2857, %v2917
    %v2922 = vadd.f32 %v2858, %v2918
    %2923 = vrot.lane.b32.xlu0 %v119, 89
    %v2924 = vpop.permute.xlu0 %2923
    %2925 = vrot.lane.b32.xlu0 %v120, 89
    %v2926 = vpop.permute.xlu0 %2925
    %2927 = vrot.lane.b32.xlu0 %v121, 89
    %v2928 = vpop.permute.xlu0 %2927
    %2929 = vrot.lane.b32.xlu0 %v122, 89
    %v2930 = vpop.permute.xlu0 %2929
    %vm2931 = vcmask 728064
    %v2932 = vsel %vm2931, %v2924, %v2926
    %v2933 = vsel %vm2931, %v2928, %v2930
    %v2940 = vsel %vm2931, %v2926, %v2924
    %v2941 = vsel %vm2931, %v2930, %v2928
    %s2942 = scalar_lea.vmem [#allocation7], 84
    %v2943 = vld [vmem:[%s2942] ss:$8 sm:$0x3]
    %v2945 = vperm.slane %v2943, 0
    %v2946 = vperm.slane %v2943, 1
    %v2949 = vmul.f32 %v2945, %v2932
    %v2950 = vmul.f32 %v2946, %v2940
    %v2951 = vmul.f32 %v2945, %v2933
    %v2952 = vmul.f32 %v2946, %v2941
    %v2953 = vadd.f32 %v2889, %v2949
    %v2954 = vadd.f32 %v2890, %v2950
    %v2955 = vadd.f32 %v2891, %v2951
    %v2956 = vadd.f32 %v2892, %v2952
    %s2957 = scalar_lea.vmem [#allocation7], 177
    %v2958 = vld [vmem:[%s2957] ss:$8 sm:$0x3]
    %v2960 = vperm.slane %v2958, 0
    %v2961 = vperm.slane %v2958, 1
    %v2964 = vmul.f32 %v2960, %v2932
    %v2965 = vmul.f32 %v2961, %v2940
    %v2966 = vmul.f32 %v2960, %v2933
    %v2967 = vmul.f32 %v2961, %v2941
    %v2968 = vadd.f32 %v2904, %v2964
    %v2969 = vadd.f32 %v2905, %v2965
    %v2970 = vadd.f32 %v2906, %v2966
    %v2971 = vadd.f32 %v2907, %v2967
    %s2972 = scalar_lea.vmem [#allocation7], 262
    %v2973 = vld [vmem:[%s2972] ss:$8 sm:$0x3]
    %v2975 = vperm.slane %v2973, 0
    %v2976 = vperm.slane %v2973, 1
    %v2979 = vmul.f32 %v2975, %v2932
    %v2980 = vmul.f32 %v2976, %v2940
    %v2981 = vmul.f32 %v2975, %v2933
    %v2982 = vmul.f32 %v2976, %v2941
    %v2983 = vadd.f32 %v2919, %v2979
    %v2984 = vadd.f32 %v2920, %v2980
    %v2985 = vadd.f32 %v2921, %v2981
    %v2986 = vadd.f32 %v2922, %v2982
    %v2989 = vrot.slane %v2955, 7
    %v2990 = vrot.slane %v2956, 7
    %vm2995 = vcmask 1040384
    %v2996 = vrot.slane %v2953, 7
    %v2997 = vrot.slane %v2954, 7
    %v2998 = vsel %vm2995, %v2996, %v2989
    %v2999 = vsel %vm2995, %v2997, %v2990
    %v3004 = vsel %vm2995, %v2989, %v2996
    %v3005 = vsel %vm2995, %v2990, %v2997
    %v3006 = vsel %vm114, 1, 0
    %v3007 = vsel %vm115, 1, 0
    %vm3008 = vcmp.eq.s32.totalorder %v3006, 1
    %vm3009 = vcmp.eq.s32.totalorder %v3007, 1
    %v3010 = vsel %vm3008, %v3004, 0.0
    %v3011 = vsel %vm3008, %v3005, 0.0
    %v3012 = vsel %vm3009, %v2998, 0.0
    %v3013 = vsel %vm3009, %v2999, 0.0
    %v3014 = vadd.f32 %v2968, %v3010
    %v3015 = vadd.f32 %v2969, %v3011
    %v3016 = vadd.f32 %v2970, %v3012
    %v3017 = vadd.f32 %v2971, %v3013
    %vm3022 = vcmask 1046528
    %v3023 = vrot.slane %v2983, 1
    %v3024 = vrot.slane %v2985, 1
    %v3025 = vsel %vm3022, %v3023, %v3024
    %v3026 = vrot.slane %v2984, 1
    %v3027 = vrot.slane %v2986, 1
    %v3028 = vsel %vm3022, %v3026, %v3027
    %v3035 = vsel %vm3022, %v3024, %v3023
    %v3036 = vsel %vm3022, %v3027, %v3026
    %v3037 = vsel %vm116, 1, 0
    %v3038 = vsel %vm117, 1, 0
    %vm3039 = vcmp.eq.s32.totalorder %v3037, 1
    %vm3040 = vcmp.eq.s32.totalorder %v3038, 1
    %v3041 = vsel %vm3039, %v3025, 0.0
    %v3042 = vsel %vm3039, %v3028, 0.0
    %v3043 = vsel %vm3040, %v3035, 0.0
    %v3044 = vsel %vm3040, %v3036, 0.0
    %v3045 = vadd.f32 %v3014, %v3041
    %v3046 = vadd.f32 %v3015, %v3042
    %v3047 = vadd.f32 %v3016, %v3043
    %v3048 = vadd.f32 %v3017, %v3044
    %v3049 = vstv %s79
    %v3050 = vadd.f32 %v3045, %v3049
    %v3051 = vadd.f32 %v3046, %v3049
    %v3052 = vadd.f32 %v3047, %v3049
    %v3053 = vadd.f32 %v3048, %v3049
    %v3054 = vmax.f32 %v3050, 0.0
    %v3055 = vmax.f32 %v3051, 0.0
    %v3056 = vmax.f32 %v3052, 0.0
    %v3057 = vmax.f32 %v3053, 0.0
    %v3058 = vstv %s80
    %v3059 = vadd.f32 %v3054, %v3058
    %v3060 = vadd.f32 %v3055, %v3058
    %v3061 = vadd.f32 %v3056, %v3058
    %v3062 = vadd.f32 %v3057, %v3058
    %3065 = vrot.lane.b32.xlu0 %v3060, 39
    %v3066 = vpop.permute.xlu0 %3065
    %3067 = vrot.lane.b32.xlu0 %v3062, 39
    %v3068 = vpop.permute.xlu0 %3067
    %3073 = vrot.lane.b32.xlu0 %v3059, 39
    %v3074 = vpop.permute.xlu0 %3073
    %3075 = vrot.lane.b32.xlu0 %v3061, 39
    %v3076 = vpop.permute.xlu0 %3075
    %v3077 = vsel %vm137, %v3074, %v3066
    %v3078 = vsel %vm137, %v3076, %v3068
    %v3083 = vsel %vm137, %v3066, %v3074
    %v3084 = vsel %vm137, %v3068, %v3076
    %v3085 = vld [vmem:[#allocation9] ss:$8 sm:$0x3]
    %v3087 = vperm.slane %v3085, 0
    %v3088 = vperm.slane %v3085, 1
    %v3091 = vmul.f32 %v3087, %v3083
    %v3092 = vmul.f32 %v3088, %v3077
    %v3093 = vmul.f32 %v3087, %v3084
    %v3094 = vmul.f32 %v3088, %v3078
    %v3095 = vadd.f32 %v3091, 0.0
    %v3096 = vadd.f32 %v3092, 0.0
    %v3097 = vadd.f32 %v3093, 0.0
    %v3098 = vadd.f32 %v3094, 0.0
    %s3099 = scalar_lea.vmem [#allocation9], 85
    %v3100 = vld [vmem:[%s3099] ss:$8 sm:$0x3]
    %v3102 = vperm.slane %v3100, 0
    %v3103 = vperm.slane %v3100, 1
    %v3106 = vmul.f32 %v3102, %v3083
    %v3107 = vmul.f32 %v3103, %v3077
    %v3108 = vmul.f32 %v3102, %v3084
    %v3109 = vmul.f32 %v3103, %v3078
    %v3110 = vadd.f32 %v3106, 0.0
    %v3111 = vadd.f32 %v3107, 0.0
    %v3112 = vadd.f32 %v3108, 0.0
    %v3113 = vadd.f32 %v3109, 0.0
    %s3114 = scalar_lea.vmem [#allocation9], 178
    %v3115 = vld [vmem:[%s3114] ss:$8 sm:$0x3]
    %v3117 = vperm.slane %v3115, 0
    %v3118 = vperm.slane %v3115, 1
    %v3121 = vmul.f32 %v3117, %v3083
    %v3122 = vmul.f32 %v3118, %v3077
    %v3123 = vmul.f32 %v3117, %v3084
    %v3124 = vmul.f32 %v3118, %v3078
    %v3125 = vadd.f32 %v3121, 0.0
    %v3126 = vadd.f32 %v3122, 0.0
    %v3127 = vadd.f32 %v3123, 0.0
    %v3128 = vadd.f32 %v3124, 0.0
    %3129 = vrot.lane.b32.xlu0 %v3060, 38
    %v3130 = vpop.permute.xlu0 %3129
    %3131 = vrot.lane.b32.xlu0 %v3062, 38
    %v3132 = vpop.permute.xlu0 %3131
    %3135 = vrot.lane.b32.xlu0 %v3059, 38
    %v3136 = vpop.permute.xlu0 %3135
    %3137 = vrot.lane.b32.xlu0 %v3061, 38
    %v3138 = vpop.permute.xlu0 %3137
    %v3139 = vsel %vm200, %v3136, %v3130
    %v3140 = vsel %vm200, %v3138, %v3132
    %v3145 = vsel %vm200, %v3130, %v3136
    %v3146 = vsel %vm200, %v3132, %v3138
    %s3147 = scalar_lea.vmem [#allocation9], 1
    %v3148 = vld [vmem:[%s3147] ss:$8 sm:$0x3]
    %v3150 = vperm.slane %v3148, 0
    %v3151 = vperm.slane %v3148, 1
    %v3154 = vmul.f32 %v3150, %v3145
    %v3155 = vmul.f32 %v3151, %v3139
    %v3156 = vmul.f32 %v3150, %v3146
    %v3157 = vmul.f32 %v3151, %v3140
    %v3158 = vadd.f32 %v3095, %v3154
    %v3159 = vadd.f32 %v3096, %v3155
    %v3160 = vadd.f32 %v3097, %v3156
    %v3161 = vadd.f32 %v3098, %v3157
    %s3162 = scalar_lea.vmem [#allocation9], 86
    %v3163 = vld [vmem:[%s3162] ss:$8 sm:$0x3]
    %v3165 = vperm.slane %v3163, 0
    %v3166 = vperm.slane %v3163, 1
    %v3169 = vmul.f32 %v3165, %v3145
    %v3170 = vmul.f32 %v3166, %v3139
    %v3171 = vmul.f32 %v3165, %v3146
    %v3172 = vmul.f32 %v3166, %v3140
    %v3173 = vadd.f32 %v3110, %v3169
    %v3174 = vadd.f32 %v3111, %v3170
    %v3175 = vadd.f32 %v3112, %v3171
    %v3176 = vadd.f32 %v3113, %v3172
    %s3177 = scalar_lea.vmem [#allocation9], 179
    %v3178 = vld [vmem:[%s3177] ss:$8 sm:$0x3]
    %v3180 = vperm.slane %v3178, 0
    %v3181 = vperm.slane %v3178, 1
    %v3184 = vmul.f32 %v3180, %v3145
    %v3185 = vmul.f32 %v3181, %v3139
    %v3186 = vmul.f32 %v3180, %v3146
    %v3187 = vmul.f32 %v3181, %v3140
    %v3188 = vadd.f32 %v3125, %v3184
    %v3189 = vadd.f32 %v3126, %v3185
    %v3190 = vadd.f32 %v3127, %v3186
    %v3191 = vadd.f32 %v3128, %v3187
    %3192 = vrot.lane.b32.xlu0 %v3060, 37
    %v3193 = vpop.permute.xlu0 %3192
    %3194 = vrot.lane.b32.xlu0 %v3062, 37
    %v3195 = vpop.permute.xlu0 %3194
    %3198 = vrot.lane.b32.xlu0 %v3059, 37
    %v3199 = vpop.permute.xlu0 %3198
    %3200 = vrot.lane.b32.xlu0 %v3061, 37
    %v3201 = vpop.permute.xlu0 %3200
    %v3202 = vsel %vm264, %v3199, %v3193
    %v3203 = vsel %vm264, %v3201, %v3195
    %v3208 = vsel %vm264, %v3193, %v3199
    %v3209 = vsel %vm264, %v3195, %v3201
    %s3210 = scalar_lea.vmem [#allocation9], 2
    %v3211 = vld [vmem:[%s3210] ss:$8 sm:$0x3]
    %v3213 = vperm.slane %v3211, 0
    %v3214 = vperm.slane %v3211, 1
    %v3217 = vmul.f32 %v3213, %v3208
    %v3218 = vmul.f32 %v3214, %v3202
    %v3219 = vmul.f32 %v3213, %v3209
    %v3220 = vmul.f32 %v3214, %v3203
    %v3221 = vadd.f32 %v3158, %v3217
    %v3222 = vadd.f32 %v3159, %v3218
    %v3223 = vadd.f32 %v3160, %v3219
    %v3224 = vadd.f32 %v3161, %v3220
    %s3225 = scalar_lea.vmem [#allocation9], 87
    %v3226 = vld [vmem:[%s3225] ss:$8 sm:$0x3]
    %v3228 = vperm.slane %v3226, 0
    %v3229 = vperm.slane %v3226, 1
    %v3232 = vmul.f32 %v3228, %v3208
    %v3233 = vmul.f32 %v3229, %v3202
    %v3234 = vmul.f32 %v3228, %v3209
    %v3235 = vmul.f32 %v3229, %v3203
    %v3236 = vadd.f32 %v3173, %v3232
    %v3237 = vadd.f32 %v3174, %v3233
    %v3238 = vadd.f32 %v3175, %v3234
    %v3239 = vadd.f32 %v3176, %v3235
    %s3240 = scalar_lea.vmem [#allocation9], 180
    %v3241 = vld [vmem:[%s3240] ss:$8 sm:$0x3]
    %v3243 = vperm.slane %v3241, 0
    %v3244 = vperm.slane %v3241, 1
    %v3247 = vmul.f32 %v3243, %v3208
    %v3248 = vmul.f32 %v3244, %v3202
    %v3249 = vmul.f32 %v3243, %v3209
    %v3250 = vmul.f32 %v3244, %v3203
    %v3251 = vadd.f32 %v3188, %v3247
    %v3252 = vadd.f32 %v3189, %v3248
    %v3253 = vadd.f32 %v3190, %v3249
    %v3254 = vadd.f32 %v3191, %v3250
    %3255 = vrot.lane.b32.xlu0 %v3060, 36
    %v3256 = vpop.permute.xlu0 %3255
    %3257 = vrot.lane.b32.xlu0 %v3062, 36
    %v3258 = vpop.permute.xlu0 %3257
    %3261 = vrot.lane.b32.xlu0 %v3059, 36
    %v3262 = vpop.permute.xlu0 %3261
    %3263 = vrot.lane.b32.xlu0 %v3061, 36
    %v3264 = vpop.permute.xlu0 %3263
    %v3265 = vsel %vm328, %v3262, %v3256
    %v3266 = vsel %vm328, %v3264, %v3258
    %v3271 = vsel %vm328, %v3256, %v3262
    %v3272 = vsel %vm328, %v3258, %v3264
    %s3273 = scalar_lea.vmem [#allocation9], 3
    %v3274 = vld [vmem:[%s3273] ss:$8 sm:$0x3]
    %v3276 = vperm.slane %v3274, 0
    %v3277 = vperm.slane %v3274, 1
    %v3280 = vmul.f32 %v3276, %v3271
    %v3281 = vmul.f32 %v3277, %v3265
    %v3282 = vmul.f32 %v3276, %v3272
    %v3283 = vmul.f32 %v3277, %v3266
    %v3284 = vadd.f32 %v3221, %v3280
    %v3285 = vadd.f32 %v3222, %v3281
    %v3286 = vadd.f32 %v3223, %v3282
    %v3287 = vadd.f32 %v3224, %v3283
    %s3288 = scalar_lea.vmem [#allocation9], 96
    %v3289 = vld [vmem:[%s3288] ss:$8 sm:$0x3]
    %v3291 = vperm.slane %v3289, 0
    %v3292 = vperm.slane %v3289, 1
    %v3295 = vmul.f32 %v3291, %v3271
    %v3296 = vmul.f32 %v3292, %v3265
    %v3297 = vmul.f32 %v3291, %v3272
    %v3298 = vmul.f32 %v3292, %v3266
    %v3299 = vadd.f32 %v3236, %v3295
    %v3300 = vadd.f32 %v3237, %v3296
    %v3301 = vadd.f32 %v3238, %v3297
    %v3302 = vadd.f32 %v3239, %v3298
    %s3303 = scalar_lea.vmem [#allocation9], 181
    %v3304 = vld [vmem:[%s3303] ss:$8 sm:$0x3]
    %v3306 = vperm.slane %v3304, 0
    %v3307 = vperm.slane %v3304, 1
    %v3310 = vmul.f32 %v3306, %v3271
    %v3311 = vmul.f32 %v3307, %v3265
    %v3312 = vmul.f32 %v3306, %v3272
    %v3313 = vmul.f32 %v3307, %v3266
    %v3314 = vadd.f32 %v3251, %v3310
    %v3315 = vadd.f32 %v3252, %v3311
    %v3316 = vadd.f32 %v3253, %v3312
    %v3317 = vadd.f32 %v3254, %v3313
    %3318 = vrot.lane.b32.xlu0 %v3060, 35
    %v3319 = vpop.permute.xlu0 %3318
    %3320 = vrot.lane.b32.xlu0 %v3062, 35
    %v3321 = vpop.permute.xlu0 %3320
    %3324 = vrot.lane.b32.xlu0 %v3059, 35
    %v3325 = vpop.permute.xlu0 %3324
    %3326 = vrot.lane.b32.xlu0 %v3061, 35
    %v3327 = vpop.permute.xlu0 %3326
    %v3328 = vsel %vm392, %v3325, %v3319
    %v3329 = vsel %vm392, %v3327, %v3321
    %v3334 = vsel %vm392, %v3319, %v3325
    %v3335 = vsel %vm392, %v3321, %v3327
    %s3336 = scalar_lea.vmem [#allocation9], 4
    %v3337 = vld [vmem:[%s3336] ss:$8 sm:$0x3]
    %v3339 = vperm.slane %v3337, 0
    %v3340 = vperm.slane %v3337, 1
    %v3343 = vmul.f32 %v3339, %v3334
    %v3344 = vmul.f32 %v3340, %v3328
    %v3345 = vmul.f32 %v3339, %v3335
    %v3346 = vmul.f32 %v3340, %v3329
    %v3347 = vadd.f32 %v3284, %v3343
    %v3348 = vadd.f32 %v3285, %v3344
    %v3349 = vadd.f32 %v3286, %v3345
    %v3350 = vadd.f32 %v3287, %v3346
    %s3351 = scalar_lea.vmem [#allocation9], 97
    %v3352 = vld [vmem:[%s3351] ss:$8 sm:$0x3]
    %v3354 = vperm.slane %v3352, 0
    %v3355 = vperm.slane %v3352, 1
    %v3358 = vmul.f32 %v3354, %v3334
    %v3359 = vmul.f32 %v3355, %v3328
    %v3360 = vmul.f32 %v3354, %v3335
    %v3361 = vmul.f32 %v3355, %v3329
    %v3362 = vadd.f32 %v3299, %v3358
    %v3363 = vadd.f32 %v3300, %v3359
    %v3364 = vadd.f32 %v3301, %v3360
    %v3365 = vadd.f32 %v3302, %v3361
    %s3366 = scalar_lea.vmem [#allocation9], 182
    %v3367 = vld [vmem:[%s3366] ss:$8 sm:$0x3]
    %v3369 = vperm.slane %v3367, 0
    %v3370 = vperm.slane %v3367, 1
    %v3373 = vmul.f32 %v3369, %v3334
    %v3374 = vmul.f32 %v3370, %v3328
    %v3375 = vmul.f32 %v3369, %v3335
    %v3376 = vmul.f32 %v3370, %v3329
    %v3377 = vadd.f32 %v3314, %v3373
    %v3378 = vadd.f32 %v3315, %v3374
    %v3379 = vadd.f32 %v3316, %v3375
    %v3380 = vadd.f32 %v3317, %v3376
    %3381 = vrot.lane.b32.xlu0 %v3060, 34
    %v3382 = vpop.permute.xlu0 %3381
    %3383 = vrot.lane.b32.xlu0 %v3062, 34
    %v3384 = vpop.permute.xlu0 %3383
    %3387 = vrot.lane.b32.xlu0 %v3059, 34
    %v3388 = vpop.permute.xlu0 %3387
    %3389 = vrot.lane.b32.xlu0 %v3061, 34
    %v3390 = vpop.permute.xlu0 %3389
    %v3391 = vsel %vm456, %v3388, %v3382
    %v3392 = vsel %vm456, %v3390, %v3384
    %v3397 = vsel %vm456, %v3382, %v3388
    %v3398 = vsel %vm456, %v3384, %v3390
    %s3399 = scalar_lea.vmem [#allocation9], 5
    %v3400 = vld [vmem:[%s3399] ss:$8 sm:$0x3]
    %v3402 = vperm.slane %v3400, 0
    %v3403 = vperm.slane %v3400, 1
    %v3406 = vmul.f32 %v3402, %v3397
    %v3407 = vmul.f32 %v3403, %v3391
    %v3408 = vmul.f32 %v3402, %v3398
    %v3409 = vmul.f32 %v3403, %v3392
    %v3410 = vadd.f32 %v3347, %v3406
    %v3411 = vadd.f32 %v3348, %v3407
    %v3412 = vadd.f32 %v3349, %v3408
    %v3413 = vadd.f32 %v3350, %v3409
    %s3414 = scalar_lea.vmem [#allocation9], 98
    %v3415 = vld [vmem:[%s3414] ss:$8 sm:$0x3]
    %v3417 = vperm.slane %v3415, 0
    %v3418 = vperm.slane %v3415, 1
    %v3421 = vmul.f32 %v3417, %v3397
    %v3422 = vmul.f32 %v3418, %v3391
    %v3423 = vmul.f32 %v3417, %v3398
    %v3424 = vmul.f32 %v3418, %v3392
    %v3425 = vadd.f32 %v3362, %v3421
    %v3426 = vadd.f32 %v3363, %v3422
    %v3427 = vadd.f32 %v3364, %v3423
    %v3428 = vadd.f32 %v3365, %v3424
    %s3429 = scalar_lea.vmem [#allocation9], 183
    %v3430 = vld [vmem:[%s3429] ss:$8 sm:$0x3]
    %v3432 = vperm.slane %v3430, 0
    %v3433 = vperm.slane %v3430, 1
    %v3436 = vmul.f32 %v3432, %v3397
    %v3437 = vmul.f32 %v3433, %v3391
    %v3438 = vmul.f32 %v3432, %v3398
    %v3439 = vmul.f32 %v3433, %v3392
    %v3440 = vadd.f32 %v3377, %v3436
    %v3441 = vadd.f32 %v3378, %v3437
    %v3442 = vadd.f32 %v3379, %v3438
    %v3443 = vadd.f32 %v3380, %v3439
    %3444 = vrot.lane.b32.xlu0 %v3060, 33
    %v3445 = vpop.permute.xlu0 %3444
    %3446 = vrot.lane.b32.xlu0 %v3062, 33
    %v3447 = vpop.permute.xlu0 %3446
    %3450 = vrot.lane.b32.xlu0 %v3059, 33
    %v3451 = vpop.permute.xlu0 %3450
    %3452 = vrot.lane.b32.xlu0 %v3061, 33
    %v3453 = vpop.permute.xlu0 %3452
    %v3454 = vsel %vm520, %v3451, %v3445
    %v3455 = vsel %vm520, %v3453, %v3447
    %v3460 = vsel %vm520, %v3445, %v3451
    %v3461 = vsel %vm520, %v3447, %v3453
    %s3462 = scalar_lea.vmem [#allocation9], 6
    %v3463 = vld [vmem:[%s3462] ss:$8 sm:$0x3]
    %v3465 = vperm.slane %v3463, 0
    %v3466 = vperm.slane %v3463, 1
    %v3469 = vmul.f32 %v3465, %v3460
    %v3470 = vmul.f32 %v3466, %v3454
    %v3471 = vmul.f32 %v3465, %v3461
    %v3472 = vmul.f32 %v3466, %v3455
    %v3473 = vadd.f32 %v3410, %v3469
    %v3474 = vadd.f32 %v3411, %v3470
    %v3475 = vadd.f32 %v3412, %v3471
    %v3476 = vadd.f32 %v3413, %v3472
    %s3477 = scalar_lea.vmem [#allocation9], 99
    %v3478 = vld [vmem:[%s3477] ss:$8 sm:$0x3]
    %v3480 = vperm.slane %v3478, 0
    %v3481 = vperm.slane %v3478, 1
    %v3484 = vmul.f32 %v3480, %v3460
    %v3485 = vmul.f32 %v3481, %v3454
    %v3486 = vmul.f32 %v3480, %v3461
    %v3487 = vmul.f32 %v3481, %v3455
    %v3488 = vadd.f32 %v3425, %v3484
    %v3489 = vadd.f32 %v3426, %v3485
    %v3490 = vadd.f32 %v3427, %v3486
    %v3491 = vadd.f32 %v3428, %v3487
    %s3492 = scalar_lea.vmem [#allocation9], 192
    %v3493 = vld [vmem:[%s3492] ss:$8 sm:$0x3]
    %v3495 = vperm.slane %v3493, 0
    %v3496 = vperm.slane %v3493, 1
    %v3499 = vmul.f32 %v3495, %v3460
    %v3500 = vmul.f32 %v3496, %v3454
    %v3501 = vmul.f32 %v3495, %v3461
    %v3502 = vmul.f32 %v3496, %v3455
    %v3503 = vadd.f32 %v3440, %v3499
    %v3504 = vadd.f32 %v3441, %v3500
    %v3505 = vadd.f32 %v3442, %v3501
    %v3506 = vadd.f32 %v3443, %v3502
    %3507 = vrot.lane.b32.xlu0 %v3060, 32
    %v3508 = vpop.permute.xlu0 %3507
    %3509 = vrot.lane.b32.xlu0 %v3062, 32
    %v3510 = vpop.permute.xlu0 %3509
    %3513 = vrot.lane.b32.xlu0 %v3059, 32
    %v3514 = vpop.permute.xlu0 %3513
    %3515 = vrot.lane.b32.xlu0 %v3061, 32
    %v3516 = vpop.permute.xlu0 %3515
    %v3517 = vsel %vm584, %v3514, %v3508
    %v3518 = vsel %vm584, %v3516, %v3510
    %v3523 = vsel %vm584, %v3508, %v3514
    %v3524 = vsel %vm584, %v3510, %v3516
    %s3525 = scalar_lea.vmem [#allocation9], 7
    %v3526 = vld [vmem:[%s3525] ss:$8 sm:$0x3]
    %v3528 = vperm.slane %v3526, 0
    %v3529 = vperm.slane %v3526, 1
    %v3532 = vmul.f32 %v3528, %v3523
    %v3533 = vmul.f32 %v3529, %v3517
    %v3534 = vmul.f32 %v3528, %v3524
    %v3535 = vmul.f32 %v3529, %v3518
    %v3536 = vadd.f32 %v3473, %v3532
    %v3537 = vadd.f32 %v3474, %v3533
    %v3538 = vadd.f32 %v3475, %v3534
    %v3539 = vadd.f32 %v3476, %v3535
    %s3540 = scalar_lea.vmem [#allocation9], 100
    %v3541 = vld [vmem:[%s3540] ss:$8 sm:$0x3]
    %v3543 = vperm.slane %v3541, 0
    %v3544 = vperm.slane %v3541, 1
    %v3547 = vmul.f32 %v3543, %v3523
    %v3548 = vmul.f32 %v3544, %v3517
    %v3549 = vmul.f32 %v3543, %v3524
    %v3550 = vmul.f32 %v3544, %v3518
    %v3551 = vadd.f32 %v3488, %v3547
    %v3552 = vadd.f32 %v3489, %v3548
    %v3553 = vadd.f32 %v3490, %v3549
    %v3554 = vadd.f32 %v3491, %v3550
    %s3555 = scalar_lea.vmem [#allocation9], 193
    %v3556 = vld [vmem:[%s3555] ss:$8 sm:$0x3]
    %v3558 = vperm.slane %v3556, 0
    %v3559 = vperm.slane %v3556, 1
    %v3562 = vmul.f32 %v3558, %v3523
    %v3563 = vmul.f32 %v3559, %v3517
    %v3564 = vmul.f32 %v3558, %v3524
    %v3565 = vmul.f32 %v3559, %v3518
    %v3566 = vadd.f32 %v3503, %v3562
    %v3567 = vadd.f32 %v3504, %v3563
    %v3568 = vadd.f32 %v3505, %v3564
    %v3569 = vadd.f32 %v3506, %v3565
    %3570 = vrot.lane.b32.xlu0 %v3060, 31
    %v3571 = vpop.permute.xlu0 %3570
    %3572 = vrot.lane.b32.xlu0 %v3062, 31
    %v3573 = vpop.permute.xlu0 %3572
    %3576 = vrot.lane.b32.xlu0 %v3059, 31
    %v3577 = vpop.permute.xlu0 %3576
    %3578 = vrot.lane.b32.xlu0 %v3061, 31
    %v3579 = vpop.permute.xlu0 %3578
    %v3580 = vsel %vm648, %v3577, %v3571
    %v3581 = vsel %vm648, %v3579, %v3573
    %v3586 = vsel %vm648, %v3571, %v3577
    %v3587 = vsel %vm648, %v3573, %v3579
    %s3588 = scalar_lea.vmem [#allocation9], 16
    %v3589 = vld [vmem:[%s3588] ss:$8 sm:$0x3]
    %v3591 = vperm.slane %v3589, 0
    %v3592 = vperm.slane %v3589, 1
    %v3595 = vmul.f32 %v3591, %v3586
    %v3596 = vmul.f32 %v3592, %v3580
    %v3597 = vmul.f32 %v3591, %v3587
    %v3598 = vmul.f32 %v3592, %v3581
    %v3599 = vadd.f32 %v3536, %v3595
    %v3600 = vadd.f32 %v3537, %v3596
    %v3601 = vadd.f32 %v3538, %v3597
    %v3602 = vadd.f32 %v3539, %v3598
    %s3603 = scalar_lea.vmem [#allocation9], 101
    %v3604 = vld [vmem:[%s3603] ss:$8 sm:$0x3]
    %v3606 = vperm.slane %v3604, 0
    %v3607 = vperm.slane %v3604, 1
    %v3610 = vmul.f32 %v3606, %v3586
    %v3611 = vmul.f32 %v3607, %v3580
    %v3612 = vmul.f32 %v3606, %v3587
    %v3613 = vmul.f32 %v3607, %v3581
    %v3614 = vadd.f32 %v3551, %v3610
    %v3615 = vadd.f32 %v3552, %v3611
    %v3616 = vadd.f32 %v3553, %v3612
    %v3617 = vadd.f32 %v3554, %v3613
    %s3618 = scalar_lea.vmem [#allocation9], 194
    %v3619 = vld [vmem:[%s3618] ss:$8 sm:$0x3]
    %v3621 = vperm.slane %v3619, 0
    %v3622 = vperm.slane %v3619, 1
    %v3625 = vmul.f32 %v3621, %v3586
    %v3626 = vmul.f32 %v3622, %v3580
    %v3627 = vmul.f32 %v3621, %v3587
    %v3628 = vmul.f32 %v3622, %v3581
    %v3629 = vadd.f32 %v3566, %v3625
    %v3630 = vadd.f32 %v3567, %v3626
    %v3631 = vadd.f32 %v3568, %v3627
    %v3632 = vadd.f32 %v3569, %v3628
    %3633 = vrot.lane.b32.xlu0 %v3060, 30
    %v3634 = vpop.permute.xlu0 %3633
    %3635 = vrot.lane.b32.xlu0 %v3062, 30
    %v3636 = vpop.permute.xlu0 %3635
    %3639 = vrot.lane.b32.xlu0 %v3059, 30
    %v3640 = vpop.permute.xlu0 %3639
    %3641 = vrot.lane.b32.xlu0 %v3061, 30
    %v3642 = vpop.permute.xlu0 %3641
    %v3643 = vsel %vm712, %v3640, %v3634
    %v3644 = vsel %vm712, %v3642, %v3636
    %v3649 = vsel %vm712, %v3634, %v3640
    %v3650 = vsel %vm712, %v3636, %v3642
    %s3651 = scalar_lea.vmem [#allocation9], 17
    %v3652 = vld [vmem:[%s3651] ss:$8 sm:$0x3]
    %v3654 = vperm.slane %v3652, 0
    %v3655 = vperm.slane %v3652, 1
    %v3658 = vmul.f32 %v3654, %v3649
    %v3659 = vmul.f32 %v3655, %v3643
    %v3660 = vmul.f32 %v3654, %v3650
    %v3661 = vmul.f32 %v3655, %v3644
    %v3662 = vadd.f32 %v3599, %v3658
    %v3663 = vadd.f32 %v3600, %v3659
    %v3664 = vadd.f32 %v3601, %v3660
    %v3665 = vadd.f32 %v3602, %v3661
    %s3666 = scalar_lea.vmem [#allocation9], 102
    %v3667 = vld [vmem:[%s3666] ss:$8 sm:$0x3]
    %v3669 = vperm.slane %v3667, 0
    %v3670 = vperm.slane %v3667, 1
    %v3673 = vmul.f32 %v3669, %v3649
    %v3674 = vmul.f32 %v3670, %v3643
    %v3675 = vmul.f32 %v3669, %v3650
    %v3676 = vmul.f32 %v3670, %v3644
    %v3677 = vadd.f32 %v3614, %v3673
    %v3678 = vadd.f32 %v3615, %v3674
    %v3679 = vadd.f32 %v3616, %v3675
    %v3680 = vadd.f32 %v3617, %v3676
    %s3681 = scalar_lea.vmem [#allocation9], 195
    %v3682 = vld [vmem:[%s3681] ss:$8 sm:$0x3]
    %v3684 = vperm.slane %v3682, 0
    %v3685 = vperm.slane %v3682, 1
    %v3688 = vmul.f32 %v3684, %v3649
    %v3689 = vmul.f32 %v3685, %v3643
    %v3690 = vmul.f32 %v3684, %v3650
    %v3691 = vmul.f32 %v3685, %v3644
    %v3692 = vadd.f32 %v3629, %v3688
    %v3693 = vadd.f32 %v3630, %v3689
    %v3694 = vadd.f32 %v3631, %v3690
    %v3695 = vadd.f32 %v3632, %v3691
    %3696 = vrot.lane.b32.xlu0 %v3060, 29
    %v3697 = vpop.permute.xlu0 %3696
    %3698 = vrot.lane.b32.xlu0 %v3062, 29
    %v3699 = vpop.permute.xlu0 %3698
    %3702 = vrot.lane.b32.xlu0 %v3059, 29
    %v3703 = vpop.permute.xlu0 %3702
    %3704 = vrot.lane.b32.xlu0 %v3061, 29
    %v3705 = vpop.permute.xlu0 %3704
    %v3706 = vsel %vm776, %v3703, %v3697
    %v3707 = vsel %vm776, %v3705, %v3699
    %v3712 = vsel %vm776, %v3697, %v3703
    %v3713 = vsel %vm776, %v3699, %v3705
    %s3714 = scalar_lea.vmem [#allocation9], 18
    %v3715 = vld [vmem:[%s3714] ss:$8 sm:$0x3]
    %v3717 = vperm.slane %v3715, 0
    %v3718 = vperm.slane %v3715, 1
    %v3721 = vmul.f32 %v3717, %v3712
    %v3722 = vmul.f32 %v3718, %v3706
    %v3723 = vmul.f32 %v3717, %v3713
    %v3724 = vmul.f32 %v3718, %v3707
    %v3725 = vadd.f32 %v3662, %v3721
    %v3726 = vadd.f32 %v3663, %v3722
    %v3727 = vadd.f32 %v3664, %v3723
    %v3728 = vadd.f32 %v3665, %v3724
    %s3729 = scalar_lea.vmem [#allocation9], 103
    %v3730 = vld [vmem:[%s3729] ss:$8 sm:$0x3]
    %v3732 = vperm.slane %v3730, 0
    %v3733 = vperm.slane %v3730, 1
    %v3736 = vmul.f32 %v3732, %v3712
    %v3737 = vmul.f32 %v3733, %v3706
    %v3738 = vmul.f32 %v3732, %v3713
    %v3739 = vmul.f32 %v3733, %v3707
    %v3740 = vadd.f32 %v3677, %v3736
    %v3741 = vadd.f32 %v3678, %v3737
    %v3742 = vadd.f32 %v3679, %v3738
    %v3743 = vadd.f32 %v3680, %v3739
    %s3744 = scalar_lea.vmem [#allocation9], 196
    %v3745 = vld [vmem:[%s3744] ss:$8 sm:$0x3]
    %v3747 = vperm.slane %v3745, 0
    %v3748 = vperm.slane %v3745, 1
    %v3751 = vmul.f32 %v3747, %v3712
    %v3752 = vmul.f32 %v3748, %v3706
    %v3753 = vmul.f32 %v3747, %v3713
    %v3754 = vmul.f32 %v3748, %v3707
    %v3755 = vadd.f32 %v3692, %v3751
    %v3756 = vadd.f32 %v3693, %v3752
    %v3757 = vadd.f32 %v3694, %v3753
    %v3758 = vadd.f32 %v3695, %v3754
    %3759 = vrot.lane.b32.xlu0 %v3060, 28
    %v3760 = vpop.permute.xlu0 %3759
    %3761 = vrot.lane.b32.xlu0 %v3062, 28
    %v3762 = vpop.permute.xlu0 %3761
    %3765 = vrot.lane.b32.xlu0 %v3059, 28
    %v3766 = vpop.permute.xlu0 %3765
    %3767 = vrot.lane.b32.xlu0 %v3061, 28
    %v3768 = vpop.permute.xlu0 %3767
    %v3769 = vsel %vm840, %v3766, %v3760
    %v3770 = vsel %vm840, %v3768, %v3762
    %v3775 = vsel %vm840, %v3760, %v3766
    %v3776 = vsel %vm840, %v3762, %v3768
    %s3777 = scalar_lea.vmem [#allocation9], 19
    %v3778 = vld [vmem:[%s3777] ss:$8 sm:$0x3]
    %v3780 = vperm.slane %v3778, 0
    %v3781 = vperm.slane %v3778, 1
    %v3784 = vmul.f32 %v3780, %v3775
    %v3785 = vmul.f32 %v3781, %v3769
    %v3786 = vmul.f32 %v3780, %v3776
    %v3787 = vmul.f32 %v3781, %v3770
    %v3788 = vadd.f32 %v3725, %v3784
    %v3789 = vadd.f32 %v3726, %v3785
    %v3790 = vadd.f32 %v3727, %v3786
    %v3791 = vadd.f32 %v3728, %v3787
    %s3792 = scalar_lea.vmem [#allocation9], 112
    %v3793 = vld [vmem:[%s3792] ss:$8 sm:$0x3]
    %v3795 = vperm.slane %v3793, 0
    %v3796 = vperm.slane %v3793, 1
    %v3799 = vmul.f32 %v3795, %v3775
    %v3800 = vmul.f32 %v3796, %v3769
    %v3801 = vmul.f32 %v3795, %v3776
    %v3802 = vmul.f32 %v3796, %v3770
    %v3803 = vadd.f32 %v3740, %v3799
    %v3804 = vadd.f32 %v3741, %v3800
    %v3805 = vadd.f32 %v3742, %v3801
    %v3806 = vadd.f32 %v3743, %v3802
    %s3807 = scalar_lea.vmem [#allocation9], 197
    %v3808 = vld [vmem:[%s3807] ss:$8 sm:$0x3]
    %v3810 = vperm.slane %v3808, 0
    %v3811 = vperm.slane %v3808, 1
    %v3814 = vmul.f32 %v3810, %v3775
    %v3815 = vmul.f32 %v3811, %v3769
    %v3816 = vmul.f32 %v3810, %v3776
    %v3817 = vmul.f32 %v3811, %v3770
    %v3818 = vadd.f32 %v3755, %v3814
    %v3819 = vadd.f32 %v3756, %v3815
    %v3820 = vadd.f32 %v3757, %v3816
    %v3821 = vadd.f32 %v3758, %v3817
    %3822 = vrot.lane.b32.xlu0 %v3060, 27
    %v3823 = vpop.permute.xlu0 %3822
    %3824 = vrot.lane.b32.xlu0 %v3062, 27
    %v3825 = vpop.permute.xlu0 %3824
    %3828 = vrot.lane.b32.xlu0 %v3059, 27
    %v3829 = vpop.permute.xlu0 %3828
    %3830 = vrot.lane.b32.xlu0 %v3061, 27
    %v3831 = vpop.permute.xlu0 %3830
    %v3832 = vsel %vm904, %v3829, %v3823
    %v3833 = vsel %vm904, %v3831, %v3825
    %v3838 = vsel %vm904, %v3823, %v3829
    %v3839 = vsel %vm904, %v3825, %v3831
    %s3840 = scalar_lea.vmem [#allocation9], 20
    %v3841 = vld [vmem:[%s3840] ss:$8 sm:$0x3]
    %v3843 = vperm.slane %v3841, 0
    %v3844 = vperm.slane %v3841, 1
    %v3847 = vmul.f32 %v3843, %v3838
    %v3848 = vmul.f32 %v3844, %v3832
    %v3849 = vmul.f32 %v3843, %v3839
    %v3850 = vmul.f32 %v3844, %v3833
    %v3851 = vadd.f32 %v3788, %v3847
    %v3852 = vadd.f32 %v3789, %v3848
    %v3853 = vadd.f32 %v3790, %v3849
    %v3854 = vadd.f32 %v3791, %v3850
    %s3855 = scalar_lea.vmem [#allocation9], 113
    %v3856 = vld [vmem:[%s3855] ss:$8 sm:$0x3]
    %v3858 = vperm.slane %v3856, 0
    %v3859 = vperm.slane %v3856, 1
    %v3862 = vmul.f32 %v3858, %v3838
    %v3863 = vmul.f32 %v3859, %v3832
    %v3864 = vmul.f32 %v3858, %v3839
    %v3865 = vmul.f32 %v3859, %v3833
    %v3866 = vadd.f32 %v3803, %v3862
    %v3867 = vadd.f32 %v3804, %v3863
    %v3868 = vadd.f32 %v3805, %v3864
    %v3869 = vadd.f32 %v3806, %v3865
    %s3870 = scalar_lea.vmem [#allocation9], 198
    %v3871 = vld [vmem:[%s3870] ss:$8 sm:$0x3]
    %v3873 = vperm.slane %v3871, 0
    %v3874 = vperm.slane %v3871, 1
    %v3877 = vmul.f32 %v3873, %v3838
    %v3878 = vmul.f32 %v3874, %v3832
    %v3879 = vmul.f32 %v3873, %v3839
    %v3880 = vmul.f32 %v3874, %v3833
    %v3881 = vadd.f32 %v3818, %v3877
    %v3882 = vadd.f32 %v3819, %v3878
    %v3883 = vadd.f32 %v3820, %v3879
    %v3884 = vadd.f32 %v3821, %v3880
    %3885 = vrot.lane.b32.xlu0 %v3060, 26
    %v3886 = vpop.permute.xlu0 %3885
    %3887 = vrot.lane.b32.xlu0 %v3062, 26
    %v3888 = vpop.permute.xlu0 %3887
    %3891 = vrot.lane.b32.xlu0 %v3059, 26
    %v3892 = vpop.permute.xlu0 %3891
    %3893 = vrot.lane.b32.xlu0 %v3061, 26
    %v3894 = vpop.permute.xlu0 %3893
    %v3895 = vsel %vm968, %v3892, %v3886
    %v3896 = vsel %vm968, %v3894, %v3888
    %v3901 = vsel %vm968, %v3886, %v3892
    %v3902 = vsel %vm968, %v3888, %v3894
    %s3903 = scalar_lea.vmem [#allocation9], 21
    %v3904 = vld [vmem:[%s3903] ss:$8 sm:$0x3]
    %v3906 = vperm.slane %v3904, 0
    %v3907 = vperm.slane %v3904, 1
    %v3910 = vmul.f32 %v3906, %v3901
    %v3911 = vmul.f32 %v3907, %v3895
    %v3912 = vmul.f32 %v3906, %v3902
    %v3913 = vmul.f32 %v3907, %v3896
    %v3914 = vadd.f32 %v3851, %v3910
    %v3915 = vadd.f32 %v3852, %v3911
    %v3916 = vadd.f32 %v3853, %v3912
    %v3917 = vadd.f32 %v3854, %v3913
    %s3918 = scalar_lea.vmem [#allocation9], 114
    %v3919 = vld [vmem:[%s3918] ss:$8 sm:$0x3]
    %v3921 = vperm.slane %v3919, 0
    %v3922 = vperm.slane %v3919, 1
    %v3925 = vmul.f32 %v3921, %v3901
    %v3926 = vmul.f32 %v3922, %v3895
    %v3927 = vmul.f32 %v3921, %v3902
    %v3928 = vmul.f32 %v3922, %v3896
    %v3929 = vadd.f32 %v3866, %v3925
    %v3930 = vadd.f32 %v3867, %v3926
    %v3931 = vadd.f32 %v3868, %v3927
    %v3932 = vadd.f32 %v3869, %v3928
    %s3933 = scalar_lea.vmem [#allocation9], 199
    %v3934 = vld [vmem:[%s3933] ss:$8 sm:$0x3]
    %v3936 = vperm.slane %v3934, 0
    %v3937 = vperm.slane %v3934, 1
    %v3940 = vmul.f32 %v3936, %v3901
    %v3941 = vmul.f32 %v3937, %v3895
    %v3942 = vmul.f32 %v3936, %v3902
    %v3943 = vmul.f32 %v3937, %v3896
    %v3944 = vadd.f32 %v3881, %v3940
    %v3945 = vadd.f32 %v3882, %v3941
    %v3946 = vadd.f32 %v3883, %v3942
    %v3947 = vadd.f32 %v3884, %v3943
    %3948 = vrot.lane.b32.xlu0 %v3060, 25
    %v3949 = vpop.permute.xlu0 %3948
    %3950 = vrot.lane.b32.xlu0 %v3062, 25
    %v3951 = vpop.permute.xlu0 %3950
    %3954 = vrot.lane.b32.xlu0 %v3059, 25
    %v3955 = vpop.permute.xlu0 %3954
    %3956 = vrot.lane.b32.xlu0 %v3061, 25
    %v3957 = vpop.permute.xlu0 %3956
    %v3958 = vsel %vm1032, %v3955, %v3949
    %v3959 = vsel %vm1032, %v3957, %v3951
    %v3964 = vsel %vm1032, %v3949, %v3955
    %v3965 = vsel %vm1032, %v3951, %v3957
    %s3966 = scalar_lea.vmem [#allocation9], 22
    %v3967 = vld [vmem:[%s3966] ss:$8 sm:$0x3]
    %v3969 = vperm.slane %v3967, 0
    %v3970 = vperm.slane %v3967, 1
    %v3973 = vmul.f32 %v3969, %v3964
    %v3974 = vmul.f32 %v3970, %v3958
    %v3975 = vmul.f32 %v3969, %v3965
    %v3976 = vmul.f32 %v3970, %v3959
    %v3977 = vadd.f32 %v3914, %v3973
    %v3978 = vadd.f32 %v3915, %v3974
    %v3979 = vadd.f32 %v3916, %v3975
    %v3980 = vadd.f32 %v3917, %v3976
    %s3981 = scalar_lea.vmem [#allocation9], 115
    %v3982 = vld [vmem:[%s3981] ss:$8 sm:$0x3]
    %v3984 = vperm.slane %v3982, 0
    %v3985 = vperm.slane %v3982, 1
    %v3988 = vmul.f32 %v3984, %v3964
    %v3989 = vmul.f32 %v3985, %v3958
    %v3990 = vmul.f32 %v3984, %v3965
    %v3991 = vmul.f32 %v3985, %v3959
    %v3992 = vadd.f32 %v3929, %v3988
    %v3993 = vadd.f32 %v3930, %v3989
    %v3994 = vadd.f32 %v3931, %v3990
    %v3995 = vadd.f32 %v3932, %v3991
    %s3996 = scalar_lea.vmem [#allocation9], 208
    %v3997 = vld [vmem:[%s3996] ss:$8 sm:$0x3]
    %v3999 = vperm.slane %v3997, 0
    %v4000 = vperm.slane %v3997, 1
    %v4003 = vmul.f32 %v3999, %v3964
    %v4004 = vmul.f32 %v4000, %v3958
    %v4005 = vmul.f32 %v3999, %v3965
    %v4006 = vmul.f32 %v4000, %v3959
    %v4007 = vadd.f32 %v3944, %v4003
    %v4008 = vadd.f32 %v3945, %v4004
    %v4009 = vadd.f32 %v3946, %v4005
    %v4010 = vadd.f32 %v3947, %v4006
    %4011 = vrot.lane.b32.xlu0 %v3060, 7
    %v4012 = vpop.permute.xlu0 %4011
    %4013 = vrot.lane.b32.xlu0 %v3062, 7
    %v4014 = vpop.permute.xlu0 %4013
    %4017 = vrot.lane.b32.xlu0 %v3059, 7
    %v4018 = vpop.permute.xlu0 %4017
    %4019 = vrot.lane.b32.xlu0 %v3061, 7
    %v4020 = vpop.permute.xlu0 %4019
    %v4021 = vsel %vm1096, %v4018, %v4012
    %v4022 = vsel %vm1096, %v4020, %v4014
    %v4027 = vsel %vm1096, %v4012, %v4018
    %v4028 = vsel %vm1096, %v4014, %v4020
    %s4029 = scalar_lea.vmem [#allocation9], 23
    %v4030 = vld [vmem:[%s4029] ss:$8 sm:$0x3]
    %v4032 = vperm.slane %v4030, 0
    %v4033 = vperm.slane %v4030, 1
    %v4036 = vmul.f32 %v4032, %v4027
    %v4037 = vmul.f32 %v4033, %v4021
    %v4038 = vmul.f32 %v4032, %v4028
    %v4039 = vmul.f32 %v4033, %v4022
    %v4040 = vadd.f32 %v3977, %v4036
    %v4041 = vadd.f32 %v3978, %v4037
    %v4042 = vadd.f32 %v3979, %v4038
    %v4043 = vadd.f32 %v3980, %v4039
    %s4044 = scalar_lea.vmem [#allocation9], 116
    %v4045 = vld [vmem:[%s4044] ss:$8 sm:$0x3]
    %v4047 = vperm.slane %v4045, 0
    %v4048 = vperm.slane %v4045, 1
    %v4051 = vmul.f32 %v4047, %v4027
    %v4052 = vmul.f32 %v4048, %v4021
    %v4053 = vmul.f32 %v4047, %v4028
    %v4054 = vmul.f32 %v4048, %v4022
    %v4055 = vadd.f32 %v3992, %v4051
    %v4056 = vadd.f32 %v3993, %v4052
    %v4057 = vadd.f32 %v3994, %v4053
    %v4058 = vadd.f32 %v3995, %v4054
    %s4059 = scalar_lea.vmem [#allocation9], 209
    %v4060 = vld [vmem:[%s4059] ss:$8 sm:$0x3]
    %v4062 = vperm.slane %v4060, 0
    %v4063 = vperm.slane %v4060, 1
    %v4066 = vmul.f32 %v4062, %v4027
    %v4067 = vmul.f32 %v4063, %v4021
    %v4068 = vmul.f32 %v4062, %v4028
    %v4069 = vmul.f32 %v4063, %v4022
    %v4070 = vadd.f32 %v4007, %v4066
    %v4071 = vadd.f32 %v4008, %v4067
    %v4072 = vadd.f32 %v4009, %v4068
    %v4073 = vadd.f32 %v4010, %v4069
    %4074 = vrot.lane.b32.xlu0 %v3060, 6
    %v4075 = vpop.permute.xlu0 %4074
    %4076 = vrot.lane.b32.xlu0 %v3062, 6
    %v4077 = vpop.permute.xlu0 %4076
    %4080 = vrot.lane.b32.xlu0 %v3059, 6
    %v4081 = vpop.permute.xlu0 %4080
    %4082 = vrot.lane.b32.xlu0 %v3061, 6
    %v4083 = vpop.permute.xlu0 %4082
    %v4084 = vsel %vm1160, %v4081, %v4075
    %v4085 = vsel %vm1160, %v4083, %v4077
    %v4090 = vsel %vm1160, %v4075, %v4081
    %v4091 = vsel %vm1160, %v4077, %v4083
    %s4092 = scalar_lea.vmem [#allocation9], 32
    %v4093 = vld [vmem:[%s4092] ss:$8 sm:$0x3]
    %v4095 = vperm.slane %v4093, 0
    %v4096 = vperm.slane %v4093, 1
    %v4099 = vmul.f32 %v4095, %v4090
    %v4100 = vmul.f32 %v4096, %v4084
    %v4101 = vmul.f32 %v4095, %v4091
    %v4102 = vmul.f32 %v4096, %v4085
    %v4103 = vadd.f32 %v4040, %v4099
    %v4104 = vadd.f32 %v4041, %v4100
    %v4105 = vadd.f32 %v4042, %v4101
    %v4106 = vadd.f32 %v4043, %v4102
    %s4107 = scalar_lea.vmem [#allocation9], 117
    %v4108 = vld [vmem:[%s4107] ss:$8 sm:$0x3]
    %v4110 = vperm.slane %v4108, 0
    %v4111 = vperm.slane %v4108, 1
    %v4114 = vmul.f32 %v4110, %v4090
    %v4115 = vmul.f32 %v4111, %v4084
    %v4116 = vmul.f32 %v4110, %v4091
    %v4117 = vmul.f32 %v4111, %v4085
    %v4118 = vadd.f32 %v4055, %v4114
    %v4119 = vadd.f32 %v4056, %v4115
    %v4120 = vadd.f32 %v4057, %v4116
    %v4121 = vadd.f32 %v4058, %v4117
    %s4122 = scalar_lea.vmem [#allocation9], 210
    %v4123 = vld [vmem:[%s4122] ss:$8 sm:$0x3]
    %v4125 = vperm.slane %v4123, 0
    %v4126 = vperm.slane %v4123, 1
    %v4129 = vmul.f32 %v4125, %v4090
    %v4130 = vmul.f32 %v4126, %v4084
    %v4131 = vmul.f32 %v4125, %v4091
    %v4132 = vmul.f32 %v4126, %v4085
    %v4133 = vadd.f32 %v4070, %v4129
    %v4134 = vadd.f32 %v4071, %v4130
    %v4135 = vadd.f32 %v4072, %v4131
    %v4136 = vadd.f32 %v4073, %v4132
    %4137 = vrot.lane.b32.xlu0 %v3060, 5
    %v4138 = vpop.permute.xlu0 %4137
    %4139 = vrot.lane.b32.xlu0 %v3062, 5
    %v4140 = vpop.permute.xlu0 %4139
    %4143 = vrot.lane.b32.xlu0 %v3059, 5
    %v4144 = vpop.permute.xlu0 %4143
    %4145 = vrot.lane.b32.xlu0 %v3061, 5
    %v4146 = vpop.permute.xlu0 %4145
    %v4147 = vsel %vm1224, %v4144, %v4138
    %v4148 = vsel %vm1224, %v4146, %v4140
    %v4153 = vsel %vm1224, %v4138, %v4144
    %v4154 = vsel %vm1224, %v4140, %v4146
    %s4155 = scalar_lea.vmem [#allocation9], 33
    %v4156 = vld [vmem:[%s4155] ss:$8 sm:$0x3]
    %v4158 = vperm.slane %v4156, 0
    %v4159 = vperm.slane %v4156, 1
    %v4162 = vmul.f32 %v4158, %v4153
    %v4163 = vmul.f32 %v4159, %v4147
    %v4164 = vmul.f32 %v4158, %v4154
    %v4165 = vmul.f32 %v4159, %v4148
    %v4166 = vadd.f32 %v4103, %v4162
    %v4167 = vadd.f32 %v4104, %v4163
    %v4168 = vadd.f32 %v4105, %v4164
    %v4169 = vadd.f32 %v4106, %v4165
    %s4170 = scalar_lea.vmem [#allocation9], 118
    %v4171 = vld [vmem:[%s4170] ss:$8 sm:$0x3]
    %v4173 = vperm.slane %v4171, 0
    %v4174 = vperm.slane %v4171, 1
    %v4177 = vmul.f32 %v4173, %v4153
    %v4178 = vmul.f32 %v4174, %v4147
    %v4179 = vmul.f32 %v4173, %v4154
    %v4180 = vmul.f32 %v4174, %v4148
    %v4181 = vadd.f32 %v4118, %v4177
    %v4182 = vadd.f32 %v4119, %v4178
    %v4183 = vadd.f32 %v4120, %v4179
    %v4184 = vadd.f32 %v4121, %v4180
    %s4185 = scalar_lea.vmem [#allocation9], 211
    %v4186 = vld [vmem:[%s4185] ss:$8 sm:$0x3]
    %v4188 = vperm.slane %v4186, 0
    %v4189 = vperm.slane %v4186, 1
    %v4192 = vmul.f32 %v4188, %v4153
    %v4193 = vmul.f32 %v4189, %v4147
    %v4194 = vmul.f32 %v4188, %v4154
    %v4195 = vmul.f32 %v4189, %v4148
    %v4196 = vadd.f32 %v4133, %v4192
    %v4197 = vadd.f32 %v4134, %v4193
    %v4198 = vadd.f32 %v4135, %v4194
    %v4199 = vadd.f32 %v4136, %v4195
    %4200 = vrot.lane.b32.xlu0 %v3060, 4
    %v4201 = vpop.permute.xlu0 %4200
    %4202 = vrot.lane.b32.xlu0 %v3062, 4
    %v4203 = vpop.permute.xlu0 %4202
    %4206 = vrot.lane.b32.xlu0 %v3059, 4
    %v4207 = vpop.permute.xlu0 %4206
    %4208 = vrot.lane.b32.xlu0 %v3061, 4
    %v4209 = vpop.permute.xlu0 %4208
    %v4210 = vsel %vm1288, %v4207, %v4201
    %v4211 = vsel %vm1288, %v4209, %v4203
    %v4216 = vsel %vm1288, %v4201, %v4207
    %v4217 = vsel %vm1288, %v4203, %v4209
    %s4218 = scalar_lea.vmem [#allocation9], 34
    %v4219 = vld [vmem:[%s4218] ss:$8 sm:$0x3]
    %v4221 = vperm.slane %v4219, 0
    %v4222 = vperm.slane %v4219, 1
    %v4225 = vmul.f32 %v4221, %v4216
    %v4226 = vmul.f32 %v4222, %v4210
    %v4227 = vmul.f32 %v4221, %v4217
    %v4228 = vmul.f32 %v4222, %v4211
    %v4229 = vadd.f32 %v4166, %v4225
    %v4230 = vadd.f32 %v4167, %v4226
    %v4231 = vadd.f32 %v4168, %v4227
    %v4232 = vadd.f32 %v4169, %v4228
    %s4233 = scalar_lea.vmem [#allocation9], 119
    %v4234 = vld [vmem:[%s4233] ss:$8 sm:$0x3]
    %v4236 = vperm.slane %v4234, 0
    %v4237 = vperm.slane %v4234, 1
    %v4240 = vmul.f32 %v4236, %v4216
    %v4241 = vmul.f32 %v4237, %v4210
    %v4242 = vmul.f32 %v4236, %v4217
    %v4243 = vmul.f32 %v4237, %v4211
    %v4244 = vadd.f32 %v4181, %v4240
    %v4245 = vadd.f32 %v4182, %v4241
    %v4246 = vadd.f32 %v4183, %v4242
    %v4247 = vadd.f32 %v4184, %v4243
    %s4248 = scalar_lea.vmem [#allocation9], 212
    %v4249 = vld [vmem:[%s4248] ss:$8 sm:$0x3]
    %v4251 = vperm.slane %v4249, 0
    %v4252 = vperm.slane %v4249, 1
    %v4255 = vmul.f32 %v4251, %v4216
    %v4256 = vmul.f32 %v4252, %v4210
    %v4257 = vmul.f32 %v4251, %v4217
    %v4258 = vmul.f32 %v4252, %v4211
    %v4259 = vadd.f32 %v4196, %v4255
    %v4260 = vadd.f32 %v4197, %v4256
    %v4261 = vadd.f32 %v4198, %v4257
    %v4262 = vadd.f32 %v4199, %v4258
    %4263 = vrot.lane.b32.xlu0 %v3060, 3
    %v4264 = vpop.permute.xlu0 %4263
    %4265 = vrot.lane.b32.xlu0 %v3062, 3
    %v4266 = vpop.permute.xlu0 %4265
    %4269 = vrot.lane.b32.xlu0 %v3059, 3
    %v4270 = vpop.permute.xlu0 %4269
    %4271 = vrot.lane.b32.xlu0 %v3061, 3
    %v4272 = vpop.permute.xlu0 %4271
    %v4273 = vsel %vm1352, %v4270, %v4264
    %v4274 = vsel %vm1352, %v4272, %v4266
    %v4279 = vsel %vm1352, %v4264, %v4270
    %v4280 = vsel %vm1352, %v4266, %v4272
    %s4281 = scalar_lea.vmem [#allocation9], 35
    %v4282 = vld [vmem:[%s4281] ss:$8 sm:$0x3]
    %v4284 = vperm.slane %v4282, 0
    %v4285 = vperm.slane %v4282, 1
    %v4288 = vmul.f32 %v4284, %v4279
    %v4289 = vmul.f32 %v4285, %v4273
    %v4290 = vmul.f32 %v4284, %v4280
    %v4291 = vmul.f32 %v4285, %v4274
    %v4292 = vadd.f32 %v4229, %v4288
    %v4293 = vadd.f32 %v4230, %v4289
    %v4294 = vadd.f32 %v4231, %v4290
    %v4295 = vadd.f32 %v4232, %v4291
    %s4296 = scalar_lea.vmem [#allocation9], 128
    %v4297 = vld [vmem:[%s4296] ss:$8 sm:$0x3]
    %v4299 = vperm.slane %v4297, 0
    %v4300 = vperm.slane %v4297, 1
    %v4303 = vmul.f32 %v4299, %v4279
    %v4304 = vmul.f32 %v4300, %v4273
    %v4305 = vmul.f32 %v4299, %v4280
    %v4306 = vmul.f32 %v4300, %v4274
    %v4307 = vadd.f32 %v4244, %v4303
    %v4308 = vadd.f32 %v4245, %v4304
    %v4309 = vadd.f32 %v4246, %v4305
    %v4310 = vadd.f32 %v4247, %v4306
    %s4311 = scalar_lea.vmem [#allocation9], 213
    %v4312 = vld [vmem:[%s4311] ss:$8 sm:$0x3]
    %v4314 = vperm.slane %v4312, 0
    %v4315 = vperm.slane %v4312, 1
    %v4318 = vmul.f32 %v4314, %v4279
    %v4319 = vmul.f32 %v4315, %v4273
    %v4320 = vmul.f32 %v4314, %v4280
    %v4321 = vmul.f32 %v4315, %v4274
    %v4322 = vadd.f32 %v4259, %v4318
    %v4323 = vadd.f32 %v4260, %v4319
    %v4324 = vadd.f32 %v4261, %v4320
    %v4325 = vadd.f32 %v4262, %v4321
    %4326 = vrot.lane.b32.xlu0 %v3060, 2
    %v4327 = vpop.permute.xlu0 %4326
    %4328 = vrot.lane.b32.xlu0 %v3062, 2
    %v4329 = vpop.permute.xlu0 %4328
    %4332 = vrot.lane.b32.xlu0 %v3059, 2
    %v4333 = vpop.permute.xlu0 %4332
    %4334 = vrot.lane.b32.xlu0 %v3061, 2
    %v4335 = vpop.permute.xlu0 %4334
    %v4336 = vsel %vm1416, %v4333, %v4327
    %v4337 = vsel %vm1416, %v4335, %v4329
    %v4342 = vsel %vm1416, %v4327, %v4333
    %v4343 = vsel %vm1416, %v4329, %v4335
    %s4344 = scalar_lea.vmem [#allocation9], 36
    %v4345 = vld [vmem:[%s4344] ss:$8 sm:$0x3]
    %v4347 = vperm.slane %v4345, 0
    %v4348 = vperm.slane %v4345, 1
    %v4351 = vmul.f32 %v4347, %v4342
    %v4352 = vmul.f32 %v4348, %v4336
    %v4353 = vmul.f32 %v4347, %v4343
    %v4354 = vmul.f32 %v4348, %v4337
    %v4355 = vadd.f32 %v4292, %v4351
    %v4356 = vadd.f32 %v4293, %v4352
    %v4357 = vadd.f32 %v4294, %v4353
    %v4358 = vadd.f32 %v4295, %v4354
    %s4359 = scalar_lea.vmem [#allocation9], 129
    %v4360 = vld [vmem:[%s4359] ss:$8 sm:$0x3]
    %v4362 = vperm.slane %v4360, 0
    %v4363 = vperm.slane %v4360, 1
    %v4366 = vmul.f32 %v4362, %v4342
    %v4367 = vmul.f32 %v4363, %v4336
    %v4368 = vmul.f32 %v4362, %v4343
    %v4369 = vmul.f32 %v4363, %v4337
    %v4370 = vadd.f32 %v4307, %v4366
    %v4371 = vadd.f32 %v4308, %v4367
    %v4372 = vadd.f32 %v4309, %v4368
    %v4373 = vadd.f32 %v4310, %v4369
    %s4374 = scalar_lea.vmem [#allocation9], 214
    %v4375 = vld [vmem:[%s4374] ss:$8 sm:$0x3]
    %v4377 = vperm.slane %v4375, 0
    %v4378 = vperm.slane %v4375, 1
    %v4381 = vmul.f32 %v4377, %v4342
    %v4382 = vmul.f32 %v4378, %v4336
    %v4383 = vmul.f32 %v4377, %v4343
    %v4384 = vmul.f32 %v4378, %v4337
    %v4385 = vadd.f32 %v4322, %v4381
    %v4386 = vadd.f32 %v4323, %v4382
    %v4387 = vadd.f32 %v4324, %v4383
    %v4388 = vadd.f32 %v4325, %v4384
    %4389 = vrot.lane.b32.xlu0 %v3060, 1
    %v4390 = vpop.permute.xlu0 %4389
    %4391 = vrot.lane.b32.xlu0 %v3062, 1
    %v4392 = vpop.permute.xlu0 %4391
    %4395 = vrot.lane.b32.xlu0 %v3059, 1
    %v4396 = vpop.permute.xlu0 %4395
    %4397 = vrot.lane.b32.xlu0 %v3061, 1
    %v4398 = vpop.permute.xlu0 %4397
    %v4399 = vsel %vm1480, %v4396, %v4390
    %v4400 = vsel %vm1480, %v4398, %v4392
    %v4405 = vsel %vm1480, %v4390, %v4396
    %v4406 = vsel %vm1480, %v4392, %v4398
    %s4407 = scalar_lea.vmem [#allocation9], 37
    %v4408 = vld [vmem:[%s4407] ss:$8 sm:$0x3]
    %v4410 = vperm.slane %v4408, 0
    %v4411 = vperm.slane %v4408, 1
    %v4414 = vmul.f32 %v4410, %v4405
    %v4415 = vmul.f32 %v4411, %v4399
    %v4416 = vmul.f32 %v4410, %v4406
    %v4417 = vmul.f32 %v4411, %v4400
    %v4418 = vadd.f32 %v4355, %v4414
    %v4419 = vadd.f32 %v4356, %v4415
    %v4420 = vadd.f32 %v4357, %v4416
    %v4421 = vadd.f32 %v4358, %v4417
    %s4422 = scalar_lea.vmem [#allocation9], 130
    %v4423 = vld [vmem:[%s4422] ss:$8 sm:$0x3]
    %v4425 = vperm.slane %v4423, 0
    %v4426 = vperm.slane %v4423, 1
    %v4429 = vmul.f32 %v4425, %v4405
    %v4430 = vmul.f32 %v4426, %v4399
    %v4431 = vmul.f32 %v4425, %v4406
    %v4432 = vmul.f32 %v4426, %v4400
    %v4433 = vadd.f32 %v4370, %v4429
    %v4434 = vadd.f32 %v4371, %v4430
    %v4435 = vadd.f32 %v4372, %v4431
    %v4436 = vadd.f32 %v4373, %v4432
    %s4437 = scalar_lea.vmem [#allocation9], 215
    %v4438 = vld [vmem:[%s4437] ss:$8 sm:$0x3]
    %v4440 = vperm.slane %v4438, 0
    %v4441 = vperm.slane %v4438, 1
    %v4444 = vmul.f32 %v4440, %v4405
    %v4445 = vmul.f32 %v4441, %v4399
    %v4446 = vmul.f32 %v4440, %v4406
    %v4447 = vmul.f32 %v4441, %v4400
    %v4448 = vadd.f32 %v4385, %v4444
    %v4449 = vadd.f32 %v4386, %v4445
    %v4450 = vadd.f32 %v4387, %v4446
    %v4451 = vadd.f32 %v4388, %v4447
    %s4452 = scalar_lea.vmem [#allocation9], 38
    %v4453 = vld [vmem:[%s4452] ss:$8 sm:$0x3]
    %v4455 = vperm.slane %v4453, 0
    %v4456 = vperm.slane %v4453, 1
    %v4459 = vmul.f32 %v4455, %v3059
    %v4460 = vmul.f32 %v4456, %v3060
    %v4461 = vmul.f32 %v4455, %v3061
    %v4462 = vmul.f32 %v4456, %v3062
    %v4463 = vadd.f32 %v4418, %v4459
    %v4464 = vadd.f32 %v4419, %v4460
    %v4465 = vadd.f32 %v4420, %v4461
    %v4466 = vadd.f32 %v4421, %v4462
    %s4467 = scalar_lea.vmem [#allocation9], 131
    %v4468 = vld [vmem:[%s4467] ss:$8 sm:$0x3]
    %v4470 = vperm.slane %v4468, 0
    %v4471 = vperm.slane %v4468, 1
    %v4474 = vmul.f32 %v4470, %v3059
    %v4475 = vmul.f32 %v4471, %v3060
    %v4476 = vmul.f32 %v4470, %v3061
    %v4477 = vmul.f32 %v4471, %v3062
    %v4478 = vadd.f32 %v4433, %v4474
    %v4479 = vadd.f32 %v4434, %v4475
    %v4480 = vadd.f32 %v4435, %v4476
    %v4481 = vadd.f32 %v4436, %v4477
    %s4482 = scalar_lea.vmem [#allocation9], 224
    %v4483 = vld [vmem:[%s4482] ss:$8 sm:$0x3]
    %v4485 = vperm.slane %v4483, 0
    %v4486 = vperm.slane %v4483, 1
    %v4489 = vmul.f32 %v4485, %v3059
    %v4490 = vmul.f32 %v4486, %v3060
    %v4491 = vmul.f32 %v4485, %v3061
    %v4492 = vmul.f32 %v4486, %v3062
    %v4493 = vadd.f32 %v4448, %v4489
    %v4494 = vadd.f32 %v4449, %v4490
    %v4495 = vadd.f32 %v4450, %v4491
    %v4496 = vadd.f32 %v4451, %v4492
    %4497 = vrot.lane.b32.xlu0 %v3059, 127
    %v4498 = vpop.permute.xlu0 %4497
    %4499 = vrot.lane.b32.xlu0 %v3060, 127
    %v4500 = vpop.permute.xlu0 %4499
    %4501 = vrot.lane.b32.xlu0 %v3061, 127
    %v4502 = vpop.permute.xlu0 %4501
    %4503 = vrot.lane.b32.xlu0 %v3062, 127
    %v4504 = vpop.permute.xlu0 %4503
    %v4505 = vsel %vm1587, %v4498, %v4500
    %v4506 = vsel %vm1587, %v4502, %v4504
    %v4513 = vsel %vm1587, %v4500, %v4498
    %v4514 = vsel %vm1587, %v4504, %v4502
    %s4515 = scalar_lea.vmem [#allocation9], 39
    %v4516 = vld [vmem:[%s4515] ss:$8 sm:$0x3]
    %v4518 = vperm.slane %v4516, 0
    %v4519 = vperm.slane %v4516, 1
    %v4522 = vmul.f32 %v4518, %v4505
    %v4523 = vmul.f32 %v4519, %v4513
    %v4524 = vmul.f32 %v4518, %v4506
    %v4525 = vmul.f32 %v4519, %v4514
    %v4526 = vadd.f32 %v4463, %v4522
    %v4527 = vadd.f32 %v4464, %v4523
    %v4528 = vadd.f32 %v4465, %v4524
    %v4529 = vadd.f32 %v4466, %v4525
    %s4530 = scalar_lea.vmem [#allocation9], 132
    %v4531 = vld [vmem:[%s4530] ss:$8 sm:$0x3]
    %v4533 = vperm.slane %v4531, 0
    %v4534 = vperm.slane %v4531, 1
    %v4537 = vmul.f32 %v4533, %v4505
    %v4538 = vmul.f32 %v4534, %v4513
    %v4539 = vmul.f32 %v4533, %v4506
    %v4540 = vmul.f32 %v4534, %v4514
    %v4541 = vadd.f32 %v4478, %v4537
    %v4542 = vadd.f32 %v4479, %v4538
    %v4543 = vadd.f32 %v4480, %v4539
    %v4544 = vadd.f32 %v4481, %v4540
    %s4545 = scalar_lea.vmem [#allocation9], 225
    %v4546 = vld [vmem:[%s4545] ss:$8 sm:$0x3]
    %v4548 = vperm.slane %v4546, 0
    %v4549 = vperm.slane %v4546, 1
    %v4552 = vmul.f32 %v4548, %v4505
    %v4553 = vmul.f32 %v4549, %v4513
    %v4554 = vmul.f32 %v4548, %v4506
    %v4555 = vmul.f32 %v4549, %v4514
    %v4556 = vadd.f32 %v4493, %v4552
    %v4557 = vadd.f32 %v4494, %v4553
    %v4558 = vadd.f32 %v4495, %v4554
    %v4559 = vadd.f32 %v4496, %v4555
    %4560 = vrot.lane.b32.xlu0 %v3059, 126
    %v4561 = vpop.permute.xlu0 %4560
    %4562 = vrot.lane.b32.xlu0 %v3060, 126
    %v4563 = vpop.permute.xlu0 %4562
    %4564 = vrot.lane.b32.xlu0 %v3061, 126
    %v4565 = vpop.permute.xlu0 %4564
    %4566 = vrot.lane.b32.xlu0 %v3062, 126
    %v4567 = vpop.permute.xlu0 %4566
    %v4568 = vsel %vm1651, %v4561, %v4563
    %v4569 = vsel %vm1651, %v4565, %v4567
    %v4576 = vsel %vm1651, %v4563, %v4561
    %v4577 = vsel %vm1651, %v4567, %v4565
    %s4578 = scalar_lea.vmem [#allocation9], 48
    %v4579 = vld [vmem:[%s4578] ss:$8 sm:$0x3]
    %v4581 = vperm.slane %v4579, 0
    %v4582 = vperm.slane %v4579, 1
    %v4585 = vmul.f32 %v4581, %v4568
    %v4586 = vmul.f32 %v4582, %v4576
    %v4587 = vmul.f32 %v4581, %v4569
    %v4588 = vmul.f32 %v4582, %v4577
    %v4589 = vadd.f32 %v4526, %v4585
    %v4590 = vadd.f32 %v4527, %v4586
    %v4591 = vadd.f32 %v4528, %v4587
    %v4592 = vadd.f32 %v4529, %v4588
    %s4593 = scalar_lea.vmem [#allocation9], 133
    %v4594 = vld [vmem:[%s4593] ss:$8 sm:$0x3]
    %v4596 = vperm.slane %v4594, 0
    %v4597 = vperm.slane %v4594, 1
    %v4600 = vmul.f32 %v4596, %v4568
    %v4601 = vmul.f32 %v4597, %v4576
    %v4602 = vmul.f32 %v4596, %v4569
    %v4603 = vmul.f32 %v4597, %v4577
    %v4604 = vadd.f32 %v4541, %v4600
    %v4605 = vadd.f32 %v4542, %v4601
    %v4606 = vadd.f32 %v4543, %v4602
    %v4607 = vadd.f32 %v4544, %v4603
    %s4608 = scalar_lea.vmem [#allocation9], 226
    %v4609 = vld [vmem:[%s4608] ss:$8 sm:$0x3]
    %v4611 = vperm.slane %v4609, 0
    %v4612 = vperm.slane %v4609, 1
    %v4615 = vmul.f32 %v4611, %v4568
    %v4616 = vmul.f32 %v4612, %v4576
    %v4617 = vmul.f32 %v4611, %v4569
    %v4618 = vmul.f32 %v4612, %v4577
    %v4619 = vadd.f32 %v4556, %v4615
    %v4620 = vadd.f32 %v4557, %v4616
    %v4621 = vadd.f32 %v4558, %v4617
    %v4622 = vadd.f32 %v4559, %v4618
    %4623 = vrot.lane.b32.xlu0 %v3059, 125
    %v4624 = vpop.permute.xlu0 %4623
    %4625 = vrot.lane.b32.xlu0 %v3060, 125
    %v4626 = vpop.permute.xlu0 %4625
    %4627 = vrot.lane.b32.xlu0 %v3061, 125
    %v4628 = vpop.permute.xlu0 %4627
    %4629 = vrot.lane.b32.xlu0 %v3062, 125
    %v4630 = vpop.permute.xlu0 %4629
    %v4631 = vsel %vm1715, %v4624, %v4626
    %v4632 = vsel %vm1715, %v4628, %v4630
    %v4639 = vsel %vm1715, %v4626, %v4624
    %v4640 = vsel %vm1715, %v4630, %v4628
    %s4641 = scalar_lea.vmem [#allocation9], 49
    %v4642 = vld [vmem:[%s4641] ss:$8 sm:$0x3]
    %v4644 = vperm.slane %v4642, 0
    %v4645 = vperm.slane %v4642, 1
    %v4648 = vmul.f32 %v4644, %v4631
    %v4649 = vmul.f32 %v4645, %v4639
    %v4650 = vmul.f32 %v4644, %v4632
    %v4651 = vmul.f32 %v4645, %v4640
    %v4652 = vadd.f32 %v4589, %v4648
    %v4653 = vadd.f32 %v4590, %v4649
    %v4654 = vadd.f32 %v4591, %v4650
    %v4655 = vadd.f32 %v4592, %v4651
    %s4656 = scalar_lea.vmem [#allocation9], 134
    %v4657 = vld [vmem:[%s4656] ss:$8 sm:$0x3]
    %v4659 = vperm.slane %v4657, 0
    %v4660 = vperm.slane %v4657, 1
    %v4663 = vmul.f32 %v4659, %v4631
    %v4664 = vmul.f32 %v4660, %v4639
    %v4665 = vmul.f32 %v4659, %v4632
    %v4666 = vmul.f32 %v4660, %v4640
    %v4667 = vadd.f32 %v4604, %v4663
    %v4668 = vadd.f32 %v4605, %v4664
    %v4669 = vadd.f32 %v4606, %v4665
    %v4670 = vadd.f32 %v4607, %v4666
    %s4671 = scalar_lea.vmem [#allocation9], 227
    %v4672 = vld [vmem:[%s4671] ss:$8 sm:$0x3]
    %v4674 = vperm.slane %v4672, 0
    %v4675 = vperm.slane %v4672, 1
    %v4678 = vmul.f32 %v4674, %v4631
    %v4679 = vmul.f32 %v4675, %v4639
    %v4680 = vmul.f32 %v4674, %v4632
    %v4681 = vmul.f32 %v4675, %v4640
    %v4682 = vadd.f32 %v4619, %v4678
    %v4683 = vadd.f32 %v4620, %v4679
    %v4684 = vadd.f32 %v4621, %v4680
    %v4685 = vadd.f32 %v4622, %v4681
    %4686 = vrot.lane.b32.xlu0 %v3059, 124
    %v4687 = vpop.permute.xlu0 %4686
    %4688 = vrot.lane.b32.xlu0 %v3060, 124
    %v4689 = vpop.permute.xlu0 %4688
    %4690 = vrot.lane.b32.xlu0 %v3061, 124
    %v4691 = vpop.permute.xlu0 %4690
    %4692 = vrot.lane.b32.xlu0 %v3062, 124
    %v4693 = vpop.permute.xlu0 %4692
    %v4694 = vsel %vm1779, %v4687, %v4689
    %v4695 = vsel %vm1779, %v4691, %v4693
    %v4702 = vsel %vm1779, %v4689, %v4687
    %v4703 = vsel %vm1779, %v4693, %v4691
    %s4704 = scalar_lea.vmem [#allocation9], 50
    %v4705 = vld [vmem:[%s4704] ss:$8 sm:$0x3]
    %v4707 = vperm.slane %v4705, 0
    %v4708 = vperm.slane %v4705, 1
    %v4711 = vmul.f32 %v4707, %v4694
    %v4712 = vmul.f32 %v4708, %v4702
    %v4713 = vmul.f32 %v4707, %v4695
    %v4714 = vmul.f32 %v4708, %v4703
    %v4715 = vadd.f32 %v4652, %v4711
    %v4716 = vadd.f32 %v4653, %v4712
    %v4717 = vadd.f32 %v4654, %v4713
    %v4718 = vadd.f32 %v4655, %v4714
    %s4719 = scalar_lea.vmem [#allocation9], 135
    %v4720 = vld [vmem:[%s4719] ss:$8 sm:$0x3]
    %v4722 = vperm.slane %v4720, 0
    %v4723 = vperm.slane %v4720, 1
    %v4726 = vmul.f32 %v4722, %v4694
    %v4727 = vmul.f32 %v4723, %v4702
    %v4728 = vmul.f32 %v4722, %v4695
    %v4729 = vmul.f32 %v4723, %v4703
    %v4730 = vadd.f32 %v4667, %v4726
    %v4731 = vadd.f32 %v4668, %v4727
    %v4732 = vadd.f32 %v4669, %v4728
    %v4733 = vadd.f32 %v4670, %v4729
    %s4734 = scalar_lea.vmem [#allocation9], 228
    %v4735 = vld [vmem:[%s4734] ss:$8 sm:$0x3]
    %v4737 = vperm.slane %v4735, 0
    %v4738 = vperm.slane %v4735, 1
    %v4741 = vmul.f32 %v4737, %v4694
    %v4742 = vmul.f32 %v4738, %v4702
    %v4743 = vmul.f32 %v4737, %v4695
    %v4744 = vmul.f32 %v4738, %v4703
    %v4745 = vadd.f32 %v4682, %v4741
    %v4746 = vadd.f32 %v4683, %v4742
    %v4747 = vadd.f32 %v4684, %v4743
    %v4748 = vadd.f32 %v4685, %v4744
    %4749 = vrot.lane.b32.xlu0 %v3059, 123
    %v4750 = vpop.permute.xlu0 %4749
    %4751 = vrot.lane.b32.xlu0 %v3060, 123
    %v4752 = vpop.permute.xlu0 %4751
    %4753 = vrot.lane.b32.xlu0 %v3061, 123
    %v4754 = vpop.permute.xlu0 %4753
    %4755 = vrot.lane.b32.xlu0 %v3062, 123
    %v4756 = vpop.permute.xlu0 %4755
    %v4757 = vsel %vm1843, %v4750, %v4752
    %v4758 = vsel %vm1843, %v4754, %v4756
    %v4765 = vsel %vm1843, %v4752, %v4750
    %v4766 = vsel %vm1843, %v4756, %v4754
    %s4767 = scalar_lea.vmem [#allocation9], 51
    %v4768 = vld [vmem:[%s4767] ss:$8 sm:$0x3]
    %v4770 = vperm.slane %v4768, 0
    %v4771 = vperm.slane %v4768, 1
    %v4774 = vmul.f32 %v4770, %v4757
    %v4775 = vmul.f32 %v4771, %v4765
    %v4776 = vmul.f32 %v4770, %v4758
    %v4777 = vmul.f32 %v4771, %v4766
    %v4778 = vadd.f32 %v4715, %v4774
    %v4779 = vadd.f32 %v4716, %v4775
    %v4780 = vadd.f32 %v4717, %v4776
    %v4781 = vadd.f32 %v4718, %v4777
    %s4782 = scalar_lea.vmem [#allocation9], 144
    %v4783 = vld [vmem:[%s4782] ss:$8 sm:$0x3]
    %v4785 = vperm.slane %v4783, 0
    %v4786 = vperm.slane %v4783, 1
    %v4789 = vmul.f32 %v4785, %v4757
    %v4790 = vmul.f32 %v4786, %v4765
    %v4791 = vmul.f32 %v4785, %v4758
    %v4792 = vmul.f32 %v4786, %v4766
    %v4793 = vadd.f32 %v4730, %v4789
    %v4794 = vadd.f32 %v4731, %v4790
    %v4795 = vadd.f32 %v4732, %v4791
    %v4796 = vadd.f32 %v4733, %v4792
    %s4797 = scalar_lea.vmem [#allocation9], 229
    %v4798 = vld [vmem:[%s4797] ss:$8 sm:$0x3]
    %v4800 = vperm.slane %v4798, 0
    %v4801 = vperm.slane %v4798, 1
    %v4804 = vmul.f32 %v4800, %v4757
    %v4805 = vmul.f32 %v4801, %v4765
    %v4806 = vmul.f32 %v4800, %v4758
    %v4807 = vmul.f32 %v4801, %v4766
    %v4808 = vadd.f32 %v4745, %v4804
    %v4809 = vadd.f32 %v4746, %v4805
    %v4810 = vadd.f32 %v4747, %v4806
    %v4811 = vadd.f32 %v4748, %v4807
    %4812 = vrot.lane.b32.xlu0 %v3059, 122
    %v4813 = vpop.permute.xlu0 %4812
    %4814 = vrot.lane.b32.xlu0 %v3060, 122
    %v4815 = vpop.permute.xlu0 %4814
    %4816 = vrot.lane.b32.xlu0 %v3061, 122
    %v4817 = vpop.permute.xlu0 %4816
    %4818 = vrot.lane.b32.xlu0 %v3062, 122
    %v4819 = vpop.permute.xlu0 %4818
    %v4820 = vsel %vm1907, %v4813, %v4815
    %v4821 = vsel %vm1907, %v4817, %v4819
    %v4828 = vsel %vm1907, %v4815, %v4813
    %v4829 = vsel %vm1907, %v4819, %v4817
    %s4830 = scalar_lea.vmem [#allocation9], 52
    %v4831 = vld [vmem:[%s4830] ss:$8 sm:$0x3]
    %v4833 = vperm.slane %v4831, 0
    %v4834 = vperm.slane %v4831, 1
    %v4837 = vmul.f32 %v4833, %v4820
    %v4838 = vmul.f32 %v4834, %v4828
    %v4839 = vmul.f32 %v4833, %v4821
    %v4840 = vmul.f32 %v4834, %v4829
    %v4841 = vadd.f32 %v4778, %v4837
    %v4842 = vadd.f32 %v4779, %v4838
    %v4843 = vadd.f32 %v4780, %v4839
    %v4844 = vadd.f32 %v4781, %v4840
    %s4845 = scalar_lea.vmem [#allocation9], 145
    %v4846 = vld [vmem:[%s4845] ss:$8 sm:$0x3]
    %v4848 = vperm.slane %v4846, 0
    %v4849 = vperm.slane %v4846, 1
    %v4852 = vmul.f32 %v4848, %v4820
    %v4853 = vmul.f32 %v4849, %v4828
    %v4854 = vmul.f32 %v4848, %v4821
    %v4855 = vmul.f32 %v4849, %v4829
    %v4856 = vadd.f32 %v4793, %v4852
    %v4857 = vadd.f32 %v4794, %v4853
    %v4858 = vadd.f32 %v4795, %v4854
    %v4859 = vadd.f32 %v4796, %v4855
    %s4860 = scalar_lea.vmem [#allocation9], 230
    %v4861 = vld [vmem:[%s4860] ss:$8 sm:$0x3]
    %v4863 = vperm.slane %v4861, 0
    %v4864 = vperm.slane %v4861, 1
    %v4867 = vmul.f32 %v4863, %v4820
    %v4868 = vmul.f32 %v4864, %v4828
    %v4869 = vmul.f32 %v4863, %v4821
    %v4870 = vmul.f32 %v4864, %v4829
    %v4871 = vadd.f32 %v4808, %v4867
    %v4872 = vadd.f32 %v4809, %v4868
    %v4873 = vadd.f32 %v4810, %v4869
    %v4874 = vadd.f32 %v4811, %v4870
    %4875 = vrot.lane.b32.xlu0 %v3059, 121
    %v4876 = vpop.permute.xlu0 %4875
    %4877 = vrot.lane.b32.xlu0 %v3060, 121
    %v4878 = vpop.permute.xlu0 %4877
    %4879 = vrot.lane.b32.xlu0 %v3061, 121
    %v4880 = vpop.permute.xlu0 %4879
    %4881 = vrot.lane.b32.xlu0 %v3062, 121
    %v4882 = vpop.permute.xlu0 %4881
    %v4883 = vsel %vm1971, %v4876, %v4878
    %v4884 = vsel %vm1971, %v4880, %v4882
    %v4891 = vsel %vm1971, %v4878, %v4876
    %v4892 = vsel %vm1971, %v4882, %v4880
    %s4893 = scalar_lea.vmem [#allocation9], 53
    %v4894 = vld [vmem:[%s4893] ss:$8 sm:$0x3]
    %v4896 = vperm.slane %v4894, 0
    %v4897 = vperm.slane %v4894, 1
    %v4900 = vmul.f32 %v4896, %v4883
    %v4901 = vmul.f32 %v4897, %v4891
    %v4902 = vmul.f32 %v4896, %v4884
    %v4903 = vmul.f32 %v4897, %v4892
    %v4904 = vadd.f32 %v4841, %v4900
    %v4905 = vadd.f32 %v4842, %v4901
    %v4906 = vadd.f32 %v4843, %v4902
    %v4907 = vadd.f32 %v4844, %v4903
    %s4908 = scalar_lea.vmem [#allocation9], 146
    %v4909 = vld [vmem:[%s4908] ss:$8 sm:$0x3]
    %v4911 = vperm.slane %v4909, 0
    %v4912 = vperm.slane %v4909, 1
    %v4915 = vmul.f32 %v4911, %v4883
    %v4916 = vmul.f32 %v4912, %v4891
    %v4917 = vmul.f32 %v4911, %v4884
    %v4918 = vmul.f32 %v4912, %v4892
    %v4919 = vadd.f32 %v4856, %v4915
    %v4920 = vadd.f32 %v4857, %v4916
    %v4921 = vadd.f32 %v4858, %v4917
    %v4922 = vadd.f32 %v4859, %v4918
    %s4923 = scalar_lea.vmem [#allocation9], 231
    %v4924 = vld [vmem:[%s4923] ss:$8 sm:$0x3]
    %v4926 = vperm.slane %v4924, 0
    %v4927 = vperm.slane %v4924, 1
    %v4930 = vmul.f32 %v4926, %v4883
    %v4931 = vmul.f32 %v4927, %v4891
    %v4932 = vmul.f32 %v4926, %v4884
    %v4933 = vmul.f32 %v4927, %v4892
    %v4934 = vadd.f32 %v4871, %v4930
    %v4935 = vadd.f32 %v4872, %v4931
    %v4936 = vadd.f32 %v4873, %v4932
    %v4937 = vadd.f32 %v4874, %v4933
    %4938 = vrot.lane.b32.xlu0 %v3059, 103
    %v4939 = vpop.permute.xlu0 %4938
    %4940 = vrot.lane.b32.xlu0 %v3060, 103
    %v4941 = vpop.permute.xlu0 %4940
    %4942 = vrot.lane.b32.xlu0 %v3061, 103
    %v4943 = vpop.permute.xlu0 %4942
    %4944 = vrot.lane.b32.xlu0 %v3062, 103
    %v4945 = vpop.permute.xlu0 %4944
    %v4946 = vsel %vm2035, %v4939, %v4941
    %v4947 = vsel %vm2035, %v4943, %v4945
    %v4954 = vsel %vm2035, %v4941, %v4939
    %v4955 = vsel %vm2035, %v4945, %v4943
    %s4956 = scalar_lea.vmem [#allocation9], 54
    %v4957 = vld [vmem:[%s4956] ss:$8 sm:$0x3]
    %v4959 = vperm.slane %v4957, 0
    %v4960 = vperm.slane %v4957, 1
    %v4963 = vmul.f32 %v4959, %v4946
    %v4964 = vmul.f32 %v4960, %v4954
    %v4965 = vmul.f32 %v4959, %v4947
    %v4966 = vmul.f32 %v4960, %v4955
    %v4967 = vadd.f32 %v4904, %v4963
    %v4968 = vadd.f32 %v4905, %v4964
    %v4969 = vadd.f32 %v4906, %v4965
    %v4970 = vadd.f32 %v4907, %v4966
    %s4971 = scalar_lea.vmem [#allocation9], 147
    %v4972 = vld [vmem:[%s4971] ss:$8 sm:$0x3]
    %v4974 = vperm.slane %v4972, 0
    %v4975 = vperm.slane %v4972, 1
    %v4978 = vmul.f32 %v4974, %v4946
    %v4979 = vmul.f32 %v4975, %v4954
    %v4980 = vmul.f32 %v4974, %v4947
    %v4981 = vmul.f32 %v4975, %v4955
    %v4982 = vadd.f32 %v4919, %v4978
    %v4983 = vadd.f32 %v4920, %v4979
    %v4984 = vadd.f32 %v4921, %v4980
    %v4985 = vadd.f32 %v4922, %v4981
    %s4986 = scalar_lea.vmem [#allocation9], 240
    %v4987 = vld [vmem:[%s4986] ss:$8 sm:$0x3]
    %v4989 = vperm.slane %v4987, 0
    %v4990 = vperm.slane %v4987, 1
    %v4993 = vmul.f32 %v4989, %v4946
    %v4994 = vmul.f32 %v4990, %v4954
    %v4995 = vmul.f32 %v4989, %v4947
    %v4996 = vmul.f32 %v4990, %v4955
    %v4997 = vadd.f32 %v4934, %v4993
    %v4998 = vadd.f32 %v4935, %v4994
    %v4999 = vadd.f32 %v4936, %v4995
    %v5000 = vadd.f32 %v4937, %v4996
    %5001 = vrot.lane.b32.xlu0 %v3059, 102
    %v5002 = vpop.permute.xlu0 %5001
    %5003 = vrot.lane.b32.xlu0 %v3060, 102
    %v5004 = vpop.permute.xlu0 %5003
    %5005 = vrot.lane.b32.xlu0 %v3061, 102
    %v5006 = vpop.permute.xlu0 %5005
    %5007 = vrot.lane.b32.xlu0 %v3062, 102
    %v5008 = vpop.permute.xlu0 %5007
    %v5009 = vsel %vm2099, %v5002, %v5004
    %v5010 = vsel %vm2099, %v5006, %v5008
    %v5017 = vsel %vm2099, %v5004, %v5002
    %v5018 = vsel %vm2099, %v5008, %v5006
    %s5019 = scalar_lea.vmem [#allocation9], 55
    %v5020 = vld [vmem:[%s5019] ss:$8 sm:$0x3]
    %v5022 = vperm.slane %v5020, 0
    %v5023 = vperm.slane %v5020, 1
    %v5026 = vmul.f32 %v5022, %v5009
    %v5027 = vmul.f32 %v5023, %v5017
    %v5028 = vmul.f32 %v5022, %v5010
    %v5029 = vmul.f32 %v5023, %v5018
    %v5030 = vadd.f32 %v4967, %v5026
    %v5031 = vadd.f32 %v4968, %v5027
    %v5032 = vadd.f32 %v4969, %v5028
    %v5033 = vadd.f32 %v4970, %v5029
    %s5034 = scalar_lea.vmem [#allocation9], 148
    %v5035 = vld [vmem:[%s5034] ss:$8 sm:$0x3]
    %v5037 = vperm.slane %v5035, 0
    %v5038 = vperm.slane %v5035, 1
    %v5041 = vmul.f32 %v5037, %v5009
    %v5042 = vmul.f32 %v5038, %v5017
    %v5043 = vmul.f32 %v5037, %v5010
    %v5044 = vmul.f32 %v5038, %v5018
    %v5045 = vadd.f32 %v4982, %v5041
    %v5046 = vadd.f32 %v4983, %v5042
    %v5047 = vadd.f32 %v4984, %v5043
    %v5048 = vadd.f32 %v4985, %v5044
    %s5049 = scalar_lea.vmem [#allocation9], 241
    %v5050 = vld [vmem:[%s5049] ss:$8 sm:$0x3]
    %v5052 = vperm.slane %v5050, 0
    %v5053 = vperm.slane %v5050, 1
    %v5056 = vmul.f32 %v5052, %v5009
    %v5057 = vmul.f32 %v5053, %v5017
    %v5058 = vmul.f32 %v5052, %v5010
    %v5059 = vmul.f32 %v5053, %v5018
    %v5060 = vadd.f32 %v4997, %v5056
    %v5061 = vadd.f32 %v4998, %v5057
    %v5062 = vadd.f32 %v4999, %v5058
    %v5063 = vadd.f32 %v5000, %v5059
    %5064 = vrot.lane.b32.xlu0 %v3059, 101
    %v5065 = vpop.permute.xlu0 %5064
    %5066 = vrot.lane.b32.xlu0 %v3060, 101
    %v5067 = vpop.permute.xlu0 %5066
    %5068 = vrot.lane.b32.xlu0 %v3061, 101
    %v5069 = vpop.permute.xlu0 %5068
    %5070 = vrot.lane.b32.xlu0 %v3062, 101
    %v5071 = vpop.permute.xlu0 %5070
    %v5072 = vsel %vm2163, %v5065, %v5067
    %v5073 = vsel %vm2163, %v5069, %v5071
    %v5080 = vsel %vm2163, %v5067, %v5065
    %v5081 = vsel %vm2163, %v5071, %v5069
    %s5082 = scalar_lea.vmem [#allocation9], 64
    %v5083 = vld [vmem:[%s5082] ss:$8 sm:$0x3]
    %v5085 = vperm.slane %v5083, 0
    %v5086 = vperm.slane %v5083, 1
    %v5089 = vmul.f32 %v5085, %v5072
    %v5090 = vmul.f32 %v5086, %v5080
    %v5091 = vmul.f32 %v5085, %v5073
    %v5092 = vmul.f32 %v5086, %v5081
    %v5093 = vadd.f32 %v5030, %v5089
    %v5094 = vadd.f32 %v5031, %v5090
    %v5095 = vadd.f32 %v5032, %v5091
    %v5096 = vadd.f32 %v5033, %v5092
    %s5097 = scalar_lea.vmem [#allocation9], 149
    %v5098 = vld [vmem:[%s5097] ss:$8 sm:$0x3]
    %v5100 = vperm.slane %v5098, 0
    %v5101 = vperm.slane %v5098, 1
    %v5104 = vmul.f32 %v5100, %v5072
    %v5105 = vmul.f32 %v5101, %v5080
    %v5106 = vmul.f32 %v5100, %v5073
    %v5107 = vmul.f32 %v5101, %v5081
    %v5108 = vadd.f32 %v5045, %v5104
    %v5109 = vadd.f32 %v5046, %v5105
    %v5110 = vadd.f32 %v5047, %v5106
    %v5111 = vadd.f32 %v5048, %v5107
    %s5112 = scalar_lea.vmem [#allocation9], 242
    %v5113 = vld [vmem:[%s5112] ss:$8 sm:$0x3]
    %v5115 = vperm.slane %v5113, 0
    %v5116 = vperm.slane %v5113, 1
    %v5119 = vmul.f32 %v5115, %v5072
    %v5120 = vmul.f32 %v5116, %v5080
    %v5121 = vmul.f32 %v5115, %v5073
    %v5122 = vmul.f32 %v5116, %v5081
    %v5123 = vadd.f32 %v5060, %v5119
    %v5124 = vadd.f32 %v5061, %v5120
    %v5125 = vadd.f32 %v5062, %v5121
    %v5126 = vadd.f32 %v5063, %v5122
    %5127 = vrot.lane.b32.xlu0 %v3059, 100
    %v5128 = vpop.permute.xlu0 %5127
    %5129 = vrot.lane.b32.xlu0 %v3060, 100
    %v5130 = vpop.permute.xlu0 %5129
    %5131 = vrot.lane.b32.xlu0 %v3061, 100
    %v5132 = vpop.permute.xlu0 %5131
    %5133 = vrot.lane.b32.xlu0 %v3062, 100
    %v5134 = vpop.permute.xlu0 %5133
    %v5135 = vsel %vm2227, %v5128, %v5130
    %v5136 = vsel %vm2227, %v5132, %v5134
    %v5143 = vsel %vm2227, %v5130, %v5128
    %v5144 = vsel %vm2227, %v5134, %v5132
    %s5145 = scalar_lea.vmem [#allocation9], 65
    %v5146 = vld [vmem:[%s5145] ss:$8 sm:$0x3]
    %v5148 = vperm.slane %v5146, 0
    %v5149 = vperm.slane %v5146, 1
    %v5152 = vmul.f32 %v5148, %v5135
    %v5153 = vmul.f32 %v5149, %v5143
    %v5154 = vmul.f32 %v5148, %v5136
    %v5155 = vmul.f32 %v5149, %v5144
    %v5156 = vadd.f32 %v5093, %v5152
    %v5157 = vadd.f32 %v5094, %v5153
    %v5158 = vadd.f32 %v5095, %v5154
    %v5159 = vadd.f32 %v5096, %v5155
    %s5160 = scalar_lea.vmem [#allocation9], 150
    %v5161 = vld [vmem:[%s5160] ss:$8 sm:$0x3]
    %v5163 = vperm.slane %v5161, 0
    %v5164 = vperm.slane %v5161, 1
    %v5167 = vmul.f32 %v5163, %v5135
    %v5168 = vmul.f32 %v5164, %v5143
    %v5169 = vmul.f32 %v5163, %v5136
    %v5170 = vmul.f32 %v5164, %v5144
    %v5171 = vadd.f32 %v5108, %v5167
    %v5172 = vadd.f32 %v5109, %v5168
    %v5173 = vadd.f32 %v5110, %v5169
    %v5174 = vadd.f32 %v5111, %v5170
    %s5175 = scalar_lea.vmem [#allocation9], 243
    %v5176 = vld [vmem:[%s5175] ss:$8 sm:$0x3]
    %v5178 = vperm.slane %v5176, 0
    %v5179 = vperm.slane %v5176, 1
    %v5182 = vmul.f32 %v5178, %v5135
    %v5183 = vmul.f32 %v5179, %v5143
    %v5184 = vmul.f32 %v5178, %v5136
    %v5185 = vmul.f32 %v5179, %v5144
    %v5186 = vadd.f32 %v5123, %v5182
    %v5187 = vadd.f32 %v5124, %v5183
    %v5188 = vadd.f32 %v5125, %v5184
    %v5189 = vadd.f32 %v5126, %v5185
    %5190 = vrot.lane.b32.xlu0 %v3059, 99
    %v5191 = vpop.permute.xlu0 %5190
    %5192 = vrot.lane.b32.xlu0 %v3060, 99
    %v5193 = vpop.permute.xlu0 %5192
    %5194 = vrot.lane.b32.xlu0 %v3061, 99
    %v5195 = vpop.permute.xlu0 %5194
    %5196 = vrot.lane.b32.xlu0 %v3062, 99
    %v5197 = vpop.permute.xlu0 %5196
    %v5198 = vsel %vm2291, %v5191, %v5193
    %v5199 = vsel %vm2291, %v5195, %v5197
    %v5206 = vsel %vm2291, %v5193, %v5191
    %v5207 = vsel %vm2291, %v5197, %v5195
    %s5208 = scalar_lea.vmem [#allocation9], 66
    %v5209 = vld [vmem:[%s5208] ss:$8 sm:$0x3]
    %v5211 = vperm.slane %v5209, 0
    %v5212 = vperm.slane %v5209, 1
    %v5215 = vmul.f32 %v5211, %v5198
    %v5216 = vmul.f32 %v5212, %v5206
    %v5217 = vmul.f32 %v5211, %v5199
    %v5218 = vmul.f32 %v5212, %v5207
    %v5219 = vadd.f32 %v5156, %v5215
    %v5220 = vadd.f32 %v5157, %v5216
    %v5221 = vadd.f32 %v5158, %v5217
    %v5222 = vadd.f32 %v5159, %v5218
    %s5223 = scalar_lea.vmem [#allocation9], 151
    %v5224 = vld [vmem:[%s5223] ss:$8 sm:$0x3]
    %v5226 = vperm.slane %v5224, 0
    %v5227 = vperm.slane %v5224, 1
    %v5230 = vmul.f32 %v5226, %v5198
    %v5231 = vmul.f32 %v5227, %v5206
    %v5232 = vmul.f32 %v5226, %v5199
    %v5233 = vmul.f32 %v5227, %v5207
    %v5234 = vadd.f32 %v5171, %v5230
    %v5235 = vadd.f32 %v5172, %v5231
    %v5236 = vadd.f32 %v5173, %v5232
    %v5237 = vadd.f32 %v5174, %v5233
    %s5238 = scalar_lea.vmem [#allocation9], 244
    %v5239 = vld [vmem:[%s5238] ss:$8 sm:$0x3]
    %v5241 = vperm.slane %v5239, 0
    %v5242 = vperm.slane %v5239, 1
    %v5245 = vmul.f32 %v5241, %v5198
    %v5246 = vmul.f32 %v5242, %v5206
    %v5247 = vmul.f32 %v5241, %v5199
    %v5248 = vmul.f32 %v5242, %v5207
    %v5249 = vadd.f32 %v5186, %v5245
    %v5250 = vadd.f32 %v5187, %v5246
    %v5251 = vadd.f32 %v5188, %v5247
    %v5252 = vadd.f32 %v5189, %v5248
    %5253 = vrot.lane.b32.xlu0 %v3059, 98
    %v5254 = vpop.permute.xlu0 %5253
    %5255 = vrot.lane.b32.xlu0 %v3060, 98
    %v5256 = vpop.permute.xlu0 %5255
    %5257 = vrot.lane.b32.xlu0 %v3061, 98
    %v5258 = vpop.permute.xlu0 %5257
    %5259 = vrot.lane.b32.xlu0 %v3062, 98
    %v5260 = vpop.permute.xlu0 %5259
    %v5261 = vsel %vm2355, %v5254, %v5256
    %v5262 = vsel %vm2355, %v5258, %v5260
    %v5269 = vsel %vm2355, %v5256, %v5254
    %v5270 = vsel %vm2355, %v5260, %v5258
    %s5271 = scalar_lea.vmem [#allocation9], 67
    %v5272 = vld [vmem:[%s5271] ss:$8 sm:$0x3]
    %v5274 = vperm.slane %v5272, 0
    %v5275 = vperm.slane %v5272, 1
    %v5278 = vmul.f32 %v5274, %v5261
    %v5279 = vmul.f32 %v5275, %v5269
    %v5280 = vmul.f32 %v5274, %v5262
    %v5281 = vmul.f32 %v5275, %v5270
    %v5282 = vadd.f32 %v5219, %v5278
    %v5283 = vadd.f32 %v5220, %v5279
    %v5284 = vadd.f32 %v5221, %v5280
    %v5285 = vadd.f32 %v5222, %v5281
    %s5286 = scalar_lea.vmem [#allocation9], 160
    %v5287 = vld [vmem:[%s5286] ss:$8 sm:$0x3]
    %v5289 = vperm.slane %v5287, 0
    %v5290 = vperm.slane %v5287, 1
    %v5293 = vmul.f32 %v5289, %v5261
    %v5294 = vmul.f32 %v5290, %v5269
    %v5295 = vmul.f32 %v5289, %v5262
    %v5296 = vmul.f32 %v5290, %v5270
    %v5297 = vadd.f32 %v5234, %v5293
    %v5298 = vadd.f32 %v5235, %v5294
    %v5299 = vadd.f32 %v5236, %v5295
    %v5300 = vadd.f32 %v5237, %v5296
    %s5301 = scalar_lea.vmem [#allocation9], 245
    %v5302 = vld [vmem:[%s5301] ss:$8 sm:$0x3]
    %v5304 = vperm.slane %v5302, 0
    %v5305 = vperm.slane %v5302, 1
    %v5308 = vmul.f32 %v5304, %v5261
    %v5309 = vmul.f32 %v5305, %v5269
    %v5310 = vmul.f32 %v5304, %v5262
    %v5311 = vmul.f32 %v5305, %v5270
    %v5312 = vadd.f32 %v5249, %v5308
    %v5313 = vadd.f32 %v5250, %v5309
    %v5314 = vadd.f32 %v5251, %v5310
    %v5315 = vadd.f32 %v5252, %v5311
    %5316 = vrot.lane.b32.xlu0 %v3059, 97
    %v5317 = vpop.permute.xlu0 %5316
    %5318 = vrot.lane.b32.xlu0 %v3060, 97
    %v5319 = vpop.permute.xlu0 %5318
    %5320 = vrot.lane.b32.xlu0 %v3061, 97
    %v5321 = vpop.permute.xlu0 %5320
    %5322 = vrot.lane.b32.xlu0 %v3062, 97
    %v5323 = vpop.permute.xlu0 %5322
    %v5324 = vsel %vm2419, %v5317, %v5319
    %v5325 = vsel %vm2419, %v5321, %v5323
    %v5332 = vsel %vm2419, %v5319, %v5317
    %v5333 = vsel %vm2419, %v5323, %v5321
    %s5334 = scalar_lea.vmem [#allocation9], 68
    %v5335 = vld [vmem:[%s5334] ss:$8 sm:$0x3]
    %v5337 = vperm.slane %v5335, 0
    %v5338 = vperm.slane %v5335, 1
    %v5341 = vmul.f32 %v5337, %v5324
    %v5342 = vmul.f32 %v5338, %v5332
    %v5343 = vmul.f32 %v5337, %v5325
    %v5344 = vmul.f32 %v5338, %v5333
    %v5345 = vadd.f32 %v5282, %v5341
    %v5346 = vadd.f32 %v5283, %v5342
    %v5347 = vadd.f32 %v5284, %v5343
    %v5348 = vadd.f32 %v5285, %v5344
    %s5349 = scalar_lea.vmem [#allocation9], 161
    %v5350 = vld [vmem:[%s5349] ss:$8 sm:$0x3]
    %v5352 = vperm.slane %v5350, 0
    %v5353 = vperm.slane %v5350, 1
    %v5356 = vmul.f32 %v5352, %v5324
    %v5357 = vmul.f32 %v5353, %v5332
    %v5358 = vmul.f32 %v5352, %v5325
    %v5359 = vmul.f32 %v5353, %v5333
    %v5360 = vadd.f32 %v5297, %v5356
    %v5361 = vadd.f32 %v5298, %v5357
    %v5362 = vadd.f32 %v5299, %v5358
    %v5363 = vadd.f32 %v5300, %v5359
    %s5364 = scalar_lea.vmem [#allocation9], 246
    %v5365 = vld [vmem:[%s5364] ss:$8 sm:$0x3]
    %v5367 = vperm.slane %v5365, 0
    %v5368 = vperm.slane %v5365, 1
    %v5371 = vmul.f32 %v5367, %v5324
    %v5372 = vmul.f32 %v5368, %v5332
    %v5373 = vmul.f32 %v5367, %v5325
    %v5374 = vmul.f32 %v5368, %v5333
    %v5375 = vadd.f32 %v5312, %v5371
    %v5376 = vadd.f32 %v5313, %v5372
    %v5377 = vadd.f32 %v5314, %v5373
    %v5378 = vadd.f32 %v5315, %v5374
    %5379 = vrot.lane.b32.xlu0 %v3059, 96
    %v5380 = vpop.permute.xlu0 %5379
    %5381 = vrot.lane.b32.xlu0 %v3060, 96
    %v5382 = vpop.permute.xlu0 %5381
    %5383 = vrot.lane.b32.xlu0 %v3061, 96
    %v5384 = vpop.permute.xlu0 %5383
    %5385 = vrot.lane.b32.xlu0 %v3062, 96
    %v5386 = vpop.permute.xlu0 %5385
    %v5387 = vsel %vm2483, %v5380, %v5382
    %v5388 = vsel %vm2483, %v5384, %v5386
    %v5395 = vsel %vm2483, %v5382, %v5380
    %v5396 = vsel %vm2483, %v5386, %v5384
    %s5397 = scalar_lea.vmem [#allocation9], 69
    %v5398 = vld [vmem:[%s5397] ss:$8 sm:$0x3]
    %v5400 = vperm.slane %v5398, 0
    %v5401 = vperm.slane %v5398, 1
    %v5404 = vmul.f32 %v5400, %v5387
    %v5405 = vmul.f32 %v5401, %v5395
    %v5406 = vmul.f32 %v5400, %v5388
    %v5407 = vmul.f32 %v5401, %v5396
    %v5408 = vadd.f32 %v5345, %v5404
    %v5409 = vadd.f32 %v5346, %v5405
    %v5410 = vadd.f32 %v5347, %v5406
    %v5411 = vadd.f32 %v5348, %v5407
    %s5412 = scalar_lea.vmem [#allocation9], 162
    %v5413 = vld [vmem:[%s5412] ss:$8 sm:$0x3]
    %v5415 = vperm.slane %v5413, 0
    %v5416 = vperm.slane %v5413, 1
    %v5419 = vmul.f32 %v5415, %v5387
    %v5420 = vmul.f32 %v5416, %v5395
    %v5421 = vmul.f32 %v5415, %v5388
    %v5422 = vmul.f32 %v5416, %v5396
    %v5423 = vadd.f32 %v5360, %v5419
    %v5424 = vadd.f32 %v5361, %v5420
    %v5425 = vadd.f32 %v5362, %v5421
    %v5426 = vadd.f32 %v5363, %v5422
    %s5427 = scalar_lea.vmem [#allocation9], 247
    %v5428 = vld [vmem:[%s5427] ss:$8 sm:$0x3]
    %v5430 = vperm.slane %v5428, 0
    %v5431 = vperm.slane %v5428, 1
    %v5434 = vmul.f32 %v5430, %v5387
    %v5435 = vmul.f32 %v5431, %v5395
    %v5436 = vmul.f32 %v5430, %v5388
    %v5437 = vmul.f32 %v5431, %v5396
    %v5438 = vadd.f32 %v5375, %v5434
    %v5439 = vadd.f32 %v5376, %v5435
    %v5440 = vadd.f32 %v5377, %v5436
    %v5441 = vadd.f32 %v5378, %v5437
    %5442 = vrot.lane.b32.xlu0 %v3059, 95
    %v5443 = vpop.permute.xlu0 %5442
    %5444 = vrot.lane.b32.xlu0 %v3060, 95
    %v5445 = vpop.permute.xlu0 %5444
    %5446 = vrot.lane.b32.xlu0 %v3061, 95
    %v5447 = vpop.permute.xlu0 %5446
    %5448 = vrot.lane.b32.xlu0 %v3062, 95
    %v5449 = vpop.permute.xlu0 %5448
    %v5450 = vsel %vm2547, %v5443, %v5445
    %v5451 = vsel %vm2547, %v5447, %v5449
    %v5458 = vsel %vm2547, %v5445, %v5443
    %v5459 = vsel %vm2547, %v5449, %v5447
    %s5460 = scalar_lea.vmem [#allocation9], 70
    %v5461 = vld [vmem:[%s5460] ss:$8 sm:$0x3]
    %v5463 = vperm.slane %v5461, 0
    %v5464 = vperm.slane %v5461, 1
    %v5467 = vmul.f32 %v5463, %v5450
    %v5468 = vmul.f32 %v5464, %v5458
    %v5469 = vmul.f32 %v5463, %v5451
    %v5470 = vmul.f32 %v5464, %v5459
    %v5471 = vadd.f32 %v5408, %v5467
    %v5472 = vadd.f32 %v5409, %v5468
    %v5473 = vadd.f32 %v5410, %v5469
    %v5474 = vadd.f32 %v5411, %v5470
    %s5475 = scalar_lea.vmem [#allocation9], 163
    %v5476 = vld [vmem:[%s5475] ss:$8 sm:$0x3]
    %v5478 = vperm.slane %v5476, 0
    %v5479 = vperm.slane %v5476, 1
    %v5482 = vmul.f32 %v5478, %v5450
    %v5483 = vmul.f32 %v5479, %v5458
    %v5484 = vmul.f32 %v5478, %v5451
    %v5485 = vmul.f32 %v5479, %v5459
    %v5486 = vadd.f32 %v5423, %v5482
    %v5487 = vadd.f32 %v5424, %v5483
    %v5488 = vadd.f32 %v5425, %v5484
    %v5489 = vadd.f32 %v5426, %v5485
    %s5490 = scalar_lea.vmem [#allocation9], 256
    %v5491 = vld [vmem:[%s5490] ss:$8 sm:$0x3]
    %v5493 = vperm.slane %v5491, 0
    %v5494 = vperm.slane %v5491, 1
    %v5497 = vmul.f32 %v5493, %v5450
    %v5498 = vmul.f32 %v5494, %v5458
    %v5499 = vmul.f32 %v5493, %v5451
    %v5500 = vmul.f32 %v5494, %v5459
    %v5501 = vadd.f32 %v5438, %v5497
    %v5502 = vadd.f32 %v5439, %v5498
    %v5503 = vadd.f32 %v5440, %v5499
    %v5504 = vadd.f32 %v5441, %v5500
    %5505 = vrot.lane.b32.xlu0 %v3059, 94
    %v5506 = vpop.permute.xlu0 %5505
    %5507 = vrot.lane.b32.xlu0 %v3060, 94
    %v5508 = vpop.permute.xlu0 %5507
    %5509 = vrot.lane.b32.xlu0 %v3061, 94
    %v5510 = vpop.permute.xlu0 %5509
    %5511 = vrot.lane.b32.xlu0 %v3062, 94
    %v5512 = vpop.permute.xlu0 %5511
    %v5513 = vsel %vm2611, %v5506, %v5508
    %v5514 = vsel %vm2611, %v5510, %v5512
    %v5521 = vsel %vm2611, %v5508, %v5506
    %v5522 = vsel %vm2611, %v5512, %v5510
    %s5523 = scalar_lea.vmem [#allocation9], 71
    %v5524 = vld [vmem:[%s5523] ss:$8 sm:$0x3]
    %v5526 = vperm.slane %v5524, 0
    %v5527 = vperm.slane %v5524, 1
    %v5530 = vmul.f32 %v5526, %v5513
    %v5531 = vmul.f32 %v5527, %v5521
    %v5532 = vmul.f32 %v5526, %v5514
    %v5533 = vmul.f32 %v5527, %v5522
    %v5534 = vadd.f32 %v5471, %v5530
    %v5535 = vadd.f32 %v5472, %v5531
    %v5536 = vadd.f32 %v5473, %v5532
    %v5537 = vadd.f32 %v5474, %v5533
    %s5538 = scalar_lea.vmem [#allocation9], 164
    %v5539 = vld [vmem:[%s5538] ss:$8 sm:$0x3]
    %v5541 = vperm.slane %v5539, 0
    %v5542 = vperm.slane %v5539, 1
    %v5545 = vmul.f32 %v5541, %v5513
    %v5546 = vmul.f32 %v5542, %v5521
    %v5547 = vmul.f32 %v5541, %v5514
    %v5548 = vmul.f32 %v5542, %v5522
    %v5549 = vadd.f32 %v5486, %v5545
    %v5550 = vadd.f32 %v5487, %v5546
    %v5551 = vadd.f32 %v5488, %v5547
    %v5552 = vadd.f32 %v5489, %v5548
    %s5553 = scalar_lea.vmem [#allocation9], 257
    %v5554 = vld [vmem:[%s5553] ss:$8 sm:$0x3]
    %v5556 = vperm.slane %v5554, 0
    %v5557 = vperm.slane %v5554, 1
    %v5560 = vmul.f32 %v5556, %v5513
    %v5561 = vmul.f32 %v5557, %v5521
    %v5562 = vmul.f32 %v5556, %v5514
    %v5563 = vmul.f32 %v5557, %v5522
    %v5564 = vadd.f32 %v5501, %v5560
    %v5565 = vadd.f32 %v5502, %v5561
    %v5566 = vadd.f32 %v5503, %v5562
    %v5567 = vadd.f32 %v5504, %v5563
    %5568 = vrot.lane.b32.xlu0 %v3059, 93
    %v5569 = vpop.permute.xlu0 %5568
    %5570 = vrot.lane.b32.xlu0 %v3060, 93
    %v5571 = vpop.permute.xlu0 %5570
    %5572 = vrot.lane.b32.xlu0 %v3061, 93
    %v5573 = vpop.permute.xlu0 %5572
    %5574 = vrot.lane.b32.xlu0 %v3062, 93
    %v5575 = vpop.permute.xlu0 %5574
    %v5576 = vsel %vm2675, %v5569, %v5571
    %v5577 = vsel %vm2675, %v5573, %v5575
    %v5584 = vsel %vm2675, %v5571, %v5569
    %v5585 = vsel %vm2675, %v5575, %v5573
    %s5586 = scalar_lea.vmem [#allocation9], 80
    %v5587 = vld [vmem:[%s5586] ss:$8 sm:$0x3]
    %v5589 = vperm.slane %v5587, 0
    %v5590 = vperm.slane %v5587, 1
    %v5593 = vmul.f32 %v5589, %v5576
    %v5594 = vmul.f32 %v5590, %v5584
    %v5595 = vmul.f32 %v5589, %v5577
    %v5596 = vmul.f32 %v5590, %v5585
    %v5597 = vadd.f32 %v5534, %v5593
    %v5598 = vadd.f32 %v5535, %v5594
    %v5599 = vadd.f32 %v5536, %v5595
    %v5600 = vadd.f32 %v5537, %v5596
    %s5601 = scalar_lea.vmem [#allocation9], 165
    %v5602 = vld [vmem:[%s5601] ss:$8 sm:$0x3]
    %v5604 = vperm.slane %v5602, 0
    %v5605 = vperm.slane %v5602, 1
    %v5608 = vmul.f32 %v5604, %v5576
    %v5609 = vmul.f32 %v5605, %v5584
    %v5610 = vmul.f32 %v5604, %v5577
    %v5611 = vmul.f32 %v5605, %v5585
    %v5612 = vadd.f32 %v5549, %v5608
    %v5613 = vadd.f32 %v5550, %v5609
    %v5614 = vadd.f32 %v5551, %v5610
    %v5615 = vadd.f32 %v5552, %v5611
    %s5616 = scalar_lea.vmem [#allocation9], 258
    %v5617 = vld [vmem:[%s5616] ss:$8 sm:$0x3]
    %v5619 = vperm.slane %v5617, 0
    %v5620 = vperm.slane %v5617, 1
    %v5623 = vmul.f32 %v5619, %v5576
    %v5624 = vmul.f32 %v5620, %v5584
    %v5625 = vmul.f32 %v5619, %v5577
    %v5626 = vmul.f32 %v5620, %v5585
    %v5627 = vadd.f32 %v5564, %v5623
    %v5628 = vadd.f32 %v5565, %v5624
    %v5629 = vadd.f32 %v5566, %v5625
    %v5630 = vadd.f32 %v5567, %v5626
    %5631 = vrot.lane.b32.xlu0 %v3059, 92
    %v5632 = vpop.permute.xlu0 %5631
    %5633 = vrot.lane.b32.xlu0 %v3060, 92
    %v5634 = vpop.permute.xlu0 %5633
    %5635 = vrot.lane.b32.xlu0 %v3061, 92
    %v5636 = vpop.permute.xlu0 %5635
    %5637 = vrot.lane.b32.xlu0 %v3062, 92
    %v5638 = vpop.permute.xlu0 %5637
    %v5639 = vsel %vm2739, %v5632, %v5634
    %v5640 = vsel %vm2739, %v5636, %v5638
    %v5647 = vsel %vm2739, %v5634, %v5632
    %v5648 = vsel %vm2739, %v5638, %v5636
    %s5649 = scalar_lea.vmem [#allocation9], 81
    %v5650 = vld [vmem:[%s5649] ss:$8 sm:$0x3]
    %v5652 = vperm.slane %v5650, 0
    %v5653 = vperm.slane %v5650, 1
    %v5656 = vmul.f32 %v5652, %v5639
    %v5657 = vmul.f32 %v5653, %v5647
    %v5658 = vmul.f32 %v5652, %v5640
    %v5659 = vmul.f32 %v5653, %v5648
    %v5660 = vadd.f32 %v5597, %v5656
    %v5661 = vadd.f32 %v5598, %v5657
    %v5662 = vadd.f32 %v5599, %v5658
    %v5663 = vadd.f32 %v5600, %v5659
    %s5664 = scalar_lea.vmem [#allocation9], 166
    %v5665 = vld [vmem:[%s5664] ss:$8 sm:$0x3]
    %v5667 = vperm.slane %v5665, 0
    %v5668 = vperm.slane %v5665, 1
    %v5671 = vmul.f32 %v5667, %v5639
    %v5672 = vmul.f32 %v5668, %v5647
    %v5673 = vmul.f32 %v5667, %v5640
    %v5674 = vmul.f32 %v5668, %v5648
    %v5675 = vadd.f32 %v5612, %v5671
    %v5676 = vadd.f32 %v5613, %v5672
    %v5677 = vadd.f32 %v5614, %v5673
    %v5678 = vadd.f32 %v5615, %v5674
    %s5679 = scalar_lea.vmem [#allocation9], 259
    %v5680 = vld [vmem:[%s5679] ss:$8 sm:$0x3]
    %v5682 = vperm.slane %v5680, 0
    %v5683 = vperm.slane %v5680, 1
    %v5686 = vmul.f32 %v5682, %v5639
    %v5687 = vmul.f32 %v5683, %v5647
    %v5688 = vmul.f32 %v5682, %v5640
    %v5689 = vmul.f32 %v5683, %v5648
    %v5690 = vadd.f32 %v5627, %v5686
    %v5691 = vadd.f32 %v5628, %v5687
    %v5692 = vadd.f32 %v5629, %v5688
    %v5693 = vadd.f32 %v5630, %v5689
    %5694 = vrot.lane.b32.xlu0 %v3059, 91
    %v5695 = vpop.permute.xlu0 %5694
    %5696 = vrot.lane.b32.xlu0 %v3060, 91
    %v5697 = vpop.permute.xlu0 %5696
    %5698 = vrot.lane.b32.xlu0 %v3061, 91
    %v5699 = vpop.permute.xlu0 %5698
    %5700 = vrot.lane.b32.xlu0 %v3062, 91
    %v5701 = vpop.permute.xlu0 %5700
    %v5702 = vsel %vm2803, %v5695, %v5697
    %v5703 = vsel %vm2803, %v5699, %v5701
    %v5710 = vsel %vm2803, %v5697, %v5695
    %v5711 = vsel %vm2803, %v5701, %v5699
    %s5712 = scalar_lea.vmem [#allocation9], 82
    %v5713 = vld [vmem:[%s5712] ss:$8 sm:$0x3]
    %v5715 = vperm.slane %v5713, 0
    %v5716 = vperm.slane %v5713, 1
    %v5719 = vmul.f32 %v5715, %v5702
    %v5720 = vmul.f32 %v5716, %v5710
    %v5721 = vmul.f32 %v5715, %v5703
    %v5722 = vmul.f32 %v5716, %v5711
    %v5723 = vadd.f32 %v5660, %v5719
    %v5724 = vadd.f32 %v5661, %v5720
    %v5725 = vadd.f32 %v5662, %v5721
    %v5726 = vadd.f32 %v5663, %v5722
    %s5727 = scalar_lea.vmem [#allocation9], 167
    %v5728 = vld [vmem:[%s5727] ss:$8 sm:$0x3]
    %v5730 = vperm.slane %v5728, 0
    %v5731 = vperm.slane %v5728, 1
    %v5734 = vmul.f32 %v5730, %v5702
    %v5735 = vmul.f32 %v5731, %v5710
    %v5736 = vmul.f32 %v5730, %v5703
    %v5737 = vmul.f32 %v5731, %v5711
    %v5738 = vadd.f32 %v5675, %v5734
    %v5739 = vadd.f32 %v5676, %v5735
    %v5740 = vadd.f32 %v5677, %v5736
    %v5741 = vadd.f32 %v5678, %v5737
    %s5742 = scalar_lea.vmem [#allocation9], 260
    %v5743 = vld [vmem:[%s5742] ss:$8 sm:$0x3]
    %v5745 = vperm.slane %v5743, 0
    %v5746 = vperm.slane %v5743, 1
    %v5749 = vmul.f32 %v5745, %v5702
    %v5750 = vmul.f32 %v5746, %v5710
    %v5751 = vmul.f32 %v5745, %v5703
    %v5752 = vmul.f32 %v5746, %v5711
    %v5753 = vadd.f32 %v5690, %v5749
    %v5754 = vadd.f32 %v5691, %v5750
    %v5755 = vadd.f32 %v5692, %v5751
    %v5756 = vadd.f32 %v5693, %v5752
    %5757 = vrot.lane.b32.xlu0 %v3059, 90
    %v5758 = vpop.permute.xlu0 %5757
    %5759 = vrot.lane.b32.xlu0 %v3060, 90
    %v5760 = vpop.permute.xlu0 %5759
    %5761 = vrot.lane.b32.xlu0 %v3061, 90
    %v5762 = vpop.permute.xlu0 %5761
    %5763 = vrot.lane.b32.xlu0 %v3062, 90
    %v5764 = vpop.permute.xlu0 %5763
    %v5765 = vsel %vm2867, %v5758, %v5760
    %v5766 = vsel %vm2867, %v5762, %v5764
    %v5773 = vsel %vm2867, %v5760, %v5758
    %v5774 = vsel %vm2867, %v5764, %v5762
    %s5775 = scalar_lea.vmem [#allocation9], 83
    %v5776 = vld [vmem:[%s5775] ss:$8 sm:$0x3]
    %v5778 = vperm.slane %v5776, 0
    %v5779 = vperm.slane %v5776, 1
    %v5782 = vmul.f32 %v5778, %v5765
    %v5783 = vmul.f32 %v5779, %v5773
    %v5784 = vmul.f32 %v5778, %v5766
    %v5785 = vmul.f32 %v5779, %v5774
    %v5786 = vadd.f32 %v5723, %v5782
    %v5787 = vadd.f32 %v5724, %v5783
    %v5788 = vadd.f32 %v5725, %v5784
    %v5789 = vadd.f32 %v5726, %v5785
    %s5790 = scalar_lea.vmem [#allocation9], 176
    %v5791 = vld [vmem:[%s5790] ss:$8 sm:$0x3]
    %v5793 = vperm.slane %v5791, 0
    %v5794 = vperm.slane %v5791, 1
    %v5797 = vmul.f32 %v5793, %v5765
    %v5798 = vmul.f32 %v5794, %v5773
    %v5799 = vmul.f32 %v5793, %v5766
    %v5800 = vmul.f32 %v5794, %v5774
    %v5801 = vadd.f32 %v5738, %v5797
    %v5802 = vadd.f32 %v5739, %v5798
    %v5803 = vadd.f32 %v5740, %v5799
    %v5804 = vadd.f32 %v5741, %v5800
    %s5805 = scalar_lea.vmem [#allocation9], 261
    %v5806 = vld [vmem:[%s5805] ss:$8 sm:$0x3]
    %v5808 = vperm.slane %v5806, 0
    %v5809 = vperm.slane %v5806, 1
    %v5812 = vmul.f32 %v5808, %v5765
    %v5813 = vmul.f32 %v5809, %v5773
    %v5814 = vmul.f32 %v5808, %v5766
    %v5815 = vmul.f32 %v5809, %v5774
    %v5816 = vadd.f32 %v5753, %v5812
    %v5817 = vadd.f32 %v5754, %v5813
    %v5818 = vadd.f32 %v5755, %v5814
    %v5819 = vadd.f32 %v5756, %v5815
    %5820 = vrot.lane.b32.xlu0 %v3059, 89
    %v5821 = vpop.permute.xlu0 %5820
    %5822 = vrot.lane.b32.xlu0 %v3060, 89
    %v5823 = vpop.permute.xlu0 %5822
    %5824 = vrot.lane.b32.xlu0 %v3061, 89
    %v5825 = vpop.permute.xlu0 %5824
    %5826 = vrot.lane.b32.xlu0 %v3062, 89
    %v5827 = vpop.permute.xlu0 %5826
    %v5828 = vsel %vm2931, %v5821, %v5823
    %v5829 = vsel %vm2931, %v5825, %v5827
    %v5836 = vsel %vm2931, %v5823, %v5821
    %v5837 = vsel %vm2931, %v5827, %v5825
    %s5838 = scalar_lea.vmem [#allocation9], 84
    %v5839 = vld [vmem:[%s5838] ss:$8 sm:$0x3]
    %v5841 = vperm.slane %v5839, 0
    %v5842 = vperm.slane %v5839, 1
    %v5845 = vmul.f32 %v5841, %v5828
    %v5846 = vmul.f32 %v5842, %v5836
    %v5847 = vmul.f32 %v5841, %v5829
    %v5848 = vmul.f32 %v5842, %v5837
    %v5849 = vadd.f32 %v5786, %v5845
    %v5850 = vadd.f32 %v5787, %v5846
    %v5851 = vadd.f32 %v5788, %v5847
    %v5852 = vadd.f32 %v5789, %v5848
    %s5853 = scalar_lea.vmem [#allocation9], 177
    %v5854 = vld [vmem:[%s5853] ss:$8 sm:$0x3]
    %v5856 = vperm.slane %v5854, 0
    %v5857 = vperm.slane %v5854, 1
    %v5860 = vmul.f32 %v5856, %v5828
    %v5861 = vmul.f32 %v5857, %v5836
    %v5862 = vmul.f32 %v5856, %v5829
    %v5863 = vmul.f32 %v5857, %v5837
    %v5864 = vadd.f32 %v5801, %v5860
    %v5865 = vadd.f32 %v5802, %v5861
    %v5866 = vadd.f32 %v5803, %v5862
    %v5867 = vadd.f32 %v5804, %v5863
    %s5868 = scalar_lea.vmem [#allocation9], 262
    %v5869 = vld [vmem:[%s5868] ss:$8 sm:$0x3]
    %v5871 = vperm.slane %v5869, 0
    %v5872 = vperm.slane %v5869, 1
    %v5875 = vmul.f32 %v5871, %v5828
    %v5876 = vmul.f32 %v5872, %v5836
    %v5877 = vmul.f32 %v5871, %v5829
    %v5878 = vmul.f32 %v5872, %v5837
    %v5879 = vadd.f32 %v5816, %v5875
    %v5880 = vadd.f32 %v5817, %v5876
    %v5881 = vadd.f32 %v5818, %v5877
    %v5882 = vadd.f32 %v5819, %v5878
    %v5885 = vrot.slane %v5851, 7
    %v5886 = vrot.slane %v5852, 7
    %v5891 = vrot.slane %v5849, 7
    %v5892 = vrot.slane %v5850, 7
    %v5893 = vsel %vm2995, %v5891, %v5885
    %v5894 = vsel %vm2995, %v5892, %v5886
    %v5899 = vsel %vm2995, %v5885, %v5891
    %v5900 = vsel %vm2995, %v5886, %v5892
    %v5901 = vsel %vm3008, %v5899, 0.0
    %v5902 = vsel %vm3008, %v5900, 0.0
    %v5903 = vsel %vm3009, %v5893, 0.0
    %v5904 = vsel %vm3009, %v5894, 0.0
    %v5905 = vadd.f32 %v5864, %v5901
    %v5906 = vadd.f32 %v5865, %v5902
    %v5907 = vadd.f32 %v5866, %v5903
    %v5908 = vadd.f32 %v5867, %v5904
    %v5913 = vrot.slane %v5879, 1
    %v5914 = vrot.slane %v5881, 1
    %v5915 = vsel %vm3022, %v5913, %v5914
    %v5916 = vrot.slane %v5880, 1
    %v5917 = vrot.slane %v5882, 1
    %v5918 = vsel %vm3022, %v5916, %v5917
    %v5925 = vsel %vm3022, %v5914, %v5913
    %v5926 = vsel %vm3022, %v5917, %v5916
    %v5927 = vsel %vm3039, %v5915, 0.0
    %v5928 = vsel %vm3039, %v5918, 0.0
    %v5929 = vsel %vm3040, %v5925, 0.0
    %v5930 = vsel %vm3040, %v5926, 0.0
    %v5931 = vadd.f32 %v5905, %v5927
    %v5932 = vadd.f32 %v5906, %v5928
    %v5933 = vadd.f32 %v5907, %v5929
    %v5934 = vadd.f32 %v5908, %v5930
    %v5935 = vstv %s81
    %v5936 = vmul.f32 %v5931, %v5935
    %v5937 = vmul.f32 %v5932, %v5935
    %v5938 = vmul.f32 %v5933, %v5935
    %v5939 = vmul.f32 %v5934, %v5935
    %v5940 = vstv %s82
    %v5941 = vadd.f32 %v5936, %v5940
    %v5942 = vadd.f32 %v5937, %v5940
    %v5943 = vadd.f32 %v5938, %v5940
    %v5944 = vadd.f32 %v5939, %v5940
    %v5945 = vadd.f32 %v5941, %v83
    %v5946 = vadd.f32 %v5942, %v84
    %v5947 = vadd.f32 %v5943, %v85
    %v5948 = vadd.f32 %v5944, %v86
    %v5949 = vmax.f32 %v5945, 0.0
    %v5950 = vmax.f32 %v5946, 0.0
    %v5951 = vmax.f32 %v5947, 0.0
    %v5952 = vmax.f32 %v5948, 0.0
    %5953 = vst [vmem:[#allocation10] sm:$0xff] %v5949
    %5954 = vst [vmem:[#allocation10 + $0x8] sm:$0xff] %v5950
    %5955 = vst [vmem:[#allocation10 + $0x10] sm:$0xff] %v5951
    %5956 = vst [vmem:[#allocation10 + $0x18] sm:$0xff] %v5952
    // Predicated region
    $region34: #{tpu_custom_call.1} parent=1 // pred_check
      _
    $region35: #{tpu_custom_call.1} parent=1 // pred_check_branch
      %5958 = sbr.rel (0) target = $region37
    $region36: #{tpu_custom_call.1} parent=1 // pred_region
      %5960 = vsyncadd [#allocation4], 0
      %s5961 = sshll.u32 [#allocation10], 4
      %s5962 = int_to_ptr.vmem [resolvable:$true] %s5961
      %s5963 = sshll.u32 %s4, 4
      %s5964 = int_to_ptr.hbm [resolvable:$true] %s5963
      %5969 = dma.vmem_to_hbm [thread:$0]  %s5962, 512, %s5964, [#allocation4], 256, 256, 16
    $region37: #{tpu_custom_call.1} parent=1 // pred_fallthru
      _
    // Predicated region
    $region38: #{tpu_custom_call.1} parent=1 // pred_check
      _
    $region39: #{tpu_custom_call.1} parent=1 // pred_check_branch
      %5971 = sbr.rel (0) target = $region41
    $region40: #{tpu_custom_call.1} parent=1 // pred_region
      %5973 = dma.done [#allocation4], 512
    $region41: #{tpu_custom_call.1} parent=1 // pred_fallthru
      _
    %5974 = vsyncpa [#allocation3], 1
    %5975 = vsyncpa [#allocation8], 1
    %5976 = vsyncpa [#allocation4], 1
    %5977 = vsyncpa [#allocation5], 1

</llo_original>
